<compile_context>
chip_gen: v7x
topology: tpu7x:2x2x1
jax: 0.10.0
libtpu: 0.0.40
codegen_flags: <defaults>
</compile_context>

<pallas_src>
import functools
import math

import numpy as np

import jax
import jax.numpy as jnp
from jax.experimental import pallas as pl
from jax.experimental.pallas import tpu as pltpu


def _round_up(x: int, m: int) -> int:
    return (x + m - 1) // m * m


def _head_constants(n_heads: int, head_dim: int):
    """Small constant 0/1 matrices that keep the head mixing on the MXU, lane-dense."""
    h, hd = n_heads, head_dim
    d = h * hd
    lanes = np.arange(d)
    # rep[c, i*hd + c] = 1  : replicates an (Tm, hd) head slice across all H head slots.
    rep = (lanes[None, :] % hd == np.arange(hd)[:, None]).astype(np.float32)      # (hd, D)
    # seg[i*hd + c, i] = 1  : per-head segment sum of a lane-dense (Tm, D) slab.
    seg = (lanes[:, None] // hd == np.arange(h)[None, :]).astype(np.float32)      # (D, H)
    # e[j*H + i, i*H + j] = 1 : scatters attn columns into the (Tm, H*H) output slab.
    e = np.zeros((h * h, h * h), np.float32)
    for j in range(h):
        for i in range(h):
            e[j * h + i, i * h + j] = 1.0
    return jnp.asarray(rep), jnp.asarray(seg), jnp.asarray(seg.T), jnp.asarray(e)


def prepare_weights(w_qkv, w_out, compute_dtype=jnp.bfloat16):
    """One-time weight prep: (out,in) -> (in,out) layout + MXU compute dtype."""
    return (jnp.asarray(w_qkv.T, dtype=compute_dtype),
            jnp.asarray(w_out.T, dtype=compute_dtype))


def _std_attn_kernel(x_ref, wqkv_ref, wout_ref, rep_ref, seg_ref, segt_ref, e_ref,
                     y_ref, attn_ref, *, n_heads, head_dim):
    """One grid step processes TILE_M token rows end-to-end.

    x_ref    : (TILE_M, D)        input rows (compute dtype, e.g. bf16)
    wqkv_ref : (D, 3D)            qkv weight, (in, out) layout
    wout_ref : (D, D)             out-projection weight, (in, out) layout
    rep/seg/segt/e : constant 0/1 helper matrices (see _head_constants)
    y_ref    : (TILE_M, D)        output rows
    attn_ref : (TILE_M, H*H)      attention, lane-dense (column = i*H + j)
    """
    h, hd = n_heads, head_dim
    d = h * hd
    tm = x_ref.shape[0]
    scale = 1.0 / math.sqrt(hd)

    x = x_ref[...]                                                    # (Tm, D)

    # --- QKV projection on the MXU (f32 accumulate) -------------------------------
    qkv = jnp.dot(x, wqkv_ref[...], preferred_element_type=jnp.float32)   # (Tm, 3D) f32
    q2d = qkv[:, 0 * d:1 * d] * scale                                 # (Tm, D)
    k2d = qkv[:, 1 * d:2 * d]
    v2d = qkv[:, 2 * d:3 * d]

    rep = rep_ref[...]        # (hd, D)
    seg = seg_ref[...]        # (D, H)
    segt = segt_ref[...]      # (H, D)
    e_all = e_ref[...]        # (H*H, H*H)

    # --- scores, one key head j at a time (lane-dense, no 3-D/4-D intermediates) ---
    # s[j][t, i] = scores[t, i, j]
    s = []
    for j in range(h):
        kjt = jnp.dot(k2d[:, j * hd:(j + 1) * hd], rep,
                      preferred_element_type=jnp.float32)             # (Tm, D): k[t, j, c] at lane i*hd+c
        s.append(jnp.dot(q2d * kjt, seg, preferred_element_type=jnp.float32))   # (Tm, H)

    # --- softmax over j == elementwise over the unrolled list (no cross-lane reduce)
    m = s[0]
    for j in range(1, h):
        m = jnp.maximum(m, s[j])
    e = [jnp.exp(sj - m) for sj in s]
    denom = e[0]
    for j in range(1, h):
        denom = denom + e[j]
    inv = pl.reciprocal(denom, approx=True)                           # EUP slot
    a = [ej * inv for ej in e]                                        # a[j][t, i] = attn[t, i, j]

    # --- attention output (lane-dense slab) and weighted values --------------------
    attn2d = jnp.zeros((tm, h * h), jnp.float32)
    out2d = jnp.zeros((tm, d), jnp.float32)
    for j in range(h):
        attn2d = attn2d + jnp.dot(a[j], e_all[j * h:(j + 1) * h, :],
                                  preferred_element_type=jnp.float32)
        wj = jnp.dot(a[j], segt, preferred_element_type=jnp.float32)  # (Tm, D): attn[t,i,j] at lane i*hd+c
        vjt = jnp.dot(v2d[:, j * hd:(j + 1) * hd], rep,
                      preferred_element_type=jnp.float32)             # (Tm, D): v[t,j,c]  at lane i*hd+c
        out2d = out2d + wj * vjt

    attn_ref[...] = attn2d.astype(attn_ref.dtype)

    # --- output projection on the MXU ----------------------------------------------
    y_ref[...] = jnp.dot(out2d.astype(x.dtype), wout_ref[...],
                         preferred_element_type=jnp.float32).astype(y_ref.dtype)


@functools.partial(jax.jit, static_argnames=("n_heads", "tile_m"))
def standard_attention(x, wqkv_t, wout_t, *, n_heads, tile_m=256):
    """x: (B, T, D); wqkv_t: (D, 3D); wout_t: (D, D) (already (in,out) layout, MXU dtype)."""
    B, T, D = x.shape
    assert D % n_heads == 0
    head_dim = D // n_heads
    BT = B * T
    cdt = wqkv_t.dtype

    # Row tile: multiple of 16 (bf16 sublane packing), capped by the (padded) row count.
    tile_m = int(min(tile_m, _round_up(BT, 16)))
    tile_m = _round_up(tile_m, 16)
    num_tiles = pl.cdiv(BT, tile_m)
    BT_pad = num_tiles * tile_m

    x_flat = x.reshape(BT, D).astype(cdt)
    if BT_pad != BT:
        x_flat = jnp.pad(x_flat, ((0, BT_pad - BT), (0, 0)))

    rep, seg, segt, e_all = _head_constants(n_heads, head_dim)

    kernel = functools.partial(_std_attn_kernel, n_heads=n_heads, head_dim=head_dim)
    hh = n_heads * n_heads

    y_pad, attn_pad = pl.pallas_call(
        kernel,
        out_shape=(
            jax.ShapeDtypeStruct((BT_pad, D), x.dtype),
            jax.ShapeDtypeStruct((BT_pad, hh), jnp.float32),
        ),
        grid_spec=pltpu.PrefetchScalarGridSpec(
            num_scalar_prefetch=0,
            grid=(num_tiles,),
            in_specs=[
                pl.BlockSpec((tile_m, D), lambda i: (i, 0)),          # x rows (pipelined)
                pl.BlockSpec((D, 3 * D), lambda i: (0, 0)),           # wqkv (resident)
                pl.BlockSpec((D, D), lambda i: (0, 0)),               # wout (resident)
                pl.BlockSpec((head_dim, D), lambda i: (0, 0)),        # rep
                pl.BlockSpec((D, n_heads), lambda i: (0, 0)),         # seg
                pl.BlockSpec((n_heads, D), lambda i: (0, 0)),         # segT
                pl.BlockSpec((hh, hh), lambda i: (0, 0)),             # scatter matrix
            ],
            out_specs=(
                pl.BlockSpec((tile_m, D), lambda i: (i, 0)),
                pl.BlockSpec((tile_m, hh), lambda i: (i, 0)),
            ),
        ),
        compiler_params=pltpu.CompilerParams(
            dimension_semantics=("parallel",),
            vmem_limit_bytes=32 * 1024 * 1024,
        ),
    )(x_flat, wqkv_t, wout_t, rep, seg, segt, e_all)

    y = y_pad[:BT].reshape(B, T, D)
    attn = attn_pad[:BT].reshape(B, T, n_heads, n_heads)
    return y, attn


def _reference(x, w_qkv, w_out, n_heads):
    """Pure-JAX f32 reproduction of the PyTorch forward (for the sanity check)."""
    B, T, D = x.shape
    hd = D // n_heads
    qkv = (x @ w_qkv.T).reshape(B, T, 3, n_heads, hd)
    q, k, v = qkv[:, :, 0], qkv[:, :, 1], qkv[:, :, 2]
    scores = jnp.einsum('bthd,btgd->bthg', q, k) / math.sqrt(hd)
    attn = jax.nn.softmax(scores, axis=-1)
    out = jnp.einsum('bthg,btgd->bthd', attn, v).reshape(B, T, D)
    return out @ w_out.T, attn


if __name__ == "__main__":
    # ValidationConfig defaults: dim=64, n_heads=8 (head_dim=8), batch_size=8, seq_len=16.
    D, H, B, T = 64, 8, 8, 16

    key = jax.random.PRNGKey(0)
    kx, kq, ko = jax.random.split(key, 3)
    x = jax.random.normal(kx, (B, T, D), dtype=jnp.float32)
    # PyTorch Linear layout: (out_features, in_features), no bias.
    w_qkv = jax.random.normal(kq, (3 * D, D), dtype=jnp.float32) * (1.0 / math.sqrt(D))
    w_out = jax.random.normal(ko, (D, D), dtype=jnp.float32) * (1.0 / math.sqrt(D))

    y_ref, attn_ref = _reference(x, w_qkv, w_out, H)

    # f32 compute path: tight check of the kernel's indexing / math.
    wq32, wo32 = prepare_weights(w_qkv, w_out, compute_dtype=jnp.float32)
    y32, a32 = standard_attention(x, wq32, wo32, n_heads=H, tile_m=64)  # grid of 2 row tiles
    jax.block_until_ready((y32, a32))
    assert jnp.allclose(y32, y_ref, atol=5e-3, rtol=5e-3)
    assert jnp.allclose(a32, attn_ref, atol=5e-3, rtol=5e-3)

    # bf16 MXU path (the recommended fast path): looser tolerances.
    wqbf, wobf = prepare_weights(w_qkv, w_out, compute_dtype=jnp.bfloat16)
    y, attn = standard_attention(x, wqbf, wobf, n_heads=H, tile_m=64)
    jax.block_until_ready((y, attn))
    assert jnp.allclose(y, y_ref, atol=1e-1, rtol=1e-1)
    assert jnp.allclose(attn, attn_ref, atol=7.5e-2, rtol=1e-1)

    print("KERNEL_OK")
</pallas_src>

<mosaic_0001>
module attributes {stable_mosaic.version = 11 : i64} {
  func.func @_std_attn_kernel(%arg0: i32, %arg1: memref<64x64xf32, #tpu.memory_space<vmem>>, %arg2: memref<64x192xf32, #tpu.memory_space<vmem>>, %arg3: memref<64x64xf32, #tpu.memory_space<vmem>>, %arg4: memref<8x64xf32, #tpu.memory_space<vmem>>, %arg5: memref<64x8xf32, #tpu.memory_space<vmem>>, %arg6: memref<8x64xf32, #tpu.memory_space<vmem>>, %arg7: memref<64x64xf32, #tpu.memory_space<vmem>>, %arg8: memref<64x64xf32, #tpu.memory_space<vmem>>, %arg9: memref<64x64xf32, #tpu.memory_space<vmem>>) attributes {dimension_semantics = [#tpu.dimension_semantics<parallel>], iteration_bounds = array<i64: 2>, scalar_prefetch = 0 : i64, scratch_operands = 0 : i64, tpu.core_type = #tpu.core_type<tc>, window_params = [{transform_indices = @transform_0, window_bounds = array<i64: 64, 64>}, {pipeline_mode = #tpu.pipeline_mode<synchronous>, transform_indices = @transform_1, window_bounds = array<i64: 64, 192>}, {pipeline_mode = #tpu.pipeline_mode<synchronous>, transform_indices = @transform_2, window_bounds = array<i64: 64, 64>}, {pipeline_mode = #tpu.pipeline_mode<synchronous>, transform_indices = @transform_3, window_bounds = array<i64: 8, 64>}, {pipeline_mode = #tpu.pipeline_mode<synchronous>, transform_indices = @transform_4, window_bounds = array<i64: 64, 8>}, {pipeline_mode = #tpu.pipeline_mode<synchronous>, transform_indices = @transform_5, window_bounds = array<i64: 8, 64>}, {pipeline_mode = #tpu.pipeline_mode<synchronous>, transform_indices = @transform_6, window_bounds = array<i64: 64, 64>}, {transform_indices = @transform_7, window_bounds = array<i64: 64, 64>}, {transform_indices = @transform_8, window_bounds = array<i64: 64, 64>}]} {
    %c0 = arith.constant 0 : index
    %c0_0 = arith.constant 0 : index
    %0 = vector.load %arg1[%c0, %c0_0] : memref<64x64xf32, #tpu.memory_space<vmem>>, vector<64x64xf32>
    %c0_1 = arith.constant 0 : index
    %c0_2 = arith.constant 0 : index
    %1 = vector.load %arg2[%c0_1, %c0_2] : memref<64x192xf32, #tpu.memory_space<vmem>>, vector<64x192xf32>
    %cst = arith.constant dense<0.000000e+00> : vector<64x192xf32>
    %2 = tpu.matmul %0, %1, %cst {dimension_numbers = #tpu.dot_dimension_numbers<[1], [0], [0], [1], [0, 0, 1, 1], [], []>} : vector<64x64xf32>, vector<64x192xf32>, vector<64x192xf32> -> vector<64x192xf32>
    %3 = vector.extract_strided_slice %2 {offsets = [0, 0], sizes = [64, 64], strides = [1, 1]} : vector<64x192xf32> to vector<64x64xf32>
    %cst_3 = arith.constant 0.353553385 : f32
    %4 = vector.broadcast %cst_3 : f32 to vector<64x64xf32>
    %5 = arith.mulf %3, %4 : vector<64x64xf32>
    %6 = vector.extract_strided_slice %2 {offsets = [0, 64], sizes = [64, 64], strides = [1, 1]} : vector<64x192xf32> to vector<64x64xf32>
    %7 = vector.extract_strided_slice %2 {offsets = [0, 128], sizes = [64, 64], strides = [1, 1]} : vector<64x192xf32> to vector<64x64xf32>
    %c0_4 = arith.constant 0 : index
    %c0_5 = arith.constant 0 : index
    %8 = vector.load %arg4[%c0_4, %c0_5] : memref<8x64xf32, #tpu.memory_space<vmem>>, vector<8x64xf32>
    %c0_6 = arith.constant 0 : index
    %c0_7 = arith.constant 0 : index
    %9 = vector.load %arg5[%c0_6, %c0_7] : memref<64x8xf32, #tpu.memory_space<vmem>>, vector<64x8xf32>
    %c0_8 = arith.constant 0 : index
    %c0_9 = arith.constant 0 : index
    %10 = vector.load %arg6[%c0_8, %c0_9] : memref<8x64xf32, #tpu.memory_space<vmem>>, vector<8x64xf32>
    %c0_10 = arith.constant 0 : index
    %c0_11 = arith.constant 0 : index
    %11 = vector.load %arg7[%c0_10, %c0_11] : memref<64x64xf32, #tpu.memory_space<vmem>>, vector<64x64xf32>
    %12 = vector.extract_strided_slice %6 {offsets = [0, 0], sizes = [64, 8], strides = [1, 1]} : vector<64x64xf32> to vector<64x8xf32>
    %cst_12 = arith.constant dense<0.000000e+00> : vector<64x64xf32>
    %13 = tpu.matmul %12, %8, %cst_12 {dimension_numbers = #tpu.dot_dimension_numbers<[1], [0], [0], [1], [0, 0, 1, 1], [], []>} : vector<64x8xf32>, vector<8x64xf32>, vector<64x64xf32> -> vector<64x64xf32>
    %14 = arith.mulf %5, %13 : vector<64x64xf32>
    %cst_13 = arith.constant dense<0.000000e+00> : vector<64x8xf32>
    %15 = tpu.matmul %14, %9, %cst_13 {dimension_numbers = #tpu.dot_dimension_numbers<[1], [0], [0], [1], [0, 0, 1, 1], [], []>} : vector<64x64xf32>, vector<64x8xf32>, vector<64x8xf32> -> vector<64x8xf32>
    %16 = vector.extract_strided_slice %6 {offsets = [0, 8], sizes = [64, 8], strides = [1, 1]} : vector<64x64xf32> to vector<64x8xf32>
    %cst_14 = arith.constant dense<0.000000e+00> : vector<64x64xf32>
    %17 = tpu.matmul %16, %8, %cst_14 {dimension_numbers = #tpu.dot_dimension_numbers<[1], [0], [0], [1], [0, 0, 1, 1], [], []>} : vector<64x8xf32>, vector<8x64xf32>, vector<64x64xf32> -> vector<64x64xf32>
    %18 = arith.mulf %5, %17 : vector<64x64xf32>
    %cst_15 = arith.constant dense<0.000000e+00> : vector<64x8xf32>
    %19 = tpu.matmul %18, %9, %cst_15 {dimension_numbers = #tpu.dot_dimension_numbers<[1], [0], [0], [1], [0, 0, 1, 1], [], []>} : vector<64x64xf32>, vector<64x8xf32>, vector<64x8xf32> -> vector<64x8xf32>
    %20 = vector.extract_strided_slice %6 {offsets = [0, 16], sizes = [64, 8], strides = [1, 1]} : vector<64x64xf32> to vector<64x8xf32>
    %cst_16 = arith.constant dense<0.000000e+00> : vector<64x64xf32>
    %21 = tpu.matmul %20, %8, %cst_16 {dimension_numbers = #tpu.dot_dimension_numbers<[1], [0], [0], [1], [0, 0, 1, 1], [], []>} : vector<64x8xf32>, vector<8x64xf32>, vector<64x64xf32> -> vector<64x64xf32>
    %22 = arith.mulf %5, %21 : vector<64x64xf32>
    %cst_17 = arith.constant dense<0.000000e+00> : vector<64x8xf32>
    %23 = tpu.matmul %22, %9, %cst_17 {dimension_numbers = #tpu.dot_dimension_numbers<[1], [0], [0], [1], [0, 0, 1, 1], [], []>} : vector<64x64xf32>, vector<64x8xf32>, vector<64x8xf32> -> vector<64x8xf32>
    %24 = vector.extract_strided_slice %6 {offsets = [0, 24], sizes = [64, 8], strides = [1, 1]} : vector<64x64xf32> to vector<64x8xf32>
    %cst_18 = arith.constant dense<0.000000e+00> : vector<64x64xf32>
    %25 = tpu.matmul %24, %8, %cst_18 {dimension_numbers = #tpu.dot_dimension_numbers<[1], [0], [0], [1], [0, 0, 1, 1], [], []>} : vector<64x8xf32>, vector<8x64xf32>, vector<64x64xf32> -> vector<64x64xf32>
    %26 = arith.mulf %5, %25 : vector<64x64xf32>
    %cst_19 = arith.constant dense<0.000000e+00> : vector<64x8xf32>
    %27 = tpu.matmul %26, %9, %cst_19 {dimension_numbers = #tpu.dot_dimension_numbers<[1], [0], [0], [1], [0, 0, 1, 1], [], []>} : vector<64x64xf32>, vector<64x8xf32>, vector<64x8xf32> -> vector<64x8xf32>
    %28 = vector.extract_strided_slice %6 {offsets = [0, 32], sizes = [64, 8], strides = [1, 1]} : vector<64x64xf32> to vector<64x8xf32>
    %cst_20 = arith.constant dense<0.000000e+00> : vector<64x64xf32>
    %29 = tpu.matmul %28, %8, %cst_20 {dimension_numbers = #tpu.dot_dimension_numbers<[1], [0], [0], [1], [0, 0, 1, 1], [], []>} : vector<64x8xf32>, vector<8x64xf32>, vector<64x64xf32> -> vector<64x64xf32>
    %30 = arith.mulf %5, %29 : vector<64x64xf32>
    %cst_21 = arith.constant dense<0.000000e+00> : vector<64x8xf32>
    %31 = tpu.matmul %30, %9, %cst_21 {dimension_numbers = #tpu.dot_dimension_numbers<[1], [0], [0], [1], [0, 0, 1, 1], [], []>} : vector<64x64xf32>, vector<64x8xf32>, vector<64x8xf32> -> vector<64x8xf32>
    %32 = vector.extract_strided_slice %6 {offsets = [0, 40], sizes = [64, 8], strides = [1, 1]} : vector<64x64xf32> to vector<64x8xf32>
    %cst_22 = arith.constant dense<0.000000e+00> : vector<64x64xf32>
    %33 = tpu.matmul %32, %8, %cst_22 {dimension_numbers = #tpu.dot_dimension_numbers<[1], [0], [0], [1], [0, 0, 1, 1], [], []>} : vector<64x8xf32>, vector<8x64xf32>, vector<64x64xf32> -> vector<64x64xf32>
    %34 = arith.mulf %5, %33 : vector<64x64xf32>
    %cst_23 = arith.constant dense<0.000000e+00> : vector<64x8xf32>
    %35 = tpu.matmul %34, %9, %cst_23 {dimension_numbers = #tpu.dot_dimension_numbers<[1], [0], [0], [1], [0, 0, 1, 1], [], []>} : vector<64x64xf32>, vector<64x8xf32>, vector<64x8xf32> -> vector<64x8xf32>
    %36 = vector.extract_strided_slice %6 {offsets = [0, 48], sizes = [64, 8], strides = [1, 1]} : vector<64x64xf32> to vector<64x8xf32>
    %cst_24 = arith.constant dense<0.000000e+00> : vector<64x64xf32>
    %37 = tpu.matmul %36, %8, %cst_24 {dimension_numbers = #tpu.dot_dimension_numbers<[1], [0], [0], [1], [0, 0, 1, 1], [], []>} : vector<64x8xf32>, vector<8x64xf32>, vector<64x64xf32> -> vector<64x64xf32>
    %38 = arith.mulf %5, %37 : vector<64x64xf32>
    %cst_25 = arith.constant dense<0.000000e+00> : vector<64x8xf32>
    %39 = tpu.matmul %38, %9, %cst_25 {dimension_numbers = #tpu.dot_dimension_numbers<[1], [0], [0], [1], [0, 0, 1, 1], [], []>} : vector<64x64xf32>, vector<64x8xf32>, vector<64x8xf32> -> vector<64x8xf32>
    %40 = vector.extract_strided_slice %6 {offsets = [0, 56], sizes = [64, 8], strides = [1, 1]} : vector<64x64xf32> to vector<64x8xf32>
    %cst_26 = arith.constant dense<0.000000e+00> : vector<64x64xf32>
    %41 = tpu.matmul %40, %8, %cst_26 {dimension_numbers = #tpu.dot_dimension_numbers<[1], [0], [0], [1], [0, 0, 1, 1], [], []>} : vector<64x8xf32>, vector<8x64xf32>, vector<64x64xf32> -> vector<64x64xf32>
    %42 = arith.mulf %5, %41 : vector<64x64xf32>
    %cst_27 = arith.constant dense<0.000000e+00> : vector<64x8xf32>
    %43 = tpu.matmul %42, %9, %cst_27 {dimension_numbers = #tpu.dot_dimension_numbers<[1], [0], [0], [1], [0, 0, 1, 1], [], []>} : vector<64x64xf32>, vector<64x8xf32>, vector<64x8xf32> -> vector<64x8xf32>
    %44 = arith.maximumf %15, %19 : vector<64x8xf32>
    %45 = arith.maximumf %44, %23 : vector<64x8xf32>
    %46 = arith.maximumf %45, %27 : vector<64x8xf32>
    %47 = arith.maximumf %46, %31 : vector<64x8xf32>
    %48 = arith.maximumf %47, %35 : vector<64x8xf32>
    %49 = arith.maximumf %48, %39 : vector<64x8xf32>
    %50 = arith.maximumf %49, %43 : vector<64x8xf32>
    %51 = arith.subf %15, %50 : vector<64x8xf32>
    %52 = math.exp %51 : vector<64x8xf32>
    %53 = arith.subf %19, %50 : vector<64x8xf32>
    %54 = math.exp %53 : vector<64x8xf32>
    %55 = arith.subf %23, %50 : vector<64x8xf32>
    %56 = math.exp %55 : vector<64x8xf32>
    %57 = arith.subf %27, %50 : vector<64x8xf32>
    %58 = math.exp %57 : vector<64x8xf32>
    %59 = arith.subf %31, %50 : vector<64x8xf32>
    %60 = math.exp %59 : vector<64x8xf32>
    %61 = arith.subf %35, %50 : vector<64x8xf32>
    %62 = math.exp %61 : vector<64x8xf32>
    %63 = arith.subf %39, %50 : vector<64x8xf32>
    %64 = math.exp %63 : vector<64x8xf32>
    %65 = arith.subf %43, %50 : vector<64x8xf32>
    %66 = math.exp %65 : vector<64x8xf32>
    %67 = arith.addf %52, %54 : vector<64x8xf32>
    %68 = arith.addf %67, %56 : vector<64x8xf32>
    %69 = arith.addf %68, %58 : vector<64x8xf32>
    %70 = arith.addf %69, %60 : vector<64x8xf32>
    %71 = arith.addf %70, %62 : vector<64x8xf32>
    %72 = arith.addf %71, %64 : vector<64x8xf32>
    %73 = arith.addf %72, %66 : vector<64x8xf32>
    %74 = tpu.reciprocal %73 {approx = true} : vector<64x8xf32> -> vector<64x8xf32>
    %75 = arith.mulf %52, %74 : vector<64x8xf32>
    %76 = arith.mulf %54, %74 : vector<64x8xf32>
    %77 = arith.mulf %56, %74 : vector<64x8xf32>
    %78 = arith.mulf %58, %74 : vector<64x8xf32>
    %79 = arith.mulf %60, %74 : vector<64x8xf32>
    %80 = arith.mulf %62, %74 : vector<64x8xf32>
    %81 = arith.mulf %64, %74 : vector<64x8xf32>
    %82 = arith.mulf %66, %74 : vector<64x8xf32>
    %cst_28 = arith.constant 0.000000e+00 : f32
    %83 = vector.broadcast %cst_28 : f32 to vector<64x64xf32>
    %cst_29 = arith.constant 0.000000e+00 : f32
    %84 = vector.broadcast %cst_29 : f32 to vector<64x64xf32>
    %85 = vector.extract_strided_slice %11 {offsets = [0, 0], sizes = [8, 64], strides = [1, 1]} : vector<64x64xf32> to vector<8x64xf32>
    %cst_30 = arith.constant dense<0.000000e+00> : vector<64x64xf32>
    %86 = tpu.matmul %75, %85, %cst_30 {dimension_numbers = #tpu.dot_dimension_numbers<[1], [0], [0], [1], [0, 0, 1, 1], [], []>} : vector<64x8xf32>, vector<8x64xf32>, vector<64x64xf32> -> vector<64x64xf32>
    %87 = arith.addf %83, %86 : vector<64x64xf32>
    %cst_31 = arith.constant dense<0.000000e+00> : vector<64x64xf32>
    %88 = tpu.matmul %75, %10, %cst_31 {dimension_numbers = #tpu.dot_dimension_numbers<[1], [0], [0], [1], [0, 0, 1, 1], [], []>} : vector<64x8xf32>, vector<8x64xf32>, vector<64x64xf32> -> vector<64x64xf32>
    %89 = vector.extract_strided_slice %7 {offsets = [0, 0], sizes = [64, 8], strides = [1, 1]} : vector<64x64xf32> to vector<64x8xf32>
    %cst_32 = arith.constant dense<0.000000e+00> : vector<64x64xf32>
    %90 = tpu.matmul %89, %8, %cst_32 {dimension_numbers = #tpu.dot_dimension_numbers<[1], [0], [0], [1], [0, 0, 1, 1], [], []>} : vector<64x8xf32>, vector<8x64xf32>, vector<64x64xf32> -> vector<64x64xf32>
    %91 = arith.mulf %88, %90 : vector<64x64xf32>
    %92 = arith.addf %84, %91 : vector<64x64xf32>
    %93 = vector.extract_strided_slice %11 {offsets = [8, 0], sizes = [8, 64], strides = [1, 1]} : vector<64x64xf32> to vector<8x64xf32>
    %cst_33 = arith.constant dense<0.000000e+00> : vector<64x64xf32>
    %94 = tpu.matmul %76, %93, %cst_33 {dimension_numbers = #tpu.dot_dimension_numbers<[1], [0], [0], [1], [0, 0, 1, 1], [], []>} : vector<64x8xf32>, vector<8x64xf32>, vector<64x64xf32> -> vector<64x64xf32>
    %95 = arith.addf %87, %94 : vector<64x64xf32>
    %cst_34 = arith.constant dense<0.000000e+00> : vector<64x64xf32>
    %96 = tpu.matmul %76, %10, %cst_34 {dimension_numbers = #tpu.dot_dimension_numbers<[1], [0], [0], [1], [0, 0, 1, 1], [], []>} : vector<64x8xf32>, vector<8x64xf32>, vector<64x64xf32> -> vector<64x64xf32>
    %97 = vector.extract_strided_slice %7 {offsets = [0, 8], sizes = [64, 8], strides = [1, 1]} : vector<64x64xf32> to vector<64x8xf32>
    %cst_35 = arith.constant dense<0.000000e+00> : vector<64x64xf32>
    %98 = tpu.matmul %97, %8, %cst_35 {dimension_numbers = #tpu.dot_dimension_numbers<[1], [0], [0], [1], [0, 0, 1, 1], [], []>} : vector<64x8xf32>, vector<8x64xf32>, vector<64x64xf32> -> vector<64x64xf32>
    %99 = arith.mulf %96, %98 : vector<64x64xf32>
    %100 = arith.addf %92, %99 : vector<64x64xf32>
    %101 = vector.extract_strided_slice %11 {offsets = [16, 0], sizes = [8, 64], strides = [1, 1]} : vector<64x64xf32> to vector<8x64xf32>
    %cst_36 = arith.constant dense<0.000000e+00> : vector<64x64xf32>
    %102 = tpu.matmul %77, %101, %cst_36 {dimension_numbers = #tpu.dot_dimension_numbers<[1], [0], [0], [1], [0, 0, 1, 1], [], []>} : vector<64x8xf32>, vector<8x64xf32>, vector<64x64xf32> -> vector<64x64xf32>
    %103 = arith.addf %95, %102 : vector<64x64xf32>
    %cst_37 = arith.constant dense<0.000000e+00> : vector<64x64xf32>
    %104 = tpu.matmul %77, %10, %cst_37 {dimension_numbers = #tpu.dot_dimension_numbers<[1], [0], [0], [1], [0, 0, 1, 1], [], []>} : vector<64x8xf32>, vector<8x64xf32>, vector<64x64xf32> -> vector<64x64xf32>
    %105 = vector.extract_strided_slice %7 {offsets = [0, 16], sizes = [64, 8], strides = [1, 1]} : vector<64x64xf32> to vector<64x8xf32>
    %cst_38 = arith.constant dense<0.000000e+00> : vector<64x64xf32>
    %106 = tpu.matmul %105, %8, %cst_38 {dimension_numbers = #tpu.dot_dimension_numbers<[1], [0], [0], [1], [0, 0, 1, 1], [], []>} : vector<64x8xf32>, vector<8x64xf32>, vector<64x64xf32> -> vector<64x64xf32>
    %107 = arith.mulf %104, %106 : vector<64x64xf32>
    %108 = arith.addf %100, %107 : vector<64x64xf32>
    %109 = vector.extract_strided_slice %11 {offsets = [24, 0], sizes = [8, 64], strides = [1, 1]} : vector<64x64xf32> to vector<8x64xf32>
    %cst_39 = arith.constant dense<0.000000e+00> : vector<64x64xf32>
    %110 = tpu.matmul %78, %109, %cst_39 {dimension_numbers = #tpu.dot_dimension_numbers<[1], [0], [0], [1], [0, 0, 1, 1], [], []>} : vector<64x8xf32>, vector<8x64xf32>, vector<64x64xf32> -> vector<64x64xf32>
    %111 = arith.addf %103, %110 : vector<64x64xf32>
    %cst_40 = arith.constant dense<0.000000e+00> : vector<64x64xf32>
    %112 = tpu.matmul %78, %10, %cst_40 {dimension_numbers = #tpu.dot_dimension_numbers<[1], [0], [0], [1], [0, 0, 1, 1], [], []>} : vector<64x8xf32>, vector<8x64xf32>, vector<64x64xf32> -> vector<64x64xf32>
    %113 = vector.extract_strided_slice %7 {offsets = [0, 24], sizes = [64, 8], strides = [1, 1]} : vector<64x64xf32> to vector<64x8xf32>
    %cst_41 = arith.constant dense<0.000000e+00> : vector<64x64xf32>
    %114 = tpu.matmul %113, %8, %cst_41 {dimension_numbers = #tpu.dot_dimension_numbers<[1], [0], [0], [1], [0, 0, 1, 1], [], []>} : vector<64x8xf32>, vector<8x64xf32>, vector<64x64xf32> -> vector<64x64xf32>
    %115 = arith.mulf %112, %114 : vector<64x64xf32>
    %116 = arith.addf %108, %115 : vector<64x64xf32>
    %117 = vector.extract_strided_slice %11 {offsets = [32, 0], sizes = [8, 64], strides = [1, 1]} : vector<64x64xf32> to vector<8x64xf32>
    %cst_42 = arith.constant dense<0.000000e+00> : vector<64x64xf32>
    %118 = tpu.matmul %79, %117, %cst_42 {dimension_numbers = #tpu.dot_dimension_numbers<[1], [0], [0], [1], [0, 0, 1, 1], [], []>} : vector<64x8xf32>, vector<8x64xf32>, vector<64x64xf32> -> vector<64x64xf32>
    %119 = arith.addf %111, %118 : vector<64x64xf32>
    %cst_43 = arith.constant dense<0.000000e+00> : vector<64x64xf32>
    %120 = tpu.matmul %79, %10, %cst_43 {dimension_numbers = #tpu.dot_dimension_numbers<[1], [0], [0], [1], [0, 0, 1, 1], [], []>} : vector<64x8xf32>, vector<8x64xf32>, vector<64x64xf32> -> vector<64x64xf32>
    %121 = vector.extract_strided_slice %7 {offsets = [0, 32], sizes = [64, 8], strides = [1, 1]} : vector<64x64xf32> to vector<64x8xf32>
    %cst_44 = arith.constant dense<0.000000e+00> : vector<64x64xf32>
    %122 = tpu.matmul %121, %8, %cst_44 {dimension_numbers = #tpu.dot_dimension_numbers<[1], [0], [0], [1], [0, 0, 1, 1], [], []>} : vector<64x8xf32>, vector<8x64xf32>, vector<64x64xf32> -> vector<64x64xf32>
    %123 = arith.mulf %120, %122 : vector<64x64xf32>
    %124 = arith.addf %116, %123 : vector<64x64xf32>
    %125 = vector.extract_strided_slice %11 {offsets = [40, 0], sizes = [8, 64], strides = [1, 1]} : vector<64x64xf32> to vector<8x64xf32>
    %cst_45 = arith.constant dense<0.000000e+00> : vector<64x64xf32>
    %126 = tpu.matmul %80, %125, %cst_45 {dimension_numbers = #tpu.dot_dimension_numbers<[1], [0], [0], [1], [0, 0, 1, 1], [], []>} : vector<64x8xf32>, vector<8x64xf32>, vector<64x64xf32> -> vector<64x64xf32>
    %127 = arith.addf %119, %126 : vector<64x64xf32>
    %cst_46 = arith.constant dense<0.000000e+00> : vector<64x64xf32>
    %128 = tpu.matmul %80, %10, %cst_46 {dimension_numbers = #tpu.dot_dimension_numbers<[1], [0], [0], [1], [0, 0, 1, 1], [], []>} : vector<64x8xf32>, vector<8x64xf32>, vector<64x64xf32> -> vector<64x64xf32>
    %129 = vector.extract_strided_slice %7 {offsets = [0, 40], sizes = [64, 8], strides = [1, 1]} : vector<64x64xf32> to vector<64x8xf32>
    %cst_47 = arith.constant dense<0.000000e+00> : vector<64x64xf32>
    %130 = tpu.matmul %129, %8, %cst_47 {dimension_numbers = #tpu.dot_dimension_numbers<[1], [0], [0], [1], [0, 0, 1, 1], [], []>} : vector<64x8xf32>, vector<8x64xf32>, vector<64x64xf32> -> vector<64x64xf32>
    %131 = arith.mulf %128, %130 : vector<64x64xf32>
    %132 = arith.addf %124, %131 : vector<64x64xf32>
    %133 = vector.extract_strided_slice %11 {offsets = [48, 0], sizes = [8, 64], strides = [1, 1]} : vector<64x64xf32> to vector<8x64xf32>
    %cst_48 = arith.constant dense<0.000000e+00> : vector<64x64xf32>
    %134 = tpu.matmul %81, %133, %cst_48 {dimension_numbers = #tpu.dot_dimension_numbers<[1], [0], [0], [1], [0, 0, 1, 1], [], []>} : vector<64x8xf32>, vector<8x64xf32>, vector<64x64xf32> -> vector<64x64xf32>
    %135 = arith.addf %127, %134 : vector<64x64xf32>
    %cst_49 = arith.constant dense<0.000000e+00> : vector<64x64xf32>
    %136 = tpu.matmul %81, %10, %cst_49 {dimension_numbers = #tpu.dot_dimension_numbers<[1], [0], [0], [1], [0, 0, 1, 1], [], []>} : vector<64x8xf32>, vector<8x64xf32>, vector<64x64xf32> -> vector<64x64xf32>
    %137 = vector.extract_strided_slice %7 {offsets = [0, 48], sizes = [64, 8], strides = [1, 1]} : vector<64x64xf32> to vector<64x8xf32>
    %cst_50 = arith.constant dense<0.000000e+00> : vector<64x64xf32>
    %138 = tpu.matmul %137, %8, %cst_50 {dimension_numbers = #tpu.dot_dimension_numbers<[1], [0], [0], [1], [0, 0, 1, 1], [], []>} : vector<64x8xf32>, vector<8x64xf32>, vector<64x64xf32> -> vector<64x64xf32>
    %139 = arith.mulf %136, %138 : vector<64x64xf32>
    %140 = arith.addf %132, %139 : vector<64x64xf32>
    %141 = vector.extract_strided_slice %11 {offsets = [56, 0], sizes = [8, 64], strides = [1, 1]} : vector<64x64xf32> to vector<8x64xf32>
    %cst_51 = arith.constant dense<0.000000e+00> : vector<64x64xf32>
    %142 = tpu.matmul %82, %141, %cst_51 {dimension_numbers = #tpu.dot_dimension_numbers<[1], [0], [0], [1], [0, 0, 1, 1], [], []>} : vector<64x8xf32>, vector<8x64xf32>, vector<64x64xf32> -> vector<64x64xf32>
    %143 = arith.addf %135, %142 : vector<64x64xf32>
    %cst_52 = arith.constant dense<0.000000e+00> : vector<64x64xf32>
    %144 = tpu.matmul %82, %10, %cst_52 {dimension_numbers = #tpu.dot_dimension_numbers<[1], [0], [0], [1], [0, 0, 1, 1], [], []>} : vector<64x8xf32>, vector<8x64xf32>, vector<64x64xf32> -> vector<64x64xf32>
    %145 = vector.extract_strided_slice %7 {offsets = [0, 56], sizes = [64, 8], strides = [1, 1]} : vector<64x64xf32> to vector<64x8xf32>
    %cst_53 = arith.constant dense<0.000000e+00> : vector<64x64xf32>
    %146 = tpu.matmul %145, %8, %cst_53 {dimension_numbers = #tpu.dot_dimension_numbers<[1], [0], [0], [1], [0, 0, 1, 1], [], []>} : vector<64x8xf32>, vector<8x64xf32>, vector<64x64xf32> -> vector<64x64xf32>
    %147 = arith.mulf %144, %146 : vector<64x64xf32>
    %148 = arith.addf %140, %147 : vector<64x64xf32>
    %c0_54 = arith.constant 0 : index
    %c0_55 = arith.constant 0 : index
    %149 = vector.load %arg9[%c0_54, %c0_55] : memref<64x64xf32, #tpu.memory_space<vmem>>, vector<64x64xf32>
    tpu.vector_store %arg9[%c0_54, %c0_55], %143 {strides = array<i32>} : memref<64x64xf32, #tpu.memory_space<vmem>>, vector<64x64xf32>,
    %c0_56 = arith.constant 0 : index
    %c0_57 = arith.constant 0 : index
    %150 = vector.load %arg3[%c0_56, %c0_57] : memref<64x64xf32, #tpu.memory_space<vmem>>, vector<64x64xf32>
    %cst_58 = arith.constant dense<0.000000e+00> : vector<64x64xf32>
    %151 = tpu.matmul %148, %150, %cst_58 {dimension_numbers = #tpu.dot_dimension_numbers<[1], [0], [0], [1], [0, 0, 1, 1], [], []>} : vector<64x64xf32>, vector<64x64xf32>, vector<64x64xf32> -> vector<64x64xf32>
    %c0_59 = arith.constant 0 : index
    %c0_60 = arith.constant 0 : index
    %152 = vector.load %arg8[%c0_59, %c0_60] : memref<64x64xf32, #tpu.memory_space<vmem>>, vector<64x64xf32>
    tpu.vector_store %arg8[%c0_59, %c0_60], %151 {strides = array<i32>} : memref<64x64xf32, #tpu.memory_space<vmem>>, vector<64x64xf32>,
    return
  }
  func.func @transform_0(%arg0: i32) -> (i32, i32) {
    %c0_i32 = arith.constant 0 : i32
    %c0_i32_0 = arith.constant 0 : i32
    return %arg0, %c0_i32 : i32, i32
  }
  func.func @transform_1(%arg0: i32) -> (i32, i32) {
    %c0_i32 = arith.constant 0 : i32
    %c0_i32_0 = arith.constant 0 : i32
    %c0_i32_1 = arith.constant 0 : i32
    return %c0_i32, %c0_i32_0 : i32, i32
  }
  func.func @transform_2(%arg0: i32) -> (i32, i32) {
    %c0_i32 = arith.constant 0 : i32
    %c0_i32_0 = arith.constant 0 : i32
    %c0_i32_1 = arith.constant 0 : i32
    return %c0_i32, %c0_i32_0 : i32, i32
  }
  func.func @transform_3(%arg0: i32) -> (i32, i32) {
    %c0_i32 = arith.constant 0 : i32
    %c0_i32_0 = arith.constant 0 : i32
    %c0_i32_1 = arith.constant 0 : i32
    return %c0_i32, %c0_i32_0 : i32, i32
  }
  func.func @transform_4(%arg0: i32) -> (i32, i32) {
    %c0_i32 = arith.constant 0 : i32
    %c0_i32_0 = arith.constant 0 : i32
    %c0_i32_1 = arith.constant 0 : i32
    return %c0_i32, %c0_i32_0 : i32, i32
  }
  func.func @transform_5(%arg0: i32) -> (i32, i32) {
    %c0_i32 = arith.constant 0 : i32
    %c0_i32_0 = arith.constant 0 : i32
    %c0_i32_1 = arith.constant 0 : i32
    return %c0_i32, %c0_i32_0 : i32, i32
  }
  func.func @transform_6(%arg0: i32) -> (i32, i32) {
    %c0_i32 = arith.constant 0 : i32
    %c0_i32_0 = arith.constant 0 : i32
    %c0_i32_1 = arith.constant 0 : i32
    return %c0_i32, %c0_i32_0 : i32, i32
  }
  func.func @transform_7(%arg0: i32) -> (i32, i32) {
    %c0_i32 = arith.constant 0 : i32
    %c0_i32_0 = arith.constant 0 : i32
    return %arg0, %c0_i32 : i32, i32
  }
  func.func @transform_8(%arg0: i32) -> (i32, i32) {
    %c0_i32 = arith.constant 0 : i32
    %c0_i32_0 = arith.constant 0 : i32
    return %arg0, %c0_i32 : i32, i32
  }
}

</mosaic_0001>

<llo_original>
// kernel: standard_attention.1
$region0: #{standard_attention.1}
  #allocation0 [shape = 'u32[]', space=smem, size = 0x4, offset = 0x4, fixed_abs, tag = 'smem constant byte address 0x4 - core index']
  #allocation1 [shape = 'u32[144,128]{1,0:T(1,128)}', space=vmem, size = 0x12000, scoped, tag = 'internal scratch']
  %s0 = inlined_call_operand.hbm [shape: f32[128,64], index: 0, kind: input, shape index: {}]
  %s1 = inlined_call_operand.hbm [shape: f32[64,192], index: 1, kind: input, shape index: {}]
  %s2 = inlined_call_operand.hbm [shape: f32[64,64], index: 2, kind: input, shape index: {}]
  %s3 = inlined_call_operand.hbm [shape: f32[8,64], index: 3, kind: input, shape index: {}]
  %s4 = inlined_call_operand.hbm [shape: f32[64,8], index: 4, kind: input, shape index: {}]
  %s5 = inlined_call_operand.vmem [shape: f32[8,64], index: 5, kind: input, shape index: {}]
  %s6 = inlined_call_operand.hbm [shape: f32[64,64], index: 6, kind: input, shape index: {}]
  %s7 = inlined_call_operand.hbm [shape: f32[128,64], index: 7, kind: output, shape index: {0}]
  %s8 = inlined_call_operand.vmem [shape: f32[128,64], index: 8, kind: output, shape index: {1}]
  %9 = xla_tuple %s7, %s8
  %s10 = sld [smem:[#allocation0]]
  $region93: #{standard_attention.1} parent=0
    _
  %s12 = ssub.s32 1, %s10
  %s13 = scalar_select 0, %s12, %s10
  $region1: #{standard_attention.1} parent=0
    #allocation2 [shape = 'u8[65536]{0}', space=vmem, size = 0x10000, scoped, tag = 'input window, operand 0']
    #allocation3 [shape = 's32[2]{0}', space=sflag, size = 0x8, scoped, tag = 'scoped memory for standard_attention.1']
    #allocation4 [shape = 's32[2]{0}', space=sflag, size = 0x8, scoped, tag = 'scoped memory for standard_attention.1']
    #allocation5 [shape = 'u8[65536]{0}', space=vmem, size = 0x10000, scoped, tag = 'input window, operand 1, single buffered']
    #allocation6 [shape = 's32[1]{0}', space=sflag, size = 0x4, scoped, tag = 'scoped memory for standard_attention.1']
    #allocation7 [shape = 'u8[32768]{0}', space=vmem, size = 0x8000, scoped, tag = 'input window, operand 2, single buffered']
    #allocation8 [shape = 'u8[4096]{0}', space=vmem, size = 0x1000, scoped, tag = 'input window, operand 3, single buffered']
    #allocation9 [shape = 's32[1]{0}', space=sflag, size = 0x4, scoped, tag = 'scoped memory for standard_attention.1']
    #allocation10 [shape = 'u8[32768]{0}', space=vmem, size = 0x8000, scoped, tag = 'input window, operand 4, single buffered']
    #allocation11 [shape = 'u8[32768]{0}', space=vmem, size = 0x8000, scoped, tag = 'input window, operand 6, single buffered']
    #allocation12 [shape = 's32[1]{0}', space=sflag, size = 0x4, scoped, tag = 'scoped memory for standard_attention.1']
    #allocation13 [shape = 'u8[65536]{0}', space=vmem, size = 0x10000, scoped, tag = 'output window, operand 0']
    %14 = vsyncpa [#allocation3], 0
    %s15 = scalar_lea.sflag [#allocation3], 1
    %16 = vsyncpa %s15, 0
    %17 = vsyncpa [#allocation6], 0
    %18 = vsyncpa [#allocation9], 0
    %19 = vsyncpa [#allocation12], 0
    %20 = vsyncpa [#allocation4], 0
    %s21 = scalar_lea.sflag [#allocation4], 1
    %22 = vsyncpa %s21, 0
    loop: start=0, step=1, limit=4
    $region2: #{standard_attention.1} parent=1 // loop_pre_header
      _
    $region3: #{standard_attention.1} parent=1 // loop_header
      %s24 = sphi 0, %s28
      %p25 = scmp.ge.s32.totalorder %s24, 4
      %s34 = sphi 0, %s36
      %s37 = sphi 0, %s34
      %s38 = sphi 0, %s37
      %s54 = sphi 0, %s38
      %s58 = sphi 0, %s58
      %s60 = sphi 0, %s58
      %s61 = sphi 0, %s60
      %s75 = sphi 0, %s61
      %s79 = sphi 0, %s79
      %s81 = sphi 0, %s79
      %s82 = sphi 0, %s81
      %s96 = sphi 0, %s82
      %s100 = sphi 0, %s100
      %s102 = sphi 0, %s100
      %s103 = sphi 0, %s102
      %s117 = sphi 0, %s103
      %s121 = sphi 0, %s121
      %s123 = sphi 0, %s121
      %s124 = sphi 0, %s123
      %s138 = sphi 0, %s124
      %s142 = sphi 0, %s142
      %s144 = sphi 0, %s142
      %s145 = sphi 0, %s144
      %s159 = sphi 0, %s145
      %s163 = sphi 0, %s163
      %s165 = sphi 0, %s163
      %s166 = sphi 0, %s165
      %s180 = sphi 0, %s166
      %s186 = sphi 0, %s188
      %s189 = sphi 0, %s186
      %s190 = sphi 0, %s189
      %s206 = sphi 0, %s190
      %s212 = sphi 0, %s214
      %s215 = sphi 0, %s212
      %s216 = sphi 0, %s215
      %s232 = sphi 0, %s216
    $region4: #{standard_attention.1} parent=1 // loop_header_branch
      %27 = sbr.rel (%p25) target = $region8
    $region5: #{standard_attention.1} parent=1 // loop_body
      %s29 = ssub.s32 %s24, 1
      %s30 = ssub.s32 %s24, 2
      %s31 = sadd.s32 %s24, 1
      %s32 = ssub.s32 %s24, %s31
      %p33 = scmp.eq.s32.totalorder %s32, 0
      %s35 = sadd.s32 %s34, 1
      %s36 = scalar_select %p33, %s34, %s35
      %p39 = pneg %p33
      %p40 = scmp.eq.s32.totalorder %s24, 1
      %p41 = por %p39, %p40
      %p42 = scmp.ne.s32.totalorder %s34, %s37
      %p43 = scmp.eq.s32.totalorder %s24, 0
      %p44 = por %p42, %p43
      %p45 = scmp.ne.s32.totalorder %s34, %s37
      %p46 = scmp.eq.s32.totalorder %s29, 1
      %p47 = por %p45, %p46
      %p48 = scmp.ne.s32.totalorder %s37, %s38
      %p49 = scmp.eq.s32.totalorder %s29, 0
      %p50 = por %p48, %p49
      %p51 = scmp.ne.s32.totalorder %s37, %s38
      %p52 = scmp.eq.s32.totalorder %s30, 1
      %p53 = por %p51, %p52
      %p55 = scmp.ne.s32.totalorder %s38, %s54
      %p56 = scmp.eq.s32.totalorder %s30, 0
      %p57 = por %p55, %p56
      %s59 = sadd.s32 %s58, 1
      %p62 = scmp.eq.s32.totalorder %s24, 1
      %p63 = scmp.ne.s32.totalorder %s58, %s60
      %p64 = scmp.eq.s32.totalorder %s24, 0
      %p65 = por %p63, %p64
      %p66 = scmp.ne.s32.totalorder %s58, %s60
      %p67 = scmp.eq.s32.totalorder %s29, 1
      %p68 = por %p66, %p67
      %p69 = scmp.ne.s32.totalorder %s60, %s61
      %p70 = scmp.eq.s32.totalorder %s29, 0
      %p71 = por %p69, %p70
      %p72 = scmp.ne.s32.totalorder %s60, %s61
      %p73 = scmp.eq.s32.totalorder %s30, 1
      %p74 = por %p72, %p73
      %p76 = scmp.ne.s32.totalorder %s61, %s75
      %p77 = scmp.eq.s32.totalorder %s30, 0
      %p78 = por %p76, %p77
      %s80 = sadd.s32 %s79, 1
      %p83 = scmp.eq.s32.totalorder %s24, 1
      %p84 = scmp.ne.s32.totalorder %s79, %s81
      %p85 = scmp.eq.s32.totalorder %s24, 0
      %p86 = por %p84, %p85
      %p87 = scmp.ne.s32.totalorder %s79, %s81
      %p88 = scmp.eq.s32.totalorder %s29, 1
      %p89 = por %p87, %p88
      %p90 = scmp.ne.s32.totalorder %s81, %s82
      %p91 = scmp.eq.s32.totalorder %s29, 0
      %p92 = por %p90, %p91
      %p93 = scmp.ne.s32.totalorder %s81, %s82
      %p94 = scmp.eq.s32.totalorder %s30, 1
      %p95 = por %p93, %p94
      %p97 = scmp.ne.s32.totalorder %s82, %s96
      %p98 = scmp.eq.s32.totalorder %s30, 0
      %p99 = por %p97, %p98
      %s101 = sadd.s32 %s100, 1
      %p104 = scmp.eq.s32.totalorder %s24, 1
      %p105 = scmp.ne.s32.totalorder %s100, %s102
      %p106 = scmp.eq.s32.totalorder %s24, 0
      %p107 = por %p105, %p106
      %p108 = scmp.ne.s32.totalorder %s100, %s102
      %p109 = scmp.eq.s32.totalorder %s29, 1
      %p110 = por %p108, %p109
      %p111 = scmp.ne.s32.totalorder %s102, %s103
      %p112 = scmp.eq.s32.totalorder %s29, 0
      %p113 = por %p111, %p112
      %p114 = scmp.ne.s32.totalorder %s102, %s103
      %p115 = scmp.eq.s32.totalorder %s30, 1
      %p116 = por %p114, %p115
      %p118 = scmp.ne.s32.totalorder %s103, %s117
      %p119 = scmp.eq.s32.totalorder %s30, 0
      %p120 = por %p118, %p119
      %s122 = sadd.s32 %s121, 1
      %p125 = scmp.eq.s32.totalorder %s24, 1
      %p126 = scmp.ne.s32.totalorder %s121, %s123
      %p127 = scmp.eq.s32.totalorder %s24, 0
      %p128 = por %p126, %p127
      %p129 = scmp.ne.s32.totalorder %s121, %s123
      %p130 = scmp.eq.s32.totalorder %s29, 1
      %p131 = por %p129, %p130
      %p132 = scmp.ne.s32.totalorder %s123, %s124
      %p133 = scmp.eq.s32.totalorder %s29, 0
      %p134 = por %p132, %p133
      %p135 = scmp.ne.s32.totalorder %s123, %s124
      %p136 = scmp.eq.s32.totalorder %s30, 1
      %p137 = por %p135, %p136
      %p139 = scmp.ne.s32.totalorder %s124, %s138
      %p140 = scmp.eq.s32.totalorder %s30, 0
      %p141 = por %p139, %p140
      %s143 = sadd.s32 %s142, 1
      %p146 = scmp.eq.s32.totalorder %s24, 1
      %p147 = scmp.ne.s32.totalorder %s142, %s144
      %p148 = scmp.eq.s32.totalorder %s24, 0
      %p149 = por %p147, %p148
      %p150 = scmp.ne.s32.totalorder %s142, %s144
      %p151 = scmp.eq.s32.totalorder %s29, 1
      %p152 = por %p150, %p151
      %p153 = scmp.ne.s32.totalorder %s144, %s145
      %p154 = scmp.eq.s32.totalorder %s29, 0
      %p155 = por %p153, %p154
      %p156 = scmp.ne.s32.totalorder %s144, %s145
      %p157 = scmp.eq.s32.totalorder %s30, 1
      %p158 = por %p156, %p157
      %p160 = scmp.ne.s32.totalorder %s145, %s159
      %p161 = scmp.eq.s32.totalorder %s30, 0
      %p162 = por %p160, %p161
      %s164 = sadd.s32 %s163, 1
      %p167 = scmp.eq.s32.totalorder %s24, 1
      %p168 = scmp.ne.s32.totalorder %s163, %s165
      %p169 = scmp.eq.s32.totalorder %s24, 0
      %p170 = por %p168, %p169
      %p171 = scmp.ne.s32.totalorder %s163, %s165
      %p172 = scmp.eq.s32.totalorder %s29, 1
      %p173 = por %p171, %p172
      %p174 = scmp.ne.s32.totalorder %s165, %s166
      %p175 = scmp.eq.s32.totalorder %s29, 0
      %p176 = por %p174, %p175
      %p177 = scmp.ne.s32.totalorder %s165, %s166
      %p178 = scmp.eq.s32.totalorder %s30, 1
      %p179 = por %p177, %p178
      %p181 = scmp.ne.s32.totalorder %s166, %s180
      %p182 = scmp.eq.s32.totalorder %s30, 0
      %p183 = por %p181, %p182
      %s184 = ssub.s32 %s24, %s31
      %p185 = scmp.eq.s32.totalorder %s184, 0
      %s187 = sadd.s32 %s186, 1
      %s188 = scalar_select %p185, %s186, %s187
      %p191 = pneg %p185
      %p192 = scmp.eq.s32.totalorder %s24, 1
      %p193 = por %p191, %p192
      %p194 = scmp.ne.s32.totalorder %s186, %s189
      %p195 = scmp.eq.s32.totalorder %s24, 0
      %p196 = por %p194, %p195
      %p197 = scmp.ne.s32.totalorder %s186, %s189
      %p198 = scmp.eq.s32.totalorder %s29, 1
      %p199 = por %p197, %p198
      %p200 = scmp.ne.s32.totalorder %s189, %s190
      %p201 = scmp.eq.s32.totalorder %s29, 0
      %p202 = por %p200, %p201
      %p203 = scmp.ne.s32.totalorder %s189, %s190
      %p204 = scmp.eq.s32.totalorder %s30, 1
      %p205 = por %p203, %p204
      %p207 = scmp.ne.s32.totalorder %s190, %s206
      %p208 = scmp.eq.s32.totalorder %s30, 0
      %p209 = por %p207, %p208
      %s210 = ssub.s32 %s24, %s31
      %p211 = scmp.eq.s32.totalorder %s210, 0
      %s213 = sadd.s32 %s212, 1
      %s214 = scalar_select %p211, %s212, %s213
      %p217 = pneg %p211
      %p218 = scmp.eq.s32.totalorder %s24, 1
      %p219 = por %p217, %p218
      %p220 = scmp.ne.s32.totalorder %s212, %s215
      %p221 = scmp.eq.s32.totalorder %s24, 0
      %p222 = por %p220, %p221
      %p223 = scmp.ne.s32.totalorder %s212, %s215
      %p224 = scmp.eq.s32.totalorder %s29, 1
      %p225 = por %p223, %p224
      %p226 = scmp.ne.s32.totalorder %s215, %s216
      %p227 = scmp.eq.s32.totalorder %s29, 0
      %p228 = por %p226, %p227
      %p229 = scmp.ne.s32.totalorder %s215, %s216
      %p230 = scmp.eq.s32.totalorder %s30, 1
      %p231 = por %p229, %p230
      %p233 = scmp.ne.s32.totalorder %s216, %s232
      %p234 = scmp.eq.s32.totalorder %s30, 0
      %p235 = por %p233, %p234
      %p236 = scmp.le.s32.totalorder 1, %s24
      %p237 = scmp.lt.s32.totalorder %s24, 3
      %p238 = pnand %p236, %p237
      %p239 = pneg %p238
      // Predicated region
      $region9: #{standard_attention.1} parent=5 // pred_check
        _
      $region10: #{standard_attention.1} parent=5 // pred_check_branch
        %241 = sbr.rel (%p238) target = $region12
      $region11: #{standard_attention.1} parent=5 // pred_region
        %s242 = ssub.s32 %s24, 1
        // Predicated region
        $region13: #{standard_attention.1} parent=11 // pred_check
          %p243 = pneg %p71
        $region14: #{standard_attention.1} parent=11 // pred_check_branch
          %245 = sbr.rel (%p243) target = $region16
        $region15: #{standard_attention.1} parent=11 // pred_region
          %s247 = ssub.s32 2048, 2048
          %248 = vsyncadd [#allocation6], %s247
          %s249 = sshll.u32 [#allocation5], 4
          %s250 = int_to_ptr.vmem [resolvable:$true] %s249
          %255 = dma.hbm_to_vmem [thread:$0]  %s1, 2048, %s250, [#allocation6], 256, 256, 16
        $region16: #{standard_attention.1} parent=11 // pred_fallthru
          _
        // Predicated region
        $region17: #{standard_attention.1} parent=11 // pred_check
          %p256 = pneg %p92
        $region18: #{standard_attention.1} parent=11 // pred_check_branch
          %258 = sbr.rel (%p256) target = $region20
        $region19: #{standard_attention.1} parent=11 // pred_region
          %s260 = ssub.s32 1024, 1024
          %261 = vsyncadd [#allocation6], %s260
          %s262 = sshll.u32 [#allocation7], 4
          %s263 = int_to_ptr.vmem [resolvable:$true] %s262
          %268 = dma.hbm_to_vmem [thread:$0]  %s2, 1024, %s263, [#allocation6], 128, 128, 8
        $region20: #{standard_attention.1} parent=11 // pred_fallthru
          _
        // Predicated region
        $region21: #{standard_attention.1} parent=11 // pred_check
          %p269 = pneg %p113
        $region22: #{standard_attention.1} parent=11 // pred_check_branch
          %271 = sbr.rel (%p269) target = $region24
        $region23: #{standard_attention.1} parent=11 // pred_region
          %s273 = ssub.s32 128, 128
          %274 = vsyncadd [#allocation9], %s273
          %s276 = sshll.u32 [#allocation8], 4
          %s277 = int_to_ptr.vmem [resolvable:$true] %s276
          %279 = dma.hbm_to_vmem [thread:$0]  %s3, 128, %s277, [#allocation9]
        $region24: #{standard_attention.1} parent=11 // pred_fallthru
          _
        // Predicated region
        $region25: #{standard_attention.1} parent=11 // pred_check
          %p280 = pneg %p134
        $region26: #{standard_attention.1} parent=11 // pred_check_branch
          %282 = sbr.rel (%p280) target = $region28
        $region27: #{standard_attention.1} parent=11 // pred_region
          %s284 = ssub.s32 1024, 1024
          %285 = vsyncadd [#allocation9], %s284
          %s286 = sshll.u32 [#allocation10], 4
          %s287 = int_to_ptr.vmem [resolvable:$true] %s286
          %292 = dma.hbm_to_vmem [thread:$0]  %s4, 1024, %s287, [#allocation9], 128, 128, 8
        $region28: #{standard_attention.1} parent=11 // pred_fallthru
          _
        // Predicated region
        $region29: #{standard_attention.1} parent=11 // pred_check
          %p293 = pneg %p155
        $region30: #{standard_attention.1} parent=11 // pred_check_branch
          %295 = sbr.rel (%p293) target = $region32
        $region31: #{standard_attention.1} parent=11 // pred_region
          _
        $region32: #{standard_attention.1} parent=11 // pred_fallthru
          _
        // Predicated region
        $region33: #{standard_attention.1} parent=11 // pred_check
          %p296 = pneg %p176
        $region34: #{standard_attention.1} parent=11 // pred_check_branch
          %298 = sbr.rel (%p296) target = $region36
        $region35: #{standard_attention.1} parent=11 // pred_region
          %s300 = ssub.s32 1024, 1024
          %301 = vsyncadd [#allocation12], %s300
          %s302 = sshll.u32 [#allocation11], 4
          %s303 = int_to_ptr.vmem [resolvable:$true] %s302
          %308 = dma.hbm_to_vmem [thread:$0]  %s6, 1024, %s303, [#allocation12], 128, 128, 8
        $region36: #{standard_attention.1} parent=11 // pred_fallthru
          _
      $region12: #{standard_attention.1} parent=5 // pred_fallthru
        _
      %p309 = scmp.lt.s32.totalorder %s24, 2
      // Predicated region
      $region37: #{standard_attention.1} parent=5 // pred_check
        %p310 = pneg %p309
      $region38: #{standard_attention.1} parent=5 // pred_check_branch
        %312 = sbr.rel (%p310) target = $region40
      $region39: #{standard_attention.1} parent=5 // pred_region
        // Predicated region
        $region41: #{standard_attention.1} parent=39 // pred_check
          %p313 = pneg %p44
        $region42: #{standard_attention.1} parent=39 // pred_check_branch
          %315 = sbr.rel (%p313) target = $region44
        $region43: #{standard_attention.1} parent=39 // pred_region
          %s316 = sand.u32 %s34, 1
          %s317 = scalar_lea.sflag [#allocation3], %s316
          %s318 = sand.u32 %s34, 1
          %s319 = smul.addr %s318, 64
          %s320 = scalar_lea.vmem [#allocation2], %s319
          %s321 = smul.u32 8, %s24
          %s323 = ssub.s32 1024, 1024
          %324 = vsyncadd %s317, %s323
          %s325 = smul.addr %s321, 128
          %s326 = scalar_lea.hbm %s0, %s325
          %s327 = sshll.u32 %s320, 4
          %s328 = int_to_ptr.vmem [resolvable:$true] %s327
          %333 = dma.hbm_to_vmem [thread:$0]  %s326, 1024, %s328, %s317, 128, 128, 8
        $region44: #{standard_attention.1} parent=39 // pred_fallthru
          _
      $region40: #{standard_attention.1} parent=5 // pred_fallthru
        _
      %p334 = scmp.le.s32.totalorder 1, %s24
      %p335 = scmp.lt.s32.totalorder %s24, 3
      %p336 = pnand %p334, %p335
      %p337 = pneg %p336
      // Predicated region
      $region45: #{standard_attention.1} parent=5 // pred_check
        _
      $region46: #{standard_attention.1} parent=5 // pred_check_branch
        %339 = sbr.rel (%p336) target = $region48
      $region47: #{standard_attention.1} parent=5 // pred_region
        %s340 = ssub.s32 %s24, 1
        %s341 = sand.u32 %s37, 1
        %s342 = scalar_lea.sflag [#allocation3], %s341
        %s343 = sand.u32 %s37, 1
        %s344 = smul.addr %s343, 64
        %s345 = scalar_lea.vmem [#allocation2], %s344
        // Predicated region
        $region49: #{standard_attention.1} parent=47 // pred_check
          %p346 = pneg %p50
        $region50: #{standard_attention.1} parent=47 // pred_check_branch
          %348 = sbr.rel (%p346) target = $region52
        $region51: #{standard_attention.1} parent=47 // pred_region
          %349 = dma.done %s342, 1024
        $region52: #{standard_attention.1} parent=47 // pred_fallthru
          _
        // Predicated region
        $region53: #{standard_attention.1} parent=47 // pred_check
          %p350 = pneg %p71
        $region54: #{standard_attention.1} parent=47 // pred_check_branch
          %352 = sbr.rel (%p350) target = $region56
        $region55: #{standard_attention.1} parent=47 // pred_region
          %353 = dma.done [#allocation6], 2048
        $region56: #{standard_attention.1} parent=47 // pred_fallthru
          _
        // Predicated region
        $region57: #{standard_attention.1} parent=47 // pred_check
          %p354 = pneg %p92
        $region58: #{standard_attention.1} parent=47 // pred_check_branch
          %356 = sbr.rel (%p354) target = $region60
        $region59: #{standard_attention.1} parent=47 // pred_region
          %357 = dma.done [#allocation6], 1024
        $region60: #{standard_attention.1} parent=47 // pred_fallthru
          _
        // Predicated region
        $region61: #{standard_attention.1} parent=47 // pred_check
          %p358 = pneg %p113
        $region62: #{standard_attention.1} parent=47 // pred_check_branch
          %360 = sbr.rel (%p358) target = $region64
        $region63: #{standard_attention.1} parent=47 // pred_region
          %361 = dma.done [#allocation9], 128
        $region64: #{standard_attention.1} parent=47 // pred_fallthru
          _
        // Predicated region
        $region65: #{standard_attention.1} parent=47 // pred_check
          %p362 = pneg %p134
        $region66: #{standard_attention.1} parent=47 // pred_check_branch
          %364 = sbr.rel (%p362) target = $region68
        $region67: #{standard_attention.1} parent=47 // pred_region
          %365 = dma.done [#allocation9], 1024
        $region68: #{standard_attention.1} parent=47 // pred_fallthru
          _
        // Predicated region
        $region69: #{standard_attention.1} parent=47 // pred_check
          %p366 = pneg %p176
        $region70: #{standard_attention.1} parent=47 // pred_check_branch
          %368 = sbr.rel (%p366) target = $region72
        $region71: #{standard_attention.1} parent=47 // pred_region
          %369 = dma.done [#allocation12], 1024
        $region72: #{standard_attention.1} parent=47 // pred_fallthru
          _
        %s370 = sand.u32 %s37, 1
        %s371 = scalar_lea.sflag [#allocation3], %s370
        %s372 = sand.u32 %s37, 1
        %s373 = smul.addr %s372, 64
        %s374 = scalar_lea.vmem [#allocation2], %s373
        %p375 = pneg %p50
        %p376 = pneg %p47
        %p377 = pneg %p71
        %p378 = pneg %p68
        %p379 = pneg %p92
        %p380 = pneg %p89
        %p381 = pneg %p113
        %p382 = pneg %p110
        %p383 = pneg %p134
        %p384 = pneg %p131
        %p385 = pneg %p155
        %p386 = pneg %p152
        %p387 = pneg %p176
        %p388 = pneg %p173
        %p389 = pneg %p202
        %p390 = pneg %p199
        %s391 = sand.u32 %s189, 1
        %s392 = scalar_lea.sflag [#allocation4], %s391
        %s393 = sand.u32 %s189, 1
        %s394 = smul.addr %s393, 64
        %s395 = scalar_lea.vmem [#allocation13], %s394
        %p396 = pneg %p228
        %p397 = pneg %p225
        %s398 = smul.u32 8, %s29
        %p399 = scmp.lt.s32.totalorder %s398, 15
        %s400 = scalar_select %p399, %s398, 15
        %s401 = smul.addr %s400, 8
        %s402 = scalar_lea.vmem %s8, %s401
        %s403 = smul.u32 8, %s29
        %s404 = smul.u32 8, %s29
        %s405 = smul.u32 8, %s29
        %p406 = scmp.lt.s32.totalorder %s405, 15
        %s407 = scalar_select %p406, %s405, 15
        %s408 = smul.addr %s407, 8
        %s409 = scalar_lea.vmem %s8, %s408
        %s410 = smul.u32 8, %s29
        %v411 = vld [vmem:[%s345] sm:$0xff]
        %v412 = vld [vmem:[%s345 + $0x8] sm:$0xff]
        %v413 = vld [vmem:[%s345 + $0x10] sm:$0xff]
        %v414 = vld [vmem:[%s345 + $0x18] sm:$0xff]
        %v415 = vld [vmem:[%s345 + $0x20] sm:$0xff]
        %v416 = vld [vmem:[%s345 + $0x28] sm:$0xff]
        %v417 = vld [vmem:[%s345 + $0x30] sm:$0xff]
        %v418 = vld [vmem:[%s345 + $0x38] sm:$0xff]
        %v419 = vld [vmem:[#allocation5] sm:$0xff]
        %v420 = vld [vmem:[#allocation5 + $0x8] sm:$0xff]
        %v421 = vld [vmem:[#allocation5 + $0x10] sm:$0xff]
        %v422 = vld [vmem:[#allocation5 + $0x18] sm:$0xff]
        %v423 = vld [vmem:[#allocation5 + $0x20] sm:$0xff]
        %v424 = vld [vmem:[#allocation5 + $0x28] sm:$0xff]
        %v425 = vld [vmem:[#allocation5 + $0x30] sm:$0xff]
        %v426 = vld [vmem:[#allocation5 + $0x38] sm:$0xff]
        %v427 = vld [vmem:[#allocation5 + $0x40] sm:$0xff]
        %v428 = vld [vmem:[#allocation5 + $0x48] sm:$0xff]
        %v429 = vld [vmem:[#allocation5 + $0x50] sm:$0xff]
        %v430 = vld [vmem:[#allocation5 + $0x58] sm:$0xff]
        %v431 = vld [vmem:[#allocation5 + $0x60] sm:$0xff]
        %v432 = vld [vmem:[#allocation5 + $0x68] sm:$0xff]
        %v433 = vld [vmem:[#allocation5 + $0x70] sm:$0xff]
        %v434 = vld [vmem:[#allocation5 + $0x78] sm:$0xff]
        %vm435 = vcmask 523264
        %v437 = vsel %vm435, %v411, 0
        %v440 = vsel %vm435, %v412, 0
        %v443 = vsel %vm435, %v413, 0
        %v446 = vsel %vm435, %v414, 0
        %v449 = vsel %vm435, %v415, 0
        %v452 = vsel %vm435, %v416, 0
        %v455 = vsel %vm435, %v417, 0
        %v458 = vsel %vm435, %v418, 0
        %460 = vmatprep.subr.mxu0 %v420
        %461 = vmatpush1.msra.mxu0 %v419
        %462 = vmatprep.subr.mxu0 %v422
        %463 = vmatpush1.msra.mxu0 %v421
        %464 = vmatprep.subr.mxu0 %v424
        %465 = vmatpush1.msra.mxu0 %v423
        %466 = vmatprep.subr.mxu0 %v426
        %467 = vmatpush1.msra.mxu0 %v425
        %468 = vmatprep.subr.mxu0 %v428
        %469 = vmatpush1.msra.mxu0 %v427
        %470 = vmatprep.subr.mxu0 %v430
        %471 = vmatpush1.msra.mxu0 %v429
        %472 = vmatprep.subr.mxu0 %v432
        %473 = vmatpush1.msra.mxu0 %v431
        %474 = vmatprep.subr.mxu0 %v434
        %475 = vmatpush1.msra.mxu0 %v433
        %476 = vmatprep.subr.mxu0 0.0
        %477 = vmatpush1.msra.mxu0 0.0
        %478 = vmatprep.subr.mxu0 0.0
        %479 = vmatpush1.msra.mxu0 0.0
        %480 = vmatprep.subr.mxu0 0.0
        %481 = vmatpush1.msra.mxu0 0.0
        %482 = vmatprep.subr.mxu0 0.0
        %483 = vmatpush1.msra.mxu0 0.0
        %484 = vmatprep.subr.mxu0 0.0
        %485 = vmatpush1.msra.mxu0 0.0
        %486 = vmatprep.subr.mxu0 0.0
        %487 = vmatpush1.msra.mxu0 0.0
        %488 = vmatprep.subr.mxu0 0.0
        %489 = vmatpush1.msra.mxu0 0.0
        %490 = vmatprep.subr.mxu0 0.0
        %491 = vmatpush1.msra.mxu0 0.0
        %492 = vmatprep.subr.mxu0 0.0
        %493 = vmatpush1.msra.mxu0 0.0
        %494 = vmatprep.subr.mxu0 0.0
        %495 = vmatpush1.msra.mxu0 0.0
        %496 = vmatprep.subr.mxu0 0.0
        %497 = vmatpush1.msra.mxu0 0.0
        %498 = vmatprep.subr.mxu0 0.0
        %499 = vmatpush1.msra.mxu0 0.0
        %500 = vmatprep.subr.mxu0 0.0
        %501 = vmatpush1.msra.mxu0 0.0
        %502 = vmatprep.subr.mxu0 0.0
        %503 = vmatpush1.msra.mxu0 0.0
        %504 = vmatprep.subr.mxu0 0.0
        %505 = vmatpush1.msra.mxu0 0.0
        %506 = vmatprep.subr.mxu0 0.0
        %507 = vmatpush1.msra.mxu0 0.0
        %508 = vmatprep.subr.mxu0 0.0
        %509 = vmatpush1.msra.mxu0 0.0
        %510 = vmatprep.subr.mxu0 0.0
        %511 = vmatpush1.msra.mxu0 0.0
        %512 = vmatprep.subr.mxu0 0.0
        %513 = vmatpush1.msra.mxu0 0.0
        %514 = vmatprep.subr.mxu0 0.0
        %515 = vmatpush1.msra.mxu0 0.0
        %516 = vmatprep.subr.mxu0 0.0
        %517 = vmatpush1.msra.mxu0 0.0
        %518 = vmatprep.subr.mxu0 0.0
        %519 = vmatpush1.msra.mxu0 0.0
        %520 = vmatprep.subr.mxu0 0.0
        %521 = vmatpush1.msra.mxu0 0.0
        %522 = vmatprep.subr.mxu0 0.0
        %523 = vmatpush1.msra.mxu0 0.0
        %524 = vmatprep.mubr.f32.mxu0 0.0
        %525 = vmatmul.mubr.f32.gmra.mrb[0].mxu0 %v437
        %v526 = vpop.f32.mrb[0].mxu0
        %v527 = vadd.f32 0.0, %v526
        %v528 = vpop.f32.mrb[0].mxu0
        %v529 = vadd.f32 0.0, %v528
        %530 = vmatprep.mubr.f32.mxu0 0.0
        %531 = vmatmul.mubr.f32.gmra.mrb[0].mxu0 %v440
        %v532 = vpop.f32.mrb[0].mxu0
        %v533 = vadd.f32 0.0, %v532
        %v534 = vpop.f32.mrb[0].mxu0
        %v535 = vadd.f32 0.0, %v534
        %536 = vmatprep.mubr.f32.mxu0 0.0
        %537 = vmatmul.mubr.f32.gmra.mrb[0].mxu0 %v443
        %v538 = vpop.f32.mrb[0].mxu0
        %v539 = vadd.f32 0.0, %v538
        %v540 = vpop.f32.mrb[0].mxu0
        %v541 = vadd.f32 0.0, %v540
        %542 = vmatprep.mubr.f32.mxu0 0.0
        %543 = vmatmul.mubr.f32.gmra.mrb[0].mxu0 %v446
        %v544 = vpop.f32.mrb[0].mxu0
        %v545 = vadd.f32 0.0, %v544
        %v546 = vpop.f32.mrb[0].mxu0
        %v547 = vadd.f32 0.0, %v546
        %548 = vmatprep.mubr.f32.mxu0 0.0
        %549 = vmatmul.mubr.f32.gmra.mrb[0].mxu0 %v449
        %v550 = vpop.f32.mrb[0].mxu0
        %v551 = vadd.f32 0.0, %v550
        %v552 = vpop.f32.mrb[0].mxu0
        %v553 = vadd.f32 0.0, %v552
        %554 = vmatprep.mubr.f32.mxu0 0.0
        %555 = vmatmul.mubr.f32.gmra.mrb[0].mxu0 %v452
        %v556 = vpop.f32.mrb[0].mxu0
        %v557 = vadd.f32 0.0, %v556
        %v558 = vpop.f32.mrb[0].mxu0
        %v559 = vadd.f32 0.0, %v558
        %560 = vmatprep.mubr.f32.mxu0 0.0
        %561 = vmatmul.mubr.f32.gmra.mrb[0].mxu0 %v455
        %v562 = vpop.f32.mrb[0].mxu0
        %v563 = vadd.f32 0.0, %v562
        %v564 = vpop.f32.mrb[0].mxu0
        %v565 = vadd.f32 0.0, %v564
        %566 = vmatprep.mubr.f32.mxu0 0.0
        %567 = vmatmul.mubr.f32.gmra.mrb[0].mxu0 %v458
        %v568 = vpop.f32.mrb[0].mxu0
        %v569 = vadd.f32 0.0, %v568
        %v570 = vpop.f32.mrb[0].mxu0
        %v571 = vadd.f32 0.0, %v570
        %572 = vdwg.mxu0
        %v573 = vmul.f32 %v527, 0.35355338
        %v574 = vmul.f32 %v533, 0.35355338
        %v575 = vmul.f32 %v539, 0.35355338
        %v576 = vmul.f32 %v545, 0.35355338
        %v577 = vmul.f32 %v551, 0.35355338
        %v578 = vmul.f32 %v557, 0.35355338
        %v579 = vmul.f32 %v563, 0.35355338
        %v580 = vmul.f32 %v569, 0.35355338
        %v581 = vld [vmem:[#allocation8] sm:$0xff]
        %v582 = vld [vmem:[#allocation10] sm:$0xff]
        %v583 = vld [vmem:[#allocation10 + $0x8] sm:$0xff]
        %v584 = vld [vmem:[#allocation10 + $0x10] sm:$0xff]
        %v585 = vld [vmem:[#allocation10 + $0x18] sm:$0xff]
        %v586 = vld [vmem:[#allocation10 + $0x20] sm:$0xff]
        %v587 = vld [vmem:[#allocation10 + $0x28] sm:$0xff]
        %v588 = vld [vmem:[#allocation10 + $0x30] sm:$0xff]
        %v589 = vld [vmem:[#allocation10 + $0x38] sm:$0xff]
        %v590 = vld [vmem:[%s5] sm:$0xff]
        %v591 = vld [vmem:[#allocation11] sm:$0xff]
        %v592 = vld [vmem:[#allocation11 + $0x8] sm:$0xff]
        %v593 = vld [vmem:[#allocation11 + $0x10] sm:$0xff]
        %v594 = vld [vmem:[#allocation11 + $0x18] sm:$0xff]
        %v595 = vld [vmem:[#allocation11 + $0x20] sm:$0xff]
        %v596 = vld [vmem:[#allocation11 + $0x28] sm:$0xff]
        %v597 = vld [vmem:[#allocation11 + $0x30] sm:$0xff]
        %v598 = vld [vmem:[#allocation11 + $0x38] sm:$0xff]
        %607 = vrot.lane.b32.xlu0 %v527, 64
        %v608 = vpop.permute.xlu0 %607
        %609 = vrot.lane.b32.xlu0 %v533, 64
        %v610 = vpop.permute.xlu0 %609
        %611 = vrot.lane.b32.xlu0 %v539, 64
        %v612 = vpop.permute.xlu0 %611
        %613 = vrot.lane.b32.xlu0 %v545, 64
        %v614 = vpop.permute.xlu0 %613
        %615 = vrot.lane.b32.xlu0 %v551, 64
        %v616 = vpop.permute.xlu0 %615
        %617 = vrot.lane.b32.xlu0 %v557, 64
        %v618 = vpop.permute.xlu0 %617
        %619 = vrot.lane.b32.xlu0 %v563, 64
        %v620 = vpop.permute.xlu0 %619
        %621 = vrot.lane.b32.xlu0 %v569, 64
        %v622 = vpop.permute.xlu0 %621
        %vm623 = vcmask 64512
        %v624 = vsel %vm623, %v608, 0
        %v626 = vsel %vm623, %v610, 0
        %v628 = vsel %vm623, %v612, 0
        %v630 = vsel %vm623, %v614, 0
        %v632 = vsel %vm623, %v616, 0
        %v634 = vsel %vm623, %v618, 0
        %v636 = vsel %vm623, %v620, 0
        %v638 = vsel %vm623, %v622, 0
        %640 = vmatprep.subr.mxu0 0.0
        %641 = vmatpush1.msra.mxu0 %v581
        %642 = vmatprep.subr.mxu0 0.0
        %643 = vmatpush1.msra.mxu0 0.0
        %644 = vmatprep.subr.mxu0 0.0
        %645 = vmatpush1.msra.mxu0 0.0
        %646 = vmatprep.subr.mxu0 0.0
        %647 = vmatpush1.msra.mxu0 0.0
        %648 = vmatprep.subr.mxu0 0.0
        %649 = vmatpush1.msra.mxu0 0.0
        %650 = vmatprep.subr.mxu0 0.0
        %651 = vmatpush1.msra.mxu0 0.0
        %652 = vmatprep.subr.mxu0 0.0
        %653 = vmatpush1.msra.mxu0 0.0
        %654 = vmatprep.subr.mxu0 0.0
        %655 = vmatpush1.msra.mxu0 0.0
        %656 = vmatprep.subr.mxu0 0.0
        %657 = vmatpush1.msra.mxu0 0.0
        %658 = vmatprep.subr.mxu0 0.0
        %659 = vmatpush1.msra.mxu0 0.0
        %660 = vmatprep.subr.mxu0 0.0
        %661 = vmatpush1.msra.mxu0 0.0
        %662 = vmatprep.subr.mxu0 0.0
        %663 = vmatpush1.msra.mxu0 0.0
        %664 = vmatprep.subr.mxu0 0.0
        %665 = vmatpush1.msra.mxu0 0.0
        %666 = vmatprep.subr.mxu0 0.0
        %667 = vmatpush1.msra.mxu0 0.0
        %668 = vmatprep.subr.mxu0 0.0
        %669 = vmatpush1.msra.mxu0 0.0
        %670 = vmatprep.subr.mxu0 0.0
        %671 = vmatpush1.msra.mxu0 0.0
        %672 = vmatprep.subr.mxu0 0.0
        %673 = vmatpush1.msra.mxu0 0.0
        %674 = vmatprep.subr.mxu0 0.0
        %675 = vmatpush1.msra.mxu0 0.0
        %676 = vmatprep.subr.mxu0 0.0
        %677 = vmatpush1.msra.mxu0 0.0
        %678 = vmatprep.subr.mxu0 0.0
        %679 = vmatpush1.msra.mxu0 0.0
        %680 = vmatprep.subr.mxu0 0.0
        %681 = vmatpush1.msra.mxu0 0.0
        %682 = vmatprep.subr.mxu0 0.0
        %683 = vmatpush1.msra.mxu0 0.0
        %684 = vmatprep.subr.mxu0 0.0
        %685 = vmatpush1.msra.mxu0 0.0
        %686 = vmatprep.subr.mxu0 0.0
        %687 = vmatpush1.msra.mxu0 0.0
        %688 = vmatprep.subr.mxu0 0.0
        %689 = vmatpush1.msra.mxu0 0.0
        %690 = vmatprep.subr.mxu0 0.0
        %691 = vmatpush1.msra.mxu0 0.0
        %692 = vmatprep.subr.mxu0 0.0
        %693 = vmatpush1.msra.mxu0 0.0
        %694 = vmatprep.subr.mxu0 0.0
        %695 = vmatpush1.msra.mxu0 0.0
        %696 = vmatprep.subr.mxu0 0.0
        %697 = vmatpush1.msra.mxu0 0.0
        %698 = vmatprep.subr.mxu0 0.0
        %699 = vmatpush1.msra.mxu0 0.0
        %700 = vmatprep.subr.mxu0 0.0
        %701 = vmatpush1.msra.mxu0 0.0
        %702 = vmatprep.subr.mxu0 0.0
        %703 = vmatpush1.msra.mxu0 0.0
        %704 = vmatprep.mubr.f32.mxu0 0.0
        %705 = vmatmul.mubr.f32.gmra.mrb[0].mxu0 %v624
        %v706 = vpop.f32.mrb[0].mxu0
        %v707 = vadd.f32 0.0, %v706
        %v708 = vpop.f32.mrb[0].mxu0
        %709 = vmatprep.mubr.f32.mxu0 0.0
        %710 = vmatmul.mubr.f32.gmra.mrb[0].mxu0 %v626
        %v711 = vpop.f32.mrb[0].mxu0
        %v712 = vadd.f32 0.0, %v711
        %v713 = vpop.f32.mrb[0].mxu0
        %714 = vmatprep.mubr.f32.mxu0 0.0
        %715 = vmatmul.mubr.f32.gmra.mrb[0].mxu0 %v628
        %v716 = vpop.f32.mrb[0].mxu0
        %v717 = vadd.f32 0.0, %v716
        %v718 = vpop.f32.mrb[0].mxu0
        %719 = vmatprep.mubr.f32.mxu0 0.0
        %720 = vmatmul.mubr.f32.gmra.mrb[0].mxu0 %v630
        %v721 = vpop.f32.mrb[0].mxu0
        %v722 = vadd.f32 0.0, %v721
        %v723 = vpop.f32.mrb[0].mxu0
        %724 = vmatprep.mubr.f32.mxu0 0.0
        %725 = vmatmul.mubr.f32.gmra.mrb[0].mxu0 %v632
        %v726 = vpop.f32.mrb[0].mxu0
        %v727 = vadd.f32 0.0, %v726
        %v728 = vpop.f32.mrb[0].mxu0
        %729 = vmatprep.mubr.f32.mxu0 0.0
        %730 = vmatmul.mubr.f32.gmra.mrb[0].mxu0 %v634
        %v731 = vpop.f32.mrb[0].mxu0
        %v732 = vadd.f32 0.0, %v731
        %v733 = vpop.f32.mrb[0].mxu0
        %734 = vmatprep.mubr.f32.mxu0 0.0
        %735 = vmatmul.mubr.f32.gmra.mrb[0].mxu0 %v636
        %v736 = vpop.f32.mrb[0].mxu0
        %v737 = vadd.f32 0.0, %v736
        %v738 = vpop.f32.mrb[0].mxu0
        %739 = vmatprep.mubr.f32.mxu0 0.0
        %740 = vmatmul.mubr.f32.gmra.mrb[0].mxu0 %v638
        %v741 = vpop.f32.mrb[0].mxu0
        %v742 = vadd.f32 0.0, %v741
        %v743 = vpop.f32.mrb[0].mxu0
        %744 = vdwg.mxu0
        %v745 = vmul.f32 %v573, %v707
        %v746 = vmul.f32 %v574, %v712
        %v747 = vmul.f32 %v575, %v717
        %v748 = vmul.f32 %v576, %v722
        %v749 = vmul.f32 %v577, %v727
        %v750 = vmul.f32 %v578, %v732
        %v751 = vmul.f32 %v579, %v737
        %v752 = vmul.f32 %v580, %v742
        %v754 = vsel %vm435, %v745, 0
        %v757 = vsel %vm435, %v746, 0
        %v760 = vsel %vm435, %v747, 0
        %v763 = vsel %vm435, %v748, 0
        %v766 = vsel %vm435, %v749, 0
        %v769 = vsel %vm435, %v750, 0
        %v772 = vsel %vm435, %v751, 0
        %v775 = vsel %vm435, %v752, 0
        %777 = vmatprep.subr.mxu0 0.0
        %778 = vmatpush1.msra.mxu0 %v582
        %779 = vmatprep.subr.mxu0 0.0
        %780 = vmatpush1.msra.mxu0 %v583
        %781 = vmatprep.subr.mxu0 0.0
        %782 = vmatpush1.msra.mxu0 %v584
        %783 = vmatprep.subr.mxu0 0.0
        %784 = vmatpush1.msra.mxu0 %v585
        %785 = vmatprep.subr.mxu0 0.0
        %786 = vmatpush1.msra.mxu0 %v586
        %787 = vmatprep.subr.mxu0 0.0
        %788 = vmatpush1.msra.mxu0 %v587
        %789 = vmatprep.subr.mxu0 0.0
        %790 = vmatpush1.msra.mxu0 %v588
        %791 = vmatprep.subr.mxu0 0.0
        %792 = vmatpush1.msra.mxu0 %v589
        %793 = vmatprep.subr.mxu0 0.0
        %794 = vmatpush1.msra.mxu0 0.0
        %795 = vmatprep.subr.mxu0 0.0
        %796 = vmatpush1.msra.mxu0 0.0
        %797 = vmatprep.subr.mxu0 0.0
        %798 = vmatpush1.msra.mxu0 0.0
        %799 = vmatprep.subr.mxu0 0.0
        %800 = vmatpush1.msra.mxu0 0.0
        %801 = vmatprep.subr.mxu0 0.0
        %802 = vmatpush1.msra.mxu0 0.0
        %803 = vmatprep.subr.mxu0 0.0
        %804 = vmatpush1.msra.mxu0 0.0
        %805 = vmatprep.subr.mxu0 0.0
        %806 = vmatpush1.msra.mxu0 0.0
        %807 = vmatprep.subr.mxu0 0.0
        %808 = vmatpush1.msra.mxu0 0.0
        %809 = vmatprep.subr.mxu0 0.0
        %810 = vmatpush1.msra.mxu0 0.0
        %811 = vmatprep.subr.mxu0 0.0
        %812 = vmatpush1.msra.mxu0 0.0
        %813 = vmatprep.subr.mxu0 0.0
        %814 = vmatpush1.msra.mxu0 0.0
        %815 = vmatprep.subr.mxu0 0.0
        %816 = vmatpush1.msra.mxu0 0.0
        %817 = vmatprep.subr.mxu0 0.0
        %818 = vmatpush1.msra.mxu0 0.0
        %819 = vmatprep.subr.mxu0 0.0
        %820 = vmatpush1.msra.mxu0 0.0
        %821 = vmatprep.subr.mxu0 0.0
        %822 = vmatpush1.msra.mxu0 0.0
        %823 = vmatprep.subr.mxu0 0.0
        %824 = vmatpush1.msra.mxu0 0.0
        %825 = vmatprep.subr.mxu0 0.0
        %826 = vmatpush1.msra.mxu0 0.0
        %827 = vmatprep.subr.mxu0 0.0
        %828 = vmatpush1.msra.mxu0 0.0
        %829 = vmatprep.subr.mxu0 0.0
        %830 = vmatpush1.msra.mxu0 0.0
        %831 = vmatprep.subr.mxu0 0.0
        %832 = vmatpush1.msra.mxu0 0.0
        %833 = vmatprep.subr.mxu0 0.0
        %834 = vmatpush1.msra.mxu0 0.0
        %835 = vmatprep.subr.mxu0 0.0
        %836 = vmatpush1.msra.mxu0 0.0
        %837 = vmatprep.subr.mxu0 0.0
        %838 = vmatpush1.msra.mxu0 0.0
        %839 = vmatprep.subr.mxu0 0.0
        %840 = vmatpush1.msra.mxu0 0.0
        %841 = vmatprep.mubr.f32.mxu0 0.0
        %842 = vmatmul.mubr.f32.gmra.mrb[0].mxu0 %v754
        %v843 = vpop.f32.mrb[0].mxu0
        %v844 = vadd.f32 0.0, %v843
        %v845 = vpop.f32.mrb[0].mxu0
        %846 = vmatprep.mubr.f32.mxu0 0.0
        %847 = vmatmul.mubr.f32.gmra.mrb[0].mxu0 %v757
        %v848 = vpop.f32.mrb[0].mxu0
        %v849 = vadd.f32 0.0, %v848
        %v850 = vpop.f32.mrb[0].mxu0
        %851 = vmatprep.mubr.f32.mxu0 0.0
        %852 = vmatmul.mubr.f32.gmra.mrb[0].mxu0 %v760
        %v853 = vpop.f32.mrb[0].mxu0
        %v854 = vadd.f32 0.0, %v853
        %v855 = vpop.f32.mrb[0].mxu0
        %856 = vmatprep.mubr.f32.mxu0 0.0
        %857 = vmatmul.mubr.f32.gmra.mrb[0].mxu0 %v763
        %v858 = vpop.f32.mrb[0].mxu0
        %v859 = vadd.f32 0.0, %v858
        %v860 = vpop.f32.mrb[0].mxu0
        %861 = vmatprep.mubr.f32.mxu0 0.0
        %862 = vmatmul.mubr.f32.gmra.mrb[0].mxu0 %v766
        %v863 = vpop.f32.mrb[0].mxu0
        %v864 = vadd.f32 0.0, %v863
        %v865 = vpop.f32.mrb[0].mxu0
        %866 = vmatprep.mubr.f32.mxu0 0.0
        %867 = vmatmul.mubr.f32.gmra.mrb[0].mxu0 %v769
        %v868 = vpop.f32.mrb[0].mxu0
        %v869 = vadd.f32 0.0, %v868
        %v870 = vpop.f32.mrb[0].mxu0
        %871 = vmatprep.mubr.f32.mxu0 0.0
        %872 = vmatmul.mubr.f32.gmra.mrb[0].mxu0 %v772
        %v873 = vpop.f32.mrb[0].mxu0
        %v874 = vadd.f32 0.0, %v873
        %v875 = vpop.f32.mrb[0].mxu0
        %876 = vmatprep.mubr.f32.mxu0 0.0
        %877 = vmatmul.mubr.f32.gmra.mrb[0].mxu0 %v775
        %v878 = vpop.f32.mrb[0].mxu0
        %v879 = vadd.f32 0.0, %v878
        %v880 = vpop.f32.mrb[0].mxu0
        %881 = vdwg.mxu0
        %882 = vrot.lane.b32.xlu0 %v527, 56
        %v883 = vpop.permute.xlu0 %882
        %884 = vrot.lane.b32.xlu0 %v533, 56
        %v885 = vpop.permute.xlu0 %884
        %886 = vrot.lane.b32.xlu0 %v539, 56
        %v887 = vpop.permute.xlu0 %886
        %888 = vrot.lane.b32.xlu0 %v545, 56
        %v889 = vpop.permute.xlu0 %888
        %890 = vrot.lane.b32.xlu0 %v551, 56
        %v891 = vpop.permute.xlu0 %890
        %892 = vrot.lane.b32.xlu0 %v557, 56
        %v893 = vpop.permute.xlu0 %892
        %894 = vrot.lane.b32.xlu0 %v563, 56
        %v895 = vpop.permute.xlu0 %894
        %896 = vrot.lane.b32.xlu0 %v569, 56
        %v897 = vpop.permute.xlu0 %896
        %v898 = vsel %vm623, %v883, 0
        %v900 = vsel %vm623, %v885, 0
        %v902 = vsel %vm623, %v887, 0
        %v904 = vsel %vm623, %v889, 0
        %v906 = vsel %vm623, %v891, 0
        %v908 = vsel %vm623, %v893, 0
        %v910 = vsel %vm623, %v895, 0
        %v912 = vsel %vm623, %v897, 0
        %914 = vmatprep.subr.mxu0 0.0
        %915 = vmatpush1.msra.mxu0 %v581
        %916 = vmatprep.subr.mxu0 0.0
        %917 = vmatpush1.msra.mxu0 0.0
        %918 = vmatprep.subr.mxu0 0.0
        %919 = vmatpush1.msra.mxu0 0.0
        %920 = vmatprep.subr.mxu0 0.0
        %921 = vmatpush1.msra.mxu0 0.0
        %922 = vmatprep.subr.mxu0 0.0
        %923 = vmatpush1.msra.mxu0 0.0
        %924 = vmatprep.subr.mxu0 0.0
        %925 = vmatpush1.msra.mxu0 0.0
        %926 = vmatprep.subr.mxu0 0.0
        %927 = vmatpush1.msra.mxu0 0.0
        %928 = vmatprep.subr.mxu0 0.0
        %929 = vmatpush1.msra.mxu0 0.0
        %930 = vmatprep.subr.mxu0 0.0
        %931 = vmatpush1.msra.mxu0 0.0
        %932 = vmatprep.subr.mxu0 0.0
        %933 = vmatpush1.msra.mxu0 0.0
        %934 = vmatprep.subr.mxu0 0.0
        %935 = vmatpush1.msra.mxu0 0.0
        %936 = vmatprep.subr.mxu0 0.0
        %937 = vmatpush1.msra.mxu0 0.0
        %938 = vmatprep.subr.mxu0 0.0
        %939 = vmatpush1.msra.mxu0 0.0
        %940 = vmatprep.subr.mxu0 0.0
        %941 = vmatpush1.msra.mxu0 0.0
        %942 = vmatprep.subr.mxu0 0.0
        %943 = vmatpush1.msra.mxu0 0.0
        %944 = vmatprep.subr.mxu0 0.0
        %945 = vmatpush1.msra.mxu0 0.0
        %946 = vmatprep.subr.mxu0 0.0
        %947 = vmatpush1.msra.mxu0 0.0
        %948 = vmatprep.subr.mxu0 0.0
        %949 = vmatpush1.msra.mxu0 0.0
        %950 = vmatprep.subr.mxu0 0.0
        %951 = vmatpush1.msra.mxu0 0.0
        %952 = vmatprep.subr.mxu0 0.0
        %953 = vmatpush1.msra.mxu0 0.0
        %954 = vmatprep.subr.mxu0 0.0
        %955 = vmatpush1.msra.mxu0 0.0
        %956 = vmatprep.subr.mxu0 0.0
        %957 = vmatpush1.msra.mxu0 0.0
        %958 = vmatprep.subr.mxu0 0.0
        %959 = vmatpush1.msra.mxu0 0.0
        %960 = vmatprep.subr.mxu0 0.0
        %961 = vmatpush1.msra.mxu0 0.0
        %962 = vmatprep.subr.mxu0 0.0
        %963 = vmatpush1.msra.mxu0 0.0
        %964 = vmatprep.subr.mxu0 0.0
        %965 = vmatpush1.msra.mxu0 0.0
        %966 = vmatprep.subr.mxu0 0.0
        %967 = vmatpush1.msra.mxu0 0.0
        %968 = vmatprep.subr.mxu0 0.0
        %969 = vmatpush1.msra.mxu0 0.0
        %970 = vmatprep.subr.mxu0 0.0
        %971 = vmatpush1.msra.mxu0 0.0
        %972 = vmatprep.subr.mxu0 0.0
        %973 = vmatpush1.msra.mxu0 0.0
        %974 = vmatprep.subr.mxu0 0.0
        %975 = vmatpush1.msra.mxu0 0.0
        %976 = vmatprep.subr.mxu0 0.0
        %977 = vmatpush1.msra.mxu0 0.0
        %978 = vmatprep.mubr.f32.mxu0 0.0
        %979 = vmatmul.mubr.f32.gmra.mrb[0].mxu0 %v898
        %v980 = vpop.f32.mrb[0].mxu0
        %v981 = vadd.f32 0.0, %v980
        %v982 = vpop.f32.mrb[0].mxu0
        %983 = vmatprep.mubr.f32.mxu0 0.0
        %984 = vmatmul.mubr.f32.gmra.mrb[0].mxu0 %v900
        %v985 = vpop.f32.mrb[0].mxu0
        %v986 = vadd.f32 0.0, %v985
        %v987 = vpop.f32.mrb[0].mxu0
        %988 = vmatprep.mubr.f32.mxu0 0.0
        %989 = vmatmul.mubr.f32.gmra.mrb[0].mxu0 %v902
        %v990 = vpop.f32.mrb[0].mxu0
        %v991 = vadd.f32 0.0, %v990
        %v992 = vpop.f32.mrb[0].mxu0
        %993 = vmatprep.mubr.f32.mxu0 0.0
        %994 = vmatmul.mubr.f32.gmra.mrb[0].mxu0 %v904
        %v995 = vpop.f32.mrb[0].mxu0
        %v996 = vadd.f32 0.0, %v995
        %v997 = vpop.f32.mrb[0].mxu0
        %998 = vmatprep.mubr.f32.mxu0 0.0
        %999 = vmatmul.mubr.f32.gmra.mrb[0].mxu0 %v906
        %v1000 = vpop.f32.mrb[0].mxu0
        %v1001 = vadd.f32 0.0, %v1000
        %v1002 = vpop.f32.mrb[0].mxu0
        %1003 = vmatprep.mubr.f32.mxu0 0.0
        %1004 = vmatmul.mubr.f32.gmra.mrb[0].mxu0 %v908
        %v1005 = vpop.f32.mrb[0].mxu0
        %v1006 = vadd.f32 0.0, %v1005
        %v1007 = vpop.f32.mrb[0].mxu0
        %1008 = vmatprep.mubr.f32.mxu0 0.0
        %1009 = vmatmul.mubr.f32.gmra.mrb[0].mxu0 %v910
        %v1010 = vpop.f32.mrb[0].mxu0
        %v1011 = vadd.f32 0.0, %v1010
        %v1012 = vpop.f32.mrb[0].mxu0
        %1013 = vmatprep.mubr.f32.mxu0 0.0
        %1014 = vmatmul.mubr.f32.gmra.mrb[0].mxu0 %v912
        %v1015 = vpop.f32.mrb[0].mxu0
        %v1016 = vadd.f32 0.0, %v1015
        %v1017 = vpop.f32.mrb[0].mxu0
        %1018 = vdwg.mxu0
        %v1019 = vmul.f32 %v573, %v981
        %v1020 = vmul.f32 %v574, %v986
        %v1021 = vmul.f32 %v575, %v991
        %v1022 = vmul.f32 %v576, %v996
        %v1023 = vmul.f32 %v577, %v1001
        %v1024 = vmul.f32 %v578, %v1006
        %v1025 = vmul.f32 %v579, %v1011
        %v1026 = vmul.f32 %v580, %v1016
        %v1028 = vsel %vm435, %v1019, 0
        %v1031 = vsel %vm435, %v1020, 0
        %v1034 = vsel %vm435, %v1021, 0
        %v1037 = vsel %vm435, %v1022, 0
        %v1040 = vsel %vm435, %v1023, 0
        %v1043 = vsel %vm435, %v1024, 0
        %v1046 = vsel %vm435, %v1025, 0
        %v1049 = vsel %vm435, %v1026, 0
        %1051 = vmatprep.subr.mxu0 0.0
        %1052 = vmatpush1.msra.mxu0 %v582
        %1053 = vmatprep.subr.mxu0 0.0
        %1054 = vmatpush1.msra.mxu0 %v583
        %1055 = vmatprep.subr.mxu0 0.0
        %1056 = vmatpush1.msra.mxu0 %v584
        %1057 = vmatprep.subr.mxu0 0.0
        %1058 = vmatpush1.msra.mxu0 %v585
        %1059 = vmatprep.subr.mxu0 0.0
        %1060 = vmatpush1.msra.mxu0 %v586
        %1061 = vmatprep.subr.mxu0 0.0
        %1062 = vmatpush1.msra.mxu0 %v587
        %1063 = vmatprep.subr.mxu0 0.0
        %1064 = vmatpush1.msra.mxu0 %v588
        %1065 = vmatprep.subr.mxu0 0.0
        %1066 = vmatpush1.msra.mxu0 %v589
        %1067 = vmatprep.subr.mxu0 0.0
        %1068 = vmatpush1.msra.mxu0 0.0
        %1069 = vmatprep.subr.mxu0 0.0
        %1070 = vmatpush1.msra.mxu0 0.0
        %1071 = vmatprep.subr.mxu0 0.0
        %1072 = vmatpush1.msra.mxu0 0.0
        %1073 = vmatprep.subr.mxu0 0.0
        %1074 = vmatpush1.msra.mxu0 0.0
        %1075 = vmatprep.subr.mxu0 0.0
        %1076 = vmatpush1.msra.mxu0 0.0
        %1077 = vmatprep.subr.mxu0 0.0
        %1078 = vmatpush1.msra.mxu0 0.0
        %1079 = vmatprep.subr.mxu0 0.0
        %1080 = vmatpush1.msra.mxu0 0.0
        %1081 = vmatprep.subr.mxu0 0.0
        %1082 = vmatpush1.msra.mxu0 0.0
        %1083 = vmatprep.subr.mxu0 0.0
        %1084 = vmatpush1.msra.mxu0 0.0
        %1085 = vmatprep.subr.mxu0 0.0
        %1086 = vmatpush1.msra.mxu0 0.0
        %1087 = vmatprep.subr.mxu0 0.0
        %1088 = vmatpush1.msra.mxu0 0.0
        %1089 = vmatprep.subr.mxu0 0.0
        %1090 = vmatpush1.msra.mxu0 0.0
        %1091 = vmatprep.subr.mxu0 0.0
        %1092 = vmatpush1.msra.mxu0 0.0
        %1093 = vmatprep.subr.mxu0 0.0
        %1094 = vmatpush1.msra.mxu0 0.0
        %1095 = vmatprep.subr.mxu0 0.0
        %1096 = vmatpush1.msra.mxu0 0.0
        %1097 = vmatprep.subr.mxu0 0.0
        %1098 = vmatpush1.msra.mxu0 0.0
        %1099 = vmatprep.subr.mxu0 0.0
        %1100 = vmatpush1.msra.mxu0 0.0
        %1101 = vmatprep.subr.mxu0 0.0
        %1102 = vmatpush1.msra.mxu0 0.0
        %1103 = vmatprep.subr.mxu0 0.0
        %1104 = vmatpush1.msra.mxu0 0.0
        %1105 = vmatprep.subr.mxu0 0.0
        %1106 = vmatpush1.msra.mxu0 0.0
        %1107 = vmatprep.subr.mxu0 0.0
        %1108 = vmatpush1.msra.mxu0 0.0
        %1109 = vmatprep.subr.mxu0 0.0
        %1110 = vmatpush1.msra.mxu0 0.0
        %1111 = vmatprep.subr.mxu0 0.0
        %1112 = vmatpush1.msra.mxu0 0.0
        %1113 = vmatprep.subr.mxu0 0.0
        %1114 = vmatpush1.msra.mxu0 0.0
        %1115 = vmatprep.mubr.f32.mxu0 0.0
        %1116 = vmatmul.mubr.f32.gmra.mrb[0].mxu0 %v1028
        %v1117 = vpop.f32.mrb[0].mxu0
        %v1118 = vadd.f32 0.0, %v1117
        %v1119 = vpop.f32.mrb[0].mxu0
        %1120 = vmatprep.mubr.f32.mxu0 0.0
        %1121 = vmatmul.mubr.f32.gmra.mrb[0].mxu0 %v1031
        %v1122 = vpop.f32.mrb[0].mxu0
        %v1123 = vadd.f32 0.0, %v1122
        %v1124 = vpop.f32.mrb[0].mxu0
        %1125 = vmatprep.mubr.f32.mxu0 0.0
        %1126 = vmatmul.mubr.f32.gmra.mrb[0].mxu0 %v1034
        %v1127 = vpop.f32.mrb[0].mxu0
        %v1128 = vadd.f32 0.0, %v1127
        %v1129 = vpop.f32.mrb[0].mxu0
        %1130 = vmatprep.mubr.f32.mxu0 0.0
        %1131 = vmatmul.mubr.f32.gmra.mrb[0].mxu0 %v1037
        %v1132 = vpop.f32.mrb[0].mxu0
        %v1133 = vadd.f32 0.0, %v1132
        %v1134 = vpop.f32.mrb[0].mxu0
        %1135 = vmatprep.mubr.f32.mxu0 0.0
        %1136 = vmatmul.mubr.f32.gmra.mrb[0].mxu0 %v1040
        %v1137 = vpop.f32.mrb[0].mxu0
        %v1138 = vadd.f32 0.0, %v1137
        %v1139 = vpop.f32.mrb[0].mxu0
        %1140 = vmatprep.mubr.f32.mxu0 0.0
        %1141 = vmatmul.mubr.f32.gmra.mrb[0].mxu0 %v1043
        %v1142 = vpop.f32.mrb[0].mxu0
        %v1143 = vadd.f32 0.0, %v1142
        %v1144 = vpop.f32.mrb[0].mxu0
        %1145 = vmatprep.mubr.f32.mxu0 0.0
        %1146 = vmatmul.mubr.f32.gmra.mrb[0].mxu0 %v1046
        %v1147 = vpop.f32.mrb[0].mxu0
        %v1148 = vadd.f32 0.0, %v1147
        %v1149 = vpop.f32.mrb[0].mxu0
        %1150 = vmatprep.mubr.f32.mxu0 0.0
        %1151 = vmatmul.mubr.f32.gmra.mrb[0].mxu0 %v1049
        %v1152 = vpop.f32.mrb[0].mxu0
        %v1153 = vadd.f32 0.0, %v1152
        %v1154 = vpop.f32.mrb[0].mxu0
        %1155 = vdwg.mxu0
        %1156 = vrot.lane.b32.xlu0 %v527, 48
        %v1157 = vpop.permute.xlu0 %1156
        %1158 = vrot.lane.b32.xlu0 %v533, 48
        %v1159 = vpop.permute.xlu0 %1158
        %1160 = vrot.lane.b32.xlu0 %v539, 48
        %v1161 = vpop.permute.xlu0 %1160
        %1162 = vrot.lane.b32.xlu0 %v545, 48
        %v1163 = vpop.permute.xlu0 %1162
        %1164 = vrot.lane.b32.xlu0 %v551, 48
        %v1165 = vpop.permute.xlu0 %1164
        %1166 = vrot.lane.b32.xlu0 %v557, 48
        %v1167 = vpop.permute.xlu0 %1166
        %1168 = vrot.lane.b32.xlu0 %v563, 48
        %v1169 = vpop.permute.xlu0 %1168
        %1170 = vrot.lane.b32.xlu0 %v569, 48
        %v1171 = vpop.permute.xlu0 %1170
        %v1172 = vsel %vm623, %v1157, 0
        %v1174 = vsel %vm623, %v1159, 0
        %v1176 = vsel %vm623, %v1161, 0
        %v1178 = vsel %vm623, %v1163, 0
        %v1180 = vsel %vm623, %v1165, 0
        %v1182 = vsel %vm623, %v1167, 0
        %v1184 = vsel %vm623, %v1169, 0
        %v1186 = vsel %vm623, %v1171, 0
        %1188 = vmatprep.subr.mxu0 0.0
        %1189 = vmatpush1.msra.mxu0 %v581
        %1190 = vmatprep.subr.mxu0 0.0
        %1191 = vmatpush1.msra.mxu0 0.0
        %1192 = vmatprep.subr.mxu0 0.0
        %1193 = vmatpush1.msra.mxu0 0.0
        %1194 = vmatprep.subr.mxu0 0.0
        %1195 = vmatpush1.msra.mxu0 0.0
        %1196 = vmatprep.subr.mxu0 0.0
        %1197 = vmatpush1.msra.mxu0 0.0
        %1198 = vmatprep.subr.mxu0 0.0
        %1199 = vmatpush1.msra.mxu0 0.0
        %1200 = vmatprep.subr.mxu0 0.0
        %1201 = vmatpush1.msra.mxu0 0.0
        %1202 = vmatprep.subr.mxu0 0.0
        %1203 = vmatpush1.msra.mxu0 0.0
        %1204 = vmatprep.subr.mxu0 0.0
        %1205 = vmatpush1.msra.mxu0 0.0
        %1206 = vmatprep.subr.mxu0 0.0
        %1207 = vmatpush1.msra.mxu0 0.0
        %1208 = vmatprep.subr.mxu0 0.0
        %1209 = vmatpush1.msra.mxu0 0.0
        %1210 = vmatprep.subr.mxu0 0.0
        %1211 = vmatpush1.msra.mxu0 0.0
        %1212 = vmatprep.subr.mxu0 0.0
        %1213 = vmatpush1.msra.mxu0 0.0
        %1214 = vmatprep.subr.mxu0 0.0
        %1215 = vmatpush1.msra.mxu0 0.0
        %1216 = vmatprep.subr.mxu0 0.0
        %1217 = vmatpush1.msra.mxu0 0.0
        %1218 = vmatprep.subr.mxu0 0.0
        %1219 = vmatpush1.msra.mxu0 0.0
        %1220 = vmatprep.subr.mxu0 0.0
        %1221 = vmatpush1.msra.mxu0 0.0
        %1222 = vmatprep.subr.mxu0 0.0
        %1223 = vmatpush1.msra.mxu0 0.0
        %1224 = vmatprep.subr.mxu0 0.0
        %1225 = vmatpush1.msra.mxu0 0.0
        %1226 = vmatprep.subr.mxu0 0.0
        %1227 = vmatpush1.msra.mxu0 0.0
        %1228 = vmatprep.subr.mxu0 0.0
        %1229 = vmatpush1.msra.mxu0 0.0
        %1230 = vmatprep.subr.mxu0 0.0
        %1231 = vmatpush1.msra.mxu0 0.0
        %1232 = vmatprep.subr.mxu0 0.0
        %1233 = vmatpush1.msra.mxu0 0.0
        %1234 = vmatprep.subr.mxu0 0.0
        %1235 = vmatpush1.msra.mxu0 0.0
        %1236 = vmatprep.subr.mxu0 0.0
        %1237 = vmatpush1.msra.mxu0 0.0
        %1238 = vmatprep.subr.mxu0 0.0
        %1239 = vmatpush1.msra.mxu0 0.0
        %1240 = vmatprep.subr.mxu0 0.0
        %1241 = vmatpush1.msra.mxu0 0.0
        %1242 = vmatprep.subr.mxu0 0.0
        %1243 = vmatpush1.msra.mxu0 0.0
        %1244 = vmatprep.subr.mxu0 0.0
        %1245 = vmatpush1.msra.mxu0 0.0
        %1246 = vmatprep.subr.mxu0 0.0
        %1247 = vmatpush1.msra.mxu0 0.0
        %1248 = vmatprep.subr.mxu0 0.0
        %1249 = vmatpush1.msra.mxu0 0.0
        %1250 = vmatprep.subr.mxu0 0.0
        %1251 = vmatpush1.msra.mxu0 0.0
        %1252 = vmatprep.mubr.f32.mxu0 0.0
        %1253 = vmatmul.mubr.f32.gmra.mrb[0].mxu0 %v1172
        %v1254 = vpop.f32.mrb[0].mxu0
        %v1255 = vadd.f32 0.0, %v1254
        %v1256 = vpop.f32.mrb[0].mxu0
        %1257 = vmatprep.mubr.f32.mxu0 0.0
        %1258 = vmatmul.mubr.f32.gmra.mrb[0].mxu0 %v1174
        %v1259 = vpop.f32.mrb[0].mxu0
        %v1260 = vadd.f32 0.0, %v1259
        %v1261 = vpop.f32.mrb[0].mxu0
        %1262 = vmatprep.mubr.f32.mxu0 0.0
        %1263 = vmatmul.mubr.f32.gmra.mrb[0].mxu0 %v1176
        %v1264 = vpop.f32.mrb[0].mxu0
        %v1265 = vadd.f32 0.0, %v1264
        %v1266 = vpop.f32.mrb[0].mxu0
        %1267 = vmatprep.mubr.f32.mxu0 0.0
        %1268 = vmatmul.mubr.f32.gmra.mrb[0].mxu0 %v1178
        %v1269 = vpop.f32.mrb[0].mxu0
        %v1270 = vadd.f32 0.0, %v1269
        %v1271 = vpop.f32.mrb[0].mxu0
        %1272 = vmatprep.mubr.f32.mxu0 0.0
        %1273 = vmatmul.mubr.f32.gmra.mrb[0].mxu0 %v1180
        %v1274 = vpop.f32.mrb[0].mxu0
        %v1275 = vadd.f32 0.0, %v1274
        %v1276 = vpop.f32.mrb[0].mxu0
        %1277 = vmatprep.mubr.f32.mxu0 0.0
        %1278 = vmatmul.mubr.f32.gmra.mrb[0].mxu0 %v1182
        %v1279 = vpop.f32.mrb[0].mxu0
        %v1280 = vadd.f32 0.0, %v1279
        %v1281 = vpop.f32.mrb[0].mxu0
        %1282 = vmatprep.mubr.f32.mxu0 0.0
        %1283 = vmatmul.mubr.f32.gmra.mrb[0].mxu0 %v1184
        %v1284 = vpop.f32.mrb[0].mxu0
        %v1285 = vadd.f32 0.0, %v1284
        %v1286 = vpop.f32.mrb[0].mxu0
        %1287 = vmatprep.mubr.f32.mxu0 0.0
        %1288 = vmatmul.mubr.f32.gmra.mrb[0].mxu0 %v1186
        %v1289 = vpop.f32.mrb[0].mxu0
        %v1290 = vadd.f32 0.0, %v1289
        %v1291 = vpop.f32.mrb[0].mxu0
        %1292 = vdwg.mxu0
        %v1293 = vmul.f32 %v573, %v1255
        %v1294 = vmul.f32 %v574, %v1260
        %v1295 = vmul.f32 %v575, %v1265
        %v1296 = vmul.f32 %v576, %v1270
        %v1297 = vmul.f32 %v577, %v1275
        %v1298 = vmul.f32 %v578, %v1280
        %v1299 = vmul.f32 %v579, %v1285
        %v1300 = vmul.f32 %v580, %v1290
        %v1302 = vsel %vm435, %v1293, 0
        %v1305 = vsel %vm435, %v1294, 0
        %v1308 = vsel %vm435, %v1295, 0
        %v1311 = vsel %vm435, %v1296, 0
        %v1314 = vsel %vm435, %v1297, 0
        %v1317 = vsel %vm435, %v1298, 0
        %v1320 = vsel %vm435, %v1299, 0
        %v1323 = vsel %vm435, %v1300, 0
        %1325 = vmatprep.subr.mxu0 0.0
        %1326 = vmatpush1.msra.mxu0 %v582
        %1327 = vmatprep.subr.mxu0 0.0
        %1328 = vmatpush1.msra.mxu0 %v583
        %1329 = vmatprep.subr.mxu0 0.0
        %1330 = vmatpush1.msra.mxu0 %v584
        %1331 = vmatprep.subr.mxu0 0.0
        %1332 = vmatpush1.msra.mxu0 %v585
        %1333 = vmatprep.subr.mxu0 0.0
        %1334 = vmatpush1.msra.mxu0 %v586
        %1335 = vmatprep.subr.mxu0 0.0
        %1336 = vmatpush1.msra.mxu0 %v587
        %1337 = vmatprep.subr.mxu0 0.0
        %1338 = vmatpush1.msra.mxu0 %v588
        %1339 = vmatprep.subr.mxu0 0.0
        %1340 = vmatpush1.msra.mxu0 %v589
        %1341 = vmatprep.subr.mxu0 0.0
        %1342 = vmatpush1.msra.mxu0 0.0
        %1343 = vmatprep.subr.mxu0 0.0
        %1344 = vmatpush1.msra.mxu0 0.0
        %1345 = vmatprep.subr.mxu0 0.0
        %1346 = vmatpush1.msra.mxu0 0.0
        %1347 = vmatprep.subr.mxu0 0.0
        %1348 = vmatpush1.msra.mxu0 0.0
        %1349 = vmatprep.subr.mxu0 0.0
        %1350 = vmatpush1.msra.mxu0 0.0
        %1351 = vmatprep.subr.mxu0 0.0
        %1352 = vmatpush1.msra.mxu0 0.0
        %1353 = vmatprep.subr.mxu0 0.0
        %1354 = vmatpush1.msra.mxu0 0.0
        %1355 = vmatprep.subr.mxu0 0.0
        %1356 = vmatpush1.msra.mxu0 0.0
        %1357 = vmatprep.subr.mxu0 0.0
        %1358 = vmatpush1.msra.mxu0 0.0
        %1359 = vmatprep.subr.mxu0 0.0
        %1360 = vmatpush1.msra.mxu0 0.0
        %1361 = vmatprep.subr.mxu0 0.0
        %1362 = vmatpush1.msra.mxu0 0.0
        %1363 = vmatprep.subr.mxu0 0.0
        %1364 = vmatpush1.msra.mxu0 0.0
        %1365 = vmatprep.subr.mxu0 0.0
        %1366 = vmatpush1.msra.mxu0 0.0
        %1367 = vmatprep.subr.mxu0 0.0
        %1368 = vmatpush1.msra.mxu0 0.0
        %1369 = vmatprep.subr.mxu0 0.0
        %1370 = vmatpush1.msra.mxu0 0.0
        %1371 = vmatprep.subr.mxu0 0.0
        %1372 = vmatpush1.msra.mxu0 0.0
        %1373 = vmatprep.subr.mxu0 0.0
        %1374 = vmatpush1.msra.mxu0 0.0
        %1375 = vmatprep.subr.mxu0 0.0
        %1376 = vmatpush1.msra.mxu0 0.0
        %1377 = vmatprep.subr.mxu0 0.0
        %1378 = vmatpush1.msra.mxu0 0.0
        %1379 = vmatprep.subr.mxu0 0.0
        %1380 = vmatpush1.msra.mxu0 0.0
        %1381 = vmatprep.subr.mxu0 0.0
        %1382 = vmatpush1.msra.mxu0 0.0
        %1383 = vmatprep.subr.mxu0 0.0
        %1384 = vmatpush1.msra.mxu0 0.0
        %1385 = vmatprep.subr.mxu0 0.0
        %1386 = vmatpush1.msra.mxu0 0.0
        %1387 = vmatprep.subr.mxu0 0.0
        %1388 = vmatpush1.msra.mxu0 0.0
        %1389 = vmatprep.mubr.f32.mxu0 0.0
        %1390 = vmatmul.mubr.f32.gmra.mrb[0].mxu0 %v1302
        %v1391 = vpop.f32.mrb[0].mxu0
        %v1392 = vadd.f32 0.0, %v1391
        %v1393 = vpop.f32.mrb[0].mxu0
        %1394 = vmatprep.mubr.f32.mxu0 0.0
        %1395 = vmatmul.mubr.f32.gmra.mrb[0].mxu0 %v1305
        %v1396 = vpop.f32.mrb[0].mxu0
        %v1397 = vadd.f32 0.0, %v1396
        %v1398 = vpop.f32.mrb[0].mxu0
        %1399 = vmatprep.mubr.f32.mxu0 0.0
        %1400 = vmatmul.mubr.f32.gmra.mrb[0].mxu0 %v1308
        %v1401 = vpop.f32.mrb[0].mxu0
        %v1402 = vadd.f32 0.0, %v1401
        %v1403 = vpop.f32.mrb[0].mxu0
        %1404 = vmatprep.mubr.f32.mxu0 0.0
        %1405 = vmatmul.mubr.f32.gmra.mrb[0].mxu0 %v1311
        %v1406 = vpop.f32.mrb[0].mxu0
        %v1407 = vadd.f32 0.0, %v1406
        %v1408 = vpop.f32.mrb[0].mxu0
        %1409 = vmatprep.mubr.f32.mxu0 0.0
        %1410 = vmatmul.mubr.f32.gmra.mrb[0].mxu0 %v1314
        %v1411 = vpop.f32.mrb[0].mxu0
        %v1412 = vadd.f32 0.0, %v1411
        %v1413 = vpop.f32.mrb[0].mxu0
        %1414 = vmatprep.mubr.f32.mxu0 0.0
        %1415 = vmatmul.mubr.f32.gmra.mrb[0].mxu0 %v1317
        %v1416 = vpop.f32.mrb[0].mxu0
        %v1417 = vadd.f32 0.0, %v1416
        %v1418 = vpop.f32.mrb[0].mxu0
        %1419 = vmatprep.mubr.f32.mxu0 0.0
        %1420 = vmatmul.mubr.f32.gmra.mrb[0].mxu0 %v1320
        %v1421 = vpop.f32.mrb[0].mxu0
        %v1422 = vadd.f32 0.0, %v1421
        %v1423 = vpop.f32.mrb[0].mxu0
        %1424 = vmatprep.mubr.f32.mxu0 0.0
        %1425 = vmatmul.mubr.f32.gmra.mrb[0].mxu0 %v1323
        %v1426 = vpop.f32.mrb[0].mxu0
        %v1427 = vadd.f32 0.0, %v1426
        %v1428 = vpop.f32.mrb[0].mxu0
        %1429 = vdwg.mxu0
        %1430 = vrot.lane.b32.xlu0 %v527, 40
        %v1431 = vpop.permute.xlu0 %1430
        %1432 = vrot.lane.b32.xlu0 %v533, 40
        %v1433 = vpop.permute.xlu0 %1432
        %1434 = vrot.lane.b32.xlu0 %v539, 40
        %v1435 = vpop.permute.xlu0 %1434
        %1436 = vrot.lane.b32.xlu0 %v545, 40
        %v1437 = vpop.permute.xlu0 %1436
        %1438 = vrot.lane.b32.xlu0 %v551, 40
        %v1439 = vpop.permute.xlu0 %1438
        %1440 = vrot.lane.b32.xlu0 %v557, 40
        %v1441 = vpop.permute.xlu0 %1440
        %1442 = vrot.lane.b32.xlu0 %v563, 40
        %v1443 = vpop.permute.xlu0 %1442
        %1444 = vrot.lane.b32.xlu0 %v569, 40
        %v1445 = vpop.permute.xlu0 %1444
        %v1446 = vsel %vm623, %v1431, 0
        %v1448 = vsel %vm623, %v1433, 0
        %v1450 = vsel %vm623, %v1435, 0
        %v1452 = vsel %vm623, %v1437, 0
        %v1454 = vsel %vm623, %v1439, 0
        %v1456 = vsel %vm623, %v1441, 0
        %v1458 = vsel %vm623, %v1443, 0
        %v1460 = vsel %vm623, %v1445, 0
        %1462 = vmatprep.subr.mxu0 0.0
        %1463 = vmatpush1.msra.mxu0 %v581
        %1464 = vmatprep.subr.mxu0 0.0
        %1465 = vmatpush1.msra.mxu0 0.0
        %1466 = vmatprep.subr.mxu0 0.0
        %1467 = vmatpush1.msra.mxu0 0.0
        %1468 = vmatprep.subr.mxu0 0.0
        %1469 = vmatpush1.msra.mxu0 0.0
        %1470 = vmatprep.subr.mxu0 0.0
        %1471 = vmatpush1.msra.mxu0 0.0
        %1472 = vmatprep.subr.mxu0 0.0
        %1473 = vmatpush1.msra.mxu0 0.0
        %1474 = vmatprep.subr.mxu0 0.0
        %1475 = vmatpush1.msra.mxu0 0.0
        %1476 = vmatprep.subr.mxu0 0.0
        %1477 = vmatpush1.msra.mxu0 0.0
        %1478 = vmatprep.subr.mxu0 0.0
        %1479 = vmatpush1.msra.mxu0 0.0
        %1480 = vmatprep.subr.mxu0 0.0
        %1481 = vmatpush1.msra.mxu0 0.0
        %1482 = vmatprep.subr.mxu0 0.0
        %1483 = vmatpush1.msra.mxu0 0.0
        %1484 = vmatprep.subr.mxu0 0.0
        %1485 = vmatpush1.msra.mxu0 0.0
        %1486 = vmatprep.subr.mxu0 0.0
        %1487 = vmatpush1.msra.mxu0 0.0
        %1488 = vmatprep.subr.mxu0 0.0
        %1489 = vmatpush1.msra.mxu0 0.0
        %1490 = vmatprep.subr.mxu0 0.0
        %1491 = vmatpush1.msra.mxu0 0.0
        %1492 = vmatprep.subr.mxu0 0.0
        %1493 = vmatpush1.msra.mxu0 0.0
        %1494 = vmatprep.subr.mxu0 0.0
        %1495 = vmatpush1.msra.mxu0 0.0
        %1496 = vmatprep.subr.mxu0 0.0
        %1497 = vmatpush1.msra.mxu0 0.0
        %1498 = vmatprep.subr.mxu0 0.0
        %1499 = vmatpush1.msra.mxu0 0.0
        %1500 = vmatprep.subr.mxu0 0.0
        %1501 = vmatpush1.msra.mxu0 0.0
        %1502 = vmatprep.subr.mxu0 0.0
        %1503 = vmatpush1.msra.mxu0 0.0
        %1504 = vmatprep.subr.mxu0 0.0
        %1505 = vmatpush1.msra.mxu0 0.0
        %1506 = vmatprep.subr.mxu0 0.0
        %1507 = vmatpush1.msra.mxu0 0.0
        %1508 = vmatprep.subr.mxu0 0.0
        %1509 = vmatpush1.msra.mxu0 0.0
        %1510 = vmatprep.subr.mxu0 0.0
        %1511 = vmatpush1.msra.mxu0 0.0
        %1512 = vmatprep.subr.mxu0 0.0
        %1513 = vmatpush1.msra.mxu0 0.0
        %1514 = vmatprep.subr.mxu0 0.0
        %1515 = vmatpush1.msra.mxu0 0.0
        %1516 = vmatprep.subr.mxu0 0.0
        %1517 = vmatpush1.msra.mxu0 0.0
        %1518 = vmatprep.subr.mxu0 0.0
        %1519 = vmatpush1.msra.mxu0 0.0
        %1520 = vmatprep.subr.mxu0 0.0
        %1521 = vmatpush1.msra.mxu0 0.0
        %1522 = vmatprep.subr.mxu0 0.0
        %1523 = vmatpush1.msra.mxu0 0.0
        %1524 = vmatprep.subr.mxu0 0.0
        %1525 = vmatpush1.msra.mxu0 0.0
        %1526 = vmatprep.mubr.f32.mxu0 0.0
        %1527 = vmatmul.mubr.f32.gmra.mrb[0].mxu0 %v1446
        %v1528 = vpop.f32.mrb[0].mxu0
        %v1529 = vadd.f32 0.0, %v1528
        %v1530 = vpop.f32.mrb[0].mxu0
        %1531 = vmatprep.mubr.f32.mxu0 0.0
        %1532 = vmatmul.mubr.f32.gmra.mrb[0].mxu0 %v1448
        %v1533 = vpop.f32.mrb[0].mxu0
        %v1534 = vadd.f32 0.0, %v1533
        %v1535 = vpop.f32.mrb[0].mxu0
        %1536 = vmatprep.mubr.f32.mxu0 0.0
        %1537 = vmatmul.mubr.f32.gmra.mrb[0].mxu0 %v1450
        %v1538 = vpop.f32.mrb[0].mxu0
        %v1539 = vadd.f32 0.0, %v1538
        %v1540 = vpop.f32.mrb[0].mxu0
        %1541 = vmatprep.mubr.f32.mxu0 0.0
        %1542 = vmatmul.mubr.f32.gmra.mrb[0].mxu0 %v1452
        %v1543 = vpop.f32.mrb[0].mxu0
        %v1544 = vadd.f32 0.0, %v1543
        %v1545 = vpop.f32.mrb[0].mxu0
        %1546 = vmatprep.mubr.f32.mxu0 0.0
        %1547 = vmatmul.mubr.f32.gmra.mrb[0].mxu0 %v1454
        %v1548 = vpop.f32.mrb[0].mxu0
        %v1549 = vadd.f32 0.0, %v1548
        %v1550 = vpop.f32.mrb[0].mxu0
        %1551 = vmatprep.mubr.f32.mxu0 0.0
        %1552 = vmatmul.mubr.f32.gmra.mrb[0].mxu0 %v1456
        %v1553 = vpop.f32.mrb[0].mxu0
        %v1554 = vadd.f32 0.0, %v1553
        %v1555 = vpop.f32.mrb[0].mxu0
        %1556 = vmatprep.mubr.f32.mxu0 0.0
        %1557 = vmatmul.mubr.f32.gmra.mrb[0].mxu0 %v1458
        %v1558 = vpop.f32.mrb[0].mxu0
        %v1559 = vadd.f32 0.0, %v1558
        %v1560 = vpop.f32.mrb[0].mxu0
        %1561 = vmatprep.mubr.f32.mxu0 0.0
        %1562 = vmatmul.mubr.f32.gmra.mrb[0].mxu0 %v1460
        %v1563 = vpop.f32.mrb[0].mxu0
        %v1564 = vadd.f32 0.0, %v1563
        %v1565 = vpop.f32.mrb[0].mxu0
        %1566 = vdwg.mxu0
        %v1567 = vmul.f32 %v573, %v1529
        %v1568 = vmul.f32 %v574, %v1534
        %v1569 = vmul.f32 %v575, %v1539
        %v1570 = vmul.f32 %v576, %v1544
        %v1571 = vmul.f32 %v577, %v1549
        %v1572 = vmul.f32 %v578, %v1554
        %v1573 = vmul.f32 %v579, %v1559
        %v1574 = vmul.f32 %v580, %v1564
        %v1576 = vsel %vm435, %v1567, 0
        %v1579 = vsel %vm435, %v1568, 0
        %v1582 = vsel %vm435, %v1569, 0
        %v1585 = vsel %vm435, %v1570, 0
        %v1588 = vsel %vm435, %v1571, 0
        %v1591 = vsel %vm435, %v1572, 0
        %v1594 = vsel %vm435, %v1573, 0
        %v1597 = vsel %vm435, %v1574, 0
        %1599 = vmatprep.subr.mxu0 0.0
        %1600 = vmatpush1.msra.mxu0 %v582
        %1601 = vmatprep.subr.mxu0 0.0
        %1602 = vmatpush1.msra.mxu0 %v583
        %1603 = vmatprep.subr.mxu0 0.0
        %1604 = vmatpush1.msra.mxu0 %v584
        %1605 = vmatprep.subr.mxu0 0.0
        %1606 = vmatpush1.msra.mxu0 %v585
        %1607 = vmatprep.subr.mxu0 0.0
        %1608 = vmatpush1.msra.mxu0 %v586
        %1609 = vmatprep.subr.mxu0 0.0
        %1610 = vmatpush1.msra.mxu0 %v587
        %1611 = vmatprep.subr.mxu0 0.0
        %1612 = vmatpush1.msra.mxu0 %v588
        %1613 = vmatprep.subr.mxu0 0.0
        %1614 = vmatpush1.msra.mxu0 %v589
        %1615 = vmatprep.subr.mxu0 0.0
        %1616 = vmatpush1.msra.mxu0 0.0
        %1617 = vmatprep.subr.mxu0 0.0
        %1618 = vmatpush1.msra.mxu0 0.0
        %1619 = vmatprep.subr.mxu0 0.0
        %1620 = vmatpush1.msra.mxu0 0.0
        %1621 = vmatprep.subr.mxu0 0.0
        %1622 = vmatpush1.msra.mxu0 0.0
        %1623 = vmatprep.subr.mxu0 0.0
        %1624 = vmatpush1.msra.mxu0 0.0
        %1625 = vmatprep.subr.mxu0 0.0
        %1626 = vmatpush1.msra.mxu0 0.0
        %1627 = vmatprep.subr.mxu0 0.0
        %1628 = vmatpush1.msra.mxu0 0.0
        %1629 = vmatprep.subr.mxu0 0.0
        %1630 = vmatpush1.msra.mxu0 0.0
        %1631 = vmatprep.subr.mxu0 0.0
        %1632 = vmatpush1.msra.mxu0 0.0
        %1633 = vmatprep.subr.mxu0 0.0
        %1634 = vmatpush1.msra.mxu0 0.0
        %1635 = vmatprep.subr.mxu0 0.0
        %1636 = vmatpush1.msra.mxu0 0.0
        %1637 = vmatprep.subr.mxu0 0.0
        %1638 = vmatpush1.msra.mxu0 0.0
        %1639 = vmatprep.subr.mxu0 0.0
        %1640 = vmatpush1.msra.mxu0 0.0
        %1641 = vmatprep.subr.mxu0 0.0
        %1642 = vmatpush1.msra.mxu0 0.0
        %1643 = vmatprep.subr.mxu0 0.0
        %1644 = vmatpush1.msra.mxu0 0.0
        %1645 = vmatprep.subr.mxu0 0.0
        %1646 = vmatpush1.msra.mxu0 0.0
        %1647 = vmatprep.subr.mxu0 0.0
        %1648 = vmatpush1.msra.mxu0 0.0
        %1649 = vmatprep.subr.mxu0 0.0
        %1650 = vmatpush1.msra.mxu0 0.0
        %1651 = vmatprep.subr.mxu0 0.0
        %1652 = vmatpush1.msra.mxu0 0.0
        %1653 = vmatprep.subr.mxu0 0.0
        %1654 = vmatpush1.msra.mxu0 0.0
        %1655 = vmatprep.subr.mxu0 0.0
        %1656 = vmatpush1.msra.mxu0 0.0
        %1657 = vmatprep.subr.mxu0 0.0
        %1658 = vmatpush1.msra.mxu0 0.0
        %1659 = vmatprep.subr.mxu0 0.0
        %1660 = vmatpush1.msra.mxu0 0.0
        %1661 = vmatprep.subr.mxu0 0.0
        %1662 = vmatpush1.msra.mxu0 0.0
        %1663 = vmatprep.mubr.f32.mxu0 0.0
        %1664 = vmatmul.mubr.f32.gmra.mrb[0].mxu0 %v1576
        %v1665 = vpop.f32.mrb[0].mxu0
        %v1666 = vadd.f32 0.0, %v1665
        %v1667 = vpop.f32.mrb[0].mxu0
        %1668 = vmatprep.mubr.f32.mxu0 0.0
        %1669 = vmatmul.mubr.f32.gmra.mrb[0].mxu0 %v1579
        %v1670 = vpop.f32.mrb[0].mxu0
        %v1671 = vadd.f32 0.0, %v1670
        %v1672 = vpop.f32.mrb[0].mxu0
        %1673 = vmatprep.mubr.f32.mxu0 0.0
        %1674 = vmatmul.mubr.f32.gmra.mrb[0].mxu0 %v1582
        %v1675 = vpop.f32.mrb[0].mxu0
        %v1676 = vadd.f32 0.0, %v1675
        %v1677 = vpop.f32.mrb[0].mxu0
        %1678 = vmatprep.mubr.f32.mxu0 0.0
        %1679 = vmatmul.mubr.f32.gmra.mrb[0].mxu0 %v1585
        %v1680 = vpop.f32.mrb[0].mxu0
        %v1681 = vadd.f32 0.0, %v1680
        %v1682 = vpop.f32.mrb[0].mxu0
        %1683 = vmatprep.mubr.f32.mxu0 0.0
        %1684 = vmatmul.mubr.f32.gmra.mrb[0].mxu0 %v1588
        %v1685 = vpop.f32.mrb[0].mxu0
        %v1686 = vadd.f32 0.0, %v1685
        %v1687 = vpop.f32.mrb[0].mxu0
        %1688 = vmatprep.mubr.f32.mxu0 0.0
        %1689 = vmatmul.mubr.f32.gmra.mrb[0].mxu0 %v1591
        %v1690 = vpop.f32.mrb[0].mxu0
        %v1691 = vadd.f32 0.0, %v1690
        %v1692 = vpop.f32.mrb[0].mxu0
        %1693 = vmatprep.mubr.f32.mxu0 0.0
        %1694 = vmatmul.mubr.f32.gmra.mrb[0].mxu0 %v1594
        %v1695 = vpop.f32.mrb[0].mxu0
        %v1696 = vadd.f32 0.0, %v1695
        %v1697 = vpop.f32.mrb[0].mxu0
        %1698 = vmatprep.mubr.f32.mxu0 0.0
        %1699 = vmatmul.mubr.f32.gmra.mrb[0].mxu0 %v1597
        %v1700 = vpop.f32.mrb[0].mxu0
        %v1701 = vadd.f32 0.0, %v1700
        %v1702 = vpop.f32.mrb[0].mxu0
        %1703 = vdwg.mxu0
        %1704 = vrot.lane.b32.xlu0 %v527, 32
        %v1705 = vpop.permute.xlu0 %1704
        %1706 = vrot.lane.b32.xlu0 %v533, 32
        %v1707 = vpop.permute.xlu0 %1706
        %1708 = vrot.lane.b32.xlu0 %v539, 32
        %v1709 = vpop.permute.xlu0 %1708
        %1710 = vrot.lane.b32.xlu0 %v545, 32
        %v1711 = vpop.permute.xlu0 %1710
        %1712 = vrot.lane.b32.xlu0 %v551, 32
        %v1713 = vpop.permute.xlu0 %1712
        %1714 = vrot.lane.b32.xlu0 %v557, 32
        %v1715 = vpop.permute.xlu0 %1714
        %1716 = vrot.lane.b32.xlu0 %v563, 32
        %v1717 = vpop.permute.xlu0 %1716
        %1718 = vrot.lane.b32.xlu0 %v569, 32
        %v1719 = vpop.permute.xlu0 %1718
        %v1720 = vsel %vm623, %v1705, 0
        %v1722 = vsel %vm623, %v1707, 0
        %v1724 = vsel %vm623, %v1709, 0
        %v1726 = vsel %vm623, %v1711, 0
        %v1728 = vsel %vm623, %v1713, 0
        %v1730 = vsel %vm623, %v1715, 0
        %v1732 = vsel %vm623, %v1717, 0
        %v1734 = vsel %vm623, %v1719, 0
        %1736 = vmatprep.subr.mxu0 0.0
        %1737 = vmatpush1.msra.mxu0 %v581
        %1738 = vmatprep.subr.mxu0 0.0
        %1739 = vmatpush1.msra.mxu0 0.0
        %1740 = vmatprep.subr.mxu0 0.0
        %1741 = vmatpush1.msra.mxu0 0.0
        %1742 = vmatprep.subr.mxu0 0.0
        %1743 = vmatpush1.msra.mxu0 0.0
        %1744 = vmatprep.subr.mxu0 0.0
        %1745 = vmatpush1.msra.mxu0 0.0
        %1746 = vmatprep.subr.mxu0 0.0
        %1747 = vmatpush1.msra.mxu0 0.0
        %1748 = vmatprep.subr.mxu0 0.0
        %1749 = vmatpush1.msra.mxu0 0.0
        %1750 = vmatprep.subr.mxu0 0.0
        %1751 = vmatpush1.msra.mxu0 0.0
        %1752 = vmatprep.subr.mxu0 0.0
        %1753 = vmatpush1.msra.mxu0 0.0
        %1754 = vmatprep.subr.mxu0 0.0
        %1755 = vmatpush1.msra.mxu0 0.0
        %1756 = vmatprep.subr.mxu0 0.0
        %1757 = vmatpush1.msra.mxu0 0.0
        %1758 = vmatprep.subr.mxu0 0.0
        %1759 = vmatpush1.msra.mxu0 0.0
        %1760 = vmatprep.subr.mxu0 0.0
        %1761 = vmatpush1.msra.mxu0 0.0
        %1762 = vmatprep.subr.mxu0 0.0
        %1763 = vmatpush1.msra.mxu0 0.0
        %1764 = vmatprep.subr.mxu0 0.0
        %1765 = vmatpush1.msra.mxu0 0.0
        %1766 = vmatprep.subr.mxu0 0.0
        %1767 = vmatpush1.msra.mxu0 0.0
        %1768 = vmatprep.subr.mxu0 0.0
        %1769 = vmatpush1.msra.mxu0 0.0
        %1770 = vmatprep.subr.mxu0 0.0
        %1771 = vmatpush1.msra.mxu0 0.0
        %1772 = vmatprep.subr.mxu0 0.0
        %1773 = vmatpush1.msra.mxu0 0.0
        %1774 = vmatprep.subr.mxu0 0.0
        %1775 = vmatpush1.msra.mxu0 0.0
        %1776 = vmatprep.subr.mxu0 0.0
        %1777 = vmatpush1.msra.mxu0 0.0
        %1778 = vmatprep.subr.mxu0 0.0
        %1779 = vmatpush1.msra.mxu0 0.0
        %1780 = vmatprep.subr.mxu0 0.0
        %1781 = vmatpush1.msra.mxu0 0.0
        %1782 = vmatprep.subr.mxu0 0.0
        %1783 = vmatpush1.msra.mxu0 0.0
        %1784 = vmatprep.subr.mxu0 0.0
        %1785 = vmatpush1.msra.mxu0 0.0
        %1786 = vmatprep.subr.mxu0 0.0
        %1787 = vmatpush1.msra.mxu0 0.0
        %1788 = vmatprep.subr.mxu0 0.0
        %1789 = vmatpush1.msra.mxu0 0.0
        %1790 = vmatprep.subr.mxu0 0.0
        %1791 = vmatpush1.msra.mxu0 0.0
        %1792 = vmatprep.subr.mxu0 0.0
        %1793 = vmatpush1.msra.mxu0 0.0
        %1794 = vmatprep.subr.mxu0 0.0
        %1795 = vmatpush1.msra.mxu0 0.0
        %1796 = vmatprep.subr.mxu0 0.0
        %1797 = vmatpush1.msra.mxu0 0.0
        %1798 = vmatprep.subr.mxu0 0.0
        %1799 = vmatpush1.msra.mxu0 0.0
        %1800 = vmatprep.mubr.f32.mxu0 0.0
        %1801 = vmatmul.mubr.f32.gmra.mrb[0].mxu0 %v1720
        %v1802 = vpop.f32.mrb[0].mxu0
        %v1803 = vadd.f32 0.0, %v1802
        %v1804 = vpop.f32.mrb[0].mxu0
        %1805 = vmatprep.mubr.f32.mxu0 0.0
        %1806 = vmatmul.mubr.f32.gmra.mrb[0].mxu0 %v1722
        %v1807 = vpop.f32.mrb[0].mxu0
        %v1808 = vadd.f32 0.0, %v1807
        %v1809 = vpop.f32.mrb[0].mxu0
        %1810 = vmatprep.mubr.f32.mxu0 0.0
        %1811 = vmatmul.mubr.f32.gmra.mrb[0].mxu0 %v1724
        %v1812 = vpop.f32.mrb[0].mxu0
        %v1813 = vadd.f32 0.0, %v1812
        %v1814 = vpop.f32.mrb[0].mxu0
        %1815 = vmatprep.mubr.f32.mxu0 0.0
        %1816 = vmatmul.mubr.f32.gmra.mrb[0].mxu0 %v1726
        %v1817 = vpop.f32.mrb[0].mxu0
        %v1818 = vadd.f32 0.0, %v1817
        %v1819 = vpop.f32.mrb[0].mxu0
        %1820 = vmatprep.mubr.f32.mxu0 0.0
        %1821 = vmatmul.mubr.f32.gmra.mrb[0].mxu0 %v1728
        %v1822 = vpop.f32.mrb[0].mxu0
        %v1823 = vadd.f32 0.0, %v1822
        %v1824 = vpop.f32.mrb[0].mxu0
        %1825 = vmatprep.mubr.f32.mxu0 0.0
        %1826 = vmatmul.mubr.f32.gmra.mrb[0].mxu0 %v1730
        %v1827 = vpop.f32.mrb[0].mxu0
        %v1828 = vadd.f32 0.0, %v1827
        %v1829 = vpop.f32.mrb[0].mxu0
        %1830 = vmatprep.mubr.f32.mxu0 0.0
        %1831 = vmatmul.mubr.f32.gmra.mrb[0].mxu0 %v1732
        %v1832 = vpop.f32.mrb[0].mxu0
        %v1833 = vadd.f32 0.0, %v1832
        %v1834 = vpop.f32.mrb[0].mxu0
        %1835 = vmatprep.mubr.f32.mxu0 0.0
        %1836 = vmatmul.mubr.f32.gmra.mrb[0].mxu0 %v1734
        %v1837 = vpop.f32.mrb[0].mxu0
        %v1838 = vadd.f32 0.0, %v1837
        %v1839 = vpop.f32.mrb[0].mxu0
        %1840 = vdwg.mxu0
        %v1841 = vmul.f32 %v573, %v1803
        %v1842 = vmul.f32 %v574, %v1808
        %v1843 = vmul.f32 %v575, %v1813
        %v1844 = vmul.f32 %v576, %v1818
        %v1845 = vmul.f32 %v577, %v1823
        %v1846 = vmul.f32 %v578, %v1828
        %v1847 = vmul.f32 %v579, %v1833
        %v1848 = vmul.f32 %v580, %v1838
        %v1850 = vsel %vm435, %v1841, 0
        %v1853 = vsel %vm435, %v1842, 0
        %v1856 = vsel %vm435, %v1843, 0
        %v1859 = vsel %vm435, %v1844, 0
        %v1862 = vsel %vm435, %v1845, 0
        %v1865 = vsel %vm435, %v1846, 0
        %v1868 = vsel %vm435, %v1847, 0
        %v1871 = vsel %vm435, %v1848, 0
        %1873 = vmatprep.subr.mxu0 0.0
        %1874 = vmatpush1.msra.mxu0 %v582
        %1875 = vmatprep.subr.mxu0 0.0
        %1876 = vmatpush1.msra.mxu0 %v583
        %1877 = vmatprep.subr.mxu0 0.0
        %1878 = vmatpush1.msra.mxu0 %v584
        %1879 = vmatprep.subr.mxu0 0.0
        %1880 = vmatpush1.msra.mxu0 %v585
        %1881 = vmatprep.subr.mxu0 0.0
        %1882 = vmatpush1.msra.mxu0 %v586
        %1883 = vmatprep.subr.mxu0 0.0
        %1884 = vmatpush1.msra.mxu0 %v587
        %1885 = vmatprep.subr.mxu0 0.0
        %1886 = vmatpush1.msra.mxu0 %v588
        %1887 = vmatprep.subr.mxu0 0.0
        %1888 = vmatpush1.msra.mxu0 %v589
        %1889 = vmatprep.subr.mxu0 0.0
        %1890 = vmatpush1.msra.mxu0 0.0
        %1891 = vmatprep.subr.mxu0 0.0
        %1892 = vmatpush1.msra.mxu0 0.0
        %1893 = vmatprep.subr.mxu0 0.0
        %1894 = vmatpush1.msra.mxu0 0.0
        %1895 = vmatprep.subr.mxu0 0.0
        %1896 = vmatpush1.msra.mxu0 0.0
        %1897 = vmatprep.subr.mxu0 0.0
        %1898 = vmatpush1.msra.mxu0 0.0
        %1899 = vmatprep.subr.mxu0 0.0
        %1900 = vmatpush1.msra.mxu0 0.0
        %1901 = vmatprep.subr.mxu0 0.0
        %1902 = vmatpush1.msra.mxu0 0.0
        %1903 = vmatprep.subr.mxu0 0.0
        %1904 = vmatpush1.msra.mxu0 0.0
        %1905 = vmatprep.subr.mxu0 0.0
        %1906 = vmatpush1.msra.mxu0 0.0
        %1907 = vmatprep.subr.mxu0 0.0
        %1908 = vmatpush1.msra.mxu0 0.0
        %1909 = vmatprep.subr.mxu0 0.0
        %1910 = vmatpush1.msra.mxu0 0.0
        %1911 = vmatprep.subr.mxu0 0.0
        %1912 = vmatpush1.msra.mxu0 0.0
        %1913 = vmatprep.subr.mxu0 0.0
        %1914 = vmatpush1.msra.mxu0 0.0
        %1915 = vmatprep.subr.mxu0 0.0
        %1916 = vmatpush1.msra.mxu0 0.0
        %1917 = vmatprep.subr.mxu0 0.0
        %1918 = vmatpush1.msra.mxu0 0.0
        %1919 = vmatprep.subr.mxu0 0.0
        %1920 = vmatpush1.msra.mxu0 0.0
        %1921 = vmatprep.subr.mxu0 0.0
        %1922 = vmatpush1.msra.mxu0 0.0
        %1923 = vmatprep.subr.mxu0 0.0
        %1924 = vmatpush1.msra.mxu0 0.0
        %1925 = vmatprep.subr.mxu0 0.0
        %1926 = vmatpush1.msra.mxu0 0.0
        %1927 = vmatprep.subr.mxu0 0.0
        %1928 = vmatpush1.msra.mxu0 0.0
        %1929 = vmatprep.subr.mxu0 0.0
        %1930 = vmatpush1.msra.mxu0 0.0
        %1931 = vmatprep.subr.mxu0 0.0
        %1932 = vmatpush1.msra.mxu0 0.0
        %1933 = vmatprep.subr.mxu0 0.0
        %1934 = vmatpush1.msra.mxu0 0.0
        %1935 = vmatprep.subr.mxu0 0.0
        %1936 = vmatpush1.msra.mxu0 0.0
        %1937 = vmatprep.mubr.f32.mxu0 0.0
        %1938 = vmatmul.mubr.f32.gmra.mrb[0].mxu0 %v1850
        %v1939 = vpop.f32.mrb[0].mxu0
        %v1940 = vadd.f32 0.0, %v1939
        %v1941 = vpop.f32.mrb[0].mxu0
        %1942 = vmatprep.mubr.f32.mxu0 0.0
        %1943 = vmatmul.mubr.f32.gmra.mrb[0].mxu0 %v1853
        %v1944 = vpop.f32.mrb[0].mxu0
        %v1945 = vadd.f32 0.0, %v1944
        %v1946 = vpop.f32.mrb[0].mxu0
        %1947 = vmatprep.mubr.f32.mxu0 0.0
        %1948 = vmatmul.mubr.f32.gmra.mrb[0].mxu0 %v1856
        %v1949 = vpop.f32.mrb[0].mxu0
        %v1950 = vadd.f32 0.0, %v1949
        %v1951 = vpop.f32.mrb[0].mxu0
        %1952 = vmatprep.mubr.f32.mxu0 0.0
        %1953 = vmatmul.mubr.f32.gmra.mrb[0].mxu0 %v1859
        %v1954 = vpop.f32.mrb[0].mxu0
        %v1955 = vadd.f32 0.0, %v1954
        %v1956 = vpop.f32.mrb[0].mxu0
        %1957 = vmatprep.mubr.f32.mxu0 0.0
        %1958 = vmatmul.mubr.f32.gmra.mrb[0].mxu0 %v1862
        %v1959 = vpop.f32.mrb[0].mxu0
        %v1960 = vadd.f32 0.0, %v1959
        %v1961 = vpop.f32.mrb[0].mxu0
        %1962 = vmatprep.mubr.f32.mxu0 0.0
        %1963 = vmatmul.mubr.f32.gmra.mrb[0].mxu0 %v1865
        %v1964 = vpop.f32.mrb[0].mxu0
        %v1965 = vadd.f32 0.0, %v1964
        %v1966 = vpop.f32.mrb[0].mxu0
        %1967 = vmatprep.mubr.f32.mxu0 0.0
        %1968 = vmatmul.mubr.f32.gmra.mrb[0].mxu0 %v1868
        %v1969 = vpop.f32.mrb[0].mxu0
        %v1970 = vadd.f32 0.0, %v1969
        %v1971 = vpop.f32.mrb[0].mxu0
        %1972 = vmatprep.mubr.f32.mxu0 0.0
        %1973 = vmatmul.mubr.f32.gmra.mrb[0].mxu0 %v1871
        %v1974 = vpop.f32.mrb[0].mxu0
        %v1975 = vadd.f32 0.0, %v1974
        %v1976 = vpop.f32.mrb[0].mxu0
        %1977 = vdwg.mxu0
        %1978 = vrot.lane.b32.xlu0 %v527, 24
        %v1979 = vpop.permute.xlu0 %1978
        %1980 = vrot.lane.b32.xlu0 %v533, 24
        %v1981 = vpop.permute.xlu0 %1980
        %1982 = vrot.lane.b32.xlu0 %v539, 24
        %v1983 = vpop.permute.xlu0 %1982
        %1984 = vrot.lane.b32.xlu0 %v545, 24
        %v1985 = vpop.permute.xlu0 %1984
        %1986 = vrot.lane.b32.xlu0 %v551, 24
        %v1987 = vpop.permute.xlu0 %1986
        %1988 = vrot.lane.b32.xlu0 %v557, 24
        %v1989 = vpop.permute.xlu0 %1988
        %1990 = vrot.lane.b32.xlu0 %v563, 24
        %v1991 = vpop.permute.xlu0 %1990
        %1992 = vrot.lane.b32.xlu0 %v569, 24
        %v1993 = vpop.permute.xlu0 %1992
        %v1994 = vsel %vm623, %v1979, 0
        %v1996 = vsel %vm623, %v1981, 0
        %v1998 = vsel %vm623, %v1983, 0
        %v2000 = vsel %vm623, %v1985, 0
        %v2002 = vsel %vm623, %v1987, 0
        %v2004 = vsel %vm623, %v1989, 0
        %v2006 = vsel %vm623, %v1991, 0
        %v2008 = vsel %vm623, %v1993, 0
        %2010 = vmatprep.subr.mxu0 0.0
        %2011 = vmatpush1.msra.mxu0 %v581
        %2012 = vmatprep.subr.mxu0 0.0
        %2013 = vmatpush1.msra.mxu0 0.0
        %2014 = vmatprep.subr.mxu0 0.0
        %2015 = vmatpush1.msra.mxu0 0.0
        %2016 = vmatprep.subr.mxu0 0.0
        %2017 = vmatpush1.msra.mxu0 0.0
        %2018 = vmatprep.subr.mxu0 0.0
        %2019 = vmatpush1.msra.mxu0 0.0
        %2020 = vmatprep.subr.mxu0 0.0
        %2021 = vmatpush1.msra.mxu0 0.0
        %2022 = vmatprep.subr.mxu0 0.0
        %2023 = vmatpush1.msra.mxu0 0.0
        %2024 = vmatprep.subr.mxu0 0.0
        %2025 = vmatpush1.msra.mxu0 0.0
        %2026 = vmatprep.subr.mxu0 0.0
        %2027 = vmatpush1.msra.mxu0 0.0
        %2028 = vmatprep.subr.mxu0 0.0
        %2029 = vmatpush1.msra.mxu0 0.0
        %2030 = vmatprep.subr.mxu0 0.0
        %2031 = vmatpush1.msra.mxu0 0.0
        %2032 = vmatprep.subr.mxu0 0.0
        %2033 = vmatpush1.msra.mxu0 0.0
        %2034 = vmatprep.subr.mxu0 0.0
        %2035 = vmatpush1.msra.mxu0 0.0
        %2036 = vmatprep.subr.mxu0 0.0
        %2037 = vmatpush1.msra.mxu0 0.0
        %2038 = vmatprep.subr.mxu0 0.0
        %2039 = vmatpush1.msra.mxu0 0.0
        %2040 = vmatprep.subr.mxu0 0.0
        %2041 = vmatpush1.msra.mxu0 0.0
        %2042 = vmatprep.subr.mxu0 0.0
        %2043 = vmatpush1.msra.mxu0 0.0
        %2044 = vmatprep.subr.mxu0 0.0
        %2045 = vmatpush1.msra.mxu0 0.0
        %2046 = vmatprep.subr.mxu0 0.0
        %2047 = vmatpush1.msra.mxu0 0.0
        %2048 = vmatprep.subr.mxu0 0.0
        %2049 = vmatpush1.msra.mxu0 0.0
        %2050 = vmatprep.subr.mxu0 0.0
        %2051 = vmatpush1.msra.mxu0 0.0
        %2052 = vmatprep.subr.mxu0 0.0
        %2053 = vmatpush1.msra.mxu0 0.0
        %2054 = vmatprep.subr.mxu0 0.0
        %2055 = vmatpush1.msra.mxu0 0.0
        %2056 = vmatprep.subr.mxu0 0.0
        %2057 = vmatpush1.msra.mxu0 0.0
        %2058 = vmatprep.subr.mxu0 0.0
        %2059 = vmatpush1.msra.mxu0 0.0
        %2060 = vmatprep.subr.mxu0 0.0
        %2061 = vmatpush1.msra.mxu0 0.0
        %2062 = vmatprep.subr.mxu0 0.0
        %2063 = vmatpush1.msra.mxu0 0.0
        %2064 = vmatprep.subr.mxu0 0.0
        %2065 = vmatpush1.msra.mxu0 0.0
        %2066 = vmatprep.subr.mxu0 0.0
        %2067 = vmatpush1.msra.mxu0 0.0
        %2068 = vmatprep.subr.mxu0 0.0
        %2069 = vmatpush1.msra.mxu0 0.0
        %2070 = vmatprep.subr.mxu0 0.0
        %2071 = vmatpush1.msra.mxu0 0.0
        %2072 = vmatprep.subr.mxu0 0.0
        %2073 = vmatpush1.msra.mxu0 0.0
        %2074 = vmatprep.mubr.f32.mxu0 0.0
        %2075 = vmatmul.mubr.f32.gmra.mrb[0].mxu0 %v1994
        %v2076 = vpop.f32.mrb[0].mxu0
        %v2077 = vadd.f32 0.0, %v2076
        %v2078 = vpop.f32.mrb[0].mxu0
        %2079 = vmatprep.mubr.f32.mxu0 0.0
        %2080 = vmatmul.mubr.f32.gmra.mrb[0].mxu0 %v1996
        %v2081 = vpop.f32.mrb[0].mxu0
        %v2082 = vadd.f32 0.0, %v2081
        %v2083 = vpop.f32.mrb[0].mxu0
        %2084 = vmatprep.mubr.f32.mxu0 0.0
        %2085 = vmatmul.mubr.f32.gmra.mrb[0].mxu0 %v1998
        %v2086 = vpop.f32.mrb[0].mxu0
        %v2087 = vadd.f32 0.0, %v2086
        %v2088 = vpop.f32.mrb[0].mxu0
        %2089 = vmatprep.mubr.f32.mxu0 0.0
        %2090 = vmatmul.mubr.f32.gmra.mrb[0].mxu0 %v2000
        %v2091 = vpop.f32.mrb[0].mxu0
        %v2092 = vadd.f32 0.0, %v2091
        %v2093 = vpop.f32.mrb[0].mxu0
        %2094 = vmatprep.mubr.f32.mxu0 0.0
        %2095 = vmatmul.mubr.f32.gmra.mrb[0].mxu0 %v2002
        %v2096 = vpop.f32.mrb[0].mxu0
        %v2097 = vadd.f32 0.0, %v2096
        %v2098 = vpop.f32.mrb[0].mxu0
        %2099 = vmatprep.mubr.f32.mxu0 0.0
        %2100 = vmatmul.mubr.f32.gmra.mrb[0].mxu0 %v2004
        %v2101 = vpop.f32.mrb[0].mxu0
        %v2102 = vadd.f32 0.0, %v2101
        %v2103 = vpop.f32.mrb[0].mxu0
        %2104 = vmatprep.mubr.f32.mxu0 0.0
        %2105 = vmatmul.mubr.f32.gmra.mrb[0].mxu0 %v2006
        %v2106 = vpop.f32.mrb[0].mxu0
        %v2107 = vadd.f32 0.0, %v2106
        %v2108 = vpop.f32.mrb[0].mxu0
        %2109 = vmatprep.mubr.f32.mxu0 0.0
        %2110 = vmatmul.mubr.f32.gmra.mrb[0].mxu0 %v2008
        %v2111 = vpop.f32.mrb[0].mxu0
        %v2112 = vadd.f32 0.0, %v2111
        %v2113 = vpop.f32.mrb[0].mxu0
        %2114 = vdwg.mxu0
        %v2115 = vmul.f32 %v573, %v2077
        %v2116 = vmul.f32 %v574, %v2082
        %v2117 = vmul.f32 %v575, %v2087
        %v2118 = vmul.f32 %v576, %v2092
        %v2119 = vmul.f32 %v577, %v2097
        %v2120 = vmul.f32 %v578, %v2102
        %v2121 = vmul.f32 %v579, %v2107
        %v2122 = vmul.f32 %v580, %v2112
        %v2124 = vsel %vm435, %v2115, 0
        %v2127 = vsel %vm435, %v2116, 0
        %v2130 = vsel %vm435, %v2117, 0
        %v2133 = vsel %vm435, %v2118, 0
        %v2136 = vsel %vm435, %v2119, 0
        %v2139 = vsel %vm435, %v2120, 0
        %v2142 = vsel %vm435, %v2121, 0
        %v2145 = vsel %vm435, %v2122, 0
        %2147 = vmatprep.subr.mxu0 0.0
        %2148 = vmatpush1.msra.mxu0 %v582
        %2149 = vmatprep.subr.mxu0 0.0
        %2150 = vmatpush1.msra.mxu0 %v583
        %2151 = vmatprep.subr.mxu0 0.0
        %2152 = vmatpush1.msra.mxu0 %v584
        %2153 = vmatprep.subr.mxu0 0.0
        %2154 = vmatpush1.msra.mxu0 %v585
        %2155 = vmatprep.subr.mxu0 0.0
        %2156 = vmatpush1.msra.mxu0 %v586
        %2157 = vmatprep.subr.mxu0 0.0
        %2158 = vmatpush1.msra.mxu0 %v587
        %2159 = vmatprep.subr.mxu0 0.0
        %2160 = vmatpush1.msra.mxu0 %v588
        %2161 = vmatprep.subr.mxu0 0.0
        %2162 = vmatpush1.msra.mxu0 %v589
        %2163 = vmatprep.subr.mxu0 0.0
        %2164 = vmatpush1.msra.mxu0 0.0
        %2165 = vmatprep.subr.mxu0 0.0
        %2166 = vmatpush1.msra.mxu0 0.0
        %2167 = vmatprep.subr.mxu0 0.0
        %2168 = vmatpush1.msra.mxu0 0.0
        %2169 = vmatprep.subr.mxu0 0.0
        %2170 = vmatpush1.msra.mxu0 0.0
        %2171 = vmatprep.subr.mxu0 0.0
        %2172 = vmatpush1.msra.mxu0 0.0
        %2173 = vmatprep.subr.mxu0 0.0
        %2174 = vmatpush1.msra.mxu0 0.0
        %2175 = vmatprep.subr.mxu0 0.0
        %2176 = vmatpush1.msra.mxu0 0.0
        %2177 = vmatprep.subr.mxu0 0.0
        %2178 = vmatpush1.msra.mxu0 0.0
        %2179 = vmatprep.subr.mxu0 0.0
        %2180 = vmatpush1.msra.mxu0 0.0
        %2181 = vmatprep.subr.mxu0 0.0
        %2182 = vmatpush1.msra.mxu0 0.0
        %2183 = vmatprep.subr.mxu0 0.0
        %2184 = vmatpush1.msra.mxu0 0.0
        %2185 = vmatprep.subr.mxu0 0.0
        %2186 = vmatpush1.msra.mxu0 0.0
        %2187 = vmatprep.subr.mxu0 0.0
        %2188 = vmatpush1.msra.mxu0 0.0
        %2189 = vmatprep.subr.mxu0 0.0
        %2190 = vmatpush1.msra.mxu0 0.0
        %2191 = vmatprep.subr.mxu0 0.0
        %2192 = vmatpush1.msra.mxu0 0.0
        %2193 = vmatprep.subr.mxu0 0.0
        %2194 = vmatpush1.msra.mxu0 0.0
        %2195 = vmatprep.subr.mxu0 0.0
        %2196 = vmatpush1.msra.mxu0 0.0
        %2197 = vmatprep.subr.mxu0 0.0
        %2198 = vmatpush1.msra.mxu0 0.0
        %2199 = vmatprep.subr.mxu0 0.0
        %2200 = vmatpush1.msra.mxu0 0.0
        %2201 = vmatprep.subr.mxu0 0.0
        %2202 = vmatpush1.msra.mxu0 0.0
        %2203 = vmatprep.subr.mxu0 0.0
        %2204 = vmatpush1.msra.mxu0 0.0
        %2205 = vmatprep.subr.mxu0 0.0
        %2206 = vmatpush1.msra.mxu0 0.0
        %2207 = vmatprep.subr.mxu0 0.0
        %2208 = vmatpush1.msra.mxu0 0.0
        %2209 = vmatprep.subr.mxu0 0.0
        %2210 = vmatpush1.msra.mxu0 0.0
        %2211 = vmatprep.mubr.f32.mxu0 0.0
        %2212 = vmatmul.mubr.f32.gmra.mrb[0].mxu0 %v2124
        %v2213 = vpop.f32.mrb[0].mxu0
        %v2214 = vadd.f32 0.0, %v2213
        %v2215 = vpop.f32.mrb[0].mxu0
        %2216 = vmatprep.mubr.f32.mxu0 0.0
        %2217 = vmatmul.mubr.f32.gmra.mrb[0].mxu0 %v2127
        %v2218 = vpop.f32.mrb[0].mxu0
        %v2219 = vadd.f32 0.0, %v2218
        %v2220 = vpop.f32.mrb[0].mxu0
        %2221 = vmatprep.mubr.f32.mxu0 0.0
        %2222 = vmatmul.mubr.f32.gmra.mrb[0].mxu0 %v2130
        %v2223 = vpop.f32.mrb[0].mxu0
        %v2224 = vadd.f32 0.0, %v2223
        %v2225 = vpop.f32.mrb[0].mxu0
        %2226 = vmatprep.mubr.f32.mxu0 0.0
        %2227 = vmatmul.mubr.f32.gmra.mrb[0].mxu0 %v2133
        %v2228 = vpop.f32.mrb[0].mxu0
        %v2229 = vadd.f32 0.0, %v2228
        %v2230 = vpop.f32.mrb[0].mxu0
        %2231 = vmatprep.mubr.f32.mxu0 0.0
        %2232 = vmatmul.mubr.f32.gmra.mrb[0].mxu0 %v2136
        %v2233 = vpop.f32.mrb[0].mxu0
        %v2234 = vadd.f32 0.0, %v2233
        %v2235 = vpop.f32.mrb[0].mxu0
        %2236 = vmatprep.mubr.f32.mxu0 0.0
        %2237 = vmatmul.mubr.f32.gmra.mrb[0].mxu0 %v2139
        %v2238 = vpop.f32.mrb[0].mxu0
        %v2239 = vadd.f32 0.0, %v2238
        %v2240 = vpop.f32.mrb[0].mxu0
        %2241 = vmatprep.mubr.f32.mxu0 0.0
        %2242 = vmatmul.mubr.f32.gmra.mrb[0].mxu0 %v2142
        %v2243 = vpop.f32.mrb[0].mxu0
        %v2244 = vadd.f32 0.0, %v2243
        %v2245 = vpop.f32.mrb[0].mxu0
        %2246 = vmatprep.mubr.f32.mxu0 0.0
        %2247 = vmatmul.mubr.f32.gmra.mrb[0].mxu0 %v2145
        %v2248 = vpop.f32.mrb[0].mxu0
        %v2249 = vadd.f32 0.0, %v2248
        %v2250 = vpop.f32.mrb[0].mxu0
        %2251 = vdwg.mxu0
        %2252 = vrot.lane.b32.xlu0 %v527, 16
        %v2253 = vpop.permute.xlu0 %2252
        %2254 = vrot.lane.b32.xlu0 %v533, 16
        %v2255 = vpop.permute.xlu0 %2254
        %2256 = vrot.lane.b32.xlu0 %v539, 16
        %v2257 = vpop.permute.xlu0 %2256
        %2258 = vrot.lane.b32.xlu0 %v545, 16
        %v2259 = vpop.permute.xlu0 %2258
        %2260 = vrot.lane.b32.xlu0 %v551, 16
        %v2261 = vpop.permute.xlu0 %2260
        %2262 = vrot.lane.b32.xlu0 %v557, 16
        %v2263 = vpop.permute.xlu0 %2262
        %2264 = vrot.lane.b32.xlu0 %v563, 16
        %v2265 = vpop.permute.xlu0 %2264
        %2266 = vrot.lane.b32.xlu0 %v569, 16
        %v2267 = vpop.permute.xlu0 %2266
        %v2268 = vsel %vm623, %v2253, 0
        %v2270 = vsel %vm623, %v2255, 0
        %v2272 = vsel %vm623, %v2257, 0
        %v2274 = vsel %vm623, %v2259, 0
        %v2276 = vsel %vm623, %v2261, 0
        %v2278 = vsel %vm623, %v2263, 0
        %v2280 = vsel %vm623, %v2265, 0
        %v2282 = vsel %vm623, %v2267, 0
        %2284 = vmatprep.subr.mxu0 0.0
        %2285 = vmatpush1.msra.mxu0 %v581
        %2286 = vmatprep.subr.mxu0 0.0
        %2287 = vmatpush1.msra.mxu0 0.0
        %2288 = vmatprep.subr.mxu0 0.0
        %2289 = vmatpush1.msra.mxu0 0.0
        %2290 = vmatprep.subr.mxu0 0.0
        %2291 = vmatpush1.msra.mxu0 0.0
        %2292 = vmatprep.subr.mxu0 0.0
        %2293 = vmatpush1.msra.mxu0 0.0
        %2294 = vmatprep.subr.mxu0 0.0
        %2295 = vmatpush1.msra.mxu0 0.0
        %2296 = vmatprep.subr.mxu0 0.0
        %2297 = vmatpush1.msra.mxu0 0.0
        %2298 = vmatprep.subr.mxu0 0.0
        %2299 = vmatpush1.msra.mxu0 0.0
        %2300 = vmatprep.subr.mxu0 0.0
        %2301 = vmatpush1.msra.mxu0 0.0
        %2302 = vmatprep.subr.mxu0 0.0
        %2303 = vmatpush1.msra.mxu0 0.0
        %2304 = vmatprep.subr.mxu0 0.0
        %2305 = vmatpush1.msra.mxu0 0.0
        %2306 = vmatprep.subr.mxu0 0.0
        %2307 = vmatpush1.msra.mxu0 0.0
        %2308 = vmatprep.subr.mxu0 0.0
        %2309 = vmatpush1.msra.mxu0 0.0
        %2310 = vmatprep.subr.mxu0 0.0
        %2311 = vmatpush1.msra.mxu0 0.0
        %2312 = vmatprep.subr.mxu0 0.0
        %2313 = vmatpush1.msra.mxu0 0.0
        %2314 = vmatprep.subr.mxu0 0.0
        %2315 = vmatpush1.msra.mxu0 0.0
        %2316 = vmatprep.subr.mxu0 0.0
        %2317 = vmatpush1.msra.mxu0 0.0
        %2318 = vmatprep.subr.mxu0 0.0
        %2319 = vmatpush1.msra.mxu0 0.0
        %2320 = vmatprep.subr.mxu0 0.0
        %2321 = vmatpush1.msra.mxu0 0.0
        %2322 = vmatprep.subr.mxu0 0.0
        %2323 = vmatpush1.msra.mxu0 0.0
        %2324 = vmatprep.subr.mxu0 0.0
        %2325 = vmatpush1.msra.mxu0 0.0
        %2326 = vmatprep.subr.mxu0 0.0
        %2327 = vmatpush1.msra.mxu0 0.0
        %2328 = vmatprep.subr.mxu0 0.0
        %2329 = vmatpush1.msra.mxu0 0.0
        %2330 = vmatprep.subr.mxu0 0.0
        %2331 = vmatpush1.msra.mxu0 0.0
        %2332 = vmatprep.subr.mxu0 0.0
        %2333 = vmatpush1.msra.mxu0 0.0
        %2334 = vmatprep.subr.mxu0 0.0
        %2335 = vmatpush1.msra.mxu0 0.0
        %2336 = vmatprep.subr.mxu0 0.0
        %2337 = vmatpush1.msra.mxu0 0.0
        %2338 = vmatprep.subr.mxu0 0.0
        %2339 = vmatpush1.msra.mxu0 0.0
        %2340 = vmatprep.subr.mxu0 0.0
        %2341 = vmatpush1.msra.mxu0 0.0
        %2342 = vmatprep.subr.mxu0 0.0
        %2343 = vmatpush1.msra.mxu0 0.0
        %2344 = vmatprep.subr.mxu0 0.0
        %2345 = vmatpush1.msra.mxu0 0.0
        %2346 = vmatprep.subr.mxu0 0.0
        %2347 = vmatpush1.msra.mxu0 0.0
        %2348 = vmatprep.mubr.f32.mxu0 0.0
        %2349 = vmatmul.mubr.f32.gmra.mrb[0].mxu0 %v2268
        %v2350 = vpop.f32.mrb[0].mxu0
        %v2351 = vadd.f32 0.0, %v2350
        %v2352 = vpop.f32.mrb[0].mxu0
        %2353 = vmatprep.mubr.f32.mxu0 0.0
        %2354 = vmatmul.mubr.f32.gmra.mrb[0].mxu0 %v2270
        %v2355 = vpop.f32.mrb[0].mxu0
        %v2356 = vadd.f32 0.0, %v2355
        %v2357 = vpop.f32.mrb[0].mxu0
        %2358 = vmatprep.mubr.f32.mxu0 0.0
        %2359 = vmatmul.mubr.f32.gmra.mrb[0].mxu0 %v2272
        %v2360 = vpop.f32.mrb[0].mxu0
        %v2361 = vadd.f32 0.0, %v2360
        %v2362 = vpop.f32.mrb[0].mxu0
        %2363 = vmatprep.mubr.f32.mxu0 0.0
        %2364 = vmatmul.mubr.f32.gmra.mrb[0].mxu0 %v2274
        %v2365 = vpop.f32.mrb[0].mxu0
        %v2366 = vadd.f32 0.0, %v2365
        %v2367 = vpop.f32.mrb[0].mxu0
        %2368 = vmatprep.mubr.f32.mxu0 0.0
        %2369 = vmatmul.mubr.f32.gmra.mrb[0].mxu0 %v2276
        %v2370 = vpop.f32.mrb[0].mxu0
        %v2371 = vadd.f32 0.0, %v2370
        %v2372 = vpop.f32.mrb[0].mxu0
        %2373 = vmatprep.mubr.f32.mxu0 0.0
        %2374 = vmatmul.mubr.f32.gmra.mrb[0].mxu0 %v2278
        %v2375 = vpop.f32.mrb[0].mxu0
        %v2376 = vadd.f32 0.0, %v2375
        %v2377 = vpop.f32.mrb[0].mxu0
        %2378 = vmatprep.mubr.f32.mxu0 0.0
        %2379 = vmatmul.mubr.f32.gmra.mrb[0].mxu0 %v2280
        %v2380 = vpop.f32.mrb[0].mxu0
        %v2381 = vadd.f32 0.0, %v2380
        %v2382 = vpop.f32.mrb[0].mxu0
        %2383 = vmatprep.mubr.f32.mxu0 0.0
        %2384 = vmatmul.mubr.f32.gmra.mrb[0].mxu0 %v2282
        %v2385 = vpop.f32.mrb[0].mxu0
        %v2386 = vadd.f32 0.0, %v2385
        %v2387 = vpop.f32.mrb[0].mxu0
        %2388 = vdwg.mxu0
        %v2389 = vmul.f32 %v573, %v2351
        %v2390 = vmul.f32 %v574, %v2356
        %v2391 = vmul.f32 %v575, %v2361
        %v2392 = vmul.f32 %v576, %v2366
        %v2393 = vmul.f32 %v577, %v2371
        %v2394 = vmul.f32 %v578, %v2376
        %v2395 = vmul.f32 %v579, %v2381
        %v2396 = vmul.f32 %v580, %v2386
        %v2398 = vsel %vm435, %v2389, 0
        %v2401 = vsel %vm435, %v2390, 0
        %v2404 = vsel %vm435, %v2391, 0
        %v2407 = vsel %vm435, %v2392, 0
        %v2410 = vsel %vm435, %v2393, 0
        %v2413 = vsel %vm435, %v2394, 0
        %v2416 = vsel %vm435, %v2395, 0
        %v2419 = vsel %vm435, %v2396, 0
        %2421 = vmatprep.subr.mxu0 0.0
        %2422 = vmatpush1.msra.mxu0 %v582
        %2423 = vmatprep.subr.mxu0 0.0
        %2424 = vmatpush1.msra.mxu0 %v583
        %2425 = vmatprep.subr.mxu0 0.0
        %2426 = vmatpush1.msra.mxu0 %v584
        %2427 = vmatprep.subr.mxu0 0.0
        %2428 = vmatpush1.msra.mxu0 %v585
        %2429 = vmatprep.subr.mxu0 0.0
        %2430 = vmatpush1.msra.mxu0 %v586
        %2431 = vmatprep.subr.mxu0 0.0
        %2432 = vmatpush1.msra.mxu0 %v587
        %2433 = vmatprep.subr.mxu0 0.0
        %2434 = vmatpush1.msra.mxu0 %v588
        %2435 = vmatprep.subr.mxu0 0.0
        %2436 = vmatpush1.msra.mxu0 %v589
        %2437 = vmatprep.subr.mxu0 0.0
        %2438 = vmatpush1.msra.mxu0 0.0
        %2439 = vmatprep.subr.mxu0 0.0
        %2440 = vmatpush1.msra.mxu0 0.0
        %2441 = vmatprep.subr.mxu0 0.0
        %2442 = vmatpush1.msra.mxu0 0.0
        %2443 = vmatprep.subr.mxu0 0.0
        %2444 = vmatpush1.msra.mxu0 0.0
        %2445 = vmatprep.subr.mxu0 0.0
        %2446 = vmatpush1.msra.mxu0 0.0
        %2447 = vmatprep.subr.mxu0 0.0
        %2448 = vmatpush1.msra.mxu0 0.0
        %2449 = vmatprep.subr.mxu0 0.0
        %2450 = vmatpush1.msra.mxu0 0.0
        %2451 = vmatprep.subr.mxu0 0.0
        %2452 = vmatpush1.msra.mxu0 0.0
        %2453 = vmatprep.subr.mxu0 0.0
        %2454 = vmatpush1.msra.mxu0 0.0
        %2455 = vmatprep.subr.mxu0 0.0
        %2456 = vmatpush1.msra.mxu0 0.0
        %2457 = vmatprep.subr.mxu0 0.0
        %2458 = vmatpush1.msra.mxu0 0.0
        %2459 = vmatprep.subr.mxu0 0.0
        %2460 = vmatpush1.msra.mxu0 0.0
        %2461 = vmatprep.subr.mxu0 0.0
        %2462 = vmatpush1.msra.mxu0 0.0
        %2463 = vmatprep.subr.mxu0 0.0
        %2464 = vmatpush1.msra.mxu0 0.0
        %2465 = vmatprep.subr.mxu0 0.0
        %2466 = vmatpush1.msra.mxu0 0.0
        %2467 = vmatprep.subr.mxu0 0.0
        %2468 = vmatpush1.msra.mxu0 0.0
        %2469 = vmatprep.subr.mxu0 0.0
        %2470 = vmatpush1.msra.mxu0 0.0
        %2471 = vmatprep.subr.mxu0 0.0
        %2472 = vmatpush1.msra.mxu0 0.0
        %2473 = vmatprep.subr.mxu0 0.0
        %2474 = vmatpush1.msra.mxu0 0.0
        %2475 = vmatprep.subr.mxu0 0.0
        %2476 = vmatpush1.msra.mxu0 0.0
        %2477 = vmatprep.subr.mxu0 0.0
        %2478 = vmatpush1.msra.mxu0 0.0
        %2479 = vmatprep.subr.mxu0 0.0
        %2480 = vmatpush1.msra.mxu0 0.0
        %2481 = vmatprep.subr.mxu0 0.0
        %2482 = vmatpush1.msra.mxu0 0.0
        %2483 = vmatprep.subr.mxu0 0.0
        %2484 = vmatpush1.msra.mxu0 0.0
        %2485 = vmatprep.mubr.f32.mxu0 0.0
        %2486 = vmatmul.mubr.f32.gmra.mrb[0].mxu0 %v2398
        %v2487 = vpop.f32.mrb[0].mxu0
        %v2488 = vadd.f32 0.0, %v2487
        %v2489 = vpop.f32.mrb[0].mxu0
        %2490 = vmatprep.mubr.f32.mxu0 0.0
        %2491 = vmatmul.mubr.f32.gmra.mrb[0].mxu0 %v2401
        %v2492 = vpop.f32.mrb[0].mxu0
        %v2493 = vadd.f32 0.0, %v2492
        %v2494 = vpop.f32.mrb[0].mxu0
        %2495 = vmatprep.mubr.f32.mxu0 0.0
        %2496 = vmatmul.mubr.f32.gmra.mrb[0].mxu0 %v2404
        %v2497 = vpop.f32.mrb[0].mxu0
        %v2498 = vadd.f32 0.0, %v2497
        %v2499 = vpop.f32.mrb[0].mxu0
        %2500 = vmatprep.mubr.f32.mxu0 0.0
        %2501 = vmatmul.mubr.f32.gmra.mrb[0].mxu0 %v2407
        %v2502 = vpop.f32.mrb[0].mxu0
        %v2503 = vadd.f32 0.0, %v2502
        %v2504 = vpop.f32.mrb[0].mxu0
        %2505 = vmatprep.mubr.f32.mxu0 0.0
        %2506 = vmatmul.mubr.f32.gmra.mrb[0].mxu0 %v2410
        %v2507 = vpop.f32.mrb[0].mxu0
        %v2508 = vadd.f32 0.0, %v2507
        %v2509 = vpop.f32.mrb[0].mxu0
        %2510 = vmatprep.mubr.f32.mxu0 0.0
        %2511 = vmatmul.mubr.f32.gmra.mrb[0].mxu0 %v2413
        %v2512 = vpop.f32.mrb[0].mxu0
        %v2513 = vadd.f32 0.0, %v2512
        %v2514 = vpop.f32.mrb[0].mxu0
        %2515 = vmatprep.mubr.f32.mxu0 0.0
        %2516 = vmatmul.mubr.f32.gmra.mrb[0].mxu0 %v2416
        %v2517 = vpop.f32.mrb[0].mxu0
        %v2518 = vadd.f32 0.0, %v2517
        %v2519 = vpop.f32.mrb[0].mxu0
        %2520 = vmatprep.mubr.f32.mxu0 0.0
        %2521 = vmatmul.mubr.f32.gmra.mrb[0].mxu0 %v2419
        %v2522 = vpop.f32.mrb[0].mxu0
        %v2523 = vadd.f32 0.0, %v2522
        %v2524 = vpop.f32.mrb[0].mxu0
        %2525 = vdwg.mxu0
        %2526 = vrot.lane.b32.xlu0 %v527, 8
        %v2527 = vpop.permute.xlu0 %2526
        %2528 = vrot.lane.b32.xlu0 %v533, 8
        %v2529 = vpop.permute.xlu0 %2528
        %2530 = vrot.lane.b32.xlu0 %v539, 8
        %v2531 = vpop.permute.xlu0 %2530
        %2532 = vrot.lane.b32.xlu0 %v545, 8
        %v2533 = vpop.permute.xlu0 %2532
        %2534 = vrot.lane.b32.xlu0 %v551, 8
        %v2535 = vpop.permute.xlu0 %2534
        %2536 = vrot.lane.b32.xlu0 %v557, 8
        %v2537 = vpop.permute.xlu0 %2536
        %2538 = vrot.lane.b32.xlu0 %v563, 8
        %v2539 = vpop.permute.xlu0 %2538
        %2540 = vrot.lane.b32.xlu0 %v569, 8
        %v2541 = vpop.permute.xlu0 %2540
        %v2542 = vsel %vm623, %v2527, 0
        %v2544 = vsel %vm623, %v2529, 0
        %v2546 = vsel %vm623, %v2531, 0
        %v2548 = vsel %vm623, %v2533, 0
        %v2550 = vsel %vm623, %v2535, 0
        %v2552 = vsel %vm623, %v2537, 0
        %v2554 = vsel %vm623, %v2539, 0
        %v2556 = vsel %vm623, %v2541, 0
        %2558 = vmatprep.subr.mxu0 0.0
        %2559 = vmatpush1.msra.mxu0 %v581
        %2560 = vmatprep.subr.mxu0 0.0
        %2561 = vmatpush1.msra.mxu0 0.0
        %2562 = vmatprep.subr.mxu0 0.0
        %2563 = vmatpush1.msra.mxu0 0.0
        %2564 = vmatprep.subr.mxu0 0.0
        %2565 = vmatpush1.msra.mxu0 0.0
        %2566 = vmatprep.subr.mxu0 0.0
        %2567 = vmatpush1.msra.mxu0 0.0
        %2568 = vmatprep.subr.mxu0 0.0
        %2569 = vmatpush1.msra.mxu0 0.0
        %2570 = vmatprep.subr.mxu0 0.0
        %2571 = vmatpush1.msra.mxu0 0.0
        %2572 = vmatprep.subr.mxu0 0.0
        %2573 = vmatpush1.msra.mxu0 0.0
        %2574 = vmatprep.subr.mxu0 0.0
        %2575 = vmatpush1.msra.mxu0 0.0
        %2576 = vmatprep.subr.mxu0 0.0
        %2577 = vmatpush1.msra.mxu0 0.0
        %2578 = vmatprep.subr.mxu0 0.0
        %2579 = vmatpush1.msra.mxu0 0.0
        %2580 = vmatprep.subr.mxu0 0.0
        %2581 = vmatpush1.msra.mxu0 0.0
        %2582 = vmatprep.subr.mxu0 0.0
        %2583 = vmatpush1.msra.mxu0 0.0
        %2584 = vmatprep.subr.mxu0 0.0
        %2585 = vmatpush1.msra.mxu0 0.0
        %2586 = vmatprep.subr.mxu0 0.0
        %2587 = vmatpush1.msra.mxu0 0.0
        %2588 = vmatprep.subr.mxu0 0.0
        %2589 = vmatpush1.msra.mxu0 0.0
        %2590 = vmatprep.subr.mxu0 0.0
        %2591 = vmatpush1.msra.mxu0 0.0
        %2592 = vmatprep.subr.mxu0 0.0
        %2593 = vmatpush1.msra.mxu0 0.0
        %2594 = vmatprep.subr.mxu0 0.0
        %2595 = vmatpush1.msra.mxu0 0.0
        %2596 = vmatprep.subr.mxu0 0.0
        %2597 = vmatpush1.msra.mxu0 0.0
        %2598 = vmatprep.subr.mxu0 0.0
        %2599 = vmatpush1.msra.mxu0 0.0
        %2600 = vmatprep.subr.mxu0 0.0
        %2601 = vmatpush1.msra.mxu0 0.0
        %2602 = vmatprep.subr.mxu0 0.0
        %2603 = vmatpush1.msra.mxu0 0.0
        %2604 = vmatprep.subr.mxu0 0.0
        %2605 = vmatpush1.msra.mxu0 0.0
        %2606 = vmatprep.subr.mxu0 0.0
        %2607 = vmatpush1.msra.mxu0 0.0
        %2608 = vmatprep.subr.mxu0 0.0
        %2609 = vmatpush1.msra.mxu0 0.0
        %2610 = vmatprep.subr.mxu0 0.0
        %2611 = vmatpush1.msra.mxu0 0.0
        %2612 = vmatprep.subr.mxu0 0.0
        %2613 = vmatpush1.msra.mxu0 0.0
        %2614 = vmatprep.subr.mxu0 0.0
        %2615 = vmatpush1.msra.mxu0 0.0
        %2616 = vmatprep.subr.mxu0 0.0
        %2617 = vmatpush1.msra.mxu0 0.0
        %2618 = vmatprep.subr.mxu0 0.0
        %2619 = vmatpush1.msra.mxu0 0.0
        %2620 = vmatprep.subr.mxu0 0.0
        %2621 = vmatpush1.msra.mxu0 0.0
        %2622 = vmatprep.mubr.f32.mxu0 0.0
        %2623 = vmatmul.mubr.f32.gmra.mrb[0].mxu0 %v2542
        %v2624 = vpop.f32.mrb[0].mxu0
        %v2625 = vadd.f32 0.0, %v2624
        %v2626 = vpop.f32.mrb[0].mxu0
        %2627 = vmatprep.mubr.f32.mxu0 0.0
        %2628 = vmatmul.mubr.f32.gmra.mrb[0].mxu0 %v2544
        %v2629 = vpop.f32.mrb[0].mxu0
        %v2630 = vadd.f32 0.0, %v2629
        %v2631 = vpop.f32.mrb[0].mxu0
        %2632 = vmatprep.mubr.f32.mxu0 0.0
        %2633 = vmatmul.mubr.f32.gmra.mrb[0].mxu0 %v2546
        %v2634 = vpop.f32.mrb[0].mxu0
        %v2635 = vadd.f32 0.0, %v2634
        %v2636 = vpop.f32.mrb[0].mxu0
        %2637 = vmatprep.mubr.f32.mxu0 0.0
        %2638 = vmatmul.mubr.f32.gmra.mrb[0].mxu0 %v2548
        %v2639 = vpop.f32.mrb[0].mxu0
        %v2640 = vadd.f32 0.0, %v2639
        %v2641 = vpop.f32.mrb[0].mxu0
        %2642 = vmatprep.mubr.f32.mxu0 0.0
        %2643 = vmatmul.mubr.f32.gmra.mrb[0].mxu0 %v2550
        %v2644 = vpop.f32.mrb[0].mxu0
        %v2645 = vadd.f32 0.0, %v2644
        %v2646 = vpop.f32.mrb[0].mxu0
        %2647 = vmatprep.mubr.f32.mxu0 0.0
        %2648 = vmatmul.mubr.f32.gmra.mrb[0].mxu0 %v2552
        %v2649 = vpop.f32.mrb[0].mxu0
        %v2650 = vadd.f32 0.0, %v2649
        %v2651 = vpop.f32.mrb[0].mxu0
        %2652 = vmatprep.mubr.f32.mxu0 0.0
        %2653 = vmatmul.mubr.f32.gmra.mrb[0].mxu0 %v2554
        %v2654 = vpop.f32.mrb[0].mxu0
        %v2655 = vadd.f32 0.0, %v2654
        %v2656 = vpop.f32.mrb[0].mxu0
        %2657 = vmatprep.mubr.f32.mxu0 0.0
        %2658 = vmatmul.mubr.f32.gmra.mrb[0].mxu0 %v2556
        %v2659 = vpop.f32.mrb[0].mxu0
        %v2660 = vadd.f32 0.0, %v2659
        %v2661 = vpop.f32.mrb[0].mxu0
        %2662 = vdwg.mxu0
        %v2663 = vmul.f32 %v573, %v2625
        %v2664 = vmul.f32 %v574, %v2630
        %v2665 = vmul.f32 %v575, %v2635
        %v2666 = vmul.f32 %v576, %v2640
        %v2667 = vmul.f32 %v577, %v2645
        %v2668 = vmul.f32 %v578, %v2650
        %v2669 = vmul.f32 %v579, %v2655
        %v2670 = vmul.f32 %v580, %v2660
        %v2672 = vsel %vm435, %v2663, 0
        %v2675 = vsel %vm435, %v2664, 0
        %v2678 = vsel %vm435, %v2665, 0
        %v2681 = vsel %vm435, %v2666, 0
        %v2684 = vsel %vm435, %v2667, 0
        %v2687 = vsel %vm435, %v2668, 0
        %v2690 = vsel %vm435, %v2669, 0
        %v2693 = vsel %vm435, %v2670, 0
        %2695 = vmatprep.subr.mxu0 0.0
        %2696 = vmatpush1.msra.mxu0 %v582
        %2697 = vmatprep.subr.mxu0 0.0
        %2698 = vmatpush1.msra.mxu0 %v583
        %2699 = vmatprep.subr.mxu0 0.0
        %2700 = vmatpush1.msra.mxu0 %v584
        %2701 = vmatprep.subr.mxu0 0.0
        %2702 = vmatpush1.msra.mxu0 %v585
        %2703 = vmatprep.subr.mxu0 0.0
        %2704 = vmatpush1.msra.mxu0 %v586
        %2705 = vmatprep.subr.mxu0 0.0
        %2706 = vmatpush1.msra.mxu0 %v587
        %2707 = vmatprep.subr.mxu0 0.0
        %2708 = vmatpush1.msra.mxu0 %v588
        %2709 = vmatprep.subr.mxu0 0.0
        %2710 = vmatpush1.msra.mxu0 %v589
        %2711 = vmatprep.subr.mxu0 0.0
        %2712 = vmatpush1.msra.mxu0 0.0
        %2713 = vmatprep.subr.mxu0 0.0
        %2714 = vmatpush1.msra.mxu0 0.0
        %2715 = vmatprep.subr.mxu0 0.0
        %2716 = vmatpush1.msra.mxu0 0.0
        %2717 = vmatprep.subr.mxu0 0.0
        %2718 = vmatpush1.msra.mxu0 0.0
        %2719 = vmatprep.subr.mxu0 0.0
        %2720 = vmatpush1.msra.mxu0 0.0
        %2721 = vmatprep.subr.mxu0 0.0
        %2722 = vmatpush1.msra.mxu0 0.0
        %2723 = vmatprep.subr.mxu0 0.0
        %2724 = vmatpush1.msra.mxu0 0.0
        %2725 = vmatprep.subr.mxu0 0.0
        %2726 = vmatpush1.msra.mxu0 0.0
        %2727 = vmatprep.subr.mxu0 0.0
        %2728 = vmatpush1.msra.mxu0 0.0
        %2729 = vmatprep.subr.mxu0 0.0
        %2730 = vmatpush1.msra.mxu0 0.0
        %2731 = vmatprep.subr.mxu0 0.0
        %2732 = vmatpush1.msra.mxu0 0.0
        %2733 = vmatprep.subr.mxu0 0.0
        %2734 = vmatpush1.msra.mxu0 0.0
        %2735 = vmatprep.subr.mxu0 0.0
        %2736 = vmatpush1.msra.mxu0 0.0
        %2737 = vmatprep.subr.mxu0 0.0
        %2738 = vmatpush1.msra.mxu0 0.0
        %2739 = vmatprep.subr.mxu0 0.0
        %2740 = vmatpush1.msra.mxu0 0.0
        %2741 = vmatprep.subr.mxu0 0.0
        %2742 = vmatpush1.msra.mxu0 0.0
        %2743 = vmatprep.subr.mxu0 0.0
        %2744 = vmatpush1.msra.mxu0 0.0
        %2745 = vmatprep.subr.mxu0 0.0
        %2746 = vmatpush1.msra.mxu0 0.0
        %2747 = vmatprep.subr.mxu0 0.0
        %2748 = vmatpush1.msra.mxu0 0.0
        %2749 = vmatprep.subr.mxu0 0.0
        %2750 = vmatpush1.msra.mxu0 0.0
        %2751 = vmatprep.subr.mxu0 0.0
        %2752 = vmatpush1.msra.mxu0 0.0
        %2753 = vmatprep.subr.mxu0 0.0
        %2754 = vmatpush1.msra.mxu0 0.0
        %2755 = vmatprep.subr.mxu0 0.0
        %2756 = vmatpush1.msra.mxu0 0.0
        %2757 = vmatprep.subr.mxu0 0.0
        %2758 = vmatpush1.msra.mxu0 0.0
        %2759 = vmatprep.mubr.f32.mxu0 0.0
        %2760 = vmatmul.mubr.f32.gmra.mrb[0].mxu0 %v2672
        %v2761 = vpop.f32.mrb[0].mxu0
        %v2762 = vadd.f32 0.0, %v2761
        %v2763 = vpop.f32.mrb[0].mxu0
        %2764 = vmatprep.mubr.f32.mxu0 0.0
        %2765 = vmatmul.mubr.f32.gmra.mrb[0].mxu0 %v2675
        %v2766 = vpop.f32.mrb[0].mxu0
        %v2767 = vadd.f32 0.0, %v2766
        %v2768 = vpop.f32.mrb[0].mxu0
        %2769 = vmatprep.mubr.f32.mxu0 0.0
        %2770 = vmatmul.mubr.f32.gmra.mrb[0].mxu0 %v2678
        %v2771 = vpop.f32.mrb[0].mxu0
        %v2772 = vadd.f32 0.0, %v2771
        %v2773 = vpop.f32.mrb[0].mxu0
        %2774 = vmatprep.mubr.f32.mxu0 0.0
        %2775 = vmatmul.mubr.f32.gmra.mrb[0].mxu0 %v2681
        %v2776 = vpop.f32.mrb[0].mxu0
        %v2777 = vadd.f32 0.0, %v2776
        %v2778 = vpop.f32.mrb[0].mxu0
        %2779 = vmatprep.mubr.f32.mxu0 0.0
        %2780 = vmatmul.mubr.f32.gmra.mrb[0].mxu0 %v2684
        %v2781 = vpop.f32.mrb[0].mxu0
        %v2782 = vadd.f32 0.0, %v2781
        %v2783 = vpop.f32.mrb[0].mxu0
        %2784 = vmatprep.mubr.f32.mxu0 0.0
        %2785 = vmatmul.mubr.f32.gmra.mrb[0].mxu0 %v2687
        %v2786 = vpop.f32.mrb[0].mxu0
        %v2787 = vadd.f32 0.0, %v2786
        %v2788 = vpop.f32.mrb[0].mxu0
        %2789 = vmatprep.mubr.f32.mxu0 0.0
        %2790 = vmatmul.mubr.f32.gmra.mrb[0].mxu0 %v2690
        %v2791 = vpop.f32.mrb[0].mxu0
        %v2792 = vadd.f32 0.0, %v2791
        %v2793 = vpop.f32.mrb[0].mxu0
        %2794 = vmatprep.mubr.f32.mxu0 0.0
        %2795 = vmatmul.mubr.f32.gmra.mrb[0].mxu0 %v2693
        %v2796 = vpop.f32.mrb[0].mxu0
        %v2797 = vadd.f32 0.0, %v2796
        %v2798 = vpop.f32.mrb[0].mxu0
        %2799 = vdwg.mxu0
        %v2800 = vmax.f32 %v844, %v1118
        %v2801 = vmax.f32 %v849, %v1123
        %v2802 = vmax.f32 %v854, %v1128
        %v2803 = vmax.f32 %v859, %v1133
        %v2804 = vmax.f32 %v864, %v1138
        %v2805 = vmax.f32 %v869, %v1143
        %v2806 = vmax.f32 %v874, %v1148
        %v2807 = vmax.f32 %v879, %v1153
        %v2808 = vmax.f32 %v2800, %v1392
        %v2809 = vmax.f32 %v2801, %v1397
        %v2810 = vmax.f32 %v2802, %v1402
        %v2811 = vmax.f32 %v2803, %v1407
        %v2812 = vmax.f32 %v2804, %v1412
        %v2813 = vmax.f32 %v2805, %v1417
        %v2814 = vmax.f32 %v2806, %v1422
        %v2815 = vmax.f32 %v2807, %v1427
        %v2816 = vmax.f32 %v2808, %v1666
        %v2817 = vmax.f32 %v2809, %v1671
        %v2818 = vmax.f32 %v2810, %v1676
        %v2819 = vmax.f32 %v2811, %v1681
        %v2820 = vmax.f32 %v2812, %v1686
        %v2821 = vmax.f32 %v2813, %v1691
        %v2822 = vmax.f32 %v2814, %v1696
        %v2823 = vmax.f32 %v2815, %v1701
        %v2824 = vmax.f32 %v2816, %v1940
        %v2825 = vmax.f32 %v2817, %v1945
        %v2826 = vmax.f32 %v2818, %v1950
        %v2827 = vmax.f32 %v2819, %v1955
        %v2828 = vmax.f32 %v2820, %v1960
        %v2829 = vmax.f32 %v2821, %v1965
        %v2830 = vmax.f32 %v2822, %v1970
        %v2831 = vmax.f32 %v2823, %v1975
        %v2832 = vmax.f32 %v2824, %v2214
        %v2833 = vmax.f32 %v2825, %v2219
        %v2834 = vmax.f32 %v2826, %v2224
        %v2835 = vmax.f32 %v2827, %v2229
        %v2836 = vmax.f32 %v2828, %v2234
        %v2837 = vmax.f32 %v2829, %v2239
        %v2838 = vmax.f32 %v2830, %v2244
        %v2839 = vmax.f32 %v2831, %v2249
        %v2840 = vmax.f32 %v2832, %v2488
        %v2841 = vmax.f32 %v2833, %v2493
        %v2842 = vmax.f32 %v2834, %v2498
        %v2843 = vmax.f32 %v2835, %v2503
        %v2844 = vmax.f32 %v2836, %v2508
        %v2845 = vmax.f32 %v2837, %v2513
        %v2846 = vmax.f32 %v2838, %v2518
        %v2847 = vmax.f32 %v2839, %v2523
        %v2848 = vmax.f32 %v2840, %v2762
        %v2849 = vmax.f32 %v2841, %v2767
        %v2850 = vmax.f32 %v2842, %v2772
        %v2851 = vmax.f32 %v2843, %v2777
        %v2852 = vmax.f32 %v2844, %v2782
        %v2853 = vmax.f32 %v2845, %v2787
        %v2854 = vmax.f32 %v2846, %v2792
        %v2855 = vmax.f32 %v2847, %v2797
        %v2856 = vsub.f32 %v844, %v2848
        %v2857 = vsub.f32 %v849, %v2849
        %v2858 = vsub.f32 %v854, %v2850
        %v2859 = vsub.f32 %v859, %v2851
        %v2860 = vsub.f32 %v864, %v2852
        %v2861 = vsub.f32 %v869, %v2853
        %v2862 = vsub.f32 %v874, %v2854
        %v2863 = vsub.f32 %v879, %v2855
        %v2864 = vmul.f32 %v2856, 1.442695
        %v2865 = vpow.pop %v2864
        %v2866 = vmul.f32 %v2857, 1.442695
        %v2867 = vpow.pop %v2866
        %v2868 = vmul.f32 %v2858, 1.442695
        %v2869 = vpow.pop %v2868
        %v2870 = vmul.f32 %v2859, 1.442695
        %v2871 = vpow.pop %v2870
        %v2872 = vmul.f32 %v2860, 1.442695
        %v2873 = vpow.pop %v2872
        %v2874 = vmul.f32 %v2861, 1.442695
        %v2875 = vpow.pop %v2874
        %v2876 = vmul.f32 %v2862, 1.442695
        %v2877 = vpow.pop %v2876
        %v2878 = vmul.f32 %v2863, 1.442695
        %v2879 = vpow.pop %v2878
        %v2880 = vsub.f32 %v1118, %v2848
        %v2881 = vsub.f32 %v1123, %v2849
        %v2882 = vsub.f32 %v1128, %v2850
        %v2883 = vsub.f32 %v1133, %v2851
        %v2884 = vsub.f32 %v1138, %v2852
        %v2885 = vsub.f32 %v1143, %v2853
        %v2886 = vsub.f32 %v1148, %v2854
        %v2887 = vsub.f32 %v1153, %v2855
        %v2888 = vmul.f32 %v2880, 1.442695
        %v2889 = vpow.pop %v2888
        %v2890 = vmul.f32 %v2881, 1.442695
        %v2891 = vpow.pop %v2890
        %v2892 = vmul.f32 %v2882, 1.442695
        %v2893 = vpow.pop %v2892
        %v2894 = vmul.f32 %v2883, 1.442695
        %v2895 = vpow.pop %v2894
        %v2896 = vmul.f32 %v2884, 1.442695
        %v2897 = vpow.pop %v2896
        %v2898 = vmul.f32 %v2885, 1.442695
        %v2899 = vpow.pop %v2898
        %v2900 = vmul.f32 %v2886, 1.442695
        %v2901 = vpow.pop %v2900
        %v2902 = vmul.f32 %v2887, 1.442695
        %v2903 = vpow.pop %v2902
        %v2904 = vsub.f32 %v1392, %v2848
        %v2905 = vsub.f32 %v1397, %v2849
        %v2906 = vsub.f32 %v1402, %v2850
        %v2907 = vsub.f32 %v1407, %v2851
        %v2908 = vsub.f32 %v1412, %v2852
        %v2909 = vsub.f32 %v1417, %v2853
        %v2910 = vsub.f32 %v1422, %v2854
        %v2911 = vsub.f32 %v1427, %v2855
        %v2912 = vmul.f32 %v2904, 1.442695
        %v2913 = vpow.pop %v2912
        %v2914 = vmul.f32 %v2905, 1.442695
        %v2915 = vpow.pop %v2914
        %v2916 = vmul.f32 %v2906, 1.442695
        %v2917 = vpow.pop %v2916
        %v2918 = vmul.f32 %v2907, 1.442695
        %v2919 = vpow.pop %v2918
        %v2920 = vmul.f32 %v2908, 1.442695
        %v2921 = vpow.pop %v2920
        %v2922 = vmul.f32 %v2909, 1.442695
        %v2923 = vpow.pop %v2922
        %v2924 = vmul.f32 %v2910, 1.442695
        %v2925 = vpow.pop %v2924
        %v2926 = vmul.f32 %v2911, 1.442695
        %v2927 = vpow.pop %v2926
        %v2928 = vsub.f32 %v1666, %v2848
        %v2929 = vsub.f32 %v1671, %v2849
        %v2930 = vsub.f32 %v1676, %v2850
        %v2931 = vsub.f32 %v1681, %v2851
        %v2932 = vsub.f32 %v1686, %v2852
        %v2933 = vsub.f32 %v1691, %v2853
        %v2934 = vsub.f32 %v1696, %v2854
        %v2935 = vsub.f32 %v1701, %v2855
        %v2936 = vmul.f32 %v2928, 1.442695
        %v2937 = vpow.pop %v2936
        %v2938 = vmul.f32 %v2929, 1.442695
        %v2939 = vpow.pop %v2938
        %v2940 = vmul.f32 %v2930, 1.442695
        %v2941 = vpow.pop %v2940
        %v2942 = vmul.f32 %v2931, 1.442695
        %v2943 = vpow.pop %v2942
        %v2944 = vmul.f32 %v2932, 1.442695
        %v2945 = vpow.pop %v2944
        %v2946 = vmul.f32 %v2933, 1.442695
        %v2947 = vpow.pop %v2946
        %v2948 = vmul.f32 %v2934, 1.442695
        %v2949 = vpow.pop %v2948
        %v2950 = vmul.f32 %v2935, 1.442695
        %v2951 = vpow.pop %v2950
        %v2952 = vsub.f32 %v1940, %v2848
        %v2953 = vsub.f32 %v1945, %v2849
        %v2954 = vsub.f32 %v1950, %v2850
        %v2955 = vsub.f32 %v1955, %v2851
        %v2956 = vsub.f32 %v1960, %v2852
        %v2957 = vsub.f32 %v1965, %v2853
        %v2958 = vsub.f32 %v1970, %v2854
        %v2959 = vsub.f32 %v1975, %v2855
        %v2960 = vmul.f32 %v2952, 1.442695
        %v2961 = vpow.pop %v2960
        %v2962 = vmul.f32 %v2953, 1.442695
        %v2963 = vpow.pop %v2962
        %v2964 = vmul.f32 %v2954, 1.442695
        %v2965 = vpow.pop %v2964
        %v2966 = vmul.f32 %v2955, 1.442695
        %v2967 = vpow.pop %v2966
        %v2968 = vmul.f32 %v2956, 1.442695
        %v2969 = vpow.pop %v2968
        %v2970 = vmul.f32 %v2957, 1.442695
        %v2971 = vpow.pop %v2970
        %v2972 = vmul.f32 %v2958, 1.442695
        %v2973 = vpow.pop %v2972
        %v2974 = vmul.f32 %v2959, 1.442695
        %v2975 = vpow.pop %v2974
        %v2976 = vsub.f32 %v2214, %v2848
        %v2977 = vsub.f32 %v2219, %v2849
        %v2978 = vsub.f32 %v2224, %v2850
        %v2979 = vsub.f32 %v2229, %v2851
        %v2980 = vsub.f32 %v2234, %v2852
        %v2981 = vsub.f32 %v2239, %v2853
        %v2982 = vsub.f32 %v2244, %v2854
        %v2983 = vsub.f32 %v2249, %v2855
        %v2984 = vmul.f32 %v2976, 1.442695
        %v2985 = vpow.pop %v2984
        %v2986 = vmul.f32 %v2977, 1.442695
        %v2987 = vpow.pop %v2986
        %v2988 = vmul.f32 %v2978, 1.442695
        %v2989 = vpow.pop %v2988
        %v2990 = vmul.f32 %v2979, 1.442695
        %v2991 = vpow.pop %v2990
        %v2992 = vmul.f32 %v2980, 1.442695
        %v2993 = vpow.pop %v2992
        %v2994 = vmul.f32 %v2981, 1.442695
        %v2995 = vpow.pop %v2994
        %v2996 = vmul.f32 %v2982, 1.442695
        %v2997 = vpow.pop %v2996
        %v2998 = vmul.f32 %v2983, 1.442695
        %v2999 = vpow.pop %v2998
        %v3000 = vsub.f32 %v2488, %v2848
        %v3001 = vsub.f32 %v2493, %v2849
        %v3002 = vsub.f32 %v2498, %v2850
        %v3003 = vsub.f32 %v2503, %v2851
        %v3004 = vsub.f32 %v2508, %v2852
        %v3005 = vsub.f32 %v2513, %v2853
        %v3006 = vsub.f32 %v2518, %v2854
        %v3007 = vsub.f32 %v2523, %v2855
        %v3008 = vmul.f32 %v3000, 1.442695
        %v3009 = vpow.pop %v3008
        %v3010 = vmul.f32 %v3001, 1.442695
        %v3011 = vpow.pop %v3010
        %v3012 = vmul.f32 %v3002, 1.442695
        %v3013 = vpow.pop %v3012
        %v3014 = vmul.f32 %v3003, 1.442695
        %v3015 = vpow.pop %v3014
        %v3016 = vmul.f32 %v3004, 1.442695
        %v3017 = vpow.pop %v3016
        %v3018 = vmul.f32 %v3005, 1.442695
        %v3019 = vpow.pop %v3018
        %v3020 = vmul.f32 %v3006, 1.442695
        %v3021 = vpow.pop %v3020
        %v3022 = vmul.f32 %v3007, 1.442695
        %v3023 = vpow.pop %v3022
        %v3024 = vsub.f32 %v2762, %v2848
        %v3025 = vsub.f32 %v2767, %v2849
        %v3026 = vsub.f32 %v2772, %v2850
        %v3027 = vsub.f32 %v2777, %v2851
        %v3028 = vsub.f32 %v2782, %v2852
        %v3029 = vsub.f32 %v2787, %v2853
        %v3030 = vsub.f32 %v2792, %v2854
        %v3031 = vsub.f32 %v2797, %v2855
        %v3032 = vmul.f32 %v3024, 1.442695
        %v3033 = vpow.pop %v3032
        %v3034 = vmul.f32 %v3025, 1.442695
        %v3035 = vpow.pop %v3034
        %v3036 = vmul.f32 %v3026, 1.442695
        %v3037 = vpow.pop %v3036
        %v3038 = vmul.f32 %v3027, 1.442695
        %v3039 = vpow.pop %v3038
        %v3040 = vmul.f32 %v3028, 1.442695
        %v3041 = vpow.pop %v3040
        %v3042 = vmul.f32 %v3029, 1.442695
        %v3043 = vpow.pop %v3042
        %v3044 = vmul.f32 %v3030, 1.442695
        %v3045 = vpow.pop %v3044
        %v3046 = vmul.f32 %v3031, 1.442695
        %v3047 = vpow.pop %v3046
        %v3048 = vadd.f32 %v2865, %v2889
        %v3049 = vadd.f32 %v2867, %v2891
        %v3050 = vadd.f32 %v2869, %v2893
        %v3051 = vadd.f32 %v2871, %v2895
        %v3052 = vadd.f32 %v2873, %v2897
        %v3053 = vadd.f32 %v2875, %v2899
        %v3054 = vadd.f32 %v2877, %v2901
        %v3055 = vadd.f32 %v2879, %v2903
        %v3056 = vadd.f32 %v3048, %v2913
        %v3057 = vadd.f32 %v3049, %v2915
        %v3058 = vadd.f32 %v3050, %v2917
        %v3059 = vadd.f32 %v3051, %v2919
        %v3060 = vadd.f32 %v3052, %v2921
        %v3061 = vadd.f32 %v3053, %v2923
        %v3062 = vadd.f32 %v3054, %v2925
        %v3063 = vadd.f32 %v3055, %v2927
        %v3064 = vadd.f32 %v3056, %v2937
        %v3065 = vadd.f32 %v3057, %v2939
        %v3066 = vadd.f32 %v3058, %v2941
        %v3067 = vadd.f32 %v3059, %v2943
        %v3068 = vadd.f32 %v3060, %v2945
        %v3069 = vadd.f32 %v3061, %v2947
        %v3070 = vadd.f32 %v3062, %v2949
        %v3071 = vadd.f32 %v3063, %v2951
        %v3072 = vadd.f32 %v3064, %v2961
        %v3073 = vadd.f32 %v3065, %v2963
        %v3074 = vadd.f32 %v3066, %v2965
        %v3075 = vadd.f32 %v3067, %v2967
        %v3076 = vadd.f32 %v3068, %v2969
        %v3077 = vadd.f32 %v3069, %v2971
        %v3078 = vadd.f32 %v3070, %v2973
        %v3079 = vadd.f32 %v3071, %v2975
        %v3080 = vadd.f32 %v3072, %v2985
        %v3081 = vadd.f32 %v3073, %v2987
        %v3082 = vadd.f32 %v3074, %v2989
        %v3083 = vadd.f32 %v3075, %v2991
        %v3084 = vadd.f32 %v3076, %v2993
        %v3085 = vadd.f32 %v3077, %v2995
        %v3086 = vadd.f32 %v3078, %v2997
        %v3087 = vadd.f32 %v3079, %v2999
        %v3088 = vadd.f32 %v3080, %v3009
        %v3089 = vadd.f32 %v3081, %v3011
        %v3090 = vadd.f32 %v3082, %v3013
        %v3091 = vadd.f32 %v3083, %v3015
        %v3092 = vadd.f32 %v3084, %v3017
        %v3093 = vadd.f32 %v3085, %v3019
        %v3094 = vadd.f32 %v3086, %v3021
        %v3095 = vadd.f32 %v3087, %v3023
        %v3096 = vadd.f32 %v3088, %v3033
        %v3097 = vadd.f32 %v3089, %v3035
        %v3098 = vadd.f32 %v3090, %v3037
        %v3099 = vadd.f32 %v3091, %v3039
        %v3100 = vadd.f32 %v3092, %v3041
        %v3101 = vadd.f32 %v3093, %v3043
        %v3102 = vadd.f32 %v3094, %v3045
        %v3103 = vadd.f32 %v3095, %v3047
        %v3104 = vrcp.pop %v3096
        %v3105 = vrcp.pop %v3097
        %v3106 = vrcp.pop %v3098
        %v3107 = vrcp.pop %v3099
        %v3108 = vrcp.pop %v3100
        %v3109 = vrcp.pop %v3101
        %v3110 = vrcp.pop %v3102
        %v3111 = vrcp.pop %v3103
        %v3112 = vmul.f32 %v2865, %v3104
        %v3113 = vmul.f32 %v2867, %v3105
        %v3114 = vmul.f32 %v2869, %v3106
        %v3115 = vmul.f32 %v2871, %v3107
        %v3116 = vmul.f32 %v2873, %v3108
        %v3117 = vmul.f32 %v2875, %v3109
        %v3118 = vmul.f32 %v2877, %v3110
        %v3119 = vmul.f32 %v2879, %v3111
        %v3120 = vmul.f32 %v2889, %v3104
        %v3121 = vmul.f32 %v2891, %v3105
        %v3122 = vmul.f32 %v2893, %v3106
        %v3123 = vmul.f32 %v2895, %v3107
        %v3124 = vmul.f32 %v2897, %v3108
        %v3125 = vmul.f32 %v2899, %v3109
        %v3126 = vmul.f32 %v2901, %v3110
        %v3127 = vmul.f32 %v2903, %v3111
        %v3128 = vmul.f32 %v2913, %v3104
        %v3129 = vmul.f32 %v2915, %v3105
        %v3130 = vmul.f32 %v2917, %v3106
        %v3131 = vmul.f32 %v2919, %v3107
        %v3132 = vmul.f32 %v2921, %v3108
        %v3133 = vmul.f32 %v2923, %v3109
        %v3134 = vmul.f32 %v2925, %v3110
        %v3135 = vmul.f32 %v2927, %v3111
        %v3136 = vmul.f32 %v2937, %v3104
        %v3137 = vmul.f32 %v2939, %v3105
        %v3138 = vmul.f32 %v2941, %v3106
        %v3139 = vmul.f32 %v2943, %v3107
        %v3140 = vmul.f32 %v2945, %v3108
        %v3141 = vmul.f32 %v2947, %v3109
        %v3142 = vmul.f32 %v2949, %v3110
        %v3143 = vmul.f32 %v2951, %v3111
        %v3144 = vmul.f32 %v2961, %v3104
        %v3145 = vmul.f32 %v2963, %v3105
        %v3146 = vmul.f32 %v2965, %v3106
        %v3147 = vmul.f32 %v2967, %v3107
        %v3148 = vmul.f32 %v2969, %v3108
        %v3149 = vmul.f32 %v2971, %v3109
        %v3150 = vmul.f32 %v2973, %v3110
        %v3151 = vmul.f32 %v2975, %v3111
        %v3152 = vmul.f32 %v2985, %v3104
        %v3153 = vmul.f32 %v2987, %v3105
        %v3154 = vmul.f32 %v2989, %v3106
        %v3155 = vmul.f32 %v2991, %v3107
        %v3156 = vmul.f32 %v2993, %v3108
        %v3157 = vmul.f32 %v2995, %v3109
        %v3158 = vmul.f32 %v2997, %v3110
        %v3159 = vmul.f32 %v2999, %v3111
        %v3160 = vmul.f32 %v3009, %v3104
        %v3161 = vmul.f32 %v3011, %v3105
        %v3162 = vmul.f32 %v3013, %v3106
        %v3163 = vmul.f32 %v3015, %v3107
        %v3164 = vmul.f32 %v3017, %v3108
        %v3165 = vmul.f32 %v3019, %v3109
        %v3166 = vmul.f32 %v3021, %v3110
        %v3167 = vmul.f32 %v3023, %v3111
        %v3168 = vmul.f32 %v3033, %v3104
        %v3169 = vmul.f32 %v3035, %v3105
        %v3170 = vmul.f32 %v3037, %v3106
        %v3171 = vmul.f32 %v3039, %v3107
        %v3172 = vmul.f32 %v3041, %v3108
        %v3173 = vmul.f32 %v3043, %v3109
        %v3174 = vmul.f32 %v3045, %v3110
        %v3175 = vmul.f32 %v3047, %v3111
        %v3177 = vsel %vm623, %v3112, 0
        %v3180 = vsel %vm623, %v3113, 0
        %v3183 = vsel %vm623, %v3114, 0
        %v3186 = vsel %vm623, %v3115, 0
        %v3189 = vsel %vm623, %v3116, 0
        %v3192 = vsel %vm623, %v3117, 0
        %v3195 = vsel %vm623, %v3118, 0
        %v3198 = vsel %vm623, %v3119, 0
        %3200 = vmatprep.subr.mxu0 0.0
        %3201 = vmatpush1.msra.mxu0 %v590
        %3202 = vmatprep.subr.mxu0 0.0
        %3203 = vmatpush1.msra.mxu0 0.0
        %3204 = vmatprep.subr.mxu0 0.0
        %3205 = vmatpush1.msra.mxu0 0.0
        %3206 = vmatprep.subr.mxu0 0.0
        %3207 = vmatpush1.msra.mxu0 0.0
        %3208 = vmatprep.subr.mxu0 0.0
        %3209 = vmatpush1.msra.mxu0 0.0
        %3210 = vmatprep.subr.mxu0 0.0
        %3211 = vmatpush1.msra.mxu0 0.0
        %3212 = vmatprep.subr.mxu0 0.0
        %3213 = vmatpush1.msra.mxu0 0.0
        %3214 = vmatprep.subr.mxu0 0.0
        %3215 = vmatpush1.msra.mxu0 0.0
        %3216 = vmatprep.subr.mxu0 0.0
        %3217 = vmatpush1.msra.mxu0 0.0
        %3218 = vmatprep.subr.mxu0 0.0
        %3219 = vmatpush1.msra.mxu0 0.0
        %3220 = vmatprep.subr.mxu0 0.0
        %3221 = vmatpush1.msra.mxu0 0.0
        %3222 = vmatprep.subr.mxu0 0.0
        %3223 = vmatpush1.msra.mxu0 0.0
        %3224 = vmatprep.subr.mxu0 0.0
        %3225 = vmatpush1.msra.mxu0 0.0
        %3226 = vmatprep.subr.mxu0 0.0
        %3227 = vmatpush1.msra.mxu0 0.0
        %3228 = vmatprep.subr.mxu0 0.0
        %3229 = vmatpush1.msra.mxu0 0.0
        %3230 = vmatprep.subr.mxu0 0.0
        %3231 = vmatpush1.msra.mxu0 0.0
        %3232 = vmatprep.subr.mxu0 0.0
        %3233 = vmatpush1.msra.mxu0 0.0
        %3234 = vmatprep.subr.mxu0 0.0
        %3235 = vmatpush1.msra.mxu0 0.0
        %3236 = vmatprep.subr.mxu0 0.0
        %3237 = vmatpush1.msra.mxu0 0.0
        %3238 = vmatprep.subr.mxu0 0.0
        %3239 = vmatpush1.msra.mxu0 0.0
        %3240 = vmatprep.subr.mxu0 0.0
        %3241 = vmatpush1.msra.mxu0 0.0
        %3242 = vmatprep.subr.mxu0 0.0
        %3243 = vmatpush1.msra.mxu0 0.0
        %3244 = vmatprep.subr.mxu0 0.0
        %3245 = vmatpush1.msra.mxu0 0.0
        %3246 = vmatprep.subr.mxu0 0.0
        %3247 = vmatpush1.msra.mxu0 0.0
        %3248 = vmatprep.subr.mxu0 0.0
        %3249 = vmatpush1.msra.mxu0 0.0
        %3250 = vmatprep.subr.mxu0 0.0
        %3251 = vmatpush1.msra.mxu0 0.0
        %3252 = vmatprep.subr.mxu0 0.0
        %3253 = vmatpush1.msra.mxu0 0.0
        %3254 = vmatprep.subr.mxu0 0.0
        %3255 = vmatpush1.msra.mxu0 0.0
        %3256 = vmatprep.subr.mxu0 0.0
        %3257 = vmatpush1.msra.mxu0 0.0
        %3258 = vmatprep.subr.mxu0 0.0
        %3259 = vmatpush1.msra.mxu0 0.0
        %3260 = vmatprep.subr.mxu0 0.0
        %3261 = vmatpush1.msra.mxu0 0.0
        %3262 = vmatprep.subr.mxu0 0.0
        %3263 = vmatpush1.msra.mxu0 0.0
        %3264 = vmatprep.mubr.f32.mxu0 0.0
        %3265 = vmatmul.mubr.f32.gmra.mrb[0].mxu0 %v3177
        %v3266 = vpop.f32.mrb[0].mxu0
        %v3267 = vadd.f32 0.0, %v3266
        %v3268 = vpop.f32.mrb[0].mxu0
        %3269 = vmatprep.mubr.f32.mxu0 0.0
        %3270 = vmatmul.mubr.f32.gmra.mrb[0].mxu0 %v3180
        %v3271 = vpop.f32.mrb[0].mxu0
        %v3272 = vadd.f32 0.0, %v3271
        %v3273 = vpop.f32.mrb[0].mxu0
        %3274 = vmatprep.mubr.f32.mxu0 0.0
        %3275 = vmatmul.mubr.f32.gmra.mrb[0].mxu0 %v3183
        %v3276 = vpop.f32.mrb[0].mxu0
        %v3277 = vadd.f32 0.0, %v3276
        %v3278 = vpop.f32.mrb[0].mxu0
        %3279 = vmatprep.mubr.f32.mxu0 0.0
        %3280 = vmatmul.mubr.f32.gmra.mrb[0].mxu0 %v3186
        %v3281 = vpop.f32.mrb[0].mxu0
        %v3282 = vadd.f32 0.0, %v3281
        %v3283 = vpop.f32.mrb[0].mxu0
        %3284 = vmatprep.mubr.f32.mxu0 0.0
        %3285 = vmatmul.mubr.f32.gmra.mrb[0].mxu0 %v3189
        %v3286 = vpop.f32.mrb[0].mxu0
        %v3287 = vadd.f32 0.0, %v3286
        %v3288 = vpop.f32.mrb[0].mxu0
        %3289 = vmatprep.mubr.f32.mxu0 0.0
        %3290 = vmatmul.mubr.f32.gmra.mrb[0].mxu0 %v3192
        %v3291 = vpop.f32.mrb[0].mxu0
        %v3292 = vadd.f32 0.0, %v3291
        %v3293 = vpop.f32.mrb[0].mxu0
        %3294 = vmatprep.mubr.f32.mxu0 0.0
        %3295 = vmatmul.mubr.f32.gmra.mrb[0].mxu0 %v3195
        %v3296 = vpop.f32.mrb[0].mxu0
        %v3297 = vadd.f32 0.0, %v3296
        %v3298 = vpop.f32.mrb[0].mxu0
        %3299 = vmatprep.mubr.f32.mxu0 0.0
        %3300 = vmatmul.mubr.f32.gmra.mrb[0].mxu0 %v3198
        %v3301 = vpop.f32.mrb[0].mxu0
        %v3302 = vadd.f32 0.0, %v3301
        %v3303 = vpop.f32.mrb[0].mxu0
        %3304 = vdwg.mxu0
        %v3306 = vsel %vm623, %v529, 0
        %v3309 = vsel %vm623, %v535, 0
        %v3312 = vsel %vm623, %v541, 0
        %v3315 = vsel %vm623, %v547, 0
        %v3318 = vsel %vm623, %v553, 0
        %v3321 = vsel %vm623, %v559, 0
        %v3324 = vsel %vm623, %v565, 0
        %v3327 = vsel %vm623, %v571, 0
        %3329 = vmatprep.subr.mxu0 0.0
        %3330 = vmatpush1.msra.mxu0 %v581
        %3331 = vmatprep.subr.mxu0 0.0
        %3332 = vmatpush1.msra.mxu0 0.0
        %3333 = vmatprep.subr.mxu0 0.0
        %3334 = vmatpush1.msra.mxu0 0.0
        %3335 = vmatprep.subr.mxu0 0.0
        %3336 = vmatpush1.msra.mxu0 0.0
        %3337 = vmatprep.subr.mxu0 0.0
        %3338 = vmatpush1.msra.mxu0 0.0
        %3339 = vmatprep.subr.mxu0 0.0
        %3340 = vmatpush1.msra.mxu0 0.0
        %3341 = vmatprep.subr.mxu0 0.0
        %3342 = vmatpush1.msra.mxu0 0.0
        %3343 = vmatprep.subr.mxu0 0.0
        %3344 = vmatpush1.msra.mxu0 0.0
        %3345 = vmatprep.subr.mxu0 0.0
        %3346 = vmatpush1.msra.mxu0 0.0
        %3347 = vmatprep.subr.mxu0 0.0
        %3348 = vmatpush1.msra.mxu0 0.0
        %3349 = vmatprep.subr.mxu0 0.0
        %3350 = vmatpush1.msra.mxu0 0.0
        %3351 = vmatprep.subr.mxu0 0.0
        %3352 = vmatpush1.msra.mxu0 0.0
        %3353 = vmatprep.subr.mxu0 0.0
        %3354 = vmatpush1.msra.mxu0 0.0
        %3355 = vmatprep.subr.mxu0 0.0
        %3356 = vmatpush1.msra.mxu0 0.0
        %3357 = vmatprep.subr.mxu0 0.0
        %3358 = vmatpush1.msra.mxu0 0.0
        %3359 = vmatprep.subr.mxu0 0.0
        %3360 = vmatpush1.msra.mxu0 0.0
        %3361 = vmatprep.subr.mxu0 0.0
        %3362 = vmatpush1.msra.mxu0 0.0
        %3363 = vmatprep.subr.mxu0 0.0
        %3364 = vmatpush1.msra.mxu0 0.0
        %3365 = vmatprep.subr.mxu0 0.0
        %3366 = vmatpush1.msra.mxu0 0.0
        %3367 = vmatprep.subr.mxu0 0.0
        %3368 = vmatpush1.msra.mxu0 0.0
        %3369 = vmatprep.subr.mxu0 0.0
        %3370 = vmatpush1.msra.mxu0 0.0
        %3371 = vmatprep.subr.mxu0 0.0
        %3372 = vmatpush1.msra.mxu0 0.0
        %3373 = vmatprep.subr.mxu0 0.0
        %3374 = vmatpush1.msra.mxu0 0.0
        %3375 = vmatprep.subr.mxu0 0.0
        %3376 = vmatpush1.msra.mxu0 0.0
        %3377 = vmatprep.subr.mxu0 0.0
        %3378 = vmatpush1.msra.mxu0 0.0
        %3379 = vmatprep.subr.mxu0 0.0
        %3380 = vmatpush1.msra.mxu0 0.0
        %3381 = vmatprep.subr.mxu0 0.0
        %3382 = vmatpush1.msra.mxu0 0.0
        %3383 = vmatprep.subr.mxu0 0.0
        %3384 = vmatpush1.msra.mxu0 0.0
        %3385 = vmatprep.subr.mxu0 0.0
        %3386 = vmatpush1.msra.mxu0 0.0
        %3387 = vmatprep.subr.mxu0 0.0
        %3388 = vmatpush1.msra.mxu0 0.0
        %3389 = vmatprep.subr.mxu0 0.0
        %3390 = vmatpush1.msra.mxu0 0.0
        %3391 = vmatprep.subr.mxu0 0.0
        %3392 = vmatpush1.msra.mxu0 0.0
        %3393 = vmatprep.mubr.f32.mxu0 0.0
        %3394 = vmatmul.mubr.f32.gmra.mrb[0].mxu0 %v3306
        %v3395 = vpop.f32.mrb[0].mxu0
        %v3396 = vadd.f32 0.0, %v3395
        %v3397 = vpop.f32.mrb[0].mxu0
        %3398 = vmatprep.mubr.f32.mxu0 0.0
        %3399 = vmatmul.mubr.f32.gmra.mrb[0].mxu0 %v3309
        %v3400 = vpop.f32.mrb[0].mxu0
        %v3401 = vadd.f32 0.0, %v3400
        %v3402 = vpop.f32.mrb[0].mxu0
        %3403 = vmatprep.mubr.f32.mxu0 0.0
        %3404 = vmatmul.mubr.f32.gmra.mrb[0].mxu0 %v3312
        %v3405 = vpop.f32.mrb[0].mxu0
        %v3406 = vadd.f32 0.0, %v3405
        %v3407 = vpop.f32.mrb[0].mxu0
        %3408 = vmatprep.mubr.f32.mxu0 0.0
        %3409 = vmatmul.mubr.f32.gmra.mrb[0].mxu0 %v3315
        %v3410 = vpop.f32.mrb[0].mxu0
        %v3411 = vadd.f32 0.0, %v3410
        %v3412 = vpop.f32.mrb[0].mxu0
        %3413 = vmatprep.mubr.f32.mxu0 0.0
        %3414 = vmatmul.mubr.f32.gmra.mrb[0].mxu0 %v3318
        %v3415 = vpop.f32.mrb[0].mxu0
        %v3416 = vadd.f32 0.0, %v3415
        %v3417 = vpop.f32.mrb[0].mxu0
        %3418 = vmatprep.mubr.f32.mxu0 0.0
        %3419 = vmatmul.mubr.f32.gmra.mrb[0].mxu0 %v3321
        %v3420 = vpop.f32.mrb[0].mxu0
        %v3421 = vadd.f32 0.0, %v3420
        %v3422 = vpop.f32.mrb[0].mxu0
        %3423 = vmatprep.mubr.f32.mxu0 0.0
        %3424 = vmatmul.mubr.f32.gmra.mrb[0].mxu0 %v3324
        %v3425 = vpop.f32.mrb[0].mxu0
        %v3426 = vadd.f32 0.0, %v3425
        %v3427 = vpop.f32.mrb[0].mxu0
        %3428 = vmatprep.mubr.f32.mxu0 0.0
        %3429 = vmatmul.mubr.f32.gmra.mrb[0].mxu0 %v3327
        %v3430 = vpop.f32.mrb[0].mxu0
        %v3431 = vadd.f32 0.0, %v3430
        %v3432 = vpop.f32.mrb[0].mxu0
        %3433 = vdwg.mxu0
        %v3434 = vmul.f32 %v3267, %v3396
        %v3435 = vmul.f32 %v3272, %v3401
        %v3436 = vmul.f32 %v3277, %v3406
        %v3437 = vmul.f32 %v3282, %v3411
        %v3438 = vmul.f32 %v3287, %v3416
        %v3439 = vmul.f32 %v3292, %v3421
        %v3440 = vmul.f32 %v3297, %v3426
        %v3441 = vmul.f32 %v3302, %v3431
        %v3442 = vadd.f32 %v3434, 0.0
        %v3443 = vadd.f32 %v3435, 0.0
        %v3444 = vadd.f32 %v3436, 0.0
        %v3445 = vadd.f32 %v3437, 0.0
        %v3446 = vadd.f32 %v3438, 0.0
        %v3447 = vadd.f32 %v3439, 0.0
        %v3448 = vadd.f32 %v3440, 0.0
        %v3449 = vadd.f32 %v3441, 0.0
        %v3451 = vsel %vm623, %v3120, 0
        %v3454 = vsel %vm623, %v3121, 0
        %v3457 = vsel %vm623, %v3122, 0
        %v3460 = vsel %vm623, %v3123, 0
        %v3463 = vsel %vm623, %v3124, 0
        %v3466 = vsel %vm623, %v3125, 0
        %v3469 = vsel %vm623, %v3126, 0
        %v3472 = vsel %vm623, %v3127, 0
        %3474 = vmatprep.subr.mxu0 0.0
        %3475 = vmatpush1.msra.mxu0 %v592
        %3476 = vmatprep.subr.mxu0 0.0
        %3477 = vmatpush1.msra.mxu0 0.0
        %3478 = vmatprep.subr.mxu0 0.0
        %3479 = vmatpush1.msra.mxu0 0.0
        %3480 = vmatprep.subr.mxu0 0.0
        %3481 = vmatpush1.msra.mxu0 0.0
        %3482 = vmatprep.subr.mxu0 0.0
        %3483 = vmatpush1.msra.mxu0 0.0
        %3484 = vmatprep.subr.mxu0 0.0
        %3485 = vmatpush1.msra.mxu0 0.0
        %3486 = vmatprep.subr.mxu0 0.0
        %3487 = vmatpush1.msra.mxu0 0.0
        %3488 = vmatprep.subr.mxu0 0.0
        %3489 = vmatpush1.msra.mxu0 0.0
        %3490 = vmatprep.subr.mxu0 0.0
        %3491 = vmatpush1.msra.mxu0 0.0
        %3492 = vmatprep.subr.mxu0 0.0
        %3493 = vmatpush1.msra.mxu0 0.0
        %3494 = vmatprep.subr.mxu0 0.0
        %3495 = vmatpush1.msra.mxu0 0.0
        %3496 = vmatprep.subr.mxu0 0.0
        %3497 = vmatpush1.msra.mxu0 0.0
        %3498 = vmatprep.subr.mxu0 0.0
        %3499 = vmatpush1.msra.mxu0 0.0
        %3500 = vmatprep.subr.mxu0 0.0
        %3501 = vmatpush1.msra.mxu0 0.0
        %3502 = vmatprep.subr.mxu0 0.0
        %3503 = vmatpush1.msra.mxu0 0.0
        %3504 = vmatprep.subr.mxu0 0.0
        %3505 = vmatpush1.msra.mxu0 0.0
        %3506 = vmatprep.subr.mxu0 0.0
        %3507 = vmatpush1.msra.mxu0 0.0
        %3508 = vmatprep.subr.mxu0 0.0
        %3509 = vmatpush1.msra.mxu0 0.0
        %3510 = vmatprep.subr.mxu0 0.0
        %3511 = vmatpush1.msra.mxu0 0.0
        %3512 = vmatprep.subr.mxu0 0.0
        %3513 = vmatpush1.msra.mxu0 0.0
        %3514 = vmatprep.subr.mxu0 0.0
        %3515 = vmatpush1.msra.mxu0 0.0
        %3516 = vmatprep.subr.mxu0 0.0
        %3517 = vmatpush1.msra.mxu0 0.0
        %3518 = vmatprep.subr.mxu0 0.0
        %3519 = vmatpush1.msra.mxu0 0.0
        %3520 = vmatprep.subr.mxu0 0.0
        %3521 = vmatpush1.msra.mxu0 0.0
        %3522 = vmatprep.subr.mxu0 0.0
        %3523 = vmatpush1.msra.mxu0 0.0
        %3524 = vmatprep.subr.mxu0 0.0
        %3525 = vmatpush1.msra.mxu0 0.0
        %3526 = vmatprep.subr.mxu0 0.0
        %3527 = vmatpush1.msra.mxu0 0.0
        %3528 = vmatprep.subr.mxu0 0.0
        %3529 = vmatpush1.msra.mxu0 0.0
        %3530 = vmatprep.subr.mxu0 0.0
        %3531 = vmatpush1.msra.mxu0 0.0
        %3532 = vmatprep.subr.mxu0 0.0
        %3533 = vmatpush1.msra.mxu0 0.0
        %3534 = vmatprep.subr.mxu0 0.0
        %3535 = vmatpush1.msra.mxu0 0.0
        %3536 = vmatprep.subr.mxu0 0.0
        %3537 = vmatpush1.msra.mxu0 0.0
        %3538 = vmatprep.mubr.f32.mxu0 0.0
        %3539 = vmatmul.mubr.f32.gmra.mrb[0].mxu0 %v3451
        %v3540 = vpop.f32.mrb[0].mxu0
        %v3541 = vadd.f32 0.0, %v3540
        %v3542 = vpop.f32.mrb[0].mxu0
        %3543 = vmatprep.mubr.f32.mxu0 0.0
        %3544 = vmatmul.mubr.f32.gmra.mrb[0].mxu0 %v3454
        %v3545 = vpop.f32.mrb[0].mxu0
        %v3546 = vadd.f32 0.0, %v3545
        %v3547 = vpop.f32.mrb[0].mxu0
        %3548 = vmatprep.mubr.f32.mxu0 0.0
        %3549 = vmatmul.mubr.f32.gmra.mrb[0].mxu0 %v3457
        %v3550 = vpop.f32.mrb[0].mxu0
        %v3551 = vadd.f32 0.0, %v3550
        %v3552 = vpop.f32.mrb[0].mxu0
        %3553 = vmatprep.mubr.f32.mxu0 0.0
        %3554 = vmatmul.mubr.f32.gmra.mrb[0].mxu0 %v3460
        %v3555 = vpop.f32.mrb[0].mxu0
        %v3556 = vadd.f32 0.0, %v3555
        %v3557 = vpop.f32.mrb[0].mxu0
        %3558 = vmatprep.mubr.f32.mxu0 0.0
        %3559 = vmatmul.mubr.f32.gmra.mrb[0].mxu0 %v3463
        %v3560 = vpop.f32.mrb[0].mxu0
        %v3561 = vadd.f32 0.0, %v3560
        %v3562 = vpop.f32.mrb[0].mxu0
        %3563 = vmatprep.mubr.f32.mxu0 0.0
        %3564 = vmatmul.mubr.f32.gmra.mrb[0].mxu0 %v3466
        %v3565 = vpop.f32.mrb[0].mxu0
        %v3566 = vadd.f32 0.0, %v3565
        %v3567 = vpop.f32.mrb[0].mxu0
        %3568 = vmatprep.mubr.f32.mxu0 0.0
        %3569 = vmatmul.mubr.f32.gmra.mrb[0].mxu0 %v3469
        %v3570 = vpop.f32.mrb[0].mxu0
        %v3571 = vadd.f32 0.0, %v3570
        %v3572 = vpop.f32.mrb[0].mxu0
        %3573 = vmatprep.mubr.f32.mxu0 0.0
        %3574 = vmatmul.mubr.f32.gmra.mrb[0].mxu0 %v3472
        %v3575 = vpop.f32.mrb[0].mxu0
        %v3576 = vadd.f32 0.0, %v3575
        %v3577 = vpop.f32.mrb[0].mxu0
        %3578 = vdwg.mxu0
        %3579 = vmatprep.subr.mxu0 0.0
        %3580 = vmatpush1.msra.mxu0 %v591
        %3581 = vmatprep.subr.mxu0 0.0
        %3582 = vmatpush1.msra.mxu0 0.0
        %3583 = vmatprep.subr.mxu0 0.0
        %3584 = vmatpush1.msra.mxu0 0.0
        %3585 = vmatprep.subr.mxu0 0.0
        %3586 = vmatpush1.msra.mxu0 0.0
        %3587 = vmatprep.subr.mxu0 0.0
        %3588 = vmatpush1.msra.mxu0 0.0
        %3589 = vmatprep.subr.mxu0 0.0
        %3590 = vmatpush1.msra.mxu0 0.0
        %3591 = vmatprep.subr.mxu0 0.0
        %3592 = vmatpush1.msra.mxu0 0.0
        %3593 = vmatprep.subr.mxu0 0.0
        %3594 = vmatpush1.msra.mxu0 0.0
        %3595 = vmatprep.subr.mxu0 0.0
        %3596 = vmatpush1.msra.mxu0 0.0
        %3597 = vmatprep.subr.mxu0 0.0
        %3598 = vmatpush1.msra.mxu0 0.0
        %3599 = vmatprep.subr.mxu0 0.0
        %3600 = vmatpush1.msra.mxu0 0.0
        %3601 = vmatprep.subr.mxu0 0.0
        %3602 = vmatpush1.msra.mxu0 0.0
        %3603 = vmatprep.subr.mxu0 0.0
        %3604 = vmatpush1.msra.mxu0 0.0
        %3605 = vmatprep.subr.mxu0 0.0
        %3606 = vmatpush1.msra.mxu0 0.0
        %3607 = vmatprep.subr.mxu0 0.0
        %3608 = vmatpush1.msra.mxu0 0.0
        %3609 = vmatprep.subr.mxu0 0.0
        %3610 = vmatpush1.msra.mxu0 0.0
        %3611 = vmatprep.subr.mxu0 0.0
        %3612 = vmatpush1.msra.mxu0 0.0
        %3613 = vmatprep.subr.mxu0 0.0
        %3614 = vmatpush1.msra.mxu0 0.0
        %3615 = vmatprep.subr.mxu0 0.0
        %3616 = vmatpush1.msra.mxu0 0.0
        %3617 = vmatprep.subr.mxu0 0.0
        %3618 = vmatpush1.msra.mxu0 0.0
        %3619 = vmatprep.subr.mxu0 0.0
        %3620 = vmatpush1.msra.mxu0 0.0
        %3621 = vmatprep.subr.mxu0 0.0
        %3622 = vmatpush1.msra.mxu0 0.0
        %3623 = vmatprep.subr.mxu0 0.0
        %3624 = vmatpush1.msra.mxu0 0.0
        %3625 = vmatprep.subr.mxu0 0.0
        %3626 = vmatpush1.msra.mxu0 0.0
        %3627 = vmatprep.subr.mxu0 0.0
        %3628 = vmatpush1.msra.mxu0 0.0
        %3629 = vmatprep.subr.mxu0 0.0
        %3630 = vmatpush1.msra.mxu0 0.0
        %3631 = vmatprep.subr.mxu0 0.0
        %3632 = vmatpush1.msra.mxu0 0.0
        %3633 = vmatprep.subr.mxu0 0.0
        %3634 = vmatpush1.msra.mxu0 0.0
        %3635 = vmatprep.subr.mxu0 0.0
        %3636 = vmatpush1.msra.mxu0 0.0
        %3637 = vmatprep.subr.mxu0 0.0
        %3638 = vmatpush1.msra.mxu0 0.0
        %3639 = vmatprep.subr.mxu0 0.0
        %3640 = vmatpush1.msra.mxu0 0.0
        %3641 = vmatprep.subr.mxu0 0.0
        %3642 = vmatpush1.msra.mxu0 0.0
        %3643 = vmatprep.mubr.f32.mxu0 0.0
        %3644 = vmatmul.mubr.f32.gmra.mrb[0].mxu0 %v3177
        %v3645 = vpop.f32.mrb[0].mxu0
        %v3646 = vadd.f32 %v3541, %v3645
        %v3647 = vpop.f32.mrb[0].mxu0
        %3648 = vmatprep.mubr.f32.mxu0 0.0
        %3649 = vmatmul.mubr.f32.gmra.mrb[0].mxu0 %v3180
        %v3650 = vpop.f32.mrb[0].mxu0
        %v3651 = vadd.f32 %v3546, %v3650
        %v3652 = vpop.f32.mrb[0].mxu0
        %3653 = vmatprep.mubr.f32.mxu0 0.0
        %3654 = vmatmul.mubr.f32.gmra.mrb[0].mxu0 %v3183
        %v3655 = vpop.f32.mrb[0].mxu0
        %v3656 = vadd.f32 %v3551, %v3655
        %v3657 = vpop.f32.mrb[0].mxu0
        %3658 = vmatprep.mubr.f32.mxu0 0.0
        %3659 = vmatmul.mubr.f32.gmra.mrb[0].mxu0 %v3186
        %v3660 = vpop.f32.mrb[0].mxu0
        %v3661 = vadd.f32 %v3556, %v3660
        %v3662 = vpop.f32.mrb[0].mxu0
        %3663 = vmatprep.mubr.f32.mxu0 0.0
        %3664 = vmatmul.mubr.f32.gmra.mrb[0].mxu0 %v3189
        %v3665 = vpop.f32.mrb[0].mxu0
        %v3666 = vadd.f32 %v3561, %v3665
        %v3667 = vpop.f32.mrb[0].mxu0
        %3668 = vmatprep.mubr.f32.mxu0 0.0
        %3669 = vmatmul.mubr.f32.gmra.mrb[0].mxu0 %v3192
        %v3670 = vpop.f32.mrb[0].mxu0
        %v3671 = vadd.f32 %v3566, %v3670
        %v3672 = vpop.f32.mrb[0].mxu0
        %3673 = vmatprep.mubr.f32.mxu0 0.0
        %3674 = vmatmul.mubr.f32.gmra.mrb[0].mxu0 %v3195
        %v3675 = vpop.f32.mrb[0].mxu0
        %v3676 = vadd.f32 %v3571, %v3675
        %v3677 = vpop.f32.mrb[0].mxu0
        %3678 = vmatprep.mubr.f32.mxu0 0.0
        %3679 = vmatmul.mubr.f32.gmra.mrb[0].mxu0 %v3198
        %v3680 = vpop.f32.mrb[0].mxu0
        %v3681 = vadd.f32 %v3576, %v3680
        %v3682 = vpop.f32.mrb[0].mxu0
        %3683 = vdwg.mxu0
        %3684 = vmatprep.subr.mxu0 0.0
        %3685 = vmatpush1.msra.mxu0 %v590
        %3686 = vmatprep.subr.mxu0 0.0
        %3687 = vmatpush1.msra.mxu0 0.0
        %3688 = vmatprep.subr.mxu0 0.0
        %3689 = vmatpush1.msra.mxu0 0.0
        %3690 = vmatprep.subr.mxu0 0.0
        %3691 = vmatpush1.msra.mxu0 0.0
        %3692 = vmatprep.subr.mxu0 0.0
        %3693 = vmatpush1.msra.mxu0 0.0
        %3694 = vmatprep.subr.mxu0 0.0
        %3695 = vmatpush1.msra.mxu0 0.0
        %3696 = vmatprep.subr.mxu0 0.0
        %3697 = vmatpush1.msra.mxu0 0.0
        %3698 = vmatprep.subr.mxu0 0.0
        %3699 = vmatpush1.msra.mxu0 0.0
        %3700 = vmatprep.subr.mxu0 0.0
        %3701 = vmatpush1.msra.mxu0 0.0
        %3702 = vmatprep.subr.mxu0 0.0
        %3703 = vmatpush1.msra.mxu0 0.0
        %3704 = vmatprep.subr.mxu0 0.0
        %3705 = vmatpush1.msra.mxu0 0.0
        %3706 = vmatprep.subr.mxu0 0.0
        %3707 = vmatpush1.msra.mxu0 0.0
        %3708 = vmatprep.subr.mxu0 0.0
        %3709 = vmatpush1.msra.mxu0 0.0
        %3710 = vmatprep.subr.mxu0 0.0
        %3711 = vmatpush1.msra.mxu0 0.0
        %3712 = vmatprep.subr.mxu0 0.0
        %3713 = vmatpush1.msra.mxu0 0.0
        %3714 = vmatprep.subr.mxu0 0.0
        %3715 = vmatpush1.msra.mxu0 0.0
        %3716 = vmatprep.subr.mxu0 0.0
        %3717 = vmatpush1.msra.mxu0 0.0
        %3718 = vmatprep.subr.mxu0 0.0
        %3719 = vmatpush1.msra.mxu0 0.0
        %3720 = vmatprep.subr.mxu0 0.0
        %3721 = vmatpush1.msra.mxu0 0.0
        %3722 = vmatprep.subr.mxu0 0.0
        %3723 = vmatpush1.msra.mxu0 0.0
        %3724 = vmatprep.subr.mxu0 0.0
        %3725 = vmatpush1.msra.mxu0 0.0
        %3726 = vmatprep.subr.mxu0 0.0
        %3727 = vmatpush1.msra.mxu0 0.0
        %3728 = vmatprep.subr.mxu0 0.0
        %3729 = vmatpush1.msra.mxu0 0.0
        %3730 = vmatprep.subr.mxu0 0.0
        %3731 = vmatpush1.msra.mxu0 0.0
        %3732 = vmatprep.subr.mxu0 0.0
        %3733 = vmatpush1.msra.mxu0 0.0
        %3734 = vmatprep.subr.mxu0 0.0
        %3735 = vmatpush1.msra.mxu0 0.0
        %3736 = vmatprep.subr.mxu0 0.0
        %3737 = vmatpush1.msra.mxu0 0.0
        %3738 = vmatprep.subr.mxu0 0.0
        %3739 = vmatpush1.msra.mxu0 0.0
        %3740 = vmatprep.subr.mxu0 0.0
        %3741 = vmatpush1.msra.mxu0 0.0
        %3742 = vmatprep.subr.mxu0 0.0
        %3743 = vmatpush1.msra.mxu0 0.0
        %3744 = vmatprep.subr.mxu0 0.0
        %3745 = vmatpush1.msra.mxu0 0.0
        %3746 = vmatprep.subr.mxu0 0.0
        %3747 = vmatpush1.msra.mxu0 0.0
        %3748 = vmatprep.mubr.f32.mxu0 0.0
        %3749 = vmatmul.mubr.f32.gmra.mrb[0].mxu0 %v3451
        %v3750 = vpop.f32.mrb[0].mxu0
        %v3751 = vadd.f32 0.0, %v3750
        %v3752 = vpop.f32.mrb[0].mxu0
        %3753 = vmatprep.mubr.f32.mxu0 0.0
        %3754 = vmatmul.mubr.f32.gmra.mrb[0].mxu0 %v3454
        %v3755 = vpop.f32.mrb[0].mxu0
        %v3756 = vadd.f32 0.0, %v3755
        %v3757 = vpop.f32.mrb[0].mxu0
        %3758 = vmatprep.mubr.f32.mxu0 0.0
        %3759 = vmatmul.mubr.f32.gmra.mrb[0].mxu0 %v3457
        %v3760 = vpop.f32.mrb[0].mxu0
        %v3761 = vadd.f32 0.0, %v3760
        %v3762 = vpop.f32.mrb[0].mxu0
        %3763 = vmatprep.mubr.f32.mxu0 0.0
        %3764 = vmatmul.mubr.f32.gmra.mrb[0].mxu0 %v3460
        %v3765 = vpop.f32.mrb[0].mxu0
        %v3766 = vadd.f32 0.0, %v3765
        %v3767 = vpop.f32.mrb[0].mxu0
        %3768 = vmatprep.mubr.f32.mxu0 0.0
        %3769 = vmatmul.mubr.f32.gmra.mrb[0].mxu0 %v3463
        %v3770 = vpop.f32.mrb[0].mxu0
        %v3771 = vadd.f32 0.0, %v3770
        %v3772 = vpop.f32.mrb[0].mxu0
        %3773 = vmatprep.mubr.f32.mxu0 0.0
        %3774 = vmatmul.mubr.f32.gmra.mrb[0].mxu0 %v3466
        %v3775 = vpop.f32.mrb[0].mxu0
        %v3776 = vadd.f32 0.0, %v3775
        %v3777 = vpop.f32.mrb[0].mxu0
        %3778 = vmatprep.mubr.f32.mxu0 0.0
        %3779 = vmatmul.mubr.f32.gmra.mrb[0].mxu0 %v3469
        %v3780 = vpop.f32.mrb[0].mxu0
        %v3781 = vadd.f32 0.0, %v3780
        %v3782 = vpop.f32.mrb[0].mxu0
        %3783 = vmatprep.mubr.f32.mxu0 0.0
        %3784 = vmatmul.mubr.f32.gmra.mrb[0].mxu0 %v3472
        %v3785 = vpop.f32.mrb[0].mxu0
        %v3786 = vadd.f32 0.0, %v3785
        %v3787 = vpop.f32.mrb[0].mxu0
        %3788 = vdwg.mxu0
        %3789 = vrot.lane.b32.xlu0 %v529, 120
        %v3790 = vpop.permute.xlu0 %3789
        %3791 = vrot.lane.b32.xlu0 %v535, 120
        %v3792 = vpop.permute.xlu0 %3791
        %3793 = vrot.lane.b32.xlu0 %v541, 120
        %v3794 = vpop.permute.xlu0 %3793
        %3795 = vrot.lane.b32.xlu0 %v547, 120
        %v3796 = vpop.permute.xlu0 %3795
        %3797 = vrot.lane.b32.xlu0 %v553, 120
        %v3798 = vpop.permute.xlu0 %3797
        %3799 = vrot.lane.b32.xlu0 %v559, 120
        %v3800 = vpop.permute.xlu0 %3799
        %3801 = vrot.lane.b32.xlu0 %v565, 120
        %v3802 = vpop.permute.xlu0 %3801
        %3803 = vrot.lane.b32.xlu0 %v571, 120
        %v3804 = vpop.permute.xlu0 %3803
        %v3805 = vsel %vm623, %v3790, 0
        %v3807 = vsel %vm623, %v3792, 0
        %v3809 = vsel %vm623, %v3794, 0
        %v3811 = vsel %vm623, %v3796, 0
        %v3813 = vsel %vm623, %v3798, 0
        %v3815 = vsel %vm623, %v3800, 0
        %v3817 = vsel %vm623, %v3802, 0
        %v3819 = vsel %vm623, %v3804, 0
        %3821 = vmatprep.subr.mxu0 0.0
        %3822 = vmatpush1.msra.mxu0 %v581
        %3823 = vmatprep.subr.mxu0 0.0
        %3824 = vmatpush1.msra.mxu0 0.0
        %3825 = vmatprep.subr.mxu0 0.0
        %3826 = vmatpush1.msra.mxu0 0.0
        %3827 = vmatprep.subr.mxu0 0.0
        %3828 = vmatpush1.msra.mxu0 0.0
        %3829 = vmatprep.subr.mxu0 0.0
        %3830 = vmatpush1.msra.mxu0 0.0
        %3831 = vmatprep.subr.mxu0 0.0
        %3832 = vmatpush1.msra.mxu0 0.0
        %3833 = vmatprep.subr.mxu0 0.0
        %3834 = vmatpush1.msra.mxu0 0.0
        %3835 = vmatprep.subr.mxu0 0.0
        %3836 = vmatpush1.msra.mxu0 0.0
        %3837 = vmatprep.subr.mxu0 0.0
        %3838 = vmatpush1.msra.mxu0 0.0
        %3839 = vmatprep.subr.mxu0 0.0
        %3840 = vmatpush1.msra.mxu0 0.0
        %3841 = vmatprep.subr.mxu0 0.0
        %3842 = vmatpush1.msra.mxu0 0.0
        %3843 = vmatprep.subr.mxu0 0.0
        %3844 = vmatpush1.msra.mxu0 0.0
        %3845 = vmatprep.subr.mxu0 0.0
        %3846 = vmatpush1.msra.mxu0 0.0
        %3847 = vmatprep.subr.mxu0 0.0
        %3848 = vmatpush1.msra.mxu0 0.0
        %3849 = vmatprep.subr.mxu0 0.0
        %3850 = vmatpush1.msra.mxu0 0.0
        %3851 = vmatprep.subr.mxu0 0.0
        %3852 = vmatpush1.msra.mxu0 0.0
        %3853 = vmatprep.subr.mxu0 0.0
        %3854 = vmatpush1.msra.mxu0 0.0
        %3855 = vmatprep.subr.mxu0 0.0
        %3856 = vmatpush1.msra.mxu0 0.0
        %3857 = vmatprep.subr.mxu0 0.0
        %3858 = vmatpush1.msra.mxu0 0.0
        %3859 = vmatprep.subr.mxu0 0.0
        %3860 = vmatpush1.msra.mxu0 0.0
        %3861 = vmatprep.subr.mxu0 0.0
        %3862 = vmatpush1.msra.mxu0 0.0
        %3863 = vmatprep.subr.mxu0 0.0
        %3864 = vmatpush1.msra.mxu0 0.0
        %3865 = vmatprep.subr.mxu0 0.0
        %3866 = vmatpush1.msra.mxu0 0.0
        %3867 = vmatprep.subr.mxu0 0.0
        %3868 = vmatpush1.msra.mxu0 0.0
        %3869 = vmatprep.subr.mxu0 0.0
        %3870 = vmatpush1.msra.mxu0 0.0
        %3871 = vmatprep.subr.mxu0 0.0
        %3872 = vmatpush1.msra.mxu0 0.0
        %3873 = vmatprep.subr.mxu0 0.0
        %3874 = vmatpush1.msra.mxu0 0.0
        %3875 = vmatprep.subr.mxu0 0.0
        %3876 = vmatpush1.msra.mxu0 0.0
        %3877 = vmatprep.subr.mxu0 0.0
        %3878 = vmatpush1.msra.mxu0 0.0
        %3879 = vmatprep.subr.mxu0 0.0
        %3880 = vmatpush1.msra.mxu0 0.0
        %3881 = vmatprep.subr.mxu0 0.0
        %3882 = vmatpush1.msra.mxu0 0.0
        %3883 = vmatprep.subr.mxu0 0.0
        %3884 = vmatpush1.msra.mxu0 0.0
        %3885 = vmatprep.mubr.f32.mxu0 0.0
        %3886 = vmatmul.mubr.f32.gmra.mrb[0].mxu0 %v3805
        %v3887 = vpop.f32.mrb[0].mxu0
        %v3888 = vadd.f32 0.0, %v3887
        %v3889 = vpop.f32.mrb[0].mxu0
        %3890 = vmatprep.mubr.f32.mxu0 0.0
        %3891 = vmatmul.mubr.f32.gmra.mrb[0].mxu0 %v3807
        %v3892 = vpop.f32.mrb[0].mxu0
        %v3893 = vadd.f32 0.0, %v3892
        %v3894 = vpop.f32.mrb[0].mxu0
        %3895 = vmatprep.mubr.f32.mxu0 0.0
        %3896 = vmatmul.mubr.f32.gmra.mrb[0].mxu0 %v3809
        %v3897 = vpop.f32.mrb[0].mxu0
        %v3898 = vadd.f32 0.0, %v3897
        %v3899 = vpop.f32.mrb[0].mxu0
        %3900 = vmatprep.mubr.f32.mxu0 0.0
        %3901 = vmatmul.mubr.f32.gmra.mrb[0].mxu0 %v3811
        %v3902 = vpop.f32.mrb[0].mxu0
        %v3903 = vadd.f32 0.0, %v3902
        %v3904 = vpop.f32.mrb[0].mxu0
        %3905 = vmatprep.mubr.f32.mxu0 0.0
        %3906 = vmatmul.mubr.f32.gmra.mrb[0].mxu0 %v3813
        %v3907 = vpop.f32.mrb[0].mxu0
        %v3908 = vadd.f32 0.0, %v3907
        %v3909 = vpop.f32.mrb[0].mxu0
        %3910 = vmatprep.mubr.f32.mxu0 0.0
        %3911 = vmatmul.mubr.f32.gmra.mrb[0].mxu0 %v3815
        %v3912 = vpop.f32.mrb[0].mxu0
        %v3913 = vadd.f32 0.0, %v3912
        %v3914 = vpop.f32.mrb[0].mxu0
        %3915 = vmatprep.mubr.f32.mxu0 0.0
        %3916 = vmatmul.mubr.f32.gmra.mrb[0].mxu0 %v3817
        %v3917 = vpop.f32.mrb[0].mxu0
        %v3918 = vadd.f32 0.0, %v3917
        %v3919 = vpop.f32.mrb[0].mxu0
        %3920 = vmatprep.mubr.f32.mxu0 0.0
        %3921 = vmatmul.mubr.f32.gmra.mrb[0].mxu0 %v3819
        %v3922 = vpop.f32.mrb[0].mxu0
        %v3923 = vadd.f32 0.0, %v3922
        %v3924 = vpop.f32.mrb[0].mxu0
        %3925 = vdwg.mxu0
        %v3926 = vmul.f32 %v3751, %v3888
        %v3927 = vmul.f32 %v3756, %v3893
        %v3928 = vmul.f32 %v3761, %v3898
        %v3929 = vmul.f32 %v3766, %v3903
        %v3930 = vmul.f32 %v3771, %v3908
        %v3931 = vmul.f32 %v3776, %v3913
        %v3932 = vmul.f32 %v3781, %v3918
        %v3933 = vmul.f32 %v3786, %v3923
        %v3934 = vadd.f32 %v3442, %v3926
        %v3935 = vadd.f32 %v3443, %v3927
        %v3936 = vadd.f32 %v3444, %v3928
        %v3937 = vadd.f32 %v3445, %v3929
        %v3938 = vadd.f32 %v3446, %v3930
        %v3939 = vadd.f32 %v3447, %v3931
        %v3940 = vadd.f32 %v3448, %v3932
        %v3941 = vadd.f32 %v3449, %v3933
        %v3943 = vsel %vm623, %v3128, 0
        %v3946 = vsel %vm623, %v3129, 0
        %v3949 = vsel %vm623, %v3130, 0
        %v3952 = vsel %vm623, %v3131, 0
        %v3955 = vsel %vm623, %v3132, 0
        %v3958 = vsel %vm623, %v3133, 0
        %v3961 = vsel %vm623, %v3134, 0
        %v3964 = vsel %vm623, %v3135, 0
        %3966 = vmatprep.subr.mxu0 0.0
        %3967 = vmatpush1.msra.mxu0 %v593
        %3968 = vmatprep.subr.mxu0 0.0
        %3969 = vmatpush1.msra.mxu0 0.0
        %3970 = vmatprep.subr.mxu0 0.0
        %3971 = vmatpush1.msra.mxu0 0.0
        %3972 = vmatprep.subr.mxu0 0.0
        %3973 = vmatpush1.msra.mxu0 0.0
        %3974 = vmatprep.subr.mxu0 0.0
        %3975 = vmatpush1.msra.mxu0 0.0
        %3976 = vmatprep.subr.mxu0 0.0
        %3977 = vmatpush1.msra.mxu0 0.0
        %3978 = vmatprep.subr.mxu0 0.0
        %3979 = vmatpush1.msra.mxu0 0.0
        %3980 = vmatprep.subr.mxu0 0.0
        %3981 = vmatpush1.msra.mxu0 0.0
        %3982 = vmatprep.subr.mxu0 0.0
        %3983 = vmatpush1.msra.mxu0 0.0
        %3984 = vmatprep.subr.mxu0 0.0
        %3985 = vmatpush1.msra.mxu0 0.0
        %3986 = vmatprep.subr.mxu0 0.0
        %3987 = vmatpush1.msra.mxu0 0.0
        %3988 = vmatprep.subr.mxu0 0.0
        %3989 = vmatpush1.msra.mxu0 0.0
        %3990 = vmatprep.subr.mxu0 0.0
        %3991 = vmatpush1.msra.mxu0 0.0
        %3992 = vmatprep.subr.mxu0 0.0
        %3993 = vmatpush1.msra.mxu0 0.0
        %3994 = vmatprep.subr.mxu0 0.0
        %3995 = vmatpush1.msra.mxu0 0.0
        %3996 = vmatprep.subr.mxu0 0.0
        %3997 = vmatpush1.msra.mxu0 0.0
        %3998 = vmatprep.subr.mxu0 0.0
        %3999 = vmatpush1.msra.mxu0 0.0
        %4000 = vmatprep.subr.mxu0 0.0
        %4001 = vmatpush1.msra.mxu0 0.0
        %4002 = vmatprep.subr.mxu0 0.0
        %4003 = vmatpush1.msra.mxu0 0.0
        %4004 = vmatprep.subr.mxu0 0.0
        %4005 = vmatpush1.msra.mxu0 0.0
        %4006 = vmatprep.subr.mxu0 0.0
        %4007 = vmatpush1.msra.mxu0 0.0
        %4008 = vmatprep.subr.mxu0 0.0
        %4009 = vmatpush1.msra.mxu0 0.0
        %4010 = vmatprep.subr.mxu0 0.0
        %4011 = vmatpush1.msra.mxu0 0.0
        %4012 = vmatprep.subr.mxu0 0.0
        %4013 = vmatpush1.msra.mxu0 0.0
        %4014 = vmatprep.subr.mxu0 0.0
        %4015 = vmatpush1.msra.mxu0 0.0
        %4016 = vmatprep.subr.mxu0 0.0
        %4017 = vmatpush1.msra.mxu0 0.0
        %4018 = vmatprep.subr.mxu0 0.0
        %4019 = vmatpush1.msra.mxu0 0.0
        %4020 = vmatprep.subr.mxu0 0.0
        %4021 = vmatpush1.msra.mxu0 0.0
        %4022 = vmatprep.subr.mxu0 0.0
        %4023 = vmatpush1.msra.mxu0 0.0
        %4024 = vmatprep.subr.mxu0 0.0
        %4025 = vmatpush1.msra.mxu0 0.0
        %4026 = vmatprep.subr.mxu0 0.0
        %4027 = vmatpush1.msra.mxu0 0.0
        %4028 = vmatprep.subr.mxu0 0.0
        %4029 = vmatpush1.msra.mxu0 0.0
        %4030 = vmatprep.mubr.f32.mxu0 0.0
        %4031 = vmatmul.mubr.f32.gmra.mrb[0].mxu0 %v3943
        %v4032 = vpop.f32.mrb[0].mxu0
        %v4033 = vadd.f32 0.0, %v4032
        %v4034 = vpop.f32.mrb[0].mxu0
        %4035 = vmatprep.mubr.f32.mxu0 0.0
        %4036 = vmatmul.mubr.f32.gmra.mrb[0].mxu0 %v3946
        %v4037 = vpop.f32.mrb[0].mxu0
        %v4038 = vadd.f32 0.0, %v4037
        %v4039 = vpop.f32.mrb[0].mxu0
        %4040 = vmatprep.mubr.f32.mxu0 0.0
        %4041 = vmatmul.mubr.f32.gmra.mrb[0].mxu0 %v3949
        %v4042 = vpop.f32.mrb[0].mxu0
        %v4043 = vadd.f32 0.0, %v4042
        %v4044 = vpop.f32.mrb[0].mxu0
        %4045 = vmatprep.mubr.f32.mxu0 0.0
        %4046 = vmatmul.mubr.f32.gmra.mrb[0].mxu0 %v3952
        %v4047 = vpop.f32.mrb[0].mxu0
        %v4048 = vadd.f32 0.0, %v4047
        %v4049 = vpop.f32.mrb[0].mxu0
        %4050 = vmatprep.mubr.f32.mxu0 0.0
        %4051 = vmatmul.mubr.f32.gmra.mrb[0].mxu0 %v3955
        %v4052 = vpop.f32.mrb[0].mxu0
        %v4053 = vadd.f32 0.0, %v4052
        %v4054 = vpop.f32.mrb[0].mxu0
        %4055 = vmatprep.mubr.f32.mxu0 0.0
        %4056 = vmatmul.mubr.f32.gmra.mrb[0].mxu0 %v3958
        %v4057 = vpop.f32.mrb[0].mxu0
        %v4058 = vadd.f32 0.0, %v4057
        %v4059 = vpop.f32.mrb[0].mxu0
        %4060 = vmatprep.mubr.f32.mxu0 0.0
        %4061 = vmatmul.mubr.f32.gmra.mrb[0].mxu0 %v3961
        %v4062 = vpop.f32.mrb[0].mxu0
        %v4063 = vadd.f32 0.0, %v4062
        %v4064 = vpop.f32.mrb[0].mxu0
        %4065 = vmatprep.mubr.f32.mxu0 0.0
        %4066 = vmatmul.mubr.f32.gmra.mrb[0].mxu0 %v3964
        %v4067 = vpop.f32.mrb[0].mxu0
        %v4068 = vadd.f32 0.0, %v4067
        %v4069 = vpop.f32.mrb[0].mxu0
        %4070 = vdwg.mxu0
        %v4071 = vadd.f32 %v3646, %v4033
        %v4072 = vadd.f32 %v3651, %v4038
        %v4073 = vadd.f32 %v3656, %v4043
        %v4074 = vadd.f32 %v3661, %v4048
        %v4075 = vadd.f32 %v3666, %v4053
        %v4076 = vadd.f32 %v3671, %v4058
        %v4077 = vadd.f32 %v3676, %v4063
        %v4078 = vadd.f32 %v3681, %v4068
        %4079 = vmatprep.subr.mxu0 0.0
        %4080 = vmatpush1.msra.mxu0 %v590
        %4081 = vmatprep.subr.mxu0 0.0
        %4082 = vmatpush1.msra.mxu0 0.0
        %4083 = vmatprep.subr.mxu0 0.0
        %4084 = vmatpush1.msra.mxu0 0.0
        %4085 = vmatprep.subr.mxu0 0.0
        %4086 = vmatpush1.msra.mxu0 0.0
        %4087 = vmatprep.subr.mxu0 0.0
        %4088 = vmatpush1.msra.mxu0 0.0
        %4089 = vmatprep.subr.mxu0 0.0
        %4090 = vmatpush1.msra.mxu0 0.0
        %4091 = vmatprep.subr.mxu0 0.0
        %4092 = vmatpush1.msra.mxu0 0.0
        %4093 = vmatprep.subr.mxu0 0.0
        %4094 = vmatpush1.msra.mxu0 0.0
        %4095 = vmatprep.subr.mxu0 0.0
        %4096 = vmatpush1.msra.mxu0 0.0
        %4097 = vmatprep.subr.mxu0 0.0
        %4098 = vmatpush1.msra.mxu0 0.0
        %4099 = vmatprep.subr.mxu0 0.0
        %4100 = vmatpush1.msra.mxu0 0.0
        %4101 = vmatprep.subr.mxu0 0.0
        %4102 = vmatpush1.msra.mxu0 0.0
        %4103 = vmatprep.subr.mxu0 0.0
        %4104 = vmatpush1.msra.mxu0 0.0
        %4105 = vmatprep.subr.mxu0 0.0
        %4106 = vmatpush1.msra.mxu0 0.0
        %4107 = vmatprep.subr.mxu0 0.0
        %4108 = vmatpush1.msra.mxu0 0.0
        %4109 = vmatprep.subr.mxu0 0.0
        %4110 = vmatpush1.msra.mxu0 0.0
        %4111 = vmatprep.subr.mxu0 0.0
        %4112 = vmatpush1.msra.mxu0 0.0
        %4113 = vmatprep.subr.mxu0 0.0
        %4114 = vmatpush1.msra.mxu0 0.0
        %4115 = vmatprep.subr.mxu0 0.0
        %4116 = vmatpush1.msra.mxu0 0.0
        %4117 = vmatprep.subr.mxu0 0.0
        %4118 = vmatpush1.msra.mxu0 0.0
        %4119 = vmatprep.subr.mxu0 0.0
        %4120 = vmatpush1.msra.mxu0 0.0
        %4121 = vmatprep.subr.mxu0 0.0
        %4122 = vmatpush1.msra.mxu0 0.0
        %4123 = vmatprep.subr.mxu0 0.0
        %4124 = vmatpush1.msra.mxu0 0.0
        %4125 = vmatprep.subr.mxu0 0.0
        %4126 = vmatpush1.msra.mxu0 0.0
        %4127 = vmatprep.subr.mxu0 0.0
        %4128 = vmatpush1.msra.mxu0 0.0
        %4129 = vmatprep.subr.mxu0 0.0
        %4130 = vmatpush1.msra.mxu0 0.0
        %4131 = vmatprep.subr.mxu0 0.0
        %4132 = vmatpush1.msra.mxu0 0.0
        %4133 = vmatprep.subr.mxu0 0.0
        %4134 = vmatpush1.msra.mxu0 0.0
        %4135 = vmatprep.subr.mxu0 0.0
        %4136 = vmatpush1.msra.mxu0 0.0
        %4137 = vmatprep.subr.mxu0 0.0
        %4138 = vmatpush1.msra.mxu0 0.0
        %4139 = vmatprep.subr.mxu0 0.0
        %4140 = vmatpush1.msra.mxu0 0.0
        %4141 = vmatprep.subr.mxu0 0.0
        %4142 = vmatpush1.msra.mxu0 0.0
        %4143 = vmatprep.mubr.f32.mxu0 0.0
        %4144 = vmatmul.mubr.f32.gmra.mrb[0].mxu0 %v3943
        %v4145 = vpop.f32.mrb[0].mxu0
        %v4146 = vadd.f32 0.0, %v4145
        %v4147 = vpop.f32.mrb[0].mxu0
        %4148 = vmatprep.mubr.f32.mxu0 0.0
        %4149 = vmatmul.mubr.f32.gmra.mrb[0].mxu0 %v3946
        %v4150 = vpop.f32.mrb[0].mxu0
        %v4151 = vadd.f32 0.0, %v4150
        %v4152 = vpop.f32.mrb[0].mxu0
        %4153 = vmatprep.mubr.f32.mxu0 0.0
        %4154 = vmatmul.mubr.f32.gmra.mrb[0].mxu0 %v3949
        %v4155 = vpop.f32.mrb[0].mxu0
        %v4156 = vadd.f32 0.0, %v4155
        %v4157 = vpop.f32.mrb[0].mxu0
        %4158 = vmatprep.mubr.f32.mxu0 0.0
        %4159 = vmatmul.mubr.f32.gmra.mrb[0].mxu0 %v3952
        %v4160 = vpop.f32.mrb[0].mxu0
        %v4161 = vadd.f32 0.0, %v4160
        %v4162 = vpop.f32.mrb[0].mxu0
        %4163 = vmatprep.mubr.f32.mxu0 0.0
        %4164 = vmatmul.mubr.f32.gmra.mrb[0].mxu0 %v3955
        %v4165 = vpop.f32.mrb[0].mxu0
        %v4166 = vadd.f32 0.0, %v4165
        %v4167 = vpop.f32.mrb[0].mxu0
        %4168 = vmatprep.mubr.f32.mxu0 0.0
        %4169 = vmatmul.mubr.f32.gmra.mrb[0].mxu0 %v3958
        %v4170 = vpop.f32.mrb[0].mxu0
        %v4171 = vadd.f32 0.0, %v4170
        %v4172 = vpop.f32.mrb[0].mxu0
        %4173 = vmatprep.mubr.f32.mxu0 0.0
        %4174 = vmatmul.mubr.f32.gmra.mrb[0].mxu0 %v3961
        %v4175 = vpop.f32.mrb[0].mxu0
        %v4176 = vadd.f32 0.0, %v4175
        %v4177 = vpop.f32.mrb[0].mxu0
        %4178 = vmatprep.mubr.f32.mxu0 0.0
        %4179 = vmatmul.mubr.f32.gmra.mrb[0].mxu0 %v3964
        %v4180 = vpop.f32.mrb[0].mxu0
        %v4181 = vadd.f32 0.0, %v4180
        %v4182 = vpop.f32.mrb[0].mxu0
        %4183 = vdwg.mxu0
        %4184 = vrot.lane.b32.xlu0 %v529, 112
        %v4185 = vpop.permute.xlu0 %4184
        %4186 = vrot.lane.b32.xlu0 %v535, 112
        %v4187 = vpop.permute.xlu0 %4186
        %4188 = vrot.lane.b32.xlu0 %v541, 112
        %v4189 = vpop.permute.xlu0 %4188
        %4190 = vrot.lane.b32.xlu0 %v547, 112
        %v4191 = vpop.permute.xlu0 %4190
        %4192 = vrot.lane.b32.xlu0 %v553, 112
        %v4193 = vpop.permute.xlu0 %4192
        %4194 = vrot.lane.b32.xlu0 %v559, 112
        %v4195 = vpop.permute.xlu0 %4194
        %4196 = vrot.lane.b32.xlu0 %v565, 112
        %v4197 = vpop.permute.xlu0 %4196
        %4198 = vrot.lane.b32.xlu0 %v571, 112
        %v4199 = vpop.permute.xlu0 %4198
        %v4200 = vsel %vm623, %v4185, 0
        %v4202 = vsel %vm623, %v4187, 0
        %v4204 = vsel %vm623, %v4189, 0
        %v4206 = vsel %vm623, %v4191, 0
        %v4208 = vsel %vm623, %v4193, 0
        %v4210 = vsel %vm623, %v4195, 0
        %v4212 = vsel %vm623, %v4197, 0
        %v4214 = vsel %vm623, %v4199, 0
        %4216 = vmatprep.subr.mxu0 0.0
        %4217 = vmatpush1.msra.mxu0 %v581
        %4218 = vmatprep.subr.mxu0 0.0
        %4219 = vmatpush1.msra.mxu0 0.0
        %4220 = vmatprep.subr.mxu0 0.0
        %4221 = vmatpush1.msra.mxu0 0.0
        %4222 = vmatprep.subr.mxu0 0.0
        %4223 = vmatpush1.msra.mxu0 0.0
        %4224 = vmatprep.subr.mxu0 0.0
        %4225 = vmatpush1.msra.mxu0 0.0
        %4226 = vmatprep.subr.mxu0 0.0
        %4227 = vmatpush1.msra.mxu0 0.0
        %4228 = vmatprep.subr.mxu0 0.0
        %4229 = vmatpush1.msra.mxu0 0.0
        %4230 = vmatprep.subr.mxu0 0.0
        %4231 = vmatpush1.msra.mxu0 0.0
        %4232 = vmatprep.subr.mxu0 0.0
        %4233 = vmatpush1.msra.mxu0 0.0
        %4234 = vmatprep.subr.mxu0 0.0
        %4235 = vmatpush1.msra.mxu0 0.0
        %4236 = vmatprep.subr.mxu0 0.0
        %4237 = vmatpush1.msra.mxu0 0.0
        %4238 = vmatprep.subr.mxu0 0.0
        %4239 = vmatpush1.msra.mxu0 0.0
        %4240 = vmatprep.subr.mxu0 0.0
        %4241 = vmatpush1.msra.mxu0 0.0
        %4242 = vmatprep.subr.mxu0 0.0
        %4243 = vmatpush1.msra.mxu0 0.0
        %4244 = vmatprep.subr.mxu0 0.0
        %4245 = vmatpush1.msra.mxu0 0.0
        %4246 = vmatprep.subr.mxu0 0.0
        %4247 = vmatpush1.msra.mxu0 0.0
        %4248 = vmatprep.subr.mxu0 0.0
        %4249 = vmatpush1.msra.mxu0 0.0
        %4250 = vmatprep.subr.mxu0 0.0
        %4251 = vmatpush1.msra.mxu0 0.0
        %4252 = vmatprep.subr.mxu0 0.0
        %4253 = vmatpush1.msra.mxu0 0.0
        %4254 = vmatprep.subr.mxu0 0.0
        %4255 = vmatpush1.msra.mxu0 0.0
        %4256 = vmatprep.subr.mxu0 0.0
        %4257 = vmatpush1.msra.mxu0 0.0
        %4258 = vmatprep.subr.mxu0 0.0
        %4259 = vmatpush1.msra.mxu0 0.0
        %4260 = vmatprep.subr.mxu0 0.0
        %4261 = vmatpush1.msra.mxu0 0.0
        %4262 = vmatprep.subr.mxu0 0.0
        %4263 = vmatpush1.msra.mxu0 0.0
        %4264 = vmatprep.subr.mxu0 0.0
        %4265 = vmatpush1.msra.mxu0 0.0
        %4266 = vmatprep.subr.mxu0 0.0
        %4267 = vmatpush1.msra.mxu0 0.0
        %4268 = vmatprep.subr.mxu0 0.0
        %4269 = vmatpush1.msra.mxu0 0.0
        %4270 = vmatprep.subr.mxu0 0.0
        %4271 = vmatpush1.msra.mxu0 0.0
        %4272 = vmatprep.subr.mxu0 0.0
        %4273 = vmatpush1.msra.mxu0 0.0
        %4274 = vmatprep.subr.mxu0 0.0
        %4275 = vmatpush1.msra.mxu0 0.0
        %4276 = vmatprep.subr.mxu0 0.0
        %4277 = vmatpush1.msra.mxu0 0.0
        %4278 = vmatprep.subr.mxu0 0.0
        %4279 = vmatpush1.msra.mxu0 0.0
        %4280 = vmatprep.mubr.f32.mxu0 0.0
        %4281 = vmatmul.mubr.f32.gmra.mrb[0].mxu0 %v4200
        %v4282 = vpop.f32.mrb[0].mxu0
        %v4283 = vadd.f32 0.0, %v4282
        %v4284 = vpop.f32.mrb[0].mxu0
        %4285 = vmatprep.mubr.f32.mxu0 0.0
        %4286 = vmatmul.mubr.f32.gmra.mrb[0].mxu0 %v4202
        %v4287 = vpop.f32.mrb[0].mxu0
        %v4288 = vadd.f32 0.0, %v4287
        %v4289 = vpop.f32.mrb[0].mxu0
        %4290 = vmatprep.mubr.f32.mxu0 0.0
        %4291 = vmatmul.mubr.f32.gmra.mrb[0].mxu0 %v4204
        %v4292 = vpop.f32.mrb[0].mxu0
        %v4293 = vadd.f32 0.0, %v4292
        %v4294 = vpop.f32.mrb[0].mxu0
        %4295 = vmatprep.mubr.f32.mxu0 0.0
        %4296 = vmatmul.mubr.f32.gmra.mrb[0].mxu0 %v4206
        %v4297 = vpop.f32.mrb[0].mxu0
        %v4298 = vadd.f32 0.0, %v4297
        %v4299 = vpop.f32.mrb[0].mxu0
        %4300 = vmatprep.mubr.f32.mxu0 0.0
        %4301 = vmatmul.mubr.f32.gmra.mrb[0].mxu0 %v4208
        %v4302 = vpop.f32.mrb[0].mxu0
        %v4303 = vadd.f32 0.0, %v4302
        %v4304 = vpop.f32.mrb[0].mxu0
        %4305 = vmatprep.mubr.f32.mxu0 0.0
        %4306 = vmatmul.mubr.f32.gmra.mrb[0].mxu0 %v4210
        %v4307 = vpop.f32.mrb[0].mxu0
        %v4308 = vadd.f32 0.0, %v4307
        %v4309 = vpop.f32.mrb[0].mxu0
        %4310 = vmatprep.mubr.f32.mxu0 0.0
        %4311 = vmatmul.mubr.f32.gmra.mrb[0].mxu0 %v4212
        %v4312 = vpop.f32.mrb[0].mxu0
        %v4313 = vadd.f32 0.0, %v4312
        %v4314 = vpop.f32.mrb[0].mxu0
        %4315 = vmatprep.mubr.f32.mxu0 0.0
        %4316 = vmatmul.mubr.f32.gmra.mrb[0].mxu0 %v4214
        %v4317 = vpop.f32.mrb[0].mxu0
        %v4318 = vadd.f32 0.0, %v4317
        %v4319 = vpop.f32.mrb[0].mxu0
        %4320 = vdwg.mxu0
        %v4321 = vmul.f32 %v4146, %v4283
        %v4322 = vmul.f32 %v4151, %v4288
        %v4323 = vmul.f32 %v4156, %v4293
        %v4324 = vmul.f32 %v4161, %v4298
        %v4325 = vmul.f32 %v4166, %v4303
        %v4326 = vmul.f32 %v4171, %v4308
        %v4327 = vmul.f32 %v4176, %v4313
        %v4328 = vmul.f32 %v4181, %v4318
        %v4329 = vadd.f32 %v3934, %v4321
        %v4330 = vadd.f32 %v3935, %v4322
        %v4331 = vadd.f32 %v3936, %v4323
        %v4332 = vadd.f32 %v3937, %v4324
        %v4333 = vadd.f32 %v3938, %v4325
        %v4334 = vadd.f32 %v3939, %v4326
        %v4335 = vadd.f32 %v3940, %v4327
        %v4336 = vadd.f32 %v3941, %v4328
        %v4338 = vsel %vm623, %v3136, 0
        %v4341 = vsel %vm623, %v3137, 0
        %v4344 = vsel %vm623, %v3138, 0
        %v4347 = vsel %vm623, %v3139, 0
        %v4350 = vsel %vm623, %v3140, 0
        %v4353 = vsel %vm623, %v3141, 0
        %v4356 = vsel %vm623, %v3142, 0
        %v4359 = vsel %vm623, %v3143, 0
        %4361 = vmatprep.subr.mxu0 0.0
        %4362 = vmatpush1.msra.mxu0 %v594
        %4363 = vmatprep.subr.mxu0 0.0
        %4364 = vmatpush1.msra.mxu0 0.0
        %4365 = vmatprep.subr.mxu0 0.0
        %4366 = vmatpush1.msra.mxu0 0.0
        %4367 = vmatprep.subr.mxu0 0.0
        %4368 = vmatpush1.msra.mxu0 0.0
        %4369 = vmatprep.subr.mxu0 0.0
        %4370 = vmatpush1.msra.mxu0 0.0
        %4371 = vmatprep.subr.mxu0 0.0
        %4372 = vmatpush1.msra.mxu0 0.0
        %4373 = vmatprep.subr.mxu0 0.0
        %4374 = vmatpush1.msra.mxu0 0.0
        %4375 = vmatprep.subr.mxu0 0.0
        %4376 = vmatpush1.msra.mxu0 0.0
        %4377 = vmatprep.subr.mxu0 0.0
        %4378 = vmatpush1.msra.mxu0 0.0
        %4379 = vmatprep.subr.mxu0 0.0
        %4380 = vmatpush1.msra.mxu0 0.0
        %4381 = vmatprep.subr.mxu0 0.0
        %4382 = vmatpush1.msra.mxu0 0.0
        %4383 = vmatprep.subr.mxu0 0.0
        %4384 = vmatpush1.msra.mxu0 0.0
        %4385 = vmatprep.subr.mxu0 0.0
        %4386 = vmatpush1.msra.mxu0 0.0
        %4387 = vmatprep.subr.mxu0 0.0
        %4388 = vmatpush1.msra.mxu0 0.0
        %4389 = vmatprep.subr.mxu0 0.0
        %4390 = vmatpush1.msra.mxu0 0.0
        %4391 = vmatprep.subr.mxu0 0.0
        %4392 = vmatpush1.msra.mxu0 0.0
        %4393 = vmatprep.subr.mxu0 0.0
        %4394 = vmatpush1.msra.mxu0 0.0
        %4395 = vmatprep.subr.mxu0 0.0
        %4396 = vmatpush1.msra.mxu0 0.0
        %4397 = vmatprep.subr.mxu0 0.0
        %4398 = vmatpush1.msra.mxu0 0.0
        %4399 = vmatprep.subr.mxu0 0.0
        %4400 = vmatpush1.msra.mxu0 0.0
        %4401 = vmatprep.subr.mxu0 0.0
        %4402 = vmatpush1.msra.mxu0 0.0
        %4403 = vmatprep.subr.mxu0 0.0
        %4404 = vmatpush1.msra.mxu0 0.0
        %4405 = vmatprep.subr.mxu0 0.0
        %4406 = vmatpush1.msra.mxu0 0.0
        %4407 = vmatprep.subr.mxu0 0.0
        %4408 = vmatpush1.msra.mxu0 0.0
        %4409 = vmatprep.subr.mxu0 0.0
        %4410 = vmatpush1.msra.mxu0 0.0
        %4411 = vmatprep.subr.mxu0 0.0
        %4412 = vmatpush1.msra.mxu0 0.0
        %4413 = vmatprep.subr.mxu0 0.0
        %4414 = vmatpush1.msra.mxu0 0.0
        %4415 = vmatprep.subr.mxu0 0.0
        %4416 = vmatpush1.msra.mxu0 0.0
        %4417 = vmatprep.subr.mxu0 0.0
        %4418 = vmatpush1.msra.mxu0 0.0
        %4419 = vmatprep.subr.mxu0 0.0
        %4420 = vmatpush1.msra.mxu0 0.0
        %4421 = vmatprep.subr.mxu0 0.0
        %4422 = vmatpush1.msra.mxu0 0.0
        %4423 = vmatprep.subr.mxu0 0.0
        %4424 = vmatpush1.msra.mxu0 0.0
        %4425 = vmatprep.mubr.f32.mxu0 0.0
        %4426 = vmatmul.mubr.f32.gmra.mrb[0].mxu0 %v4338
        %v4427 = vpop.f32.mrb[0].mxu0
        %v4428 = vadd.f32 0.0, %v4427
        %v4429 = vpop.f32.mrb[0].mxu0
        %4430 = vmatprep.mubr.f32.mxu0 0.0
        %4431 = vmatmul.mubr.f32.gmra.mrb[0].mxu0 %v4341
        %v4432 = vpop.f32.mrb[0].mxu0
        %v4433 = vadd.f32 0.0, %v4432
        %v4434 = vpop.f32.mrb[0].mxu0
        %4435 = vmatprep.mubr.f32.mxu0 0.0
        %4436 = vmatmul.mubr.f32.gmra.mrb[0].mxu0 %v4344
        %v4437 = vpop.f32.mrb[0].mxu0
        %v4438 = vadd.f32 0.0, %v4437
        %v4439 = vpop.f32.mrb[0].mxu0
        %4440 = vmatprep.mubr.f32.mxu0 0.0
        %4441 = vmatmul.mubr.f32.gmra.mrb[0].mxu0 %v4347
        %v4442 = vpop.f32.mrb[0].mxu0
        %v4443 = vadd.f32 0.0, %v4442
        %v4444 = vpop.f32.mrb[0].mxu0
        %4445 = vmatprep.mubr.f32.mxu0 0.0
        %4446 = vmatmul.mubr.f32.gmra.mrb[0].mxu0 %v4350
        %v4447 = vpop.f32.mrb[0].mxu0
        %v4448 = vadd.f32 0.0, %v4447
        %v4449 = vpop.f32.mrb[0].mxu0
        %4450 = vmatprep.mubr.f32.mxu0 0.0
        %4451 = vmatmul.mubr.f32.gmra.mrb[0].mxu0 %v4353
        %v4452 = vpop.f32.mrb[0].mxu0
        %v4453 = vadd.f32 0.0, %v4452
        %v4454 = vpop.f32.mrb[0].mxu0
        %4455 = vmatprep.mubr.f32.mxu0 0.0
        %4456 = vmatmul.mubr.f32.gmra.mrb[0].mxu0 %v4356
        %v4457 = vpop.f32.mrb[0].mxu0
        %v4458 = vadd.f32 0.0, %v4457
        %v4459 = vpop.f32.mrb[0].mxu0
        %4460 = vmatprep.mubr.f32.mxu0 0.0
        %4461 = vmatmul.mubr.f32.gmra.mrb[0].mxu0 %v4359
        %v4462 = vpop.f32.mrb[0].mxu0
        %v4463 = vadd.f32 0.0, %v4462
        %v4464 = vpop.f32.mrb[0].mxu0
        %4465 = vdwg.mxu0
        %v4466 = vadd.f32 %v4071, %v4428
        %v4467 = vadd.f32 %v4072, %v4433
        %v4468 = vadd.f32 %v4073, %v4438
        %v4469 = vadd.f32 %v4074, %v4443
        %v4470 = vadd.f32 %v4075, %v4448
        %v4471 = vadd.f32 %v4076, %v4453
        %v4472 = vadd.f32 %v4077, %v4458
        %v4473 = vadd.f32 %v4078, %v4463
        %4474 = vmatprep.subr.mxu0 0.0
        %4475 = vmatpush1.msra.mxu0 %v590
        %4476 = vmatprep.subr.mxu0 0.0
        %4477 = vmatpush1.msra.mxu0 0.0
        %4478 = vmatprep.subr.mxu0 0.0
        %4479 = vmatpush1.msra.mxu0 0.0
        %4480 = vmatprep.subr.mxu0 0.0
        %4481 = vmatpush1.msra.mxu0 0.0
        %4482 = vmatprep.subr.mxu0 0.0
        %4483 = vmatpush1.msra.mxu0 0.0
        %4484 = vmatprep.subr.mxu0 0.0
        %4485 = vmatpush1.msra.mxu0 0.0
        %4486 = vmatprep.subr.mxu0 0.0
        %4487 = vmatpush1.msra.mxu0 0.0
        %4488 = vmatprep.subr.mxu0 0.0
        %4489 = vmatpush1.msra.mxu0 0.0
        %4490 = vmatprep.subr.mxu0 0.0
        %4491 = vmatpush1.msra.mxu0 0.0
        %4492 = vmatprep.subr.mxu0 0.0
        %4493 = vmatpush1.msra.mxu0 0.0
        %4494 = vmatprep.subr.mxu0 0.0
        %4495 = vmatpush1.msra.mxu0 0.0
        %4496 = vmatprep.subr.mxu0 0.0
        %4497 = vmatpush1.msra.mxu0 0.0
        %4498 = vmatprep.subr.mxu0 0.0
        %4499 = vmatpush1.msra.mxu0 0.0
        %4500 = vmatprep.subr.mxu0 0.0
        %4501 = vmatpush1.msra.mxu0 0.0
        %4502 = vmatprep.subr.mxu0 0.0
        %4503 = vmatpush1.msra.mxu0 0.0
        %4504 = vmatprep.subr.mxu0 0.0
        %4505 = vmatpush1.msra.mxu0 0.0
        %4506 = vmatprep.subr.mxu0 0.0
        %4507 = vmatpush1.msra.mxu0 0.0
        %4508 = vmatprep.subr.mxu0 0.0
        %4509 = vmatpush1.msra.mxu0 0.0
        %4510 = vmatprep.subr.mxu0 0.0
        %4511 = vmatpush1.msra.mxu0 0.0
        %4512 = vmatprep.subr.mxu0 0.0
        %4513 = vmatpush1.msra.mxu0 0.0
        %4514 = vmatprep.subr.mxu0 0.0
        %4515 = vmatpush1.msra.mxu0 0.0
        %4516 = vmatprep.subr.mxu0 0.0
        %4517 = vmatpush1.msra.mxu0 0.0
        %4518 = vmatprep.subr.mxu0 0.0
        %4519 = vmatpush1.msra.mxu0 0.0
        %4520 = vmatprep.subr.mxu0 0.0
        %4521 = vmatpush1.msra.mxu0 0.0
        %4522 = vmatprep.subr.mxu0 0.0
        %4523 = vmatpush1.msra.mxu0 0.0
        %4524 = vmatprep.subr.mxu0 0.0
        %4525 = vmatpush1.msra.mxu0 0.0
        %4526 = vmatprep.subr.mxu0 0.0
        %4527 = vmatpush1.msra.mxu0 0.0
        %4528 = vmatprep.subr.mxu0 0.0
        %4529 = vmatpush1.msra.mxu0 0.0
        %4530 = vmatprep.subr.mxu0 0.0
        %4531 = vmatpush1.msra.mxu0 0.0
        %4532 = vmatprep.subr.mxu0 0.0
        %4533 = vmatpush1.msra.mxu0 0.0
        %4534 = vmatprep.subr.mxu0 0.0
        %4535 = vmatpush1.msra.mxu0 0.0
        %4536 = vmatprep.subr.mxu0 0.0
        %4537 = vmatpush1.msra.mxu0 0.0
        %4538 = vmatprep.mubr.f32.mxu0 0.0
        %4539 = vmatmul.mubr.f32.gmra.mrb[0].mxu0 %v4338
        %v4540 = vpop.f32.mrb[0].mxu0
        %v4541 = vadd.f32 0.0, %v4540
        %v4542 = vpop.f32.mrb[0].mxu0
        %4543 = vmatprep.mubr.f32.mxu0 0.0
        %4544 = vmatmul.mubr.f32.gmra.mrb[0].mxu0 %v4341
        %v4545 = vpop.f32.mrb[0].mxu0
        %v4546 = vadd.f32 0.0, %v4545
        %v4547 = vpop.f32.mrb[0].mxu0
        %4548 = vmatprep.mubr.f32.mxu0 0.0
        %4549 = vmatmul.mubr.f32.gmra.mrb[0].mxu0 %v4344
        %v4550 = vpop.f32.mrb[0].mxu0
        %v4551 = vadd.f32 0.0, %v4550
        %v4552 = vpop.f32.mrb[0].mxu0
        %4553 = vmatprep.mubr.f32.mxu0 0.0
        %4554 = vmatmul.mubr.f32.gmra.mrb[0].mxu0 %v4347
        %v4555 = vpop.f32.mrb[0].mxu0
        %v4556 = vadd.f32 0.0, %v4555
        %v4557 = vpop.f32.mrb[0].mxu0
        %4558 = vmatprep.mubr.f32.mxu0 0.0
        %4559 = vmatmul.mubr.f32.gmra.mrb[0].mxu0 %v4350
        %v4560 = vpop.f32.mrb[0].mxu0
        %v4561 = vadd.f32 0.0, %v4560
        %v4562 = vpop.f32.mrb[0].mxu0
        %4563 = vmatprep.mubr.f32.mxu0 0.0
        %4564 = vmatmul.mubr.f32.gmra.mrb[0].mxu0 %v4353
        %v4565 = vpop.f32.mrb[0].mxu0
        %v4566 = vadd.f32 0.0, %v4565
        %v4567 = vpop.f32.mrb[0].mxu0
        %4568 = vmatprep.mubr.f32.mxu0 0.0
        %4569 = vmatmul.mubr.f32.gmra.mrb[0].mxu0 %v4356
        %v4570 = vpop.f32.mrb[0].mxu0
        %v4571 = vadd.f32 0.0, %v4570
        %v4572 = vpop.f32.mrb[0].mxu0
        %4573 = vmatprep.mubr.f32.mxu0 0.0
        %4574 = vmatmul.mubr.f32.gmra.mrb[0].mxu0 %v4359
        %v4575 = vpop.f32.mrb[0].mxu0
        %v4576 = vadd.f32 0.0, %v4575
        %v4577 = vpop.f32.mrb[0].mxu0
        %4578 = vdwg.mxu0
        %4579 = vrot.lane.b32.xlu0 %v529, 104
        %v4580 = vpop.permute.xlu0 %4579
        %4581 = vrot.lane.b32.xlu0 %v535, 104
        %v4582 = vpop.permute.xlu0 %4581
        %4583 = vrot.lane.b32.xlu0 %v541, 104
        %v4584 = vpop.permute.xlu0 %4583
        %4585 = vrot.lane.b32.xlu0 %v547, 104
        %v4586 = vpop.permute.xlu0 %4585
        %4587 = vrot.lane.b32.xlu0 %v553, 104
        %v4588 = vpop.permute.xlu0 %4587
        %4589 = vrot.lane.b32.xlu0 %v559, 104
        %v4590 = vpop.permute.xlu0 %4589
        %4591 = vrot.lane.b32.xlu0 %v565, 104
        %v4592 = vpop.permute.xlu0 %4591
        %4593 = vrot.lane.b32.xlu0 %v571, 104
        %v4594 = vpop.permute.xlu0 %4593
        %v4595 = vsel %vm623, %v4580, 0
        %v4597 = vsel %vm623, %v4582, 0
        %v4599 = vsel %vm623, %v4584, 0
        %v4601 = vsel %vm623, %v4586, 0
        %v4603 = vsel %vm623, %v4588, 0
        %v4605 = vsel %vm623, %v4590, 0
        %v4607 = vsel %vm623, %v4592, 0
        %v4609 = vsel %vm623, %v4594, 0
        %4611 = vmatprep.subr.mxu0 0.0
        %4612 = vmatpush1.msra.mxu0 %v581
        %4613 = vmatprep.subr.mxu0 0.0
        %4614 = vmatpush1.msra.mxu0 0.0
        %4615 = vmatprep.subr.mxu0 0.0
        %4616 = vmatpush1.msra.mxu0 0.0
        %4617 = vmatprep.subr.mxu0 0.0
        %4618 = vmatpush1.msra.mxu0 0.0
        %4619 = vmatprep.subr.mxu0 0.0
        %4620 = vmatpush1.msra.mxu0 0.0
        %4621 = vmatprep.subr.mxu0 0.0
        %4622 = vmatpush1.msra.mxu0 0.0
        %4623 = vmatprep.subr.mxu0 0.0
        %4624 = vmatpush1.msra.mxu0 0.0
        %4625 = vmatprep.subr.mxu0 0.0
        %4626 = vmatpush1.msra.mxu0 0.0
        %4627 = vmatprep.subr.mxu0 0.0
        %4628 = vmatpush1.msra.mxu0 0.0
        %4629 = vmatprep.subr.mxu0 0.0
        %4630 = vmatpush1.msra.mxu0 0.0
        %4631 = vmatprep.subr.mxu0 0.0
        %4632 = vmatpush1.msra.mxu0 0.0
        %4633 = vmatprep.subr.mxu0 0.0
        %4634 = vmatpush1.msra.mxu0 0.0
        %4635 = vmatprep.subr.mxu0 0.0
        %4636 = vmatpush1.msra.mxu0 0.0
        %4637 = vmatprep.subr.mxu0 0.0
        %4638 = vmatpush1.msra.mxu0 0.0
        %4639 = vmatprep.subr.mxu0 0.0
        %4640 = vmatpush1.msra.mxu0 0.0
        %4641 = vmatprep.subr.mxu0 0.0
        %4642 = vmatpush1.msra.mxu0 0.0
        %4643 = vmatprep.subr.mxu0 0.0
        %4644 = vmatpush1.msra.mxu0 0.0
        %4645 = vmatprep.subr.mxu0 0.0
        %4646 = vmatpush1.msra.mxu0 0.0
        %4647 = vmatprep.subr.mxu0 0.0
        %4648 = vmatpush1.msra.mxu0 0.0
        %4649 = vmatprep.subr.mxu0 0.0
        %4650 = vmatpush1.msra.mxu0 0.0
        %4651 = vmatprep.subr.mxu0 0.0
        %4652 = vmatpush1.msra.mxu0 0.0
        %4653 = vmatprep.subr.mxu0 0.0
        %4654 = vmatpush1.msra.mxu0 0.0
        %4655 = vmatprep.subr.mxu0 0.0
        %4656 = vmatpush1.msra.mxu0 0.0
        %4657 = vmatprep.subr.mxu0 0.0
        %4658 = vmatpush1.msra.mxu0 0.0
        %4659 = vmatprep.subr.mxu0 0.0
        %4660 = vmatpush1.msra.mxu0 0.0
        %4661 = vmatprep.subr.mxu0 0.0
        %4662 = vmatpush1.msra.mxu0 0.0
        %4663 = vmatprep.subr.mxu0 0.0
        %4664 = vmatpush1.msra.mxu0 0.0
        %4665 = vmatprep.subr.mxu0 0.0
        %4666 = vmatpush1.msra.mxu0 0.0
        %4667 = vmatprep.subr.mxu0 0.0
        %4668 = vmatpush1.msra.mxu0 0.0
        %4669 = vmatprep.subr.mxu0 0.0
        %4670 = vmatpush1.msra.mxu0 0.0
        %4671 = vmatprep.subr.mxu0 0.0
        %4672 = vmatpush1.msra.mxu0 0.0
        %4673 = vmatprep.subr.mxu0 0.0
        %4674 = vmatpush1.msra.mxu0 0.0
        %4675 = vmatprep.mubr.f32.mxu0 0.0
        %4676 = vmatmul.mubr.f32.gmra.mrb[0].mxu0 %v4595
        %v4677 = vpop.f32.mrb[0].mxu0
        %v4678 = vadd.f32 0.0, %v4677
        %v4679 = vpop.f32.mrb[0].mxu0
        %4680 = vmatprep.mubr.f32.mxu0 0.0
        %4681 = vmatmul.mubr.f32.gmra.mrb[0].mxu0 %v4597
        %v4682 = vpop.f32.mrb[0].mxu0
        %v4683 = vadd.f32 0.0, %v4682
        %v4684 = vpop.f32.mrb[0].mxu0
        %4685 = vmatprep.mubr.f32.mxu0 0.0
        %4686 = vmatmul.mubr.f32.gmra.mrb[0].mxu0 %v4599
        %v4687 = vpop.f32.mrb[0].mxu0
        %v4688 = vadd.f32 0.0, %v4687
        %v4689 = vpop.f32.mrb[0].mxu0
        %4690 = vmatprep.mubr.f32.mxu0 0.0
        %4691 = vmatmul.mubr.f32.gmra.mrb[0].mxu0 %v4601
        %v4692 = vpop.f32.mrb[0].mxu0
        %v4693 = vadd.f32 0.0, %v4692
        %v4694 = vpop.f32.mrb[0].mxu0
        %4695 = vmatprep.mubr.f32.mxu0 0.0
        %4696 = vmatmul.mubr.f32.gmra.mrb[0].mxu0 %v4603
        %v4697 = vpop.f32.mrb[0].mxu0
        %v4698 = vadd.f32 0.0, %v4697
        %v4699 = vpop.f32.mrb[0].mxu0
        %4700 = vmatprep.mubr.f32.mxu0 0.0
        %4701 = vmatmul.mubr.f32.gmra.mrb[0].mxu0 %v4605
        %v4702 = vpop.f32.mrb[0].mxu0
        %v4703 = vadd.f32 0.0, %v4702
        %v4704 = vpop.f32.mrb[0].mxu0
        %4705 = vmatprep.mubr.f32.mxu0 0.0
        %4706 = vmatmul.mubr.f32.gmra.mrb[0].mxu0 %v4607
        %v4707 = vpop.f32.mrb[0].mxu0
        %v4708 = vadd.f32 0.0, %v4707
        %v4709 = vpop.f32.mrb[0].mxu0
        %4710 = vmatprep.mubr.f32.mxu0 0.0
        %4711 = vmatmul.mubr.f32.gmra.mrb[0].mxu0 %v4609
        %v4712 = vpop.f32.mrb[0].mxu0
        %v4713 = vadd.f32 0.0, %v4712
        %v4714 = vpop.f32.mrb[0].mxu0
        %4715 = vdwg.mxu0
        %v4716 = vmul.f32 %v4541, %v4678
        %v4717 = vmul.f32 %v4546, %v4683
        %v4718 = vmul.f32 %v4551, %v4688
        %v4719 = vmul.f32 %v4556, %v4693
        %v4720 = vmul.f32 %v4561, %v4698
        %v4721 = vmul.f32 %v4566, %v4703
        %v4722 = vmul.f32 %v4571, %v4708
        %v4723 = vmul.f32 %v4576, %v4713
        %v4724 = vadd.f32 %v4329, %v4716
        %v4725 = vadd.f32 %v4330, %v4717
        %v4726 = vadd.f32 %v4331, %v4718
        %v4727 = vadd.f32 %v4332, %v4719
        %v4728 = vadd.f32 %v4333, %v4720
        %v4729 = vadd.f32 %v4334, %v4721
        %v4730 = vadd.f32 %v4335, %v4722
        %v4731 = vadd.f32 %v4336, %v4723
        %v4733 = vsel %vm623, %v3144, 0
        %v4736 = vsel %vm623, %v3145, 0
        %v4739 = vsel %vm623, %v3146, 0
        %v4742 = vsel %vm623, %v3147, 0
        %v4745 = vsel %vm623, %v3148, 0
        %v4748 = vsel %vm623, %v3149, 0
        %v4751 = vsel %vm623, %v3150, 0
        %v4754 = vsel %vm623, %v3151, 0
        %4756 = vmatprep.subr.mxu0 0.0
        %4757 = vmatpush1.msra.mxu0 %v595
        %4758 = vmatprep.subr.mxu0 0.0
        %4759 = vmatpush1.msra.mxu0 0.0
        %4760 = vmatprep.subr.mxu0 0.0
        %4761 = vmatpush1.msra.mxu0 0.0
        %4762 = vmatprep.subr.mxu0 0.0
        %4763 = vmatpush1.msra.mxu0 0.0
        %4764 = vmatprep.subr.mxu0 0.0
        %4765 = vmatpush1.msra.mxu0 0.0
        %4766 = vmatprep.subr.mxu0 0.0
        %4767 = vmatpush1.msra.mxu0 0.0
        %4768 = vmatprep.subr.mxu0 0.0
        %4769 = vmatpush1.msra.mxu0 0.0
        %4770 = vmatprep.subr.mxu0 0.0
        %4771 = vmatpush1.msra.mxu0 0.0
        %4772 = vmatprep.subr.mxu0 0.0
        %4773 = vmatpush1.msra.mxu0 0.0
        %4774 = vmatprep.subr.mxu0 0.0
        %4775 = vmatpush1.msra.mxu0 0.0
        %4776 = vmatprep.subr.mxu0 0.0
        %4777 = vmatpush1.msra.mxu0 0.0
        %4778 = vmatprep.subr.mxu0 0.0
        %4779 = vmatpush1.msra.mxu0 0.0
        %4780 = vmatprep.subr.mxu0 0.0
        %4781 = vmatpush1.msra.mxu0 0.0
        %4782 = vmatprep.subr.mxu0 0.0
        %4783 = vmatpush1.msra.mxu0 0.0
        %4784 = vmatprep.subr.mxu0 0.0
        %4785 = vmatpush1.msra.mxu0 0.0
        %4786 = vmatprep.subr.mxu0 0.0
        %4787 = vmatpush1.msra.mxu0 0.0
        %4788 = vmatprep.subr.mxu0 0.0
        %4789 = vmatpush1.msra.mxu0 0.0
        %4790 = vmatprep.subr.mxu0 0.0
        %4791 = vmatpush1.msra.mxu0 0.0
        %4792 = vmatprep.subr.mxu0 0.0
        %4793 = vmatpush1.msra.mxu0 0.0
        %4794 = vmatprep.subr.mxu0 0.0
        %4795 = vmatpush1.msra.mxu0 0.0
        %4796 = vmatprep.subr.mxu0 0.0
        %4797 = vmatpush1.msra.mxu0 0.0
        %4798 = vmatprep.subr.mxu0 0.0
        %4799 = vmatpush1.msra.mxu0 0.0
        %4800 = vmatprep.subr.mxu0 0.0
        %4801 = vmatpush1.msra.mxu0 0.0
        %4802 = vmatprep.subr.mxu0 0.0
        %4803 = vmatpush1.msra.mxu0 0.0
        %4804 = vmatprep.subr.mxu0 0.0
        %4805 = vmatpush1.msra.mxu0 0.0
        %4806 = vmatprep.subr.mxu0 0.0
        %4807 = vmatpush1.msra.mxu0 0.0
        %4808 = vmatprep.subr.mxu0 0.0
        %4809 = vmatpush1.msra.mxu0 0.0
        %4810 = vmatprep.subr.mxu0 0.0
        %4811 = vmatpush1.msra.mxu0 0.0
        %4812 = vmatprep.subr.mxu0 0.0
        %4813 = vmatpush1.msra.mxu0 0.0
        %4814 = vmatprep.subr.mxu0 0.0
        %4815 = vmatpush1.msra.mxu0 0.0
        %4816 = vmatprep.subr.mxu0 0.0
        %4817 = vmatpush1.msra.mxu0 0.0
        %4818 = vmatprep.subr.mxu0 0.0
        %4819 = vmatpush1.msra.mxu0 0.0
        %4820 = vmatprep.mubr.f32.mxu0 0.0
        %4821 = vmatmul.mubr.f32.gmra.mrb[0].mxu0 %v4733
        %v4822 = vpop.f32.mrb[0].mxu0
        %v4823 = vadd.f32 0.0, %v4822
        %v4824 = vpop.f32.mrb[0].mxu0
        %4825 = vmatprep.mubr.f32.mxu0 0.0
        %4826 = vmatmul.mubr.f32.gmra.mrb[0].mxu0 %v4736
        %v4827 = vpop.f32.mrb[0].mxu0
        %v4828 = vadd.f32 0.0, %v4827
        %v4829 = vpop.f32.mrb[0].mxu0
        %4830 = vmatprep.mubr.f32.mxu0 0.0
        %4831 = vmatmul.mubr.f32.gmra.mrb[0].mxu0 %v4739
        %v4832 = vpop.f32.mrb[0].mxu0
        %v4833 = vadd.f32 0.0, %v4832
        %v4834 = vpop.f32.mrb[0].mxu0
        %4835 = vmatprep.mubr.f32.mxu0 0.0
        %4836 = vmatmul.mubr.f32.gmra.mrb[0].mxu0 %v4742
        %v4837 = vpop.f32.mrb[0].mxu0
        %v4838 = vadd.f32 0.0, %v4837
        %v4839 = vpop.f32.mrb[0].mxu0
        %4840 = vmatprep.mubr.f32.mxu0 0.0
        %4841 = vmatmul.mubr.f32.gmra.mrb[0].mxu0 %v4745
        %v4842 = vpop.f32.mrb[0].mxu0
        %v4843 = vadd.f32 0.0, %v4842
        %v4844 = vpop.f32.mrb[0].mxu0
        %4845 = vmatprep.mubr.f32.mxu0 0.0
        %4846 = vmatmul.mubr.f32.gmra.mrb[0].mxu0 %v4748
        %v4847 = vpop.f32.mrb[0].mxu0
        %v4848 = vadd.f32 0.0, %v4847
        %v4849 = vpop.f32.mrb[0].mxu0
        %4850 = vmatprep.mubr.f32.mxu0 0.0
        %4851 = vmatmul.mubr.f32.gmra.mrb[0].mxu0 %v4751
        %v4852 = vpop.f32.mrb[0].mxu0
        %v4853 = vadd.f32 0.0, %v4852
        %v4854 = vpop.f32.mrb[0].mxu0
        %4855 = vmatprep.mubr.f32.mxu0 0.0
        %4856 = vmatmul.mubr.f32.gmra.mrb[0].mxu0 %v4754
        %v4857 = vpop.f32.mrb[0].mxu0
        %v4858 = vadd.f32 0.0, %v4857
        %v4859 = vpop.f32.mrb[0].mxu0
        %4860 = vdwg.mxu0
        %v4861 = vadd.f32 %v4466, %v4823
        %v4862 = vadd.f32 %v4467, %v4828
        %v4863 = vadd.f32 %v4468, %v4833
        %v4864 = vadd.f32 %v4469, %v4838
        %v4865 = vadd.f32 %v4470, %v4843
        %v4866 = vadd.f32 %v4471, %v4848
        %v4867 = vadd.f32 %v4472, %v4853
        %v4868 = vadd.f32 %v4473, %v4858
        %4869 = vmatprep.subr.mxu0 0.0
        %4870 = vmatpush1.msra.mxu0 %v590
        %4871 = vmatprep.subr.mxu0 0.0
        %4872 = vmatpush1.msra.mxu0 0.0
        %4873 = vmatprep.subr.mxu0 0.0
        %4874 = vmatpush1.msra.mxu0 0.0
        %4875 = vmatprep.subr.mxu0 0.0
        %4876 = vmatpush1.msra.mxu0 0.0
        %4877 = vmatprep.subr.mxu0 0.0
        %4878 = vmatpush1.msra.mxu0 0.0
        %4879 = vmatprep.subr.mxu0 0.0
        %4880 = vmatpush1.msra.mxu0 0.0
        %4881 = vmatprep.subr.mxu0 0.0
        %4882 = vmatpush1.msra.mxu0 0.0
        %4883 = vmatprep.subr.mxu0 0.0
        %4884 = vmatpush1.msra.mxu0 0.0
        %4885 = vmatprep.subr.mxu0 0.0
        %4886 = vmatpush1.msra.mxu0 0.0
        %4887 = vmatprep.subr.mxu0 0.0
        %4888 = vmatpush1.msra.mxu0 0.0
        %4889 = vmatprep.subr.mxu0 0.0
        %4890 = vmatpush1.msra.mxu0 0.0
        %4891 = vmatprep.subr.mxu0 0.0
        %4892 = vmatpush1.msra.mxu0 0.0
        %4893 = vmatprep.subr.mxu0 0.0
        %4894 = vmatpush1.msra.mxu0 0.0
        %4895 = vmatprep.subr.mxu0 0.0
        %4896 = vmatpush1.msra.mxu0 0.0
        %4897 = vmatprep.subr.mxu0 0.0
        %4898 = vmatpush1.msra.mxu0 0.0
        %4899 = vmatprep.subr.mxu0 0.0
        %4900 = vmatpush1.msra.mxu0 0.0
        %4901 = vmatprep.subr.mxu0 0.0
        %4902 = vmatpush1.msra.mxu0 0.0
        %4903 = vmatprep.subr.mxu0 0.0
        %4904 = vmatpush1.msra.mxu0 0.0
        %4905 = vmatprep.subr.mxu0 0.0
        %4906 = vmatpush1.msra.mxu0 0.0
        %4907 = vmatprep.subr.mxu0 0.0
        %4908 = vmatpush1.msra.mxu0 0.0
        %4909 = vmatprep.subr.mxu0 0.0
        %4910 = vmatpush1.msra.mxu0 0.0
        %4911 = vmatprep.subr.mxu0 0.0
        %4912 = vmatpush1.msra.mxu0 0.0
        %4913 = vmatprep.subr.mxu0 0.0
        %4914 = vmatpush1.msra.mxu0 0.0
        %4915 = vmatprep.subr.mxu0 0.0
        %4916 = vmatpush1.msra.mxu0 0.0
        %4917 = vmatprep.subr.mxu0 0.0
        %4918 = vmatpush1.msra.mxu0 0.0
        %4919 = vmatprep.subr.mxu0 0.0
        %4920 = vmatpush1.msra.mxu0 0.0
        %4921 = vmatprep.subr.mxu0 0.0
        %4922 = vmatpush1.msra.mxu0 0.0
        %4923 = vmatprep.subr.mxu0 0.0
        %4924 = vmatpush1.msra.mxu0 0.0
        %4925 = vmatprep.subr.mxu0 0.0
        %4926 = vmatpush1.msra.mxu0 0.0
        %4927 = vmatprep.subr.mxu0 0.0
        %4928 = vmatpush1.msra.mxu0 0.0
        %4929 = vmatprep.subr.mxu0 0.0
        %4930 = vmatpush1.msra.mxu0 0.0
        %4931 = vmatprep.subr.mxu0 0.0
        %4932 = vmatpush1.msra.mxu0 0.0
        %4933 = vmatprep.mubr.f32.mxu0 0.0
        %4934 = vmatmul.mubr.f32.gmra.mrb[0].mxu0 %v4733
        %v4935 = vpop.f32.mrb[0].mxu0
        %v4936 = vadd.f32 0.0, %v4935
        %v4937 = vpop.f32.mrb[0].mxu0
        %4938 = vmatprep.mubr.f32.mxu0 0.0
        %4939 = vmatmul.mubr.f32.gmra.mrb[0].mxu0 %v4736
        %v4940 = vpop.f32.mrb[0].mxu0
        %v4941 = vadd.f32 0.0, %v4940
        %v4942 = vpop.f32.mrb[0].mxu0
        %4943 = vmatprep.mubr.f32.mxu0 0.0
        %4944 = vmatmul.mubr.f32.gmra.mrb[0].mxu0 %v4739
        %v4945 = vpop.f32.mrb[0].mxu0
        %v4946 = vadd.f32 0.0, %v4945
        %v4947 = vpop.f32.mrb[0].mxu0
        %4948 = vmatprep.mubr.f32.mxu0 0.0
        %4949 = vmatmul.mubr.f32.gmra.mrb[0].mxu0 %v4742
        %v4950 = vpop.f32.mrb[0].mxu0
        %v4951 = vadd.f32 0.0, %v4950
        %v4952 = vpop.f32.mrb[0].mxu0
        %4953 = vmatprep.mubr.f32.mxu0 0.0
        %4954 = vmatmul.mubr.f32.gmra.mrb[0].mxu0 %v4745
        %v4955 = vpop.f32.mrb[0].mxu0
        %v4956 = vadd.f32 0.0, %v4955
        %v4957 = vpop.f32.mrb[0].mxu0
        %4958 = vmatprep.mubr.f32.mxu0 0.0
        %4959 = vmatmul.mubr.f32.gmra.mrb[0].mxu0 %v4748
        %v4960 = vpop.f32.mrb[0].mxu0
        %v4961 = vadd.f32 0.0, %v4960
        %v4962 = vpop.f32.mrb[0].mxu0
        %4963 = vmatprep.mubr.f32.mxu0 0.0
        %4964 = vmatmul.mubr.f32.gmra.mrb[0].mxu0 %v4751
        %v4965 = vpop.f32.mrb[0].mxu0
        %v4966 = vadd.f32 0.0, %v4965
        %v4967 = vpop.f32.mrb[0].mxu0
        %4968 = vmatprep.mubr.f32.mxu0 0.0
        %4969 = vmatmul.mubr.f32.gmra.mrb[0].mxu0 %v4754
        %v4970 = vpop.f32.mrb[0].mxu0
        %v4971 = vadd.f32 0.0, %v4970
        %v4972 = vpop.f32.mrb[0].mxu0
        %4973 = vdwg.mxu0
        %4974 = vrot.lane.b32.xlu0 %v529, 96
        %v4975 = vpop.permute.xlu0 %4974
        %4976 = vrot.lane.b32.xlu0 %v535, 96
        %v4977 = vpop.permute.xlu0 %4976
        %4978 = vrot.lane.b32.xlu0 %v541, 96
        %v4979 = vpop.permute.xlu0 %4978
        %4980 = vrot.lane.b32.xlu0 %v547, 96
        %v4981 = vpop.permute.xlu0 %4980
        %4982 = vrot.lane.b32.xlu0 %v553, 96
        %v4983 = vpop.permute.xlu0 %4982
        %4984 = vrot.lane.b32.xlu0 %v559, 96
        %v4985 = vpop.permute.xlu0 %4984
        %4986 = vrot.lane.b32.xlu0 %v565, 96
        %v4987 = vpop.permute.xlu0 %4986
        %4988 = vrot.lane.b32.xlu0 %v571, 96
        %v4989 = vpop.permute.xlu0 %4988
        %v4990 = vsel %vm623, %v4975, 0
        %v4992 = vsel %vm623, %v4977, 0
        %v4994 = vsel %vm623, %v4979, 0
        %v4996 = vsel %vm623, %v4981, 0
        %v4998 = vsel %vm623, %v4983, 0
        %v5000 = vsel %vm623, %v4985, 0
        %v5002 = vsel %vm623, %v4987, 0
        %v5004 = vsel %vm623, %v4989, 0
        %5006 = vmatprep.subr.mxu0 0.0
        %5007 = vmatpush1.msra.mxu0 %v581
        %5008 = vmatprep.subr.mxu0 0.0
        %5009 = vmatpush1.msra.mxu0 0.0
        %5010 = vmatprep.subr.mxu0 0.0
        %5011 = vmatpush1.msra.mxu0 0.0
        %5012 = vmatprep.subr.mxu0 0.0
        %5013 = vmatpush1.msra.mxu0 0.0
        %5014 = vmatprep.subr.mxu0 0.0
        %5015 = vmatpush1.msra.mxu0 0.0
        %5016 = vmatprep.subr.mxu0 0.0
        %5017 = vmatpush1.msra.mxu0 0.0
        %5018 = vmatprep.subr.mxu0 0.0
        %5019 = vmatpush1.msra.mxu0 0.0
        %5020 = vmatprep.subr.mxu0 0.0
        %5021 = vmatpush1.msra.mxu0 0.0
        %5022 = vmatprep.subr.mxu0 0.0
        %5023 = vmatpush1.msra.mxu0 0.0
        %5024 = vmatprep.subr.mxu0 0.0
        %5025 = vmatpush1.msra.mxu0 0.0
        %5026 = vmatprep.subr.mxu0 0.0
        %5027 = vmatpush1.msra.mxu0 0.0
        %5028 = vmatprep.subr.mxu0 0.0
        %5029 = vmatpush1.msra.mxu0 0.0
        %5030 = vmatprep.subr.mxu0 0.0
        %5031 = vmatpush1.msra.mxu0 0.0
        %5032 = vmatprep.subr.mxu0 0.0
        %5033 = vmatpush1.msra.mxu0 0.0
        %5034 = vmatprep.subr.mxu0 0.0
        %5035 = vmatpush1.msra.mxu0 0.0
        %5036 = vmatprep.subr.mxu0 0.0
        %5037 = vmatpush1.msra.mxu0 0.0
        %5038 = vmatprep.subr.mxu0 0.0
        %5039 = vmatpush1.msra.mxu0 0.0
        %5040 = vmatprep.subr.mxu0 0.0
        %5041 = vmatpush1.msra.mxu0 0.0
        %5042 = vmatprep.subr.mxu0 0.0
        %5043 = vmatpush1.msra.mxu0 0.0
        %5044 = vmatprep.subr.mxu0 0.0
        %5045 = vmatpush1.msra.mxu0 0.0
        %5046 = vmatprep.subr.mxu0 0.0
        %5047 = vmatpush1.msra.mxu0 0.0
        %5048 = vmatprep.subr.mxu0 0.0
        %5049 = vmatpush1.msra.mxu0 0.0
        %5050 = vmatprep.subr.mxu0 0.0
        %5051 = vmatpush1.msra.mxu0 0.0
        %5052 = vmatprep.subr.mxu0 0.0
        %5053 = vmatpush1.msra.mxu0 0.0
        %5054 = vmatprep.subr.mxu0 0.0
        %5055 = vmatpush1.msra.mxu0 0.0
        %5056 = vmatprep.subr.mxu0 0.0
        %5057 = vmatpush1.msra.mxu0 0.0
        %5058 = vmatprep.subr.mxu0 0.0
        %5059 = vmatpush1.msra.mxu0 0.0
        %5060 = vmatprep.subr.mxu0 0.0
        %5061 = vmatpush1.msra.mxu0 0.0
        %5062 = vmatprep.subr.mxu0 0.0
        %5063 = vmatpush1.msra.mxu0 0.0
        %5064 = vmatprep.subr.mxu0 0.0
        %5065 = vmatpush1.msra.mxu0 0.0
        %5066 = vmatprep.subr.mxu0 0.0
        %5067 = vmatpush1.msra.mxu0 0.0
        %5068 = vmatprep.subr.mxu0 0.0
        %5069 = vmatpush1.msra.mxu0 0.0
        %5070 = vmatprep.mubr.f32.mxu0 0.0
        %5071 = vmatmul.mubr.f32.gmra.mrb[0].mxu0 %v4990
        %v5072 = vpop.f32.mrb[0].mxu0
        %v5073 = vadd.f32 0.0, %v5072
        %v5074 = vpop.f32.mrb[0].mxu0
        %5075 = vmatprep.mubr.f32.mxu0 0.0
        %5076 = vmatmul.mubr.f32.gmra.mrb[0].mxu0 %v4992
        %v5077 = vpop.f32.mrb[0].mxu0
        %v5078 = vadd.f32 0.0, %v5077
        %v5079 = vpop.f32.mrb[0].mxu0
        %5080 = vmatprep.mubr.f32.mxu0 0.0
        %5081 = vmatmul.mubr.f32.gmra.mrb[0].mxu0 %v4994
        %v5082 = vpop.f32.mrb[0].mxu0
        %v5083 = vadd.f32 0.0, %v5082
        %v5084 = vpop.f32.mrb[0].mxu0
        %5085 = vmatprep.mubr.f32.mxu0 0.0
        %5086 = vmatmul.mubr.f32.gmra.mrb[0].mxu0 %v4996
        %v5087 = vpop.f32.mrb[0].mxu0
        %v5088 = vadd.f32 0.0, %v5087
        %v5089 = vpop.f32.mrb[0].mxu0
        %5090 = vmatprep.mubr.f32.mxu0 0.0
        %5091 = vmatmul.mubr.f32.gmra.mrb[0].mxu0 %v4998
        %v5092 = vpop.f32.mrb[0].mxu0
        %v5093 = vadd.f32 0.0, %v5092
        %v5094 = vpop.f32.mrb[0].mxu0
        %5095 = vmatprep.mubr.f32.mxu0 0.0
        %5096 = vmatmul.mubr.f32.gmra.mrb[0].mxu0 %v5000
        %v5097 = vpop.f32.mrb[0].mxu0
        %v5098 = vadd.f32 0.0, %v5097
        %v5099 = vpop.f32.mrb[0].mxu0
        %5100 = vmatprep.mubr.f32.mxu0 0.0
        %5101 = vmatmul.mubr.f32.gmra.mrb[0].mxu0 %v5002
        %v5102 = vpop.f32.mrb[0].mxu0
        %v5103 = vadd.f32 0.0, %v5102
        %v5104 = vpop.f32.mrb[0].mxu0
        %5105 = vmatprep.mubr.f32.mxu0 0.0
        %5106 = vmatmul.mubr.f32.gmra.mrb[0].mxu0 %v5004
        %v5107 = vpop.f32.mrb[0].mxu0
        %v5108 = vadd.f32 0.0, %v5107
        %v5109 = vpop.f32.mrb[0].mxu0
        %5110 = vdwg.mxu0
        %v5111 = vmul.f32 %v4936, %v5073
        %v5112 = vmul.f32 %v4941, %v5078
        %v5113 = vmul.f32 %v4946, %v5083
        %v5114 = vmul.f32 %v4951, %v5088
        %v5115 = vmul.f32 %v4956, %v5093
        %v5116 = vmul.f32 %v4961, %v5098
        %v5117 = vmul.f32 %v4966, %v5103
        %v5118 = vmul.f32 %v4971, %v5108
        %v5119 = vadd.f32 %v4724, %v5111
        %v5120 = vadd.f32 %v4725, %v5112
        %v5121 = vadd.f32 %v4726, %v5113
        %v5122 = vadd.f32 %v4727, %v5114
        %v5123 = vadd.f32 %v4728, %v5115
        %v5124 = vadd.f32 %v4729, %v5116
        %v5125 = vadd.f32 %v4730, %v5117
        %v5126 = vadd.f32 %v4731, %v5118
        %v5128 = vsel %vm623, %v3152, 0
        %v5131 = vsel %vm623, %v3153, 0
        %v5134 = vsel %vm623, %v3154, 0
        %v5137 = vsel %vm623, %v3155, 0
        %v5140 = vsel %vm623, %v3156, 0
        %v5143 = vsel %vm623, %v3157, 0
        %v5146 = vsel %vm623, %v3158, 0
        %v5149 = vsel %vm623, %v3159, 0
        %5151 = vmatprep.subr.mxu0 0.0
        %5152 = vmatpush1.msra.mxu0 %v596
        %5153 = vmatprep.subr.mxu0 0.0
        %5154 = vmatpush1.msra.mxu0 0.0
        %5155 = vmatprep.subr.mxu0 0.0
        %5156 = vmatpush1.msra.mxu0 0.0
        %5157 = vmatprep.subr.mxu0 0.0
        %5158 = vmatpush1.msra.mxu0 0.0
        %5159 = vmatprep.subr.mxu0 0.0
        %5160 = vmatpush1.msra.mxu0 0.0
        %5161 = vmatprep.subr.mxu0 0.0
        %5162 = vmatpush1.msra.mxu0 0.0
        %5163 = vmatprep.subr.mxu0 0.0
        %5164 = vmatpush1.msra.mxu0 0.0
        %5165 = vmatprep.subr.mxu0 0.0
        %5166 = vmatpush1.msra.mxu0 0.0
        %5167 = vmatprep.subr.mxu0 0.0
        %5168 = vmatpush1.msra.mxu0 0.0
        %5169 = vmatprep.subr.mxu0 0.0
        %5170 = vmatpush1.msra.mxu0 0.0
        %5171 = vmatprep.subr.mxu0 0.0
        %5172 = vmatpush1.msra.mxu0 0.0
        %5173 = vmatprep.subr.mxu0 0.0
        %5174 = vmatpush1.msra.mxu0 0.0
        %5175 = vmatprep.subr.mxu0 0.0
        %5176 = vmatpush1.msra.mxu0 0.0
        %5177 = vmatprep.subr.mxu0 0.0
        %5178 = vmatpush1.msra.mxu0 0.0
        %5179 = vmatprep.subr.mxu0 0.0
        %5180 = vmatpush1.msra.mxu0 0.0
        %5181 = vmatprep.subr.mxu0 0.0
        %5182 = vmatpush1.msra.mxu0 0.0
        %5183 = vmatprep.subr.mxu0 0.0
        %5184 = vmatpush1.msra.mxu0 0.0
        %5185 = vmatprep.subr.mxu0 0.0
        %5186 = vmatpush1.msra.mxu0 0.0
        %5187 = vmatprep.subr.mxu0 0.0
        %5188 = vmatpush1.msra.mxu0 0.0
        %5189 = vmatprep.subr.mxu0 0.0
        %5190 = vmatpush1.msra.mxu0 0.0
        %5191 = vmatprep.subr.mxu0 0.0
        %5192 = vmatpush1.msra.mxu0 0.0
        %5193 = vmatprep.subr.mxu0 0.0
        %5194 = vmatpush1.msra.mxu0 0.0
        %5195 = vmatprep.subr.mxu0 0.0
        %5196 = vmatpush1.msra.mxu0 0.0
        %5197 = vmatprep.subr.mxu0 0.0
        %5198 = vmatpush1.msra.mxu0 0.0
        %5199 = vmatprep.subr.mxu0 0.0
        %5200 = vmatpush1.msra.mxu0 0.0
        %5201 = vmatprep.subr.mxu0 0.0
        %5202 = vmatpush1.msra.mxu0 0.0
        %5203 = vmatprep.subr.mxu0 0.0
        %5204 = vmatpush1.msra.mxu0 0.0
        %5205 = vmatprep.subr.mxu0 0.0
        %5206 = vmatpush1.msra.mxu0 0.0
        %5207 = vmatprep.subr.mxu0 0.0
        %5208 = vmatpush1.msra.mxu0 0.0
        %5209 = vmatprep.subr.mxu0 0.0
        %5210 = vmatpush1.msra.mxu0 0.0
        %5211 = vmatprep.subr.mxu0 0.0
        %5212 = vmatpush1.msra.mxu0 0.0
        %5213 = vmatprep.subr.mxu0 0.0
        %5214 = vmatpush1.msra.mxu0 0.0
        %5215 = vmatprep.mubr.f32.mxu0 0.0
        %5216 = vmatmul.mubr.f32.gmra.mrb[0].mxu0 %v5128
        %v5217 = vpop.f32.mrb[0].mxu0
        %v5218 = vadd.f32 0.0, %v5217
        %v5219 = vpop.f32.mrb[0].mxu0
        %5220 = vmatprep.mubr.f32.mxu0 0.0
        %5221 = vmatmul.mubr.f32.gmra.mrb[0].mxu0 %v5131
        %v5222 = vpop.f32.mrb[0].mxu0
        %v5223 = vadd.f32 0.0, %v5222
        %v5224 = vpop.f32.mrb[0].mxu0
        %5225 = vmatprep.mubr.f32.mxu0 0.0
        %5226 = vmatmul.mubr.f32.gmra.mrb[0].mxu0 %v5134
        %v5227 = vpop.f32.mrb[0].mxu0
        %v5228 = vadd.f32 0.0, %v5227
        %v5229 = vpop.f32.mrb[0].mxu0
        %5230 = vmatprep.mubr.f32.mxu0 0.0
        %5231 = vmatmul.mubr.f32.gmra.mrb[0].mxu0 %v5137
        %v5232 = vpop.f32.mrb[0].mxu0
        %v5233 = vadd.f32 0.0, %v5232
        %v5234 = vpop.f32.mrb[0].mxu0
        %5235 = vmatprep.mubr.f32.mxu0 0.0
        %5236 = vmatmul.mubr.f32.gmra.mrb[0].mxu0 %v5140
        %v5237 = vpop.f32.mrb[0].mxu0
        %v5238 = vadd.f32 0.0, %v5237
        %v5239 = vpop.f32.mrb[0].mxu0
        %5240 = vmatprep.mubr.f32.mxu0 0.0
        %5241 = vmatmul.mubr.f32.gmra.mrb[0].mxu0 %v5143
        %v5242 = vpop.f32.mrb[0].mxu0
        %v5243 = vadd.f32 0.0, %v5242
        %v5244 = vpop.f32.mrb[0].mxu0
        %5245 = vmatprep.mubr.f32.mxu0 0.0
        %5246 = vmatmul.mubr.f32.gmra.mrb[0].mxu0 %v5146
        %v5247 = vpop.f32.mrb[0].mxu0
        %v5248 = vadd.f32 0.0, %v5247
        %v5249 = vpop.f32.mrb[0].mxu0
        %5250 = vmatprep.mubr.f32.mxu0 0.0
        %5251 = vmatmul.mubr.f32.gmra.mrb[0].mxu0 %v5149
        %v5252 = vpop.f32.mrb[0].mxu0
        %v5253 = vadd.f32 0.0, %v5252
        %v5254 = vpop.f32.mrb[0].mxu0
        %5255 = vdwg.mxu0
        %v5256 = vadd.f32 %v4861, %v5218
        %v5257 = vadd.f32 %v4862, %v5223
        %v5258 = vadd.f32 %v4863, %v5228
        %v5259 = vadd.f32 %v4864, %v5233
        %v5260 = vadd.f32 %v4865, %v5238
        %v5261 = vadd.f32 %v4866, %v5243
        %v5262 = vadd.f32 %v4867, %v5248
        %v5263 = vadd.f32 %v4868, %v5253
        %5264 = vmatprep.subr.mxu0 0.0
        %5265 = vmatpush1.msra.mxu0 %v590
        %5266 = vmatprep.subr.mxu0 0.0
        %5267 = vmatpush1.msra.mxu0 0.0
        %5268 = vmatprep.subr.mxu0 0.0
        %5269 = vmatpush1.msra.mxu0 0.0
        %5270 = vmatprep.subr.mxu0 0.0
        %5271 = vmatpush1.msra.mxu0 0.0
        %5272 = vmatprep.subr.mxu0 0.0
        %5273 = vmatpush1.msra.mxu0 0.0
        %5274 = vmatprep.subr.mxu0 0.0
        %5275 = vmatpush1.msra.mxu0 0.0
        %5276 = vmatprep.subr.mxu0 0.0
        %5277 = vmatpush1.msra.mxu0 0.0
        %5278 = vmatprep.subr.mxu0 0.0
        %5279 = vmatpush1.msra.mxu0 0.0
        %5280 = vmatprep.subr.mxu0 0.0
        %5281 = vmatpush1.msra.mxu0 0.0
        %5282 = vmatprep.subr.mxu0 0.0
        %5283 = vmatpush1.msra.mxu0 0.0
        %5284 = vmatprep.subr.mxu0 0.0
        %5285 = vmatpush1.msra.mxu0 0.0
        %5286 = vmatprep.subr.mxu0 0.0
        %5287 = vmatpush1.msra.mxu0 0.0
        %5288 = vmatprep.subr.mxu0 0.0
        %5289 = vmatpush1.msra.mxu0 0.0
        %5290 = vmatprep.subr.mxu0 0.0
        %5291 = vmatpush1.msra.mxu0 0.0
        %5292 = vmatprep.subr.mxu0 0.0
        %5293 = vmatpush1.msra.mxu0 0.0
        %5294 = vmatprep.subr.mxu0 0.0
        %5295 = vmatpush1.msra.mxu0 0.0
        %5296 = vmatprep.subr.mxu0 0.0
        %5297 = vmatpush1.msra.mxu0 0.0
        %5298 = vmatprep.subr.mxu0 0.0
        %5299 = vmatpush1.msra.mxu0 0.0
        %5300 = vmatprep.subr.mxu0 0.0
        %5301 = vmatpush1.msra.mxu0 0.0
        %5302 = vmatprep.subr.mxu0 0.0
        %5303 = vmatpush1.msra.mxu0 0.0
        %5304 = vmatprep.subr.mxu0 0.0
        %5305 = vmatpush1.msra.mxu0 0.0
        %5306 = vmatprep.subr.mxu0 0.0
        %5307 = vmatpush1.msra.mxu0 0.0
        %5308 = vmatprep.subr.mxu0 0.0
        %5309 = vmatpush1.msra.mxu0 0.0
        %5310 = vmatprep.subr.mxu0 0.0
        %5311 = vmatpush1.msra.mxu0 0.0
        %5312 = vmatprep.subr.mxu0 0.0
        %5313 = vmatpush1.msra.mxu0 0.0
        %5314 = vmatprep.subr.mxu0 0.0
        %5315 = vmatpush1.msra.mxu0 0.0
        %5316 = vmatprep.subr.mxu0 0.0
        %5317 = vmatpush1.msra.mxu0 0.0
        %5318 = vmatprep.subr.mxu0 0.0
        %5319 = vmatpush1.msra.mxu0 0.0
        %5320 = vmatprep.subr.mxu0 0.0
        %5321 = vmatpush1.msra.mxu0 0.0
        %5322 = vmatprep.subr.mxu0 0.0
        %5323 = vmatpush1.msra.mxu0 0.0
        %5324 = vmatprep.subr.mxu0 0.0
        %5325 = vmatpush1.msra.mxu0 0.0
        %5326 = vmatprep.subr.mxu0 0.0
        %5327 = vmatpush1.msra.mxu0 0.0
        %5328 = vmatprep.mubr.f32.mxu0 0.0
        %5329 = vmatmul.mubr.f32.gmra.mrb[0].mxu0 %v5128
        %v5330 = vpop.f32.mrb[0].mxu0
        %v5331 = vadd.f32 0.0, %v5330
        %v5332 = vpop.f32.mrb[0].mxu0
        %5333 = vmatprep.mubr.f32.mxu0 0.0
        %5334 = vmatmul.mubr.f32.gmra.mrb[0].mxu0 %v5131
        %v5335 = vpop.f32.mrb[0].mxu0
        %v5336 = vadd.f32 0.0, %v5335
        %v5337 = vpop.f32.mrb[0].mxu0
        %5338 = vmatprep.mubr.f32.mxu0 0.0
        %5339 = vmatmul.mubr.f32.gmra.mrb[0].mxu0 %v5134
        %v5340 = vpop.f32.mrb[0].mxu0
        %v5341 = vadd.f32 0.0, %v5340
        %v5342 = vpop.f32.mrb[0].mxu0
        %5343 = vmatprep.mubr.f32.mxu0 0.0
        %5344 = vmatmul.mubr.f32.gmra.mrb[0].mxu0 %v5137
        %v5345 = vpop.f32.mrb[0].mxu0
        %v5346 = vadd.f32 0.0, %v5345
        %v5347 = vpop.f32.mrb[0].mxu0
        %5348 = vmatprep.mubr.f32.mxu0 0.0
        %5349 = vmatmul.mubr.f32.gmra.mrb[0].mxu0 %v5140
        %v5350 = vpop.f32.mrb[0].mxu0
        %v5351 = vadd.f32 0.0, %v5350
        %v5352 = vpop.f32.mrb[0].mxu0
        %5353 = vmatprep.mubr.f32.mxu0 0.0
        %5354 = vmatmul.mubr.f32.gmra.mrb[0].mxu0 %v5143
        %v5355 = vpop.f32.mrb[0].mxu0
        %v5356 = vadd.f32 0.0, %v5355
        %v5357 = vpop.f32.mrb[0].mxu0
        %5358 = vmatprep.mubr.f32.mxu0 0.0
        %5359 = vmatmul.mubr.f32.gmra.mrb[0].mxu0 %v5146
        %v5360 = vpop.f32.mrb[0].mxu0
        %v5361 = vadd.f32 0.0, %v5360
        %v5362 = vpop.f32.mrb[0].mxu0
        %5363 = vmatprep.mubr.f32.mxu0 0.0
        %5364 = vmatmul.mubr.f32.gmra.mrb[0].mxu0 %v5149
        %v5365 = vpop.f32.mrb[0].mxu0
        %v5366 = vadd.f32 0.0, %v5365
        %v5367 = vpop.f32.mrb[0].mxu0
        %5368 = vdwg.mxu0
        %5369 = vrot.lane.b32.xlu0 %v529, 88
        %v5370 = vpop.permute.xlu0 %5369
        %5371 = vrot.lane.b32.xlu0 %v535, 88
        %v5372 = vpop.permute.xlu0 %5371
        %5373 = vrot.lane.b32.xlu0 %v541, 88
        %v5374 = vpop.permute.xlu0 %5373
        %5375 = vrot.lane.b32.xlu0 %v547, 88
        %v5376 = vpop.permute.xlu0 %5375
        %5377 = vrot.lane.b32.xlu0 %v553, 88
        %v5378 = vpop.permute.xlu0 %5377
        %5379 = vrot.lane.b32.xlu0 %v559, 88
        %v5380 = vpop.permute.xlu0 %5379
        %5381 = vrot.lane.b32.xlu0 %v565, 88
        %v5382 = vpop.permute.xlu0 %5381
        %5383 = vrot.lane.b32.xlu0 %v571, 88
        %v5384 = vpop.permute.xlu0 %5383
        %v5385 = vsel %vm623, %v5370, 0
        %v5387 = vsel %vm623, %v5372, 0
        %v5389 = vsel %vm623, %v5374, 0
        %v5391 = vsel %vm623, %v5376, 0
        %v5393 = vsel %vm623, %v5378, 0
        %v5395 = vsel %vm623, %v5380, 0
        %v5397 = vsel %vm623, %v5382, 0
        %v5399 = vsel %vm623, %v5384, 0
        %5401 = vmatprep.subr.mxu0 0.0
        %5402 = vmatpush1.msra.mxu0 %v581
        %5403 = vmatprep.subr.mxu0 0.0
        %5404 = vmatpush1.msra.mxu0 0.0
        %5405 = vmatprep.subr.mxu0 0.0
        %5406 = vmatpush1.msra.mxu0 0.0
        %5407 = vmatprep.subr.mxu0 0.0
        %5408 = vmatpush1.msra.mxu0 0.0
        %5409 = vmatprep.subr.mxu0 0.0
        %5410 = vmatpush1.msra.mxu0 0.0
        %5411 = vmatprep.subr.mxu0 0.0
        %5412 = vmatpush1.msra.mxu0 0.0
        %5413 = vmatprep.subr.mxu0 0.0
        %5414 = vmatpush1.msra.mxu0 0.0
        %5415 = vmatprep.subr.mxu0 0.0
        %5416 = vmatpush1.msra.mxu0 0.0
        %5417 = vmatprep.subr.mxu0 0.0
        %5418 = vmatpush1.msra.mxu0 0.0
        %5419 = vmatprep.subr.mxu0 0.0
        %5420 = vmatpush1.msra.mxu0 0.0
        %5421 = vmatprep.subr.mxu0 0.0
        %5422 = vmatpush1.msra.mxu0 0.0
        %5423 = vmatprep.subr.mxu0 0.0
        %5424 = vmatpush1.msra.mxu0 0.0
        %5425 = vmatprep.subr.mxu0 0.0
        %5426 = vmatpush1.msra.mxu0 0.0
        %5427 = vmatprep.subr.mxu0 0.0
        %5428 = vmatpush1.msra.mxu0 0.0
        %5429 = vmatprep.subr.mxu0 0.0
        %5430 = vmatpush1.msra.mxu0 0.0
        %5431 = vmatprep.subr.mxu0 0.0
        %5432 = vmatpush1.msra.mxu0 0.0
        %5433 = vmatprep.subr.mxu0 0.0
        %5434 = vmatpush1.msra.mxu0 0.0
        %5435 = vmatprep.subr.mxu0 0.0
        %5436 = vmatpush1.msra.mxu0 0.0
        %5437 = vmatprep.subr.mxu0 0.0
        %5438 = vmatpush1.msra.mxu0 0.0
        %5439 = vmatprep.subr.mxu0 0.0
        %5440 = vmatpush1.msra.mxu0 0.0
        %5441 = vmatprep.subr.mxu0 0.0
        %5442 = vmatpush1.msra.mxu0 0.0
        %5443 = vmatprep.subr.mxu0 0.0
        %5444 = vmatpush1.msra.mxu0 0.0
        %5445 = vmatprep.subr.mxu0 0.0
        %5446 = vmatpush1.msra.mxu0 0.0
        %5447 = vmatprep.subr.mxu0 0.0
        %5448 = vmatpush1.msra.mxu0 0.0
        %5449 = vmatprep.subr.mxu0 0.0
        %5450 = vmatpush1.msra.mxu0 0.0
        %5451 = vmatprep.subr.mxu0 0.0
        %5452 = vmatpush1.msra.mxu0 0.0
        %5453 = vmatprep.subr.mxu0 0.0
        %5454 = vmatpush1.msra.mxu0 0.0
        %5455 = vmatprep.subr.mxu0 0.0
        %5456 = vmatpush1.msra.mxu0 0.0
        %5457 = vmatprep.subr.mxu0 0.0
        %5458 = vmatpush1.msra.mxu0 0.0
        %5459 = vmatprep.subr.mxu0 0.0
        %5460 = vmatpush1.msra.mxu0 0.0
        %5461 = vmatprep.subr.mxu0 0.0
        %5462 = vmatpush1.msra.mxu0 0.0
        %5463 = vmatprep.subr.mxu0 0.0
        %5464 = vmatpush1.msra.mxu0 0.0
        %5465 = vmatprep.mubr.f32.mxu0 0.0
        %5466 = vmatmul.mubr.f32.gmra.mrb[0].mxu0 %v5385
        %v5467 = vpop.f32.mrb[0].mxu0
        %v5468 = vadd.f32 0.0, %v5467
        %v5469 = vpop.f32.mrb[0].mxu0
        %5470 = vmatprep.mubr.f32.mxu0 0.0
        %5471 = vmatmul.mubr.f32.gmra.mrb[0].mxu0 %v5387
        %v5472 = vpop.f32.mrb[0].mxu0
        %v5473 = vadd.f32 0.0, %v5472
        %v5474 = vpop.f32.mrb[0].mxu0
        %5475 = vmatprep.mubr.f32.mxu0 0.0
        %5476 = vmatmul.mubr.f32.gmra.mrb[0].mxu0 %v5389
        %v5477 = vpop.f32.mrb[0].mxu0
        %v5478 = vadd.f32 0.0, %v5477
        %v5479 = vpop.f32.mrb[0].mxu0
        %5480 = vmatprep.mubr.f32.mxu0 0.0
        %5481 = vmatmul.mubr.f32.gmra.mrb[0].mxu0 %v5391
        %v5482 = vpop.f32.mrb[0].mxu0
        %v5483 = vadd.f32 0.0, %v5482
        %v5484 = vpop.f32.mrb[0].mxu0
        %5485 = vmatprep.mubr.f32.mxu0 0.0
        %5486 = vmatmul.mubr.f32.gmra.mrb[0].mxu0 %v5393
        %v5487 = vpop.f32.mrb[0].mxu0
        %v5488 = vadd.f32 0.0, %v5487
        %v5489 = vpop.f32.mrb[0].mxu0
        %5490 = vmatprep.mubr.f32.mxu0 0.0
        %5491 = vmatmul.mubr.f32.gmra.mrb[0].mxu0 %v5395
        %v5492 = vpop.f32.mrb[0].mxu0
        %v5493 = vadd.f32 0.0, %v5492
        %v5494 = vpop.f32.mrb[0].mxu0
        %5495 = vmatprep.mubr.f32.mxu0 0.0
        %5496 = vmatmul.mubr.f32.gmra.mrb[0].mxu0 %v5397
        %v5497 = vpop.f32.mrb[0].mxu0
        %v5498 = vadd.f32 0.0, %v5497
        %v5499 = vpop.f32.mrb[0].mxu0
        %5500 = vmatprep.mubr.f32.mxu0 0.0
        %5501 = vmatmul.mubr.f32.gmra.mrb[0].mxu0 %v5399
        %v5502 = vpop.f32.mrb[0].mxu0
        %v5503 = vadd.f32 0.0, %v5502
        %v5504 = vpop.f32.mrb[0].mxu0
        %5505 = vdwg.mxu0
        %v5506 = vmul.f32 %v5331, %v5468
        %v5507 = vmul.f32 %v5336, %v5473
        %v5508 = vmul.f32 %v5341, %v5478
        %v5509 = vmul.f32 %v5346, %v5483
        %v5510 = vmul.f32 %v5351, %v5488
        %v5511 = vmul.f32 %v5356, %v5493
        %v5512 = vmul.f32 %v5361, %v5498
        %v5513 = vmul.f32 %v5366, %v5503
        %v5514 = vadd.f32 %v5119, %v5506
        %v5515 = vadd.f32 %v5120, %v5507
        %v5516 = vadd.f32 %v5121, %v5508
        %v5517 = vadd.f32 %v5122, %v5509
        %v5518 = vadd.f32 %v5123, %v5510
        %v5519 = vadd.f32 %v5124, %v5511
        %v5520 = vadd.f32 %v5125, %v5512
        %v5521 = vadd.f32 %v5126, %v5513
        %v5523 = vsel %vm623, %v3160, 0
        %v5526 = vsel %vm623, %v3161, 0
        %v5529 = vsel %vm623, %v3162, 0
        %v5532 = vsel %vm623, %v3163, 0
        %v5535 = vsel %vm623, %v3164, 0
        %v5538 = vsel %vm623, %v3165, 0
        %v5541 = vsel %vm623, %v3166, 0
        %v5544 = vsel %vm623, %v3167, 0
        %5546 = vmatprep.subr.mxu0 0.0
        %5547 = vmatpush1.msra.mxu0 %v597
        %5548 = vmatprep.subr.mxu0 0.0
        %5549 = vmatpush1.msra.mxu0 0.0
        %5550 = vmatprep.subr.mxu0 0.0
        %5551 = vmatpush1.msra.mxu0 0.0
        %5552 = vmatprep.subr.mxu0 0.0
        %5553 = vmatpush1.msra.mxu0 0.0
        %5554 = vmatprep.subr.mxu0 0.0
        %5555 = vmatpush1.msra.mxu0 0.0
        %5556 = vmatprep.subr.mxu0 0.0
        %5557 = vmatpush1.msra.mxu0 0.0
        %5558 = vmatprep.subr.mxu0 0.0
        %5559 = vmatpush1.msra.mxu0 0.0
        %5560 = vmatprep.subr.mxu0 0.0
        %5561 = vmatpush1.msra.mxu0 0.0
        %5562 = vmatprep.subr.mxu0 0.0
        %5563 = vmatpush1.msra.mxu0 0.0
        %5564 = vmatprep.subr.mxu0 0.0
        %5565 = vmatpush1.msra.mxu0 0.0
        %5566 = vmatprep.subr.mxu0 0.0
        %5567 = vmatpush1.msra.mxu0 0.0
        %5568 = vmatprep.subr.mxu0 0.0
        %5569 = vmatpush1.msra.mxu0 0.0
        %5570 = vmatprep.subr.mxu0 0.0
        %5571 = vmatpush1.msra.mxu0 0.0
        %5572 = vmatprep.subr.mxu0 0.0
        %5573 = vmatpush1.msra.mxu0 0.0
        %5574 = vmatprep.subr.mxu0 0.0
        %5575 = vmatpush1.msra.mxu0 0.0
        %5576 = vmatprep.subr.mxu0 0.0
        %5577 = vmatpush1.msra.mxu0 0.0
        %5578 = vmatprep.subr.mxu0 0.0
        %5579 = vmatpush1.msra.mxu0 0.0
        %5580 = vmatprep.subr.mxu0 0.0
        %5581 = vmatpush1.msra.mxu0 0.0
        %5582 = vmatprep.subr.mxu0 0.0
        %5583 = vmatpush1.msra.mxu0 0.0
        %5584 = vmatprep.subr.mxu0 0.0
        %5585 = vmatpush1.msra.mxu0 0.0
        %5586 = vmatprep.subr.mxu0 0.0
        %5587 = vmatpush1.msra.mxu0 0.0
        %5588 = vmatprep.subr.mxu0 0.0
        %5589 = vmatpush1.msra.mxu0 0.0
        %5590 = vmatprep.subr.mxu0 0.0
        %5591 = vmatpush1.msra.mxu0 0.0
        %5592 = vmatprep.subr.mxu0 0.0
        %5593 = vmatpush1.msra.mxu0 0.0
        %5594 = vmatprep.subr.mxu0 0.0
        %5595 = vmatpush1.msra.mxu0 0.0
        %5596 = vmatprep.subr.mxu0 0.0
        %5597 = vmatpush1.msra.mxu0 0.0
        %5598 = vmatprep.subr.mxu0 0.0
        %5599 = vmatpush1.msra.mxu0 0.0
        %5600 = vmatprep.subr.mxu0 0.0
        %5601 = vmatpush1.msra.mxu0 0.0
        %5602 = vmatprep.subr.mxu0 0.0
        %5603 = vmatpush1.msra.mxu0 0.0
        %5604 = vmatprep.subr.mxu0 0.0
        %5605 = vmatpush1.msra.mxu0 0.0
        %5606 = vmatprep.subr.mxu0 0.0
        %5607 = vmatpush1.msra.mxu0 0.0
        %5608 = vmatprep.subr.mxu0 0.0
        %5609 = vmatpush1.msra.mxu0 0.0
        %5610 = vmatprep.mubr.f32.mxu0 0.0
        %5611 = vmatmul.mubr.f32.gmra.mrb[0].mxu0 %v5523
        %v5612 = vpop.f32.mrb[0].mxu0
        %v5613 = vadd.f32 0.0, %v5612
        %v5614 = vpop.f32.mrb[0].mxu0
        %5615 = vmatprep.mubr.f32.mxu0 0.0
        %5616 = vmatmul.mubr.f32.gmra.mrb[0].mxu0 %v5526
        %v5617 = vpop.f32.mrb[0].mxu0
        %v5618 = vadd.f32 0.0, %v5617
        %v5619 = vpop.f32.mrb[0].mxu0
        %5620 = vmatprep.mubr.f32.mxu0 0.0
        %5621 = vmatmul.mubr.f32.gmra.mrb[0].mxu0 %v5529
        %v5622 = vpop.f32.mrb[0].mxu0
        %v5623 = vadd.f32 0.0, %v5622
        %v5624 = vpop.f32.mrb[0].mxu0
        %5625 = vmatprep.mubr.f32.mxu0 0.0
        %5626 = vmatmul.mubr.f32.gmra.mrb[0].mxu0 %v5532
        %v5627 = vpop.f32.mrb[0].mxu0
        %v5628 = vadd.f32 0.0, %v5627
        %v5629 = vpop.f32.mrb[0].mxu0
        %5630 = vmatprep.mubr.f32.mxu0 0.0
        %5631 = vmatmul.mubr.f32.gmra.mrb[0].mxu0 %v5535
        %v5632 = vpop.f32.mrb[0].mxu0
        %v5633 = vadd.f32 0.0, %v5632
        %v5634 = vpop.f32.mrb[0].mxu0
        %5635 = vmatprep.mubr.f32.mxu0 0.0
        %5636 = vmatmul.mubr.f32.gmra.mrb[0].mxu0 %v5538
        %v5637 = vpop.f32.mrb[0].mxu0
        %v5638 = vadd.f32 0.0, %v5637
        %v5639 = vpop.f32.mrb[0].mxu0
        %5640 = vmatprep.mubr.f32.mxu0 0.0
        %5641 = vmatmul.mubr.f32.gmra.mrb[0].mxu0 %v5541
        %v5642 = vpop.f32.mrb[0].mxu0
        %v5643 = vadd.f32 0.0, %v5642
        %v5644 = vpop.f32.mrb[0].mxu0
        %5645 = vmatprep.mubr.f32.mxu0 0.0
        %5646 = vmatmul.mubr.f32.gmra.mrb[0].mxu0 %v5544
        %v5647 = vpop.f32.mrb[0].mxu0
        %v5648 = vadd.f32 0.0, %v5647
        %v5649 = vpop.f32.mrb[0].mxu0
        %5650 = vdwg.mxu0
        %v5651 = vadd.f32 %v5256, %v5613
        %v5652 = vadd.f32 %v5257, %v5618
        %v5653 = vadd.f32 %v5258, %v5623
        %v5654 = vadd.f32 %v5259, %v5628
        %v5655 = vadd.f32 %v5260, %v5633
        %v5656 = vadd.f32 %v5261, %v5638
        %v5657 = vadd.f32 %v5262, %v5643
        %v5658 = vadd.f32 %v5263, %v5648
        %5659 = vmatprep.subr.mxu0 0.0
        %5660 = vmatpush1.msra.mxu0 %v590
        %5661 = vmatprep.subr.mxu0 0.0
        %5662 = vmatpush1.msra.mxu0 0.0
        %5663 = vmatprep.subr.mxu0 0.0
        %5664 = vmatpush1.msra.mxu0 0.0
        %5665 = vmatprep.subr.mxu0 0.0
        %5666 = vmatpush1.msra.mxu0 0.0
        %5667 = vmatprep.subr.mxu0 0.0
        %5668 = vmatpush1.msra.mxu0 0.0
        %5669 = vmatprep.subr.mxu0 0.0
        %5670 = vmatpush1.msra.mxu0 0.0
        %5671 = vmatprep.subr.mxu0 0.0
        %5672 = vmatpush1.msra.mxu0 0.0
        %5673 = vmatprep.subr.mxu0 0.0
        %5674 = vmatpush1.msra.mxu0 0.0
        %5675 = vmatprep.subr.mxu0 0.0
        %5676 = vmatpush1.msra.mxu0 0.0
        %5677 = vmatprep.subr.mxu0 0.0
        %5678 = vmatpush1.msra.mxu0 0.0
        %5679 = vmatprep.subr.mxu0 0.0
        %5680 = vmatpush1.msra.mxu0 0.0
        %5681 = vmatprep.subr.mxu0 0.0
        %5682 = vmatpush1.msra.mxu0 0.0
        %5683 = vmatprep.subr.mxu0 0.0
        %5684 = vmatpush1.msra.mxu0 0.0
        %5685 = vmatprep.subr.mxu0 0.0
        %5686 = vmatpush1.msra.mxu0 0.0
        %5687 = vmatprep.subr.mxu0 0.0
        %5688 = vmatpush1.msra.mxu0 0.0
        %5689 = vmatprep.subr.mxu0 0.0
        %5690 = vmatpush1.msra.mxu0 0.0
        %5691 = vmatprep.subr.mxu0 0.0
        %5692 = vmatpush1.msra.mxu0 0.0
        %5693 = vmatprep.subr.mxu0 0.0
        %5694 = vmatpush1.msra.mxu0 0.0
        %5695 = vmatprep.subr.mxu0 0.0
        %5696 = vmatpush1.msra.mxu0 0.0
        %5697 = vmatprep.subr.mxu0 0.0
        %5698 = vmatpush1.msra.mxu0 0.0
        %5699 = vmatprep.subr.mxu0 0.0
        %5700 = vmatpush1.msra.mxu0 0.0
        %5701 = vmatprep.subr.mxu0 0.0
        %5702 = vmatpush1.msra.mxu0 0.0
        %5703 = vmatprep.subr.mxu0 0.0
        %5704 = vmatpush1.msra.mxu0 0.0
        %5705 = vmatprep.subr.mxu0 0.0
        %5706 = vmatpush1.msra.mxu0 0.0
        %5707 = vmatprep.subr.mxu0 0.0
        %5708 = vmatpush1.msra.mxu0 0.0
        %5709 = vmatprep.subr.mxu0 0.0
        %5710 = vmatpush1.msra.mxu0 0.0
        %5711 = vmatprep.subr.mxu0 0.0
        %5712 = vmatpush1.msra.mxu0 0.0
        %5713 = vmatprep.subr.mxu0 0.0
        %5714 = vmatpush1.msra.mxu0 0.0
        %5715 = vmatprep.subr.mxu0 0.0
        %5716 = vmatpush1.msra.mxu0 0.0
        %5717 = vmatprep.subr.mxu0 0.0
        %5718 = vmatpush1.msra.mxu0 0.0
        %5719 = vmatprep.subr.mxu0 0.0
        %5720 = vmatpush1.msra.mxu0 0.0
        %5721 = vmatprep.subr.mxu0 0.0
        %5722 = vmatpush1.msra.mxu0 0.0
        %5723 = vmatprep.mubr.f32.mxu0 0.0
        %5724 = vmatmul.mubr.f32.gmra.mrb[0].mxu0 %v5523
        %v5725 = vpop.f32.mrb[0].mxu0
        %v5726 = vadd.f32 0.0, %v5725
        %v5727 = vpop.f32.mrb[0].mxu0
        %5728 = vmatprep.mubr.f32.mxu0 0.0
        %5729 = vmatmul.mubr.f32.gmra.mrb[0].mxu0 %v5526
        %v5730 = vpop.f32.mrb[0].mxu0
        %v5731 = vadd.f32 0.0, %v5730
        %v5732 = vpop.f32.mrb[0].mxu0
        %5733 = vmatprep.mubr.f32.mxu0 0.0
        %5734 = vmatmul.mubr.f32.gmra.mrb[0].mxu0 %v5529
        %v5735 = vpop.f32.mrb[0].mxu0
        %v5736 = vadd.f32 0.0, %v5735
        %v5737 = vpop.f32.mrb[0].mxu0
        %5738 = vmatprep.mubr.f32.mxu0 0.0
        %5739 = vmatmul.mubr.f32.gmra.mrb[0].mxu0 %v5532
        %v5740 = vpop.f32.mrb[0].mxu0
        %v5741 = vadd.f32 0.0, %v5740
        %v5742 = vpop.f32.mrb[0].mxu0
        %5743 = vmatprep.mubr.f32.mxu0 0.0
        %5744 = vmatmul.mubr.f32.gmra.mrb[0].mxu0 %v5535
        %v5745 = vpop.f32.mrb[0].mxu0
        %v5746 = vadd.f32 0.0, %v5745
        %v5747 = vpop.f32.mrb[0].mxu0
        %5748 = vmatprep.mubr.f32.mxu0 0.0
        %5749 = vmatmul.mubr.f32.gmra.mrb[0].mxu0 %v5538
        %v5750 = vpop.f32.mrb[0].mxu0
        %v5751 = vadd.f32 0.0, %v5750
        %v5752 = vpop.f32.mrb[0].mxu0
        %5753 = vmatprep.mubr.f32.mxu0 0.0
        %5754 = vmatmul.mubr.f32.gmra.mrb[0].mxu0 %v5541
        %v5755 = vpop.f32.mrb[0].mxu0
        %v5756 = vadd.f32 0.0, %v5755
        %v5757 = vpop.f32.mrb[0].mxu0
        %5758 = vmatprep.mubr.f32.mxu0 0.0
        %5759 = vmatmul.mubr.f32.gmra.mrb[0].mxu0 %v5544
        %v5760 = vpop.f32.mrb[0].mxu0
        %v5761 = vadd.f32 0.0, %v5760
        %v5762 = vpop.f32.mrb[0].mxu0
        %5763 = vdwg.mxu0
        %5764 = vrot.lane.b32.xlu0 %v529, 80
        %v5765 = vpop.permute.xlu0 %5764
        %5766 = vrot.lane.b32.xlu0 %v535, 80
        %v5767 = vpop.permute.xlu0 %5766
        %5768 = vrot.lane.b32.xlu0 %v541, 80
        %v5769 = vpop.permute.xlu0 %5768
        %5770 = vrot.lane.b32.xlu0 %v547, 80
        %v5771 = vpop.permute.xlu0 %5770
        %5772 = vrot.lane.b32.xlu0 %v553, 80
        %v5773 = vpop.permute.xlu0 %5772
        %5774 = vrot.lane.b32.xlu0 %v559, 80
        %v5775 = vpop.permute.xlu0 %5774
        %5776 = vrot.lane.b32.xlu0 %v565, 80
        %v5777 = vpop.permute.xlu0 %5776
        %5778 = vrot.lane.b32.xlu0 %v571, 80
        %v5779 = vpop.permute.xlu0 %5778
        %v5780 = vsel %vm623, %v5765, 0
        %v5782 = vsel %vm623, %v5767, 0
        %v5784 = vsel %vm623, %v5769, 0
        %v5786 = vsel %vm623, %v5771, 0
        %v5788 = vsel %vm623, %v5773, 0
        %v5790 = vsel %vm623, %v5775, 0
        %v5792 = vsel %vm623, %v5777, 0
        %v5794 = vsel %vm623, %v5779, 0
        %5796 = vmatprep.subr.mxu0 0.0
        %5797 = vmatpush1.msra.mxu0 %v581
        %5798 = vmatprep.subr.mxu0 0.0
        %5799 = vmatpush1.msra.mxu0 0.0
        %5800 = vmatprep.subr.mxu0 0.0
        %5801 = vmatpush1.msra.mxu0 0.0
        %5802 = vmatprep.subr.mxu0 0.0
        %5803 = vmatpush1.msra.mxu0 0.0
        %5804 = vmatprep.subr.mxu0 0.0
        %5805 = vmatpush1.msra.mxu0 0.0
        %5806 = vmatprep.subr.mxu0 0.0
        %5807 = vmatpush1.msra.mxu0 0.0
        %5808 = vmatprep.subr.mxu0 0.0
        %5809 = vmatpush1.msra.mxu0 0.0
        %5810 = vmatprep.subr.mxu0 0.0
        %5811 = vmatpush1.msra.mxu0 0.0
        %5812 = vmatprep.subr.mxu0 0.0
        %5813 = vmatpush1.msra.mxu0 0.0
        %5814 = vmatprep.subr.mxu0 0.0
        %5815 = vmatpush1.msra.mxu0 0.0
        %5816 = vmatprep.subr.mxu0 0.0
        %5817 = vmatpush1.msra.mxu0 0.0
        %5818 = vmatprep.subr.mxu0 0.0
        %5819 = vmatpush1.msra.mxu0 0.0
        %5820 = vmatprep.subr.mxu0 0.0
        %5821 = vmatpush1.msra.mxu0 0.0
        %5822 = vmatprep.subr.mxu0 0.0
        %5823 = vmatpush1.msra.mxu0 0.0
        %5824 = vmatprep.subr.mxu0 0.0
        %5825 = vmatpush1.msra.mxu0 0.0
        %5826 = vmatprep.subr.mxu0 0.0
        %5827 = vmatpush1.msra.mxu0 0.0
        %5828 = vmatprep.subr.mxu0 0.0
        %5829 = vmatpush1.msra.mxu0 0.0
        %5830 = vmatprep.subr.mxu0 0.0
        %5831 = vmatpush1.msra.mxu0 0.0
        %5832 = vmatprep.subr.mxu0 0.0
        %5833 = vmatpush1.msra.mxu0 0.0
        %5834 = vmatprep.subr.mxu0 0.0
        %5835 = vmatpush1.msra.mxu0 0.0
        %5836 = vmatprep.subr.mxu0 0.0
        %5837 = vmatpush1.msra.mxu0 0.0
        %5838 = vmatprep.subr.mxu0 0.0
        %5839 = vmatpush1.msra.mxu0 0.0
        %5840 = vmatprep.subr.mxu0 0.0
        %5841 = vmatpush1.msra.mxu0 0.0
        %5842 = vmatprep.subr.mxu0 0.0
        %5843 = vmatpush1.msra.mxu0 0.0
        %5844 = vmatprep.subr.mxu0 0.0
        %5845 = vmatpush1.msra.mxu0 0.0
        %5846 = vmatprep.subr.mxu0 0.0
        %5847 = vmatpush1.msra.mxu0 0.0
        %5848 = vmatprep.subr.mxu0 0.0
        %5849 = vmatpush1.msra.mxu0 0.0
        %5850 = vmatprep.subr.mxu0 0.0
        %5851 = vmatpush1.msra.mxu0 0.0
        %5852 = vmatprep.subr.mxu0 0.0
        %5853 = vmatpush1.msra.mxu0 0.0
        %5854 = vmatprep.subr.mxu0 0.0
        %5855 = vmatpush1.msra.mxu0 0.0
        %5856 = vmatprep.subr.mxu0 0.0
        %5857 = vmatpush1.msra.mxu0 0.0
        %5858 = vmatprep.subr.mxu0 0.0
        %5859 = vmatpush1.msra.mxu0 0.0
        %5860 = vmatprep.mubr.f32.mxu0 0.0
        %5861 = vmatmul.mubr.f32.gmra.mrb[0].mxu0 %v5780
        %v5862 = vpop.f32.mrb[0].mxu0
        %v5863 = vadd.f32 0.0, %v5862
        %v5864 = vpop.f32.mrb[0].mxu0
        %5865 = vmatprep.mubr.f32.mxu0 0.0
        %5866 = vmatmul.mubr.f32.gmra.mrb[0].mxu0 %v5782
        %v5867 = vpop.f32.mrb[0].mxu0
        %v5868 = vadd.f32 0.0, %v5867
        %v5869 = vpop.f32.mrb[0].mxu0
        %5870 = vmatprep.mubr.f32.mxu0 0.0
        %5871 = vmatmul.mubr.f32.gmra.mrb[0].mxu0 %v5784
        %v5872 = vpop.f32.mrb[0].mxu0
        %v5873 = vadd.f32 0.0, %v5872
        %v5874 = vpop.f32.mrb[0].mxu0
        %5875 = vmatprep.mubr.f32.mxu0 0.0
        %5876 = vmatmul.mubr.f32.gmra.mrb[0].mxu0 %v5786
        %v5877 = vpop.f32.mrb[0].mxu0
        %v5878 = vadd.f32 0.0, %v5877
        %v5879 = vpop.f32.mrb[0].mxu0
        %5880 = vmatprep.mubr.f32.mxu0 0.0
        %5881 = vmatmul.mubr.f32.gmra.mrb[0].mxu0 %v5788
        %v5882 = vpop.f32.mrb[0].mxu0
        %v5883 = vadd.f32 0.0, %v5882
        %v5884 = vpop.f32.mrb[0].mxu0
        %5885 = vmatprep.mubr.f32.mxu0 0.0
        %5886 = vmatmul.mubr.f32.gmra.mrb[0].mxu0 %v5790
        %v5887 = vpop.f32.mrb[0].mxu0
        %v5888 = vadd.f32 0.0, %v5887
        %v5889 = vpop.f32.mrb[0].mxu0
        %5890 = vmatprep.mubr.f32.mxu0 0.0
        %5891 = vmatmul.mubr.f32.gmra.mrb[0].mxu0 %v5792
        %v5892 = vpop.f32.mrb[0].mxu0
        %v5893 = vadd.f32 0.0, %v5892
        %v5894 = vpop.f32.mrb[0].mxu0
        %5895 = vmatprep.mubr.f32.mxu0 0.0
        %5896 = vmatmul.mubr.f32.gmra.mrb[0].mxu0 %v5794
        %v5897 = vpop.f32.mrb[0].mxu0
        %v5898 = vadd.f32 0.0, %v5897
        %v5899 = vpop.f32.mrb[0].mxu0
        %5900 = vdwg.mxu0
        %v5901 = vmul.f32 %v5726, %v5863
        %v5902 = vmul.f32 %v5731, %v5868
        %v5903 = vmul.f32 %v5736, %v5873
        %v5904 = vmul.f32 %v5741, %v5878
        %v5905 = vmul.f32 %v5746, %v5883
        %v5906 = vmul.f32 %v5751, %v5888
        %v5907 = vmul.f32 %v5756, %v5893
        %v5908 = vmul.f32 %v5761, %v5898
        %v5909 = vadd.f32 %v5514, %v5901
        %v5910 = vadd.f32 %v5515, %v5902
        %v5911 = vadd.f32 %v5516, %v5903
        %v5912 = vadd.f32 %v5517, %v5904
        %v5913 = vadd.f32 %v5518, %v5905
        %v5914 = vadd.f32 %v5519, %v5906
        %v5915 = vadd.f32 %v5520, %v5907
        %v5916 = vadd.f32 %v5521, %v5908
        %v5918 = vsel %vm623, %v3168, 0
        %v5921 = vsel %vm623, %v3169, 0
        %v5924 = vsel %vm623, %v3170, 0
        %v5927 = vsel %vm623, %v3171, 0
        %v5930 = vsel %vm623, %v3172, 0
        %v5933 = vsel %vm623, %v3173, 0
        %v5936 = vsel %vm623, %v3174, 0
        %v5939 = vsel %vm623, %v3175, 0
        %5941 = vmatprep.subr.mxu0 0.0
        %5942 = vmatpush1.msra.mxu0 %v598
        %5943 = vmatprep.subr.mxu0 0.0
        %5944 = vmatpush1.msra.mxu0 0.0
        %5945 = vmatprep.subr.mxu0 0.0
        %5946 = vmatpush1.msra.mxu0 0.0
        %5947 = vmatprep.subr.mxu0 0.0
        %5948 = vmatpush1.msra.mxu0 0.0
        %5949 = vmatprep.subr.mxu0 0.0
        %5950 = vmatpush1.msra.mxu0 0.0
        %5951 = vmatprep.subr.mxu0 0.0
        %5952 = vmatpush1.msra.mxu0 0.0
        %5953 = vmatprep.subr.mxu0 0.0
        %5954 = vmatpush1.msra.mxu0 0.0
        %5955 = vmatprep.subr.mxu0 0.0
        %5956 = vmatpush1.msra.mxu0 0.0
        %5957 = vmatprep.subr.mxu0 0.0
        %5958 = vmatpush1.msra.mxu0 0.0
        %5959 = vmatprep.subr.mxu0 0.0
        %5960 = vmatpush1.msra.mxu0 0.0
        %5961 = vmatprep.subr.mxu0 0.0
        %5962 = vmatpush1.msra.mxu0 0.0
        %5963 = vmatprep.subr.mxu0 0.0
        %5964 = vmatpush1.msra.mxu0 0.0
        %5965 = vmatprep.subr.mxu0 0.0
        %5966 = vmatpush1.msra.mxu0 0.0
        %5967 = vmatprep.subr.mxu0 0.0
        %5968 = vmatpush1.msra.mxu0 0.0
        %5969 = vmatprep.subr.mxu0 0.0
        %5970 = vmatpush1.msra.mxu0 0.0
        %5971 = vmatprep.subr.mxu0 0.0
        %5972 = vmatpush1.msra.mxu0 0.0
        %5973 = vmatprep.subr.mxu0 0.0
        %5974 = vmatpush1.msra.mxu0 0.0
        %5975 = vmatprep.subr.mxu0 0.0
        %5976 = vmatpush1.msra.mxu0 0.0
        %5977 = vmatprep.subr.mxu0 0.0
        %5978 = vmatpush1.msra.mxu0 0.0
        %5979 = vmatprep.subr.mxu0 0.0
        %5980 = vmatpush1.msra.mxu0 0.0
        %5981 = vmatprep.subr.mxu0 0.0
        %5982 = vmatpush1.msra.mxu0 0.0
        %5983 = vmatprep.subr.mxu0 0.0
        %5984 = vmatpush1.msra.mxu0 0.0
        %5985 = vmatprep.subr.mxu0 0.0
        %5986 = vmatpush1.msra.mxu0 0.0
        %5987 = vmatprep.subr.mxu0 0.0
        %5988 = vmatpush1.msra.mxu0 0.0
        %5989 = vmatprep.subr.mxu0 0.0
        %5990 = vmatpush1.msra.mxu0 0.0
        %5991 = vmatprep.subr.mxu0 0.0
        %5992 = vmatpush1.msra.mxu0 0.0
        %5993 = vmatprep.subr.mxu0 0.0
        %5994 = vmatpush1.msra.mxu0 0.0
        %5995 = vmatprep.subr.mxu0 0.0
        %5996 = vmatpush1.msra.mxu0 0.0
        %5997 = vmatprep.subr.mxu0 0.0
        %5998 = vmatpush1.msra.mxu0 0.0
        %5999 = vmatprep.subr.mxu0 0.0
        %6000 = vmatpush1.msra.mxu0 0.0
        %6001 = vmatprep.subr.mxu0 0.0
        %6002 = vmatpush1.msra.mxu0 0.0
        %6003 = vmatprep.subr.mxu0 0.0
        %6004 = vmatpush1.msra.mxu0 0.0
        %6005 = vmatprep.mubr.f32.mxu0 0.0
        %6006 = vmatmul.mubr.f32.gmra.mrb[0].mxu0 %v5918
        %v6007 = vpop.f32.mrb[0].mxu0
        %v6008 = vadd.f32 0.0, %v6007
        %v6009 = vpop.f32.mrb[0].mxu0
        %6010 = vmatprep.mubr.f32.mxu0 0.0
        %6011 = vmatmul.mubr.f32.gmra.mrb[0].mxu0 %v5921
        %v6012 = vpop.f32.mrb[0].mxu0
        %v6013 = vadd.f32 0.0, %v6012
        %v6014 = vpop.f32.mrb[0].mxu0
        %6015 = vmatprep.mubr.f32.mxu0 0.0
        %6016 = vmatmul.mubr.f32.gmra.mrb[0].mxu0 %v5924
        %v6017 = vpop.f32.mrb[0].mxu0
        %v6018 = vadd.f32 0.0, %v6017
        %v6019 = vpop.f32.mrb[0].mxu0
        %6020 = vmatprep.mubr.f32.mxu0 0.0
        %6021 = vmatmul.mubr.f32.gmra.mrb[0].mxu0 %v5927
        %v6022 = vpop.f32.mrb[0].mxu0
        %v6023 = vadd.f32 0.0, %v6022
        %v6024 = vpop.f32.mrb[0].mxu0
        %6025 = vmatprep.mubr.f32.mxu0 0.0
        %6026 = vmatmul.mubr.f32.gmra.mrb[0].mxu0 %v5930
        %v6027 = vpop.f32.mrb[0].mxu0
        %v6028 = vadd.f32 0.0, %v6027
        %v6029 = vpop.f32.mrb[0].mxu0
        %6030 = vmatprep.mubr.f32.mxu0 0.0
        %6031 = vmatmul.mubr.f32.gmra.mrb[0].mxu0 %v5933
        %v6032 = vpop.f32.mrb[0].mxu0
        %v6033 = vadd.f32 0.0, %v6032
        %v6034 = vpop.f32.mrb[0].mxu0
        %6035 = vmatprep.mubr.f32.mxu0 0.0
        %6036 = vmatmul.mubr.f32.gmra.mrb[0].mxu0 %v5936
        %v6037 = vpop.f32.mrb[0].mxu0
        %v6038 = vadd.f32 0.0, %v6037
        %v6039 = vpop.f32.mrb[0].mxu0
        %6040 = vmatprep.mubr.f32.mxu0 0.0
        %6041 = vmatmul.mubr.f32.gmra.mrb[0].mxu0 %v5939
        %v6042 = vpop.f32.mrb[0].mxu0
        %v6043 = vadd.f32 0.0, %v6042
        %v6044 = vpop.f32.mrb[0].mxu0
        %6045 = vdwg.mxu0
        %v6046 = vadd.f32 %v5651, %v6008
        %v6047 = vadd.f32 %v5652, %v6013
        %v6048 = vadd.f32 %v5653, %v6018
        %v6049 = vadd.f32 %v5654, %v6023
        %v6050 = vadd.f32 %v5655, %v6028
        %v6051 = vadd.f32 %v5656, %v6033
        %v6052 = vadd.f32 %v5657, %v6038
        %v6053 = vadd.f32 %v5658, %v6043
        %6054 = vmatprep.subr.mxu0 0.0
        %6055 = vmatpush1.msra.mxu0 %v590
        %6056 = vmatprep.subr.mxu0 0.0
        %6057 = vmatpush1.msra.mxu0 0.0
        %6058 = vmatprep.subr.mxu0 0.0
        %6059 = vmatpush1.msra.mxu0 0.0
        %6060 = vmatprep.subr.mxu0 0.0
        %6061 = vmatpush1.msra.mxu0 0.0
        %6062 = vmatprep.subr.mxu0 0.0
        %6063 = vmatpush1.msra.mxu0 0.0
        %6064 = vmatprep.subr.mxu0 0.0
        %6065 = vmatpush1.msra.mxu0 0.0
        %6066 = vmatprep.subr.mxu0 0.0
        %6067 = vmatpush1.msra.mxu0 0.0
        %6068 = vmatprep.subr.mxu0 0.0
        %6069 = vmatpush1.msra.mxu0 0.0
        %6070 = vmatprep.subr.mxu0 0.0
        %6071 = vmatpush1.msra.mxu0 0.0
        %6072 = vmatprep.subr.mxu0 0.0
        %6073 = vmatpush1.msra.mxu0 0.0
        %6074 = vmatprep.subr.mxu0 0.0
        %6075 = vmatpush1.msra.mxu0 0.0
        %6076 = vmatprep.subr.mxu0 0.0
        %6077 = vmatpush1.msra.mxu0 0.0
        %6078 = vmatprep.subr.mxu0 0.0
        %6079 = vmatpush1.msra.mxu0 0.0
        %6080 = vmatprep.subr.mxu0 0.0
        %6081 = vmatpush1.msra.mxu0 0.0
        %6082 = vmatprep.subr.mxu0 0.0
        %6083 = vmatpush1.msra.mxu0 0.0
        %6084 = vmatprep.subr.mxu0 0.0
        %6085 = vmatpush1.msra.mxu0 0.0
        %6086 = vmatprep.subr.mxu0 0.0
        %6087 = vmatpush1.msra.mxu0 0.0
        %6088 = vmatprep.subr.mxu0 0.0
        %6089 = vmatpush1.msra.mxu0 0.0
        %6090 = vmatprep.subr.mxu0 0.0
        %6091 = vmatpush1.msra.mxu0 0.0
        %6092 = vmatprep.subr.mxu0 0.0
        %6093 = vmatpush1.msra.mxu0 0.0
        %6094 = vmatprep.subr.mxu0 0.0
        %6095 = vmatpush1.msra.mxu0 0.0
        %6096 = vmatprep.subr.mxu0 0.0
        %6097 = vmatpush1.msra.mxu0 0.0
        %6098 = vmatprep.subr.mxu0 0.0
        %6099 = vmatpush1.msra.mxu0 0.0
        %6100 = vmatprep.subr.mxu0 0.0
        %6101 = vmatpush1.msra.mxu0 0.0
        %6102 = vmatprep.subr.mxu0 0.0
        %6103 = vmatpush1.msra.mxu0 0.0
        %6104 = vmatprep.subr.mxu0 0.0
        %6105 = vmatpush1.msra.mxu0 0.0
        %6106 = vmatprep.subr.mxu0 0.0
        %6107 = vmatpush1.msra.mxu0 0.0
        %6108 = vmatprep.subr.mxu0 0.0
        %6109 = vmatpush1.msra.mxu0 0.0
        %6110 = vmatprep.subr.mxu0 0.0
        %6111 = vmatpush1.msra.mxu0 0.0
        %6112 = vmatprep.subr.mxu0 0.0
        %6113 = vmatpush1.msra.mxu0 0.0
        %6114 = vmatprep.subr.mxu0 0.0
        %6115 = vmatpush1.msra.mxu0 0.0
        %6116 = vmatprep.subr.mxu0 0.0
        %6117 = vmatpush1.msra.mxu0 0.0
        %6118 = vmatprep.mubr.f32.mxu0 0.0
        %6119 = vmatmul.mubr.f32.gmra.mrb[0].mxu0 %v5918
        %v6120 = vpop.f32.mrb[0].mxu0
        %v6121 = vadd.f32 0.0, %v6120
        %v6122 = vpop.f32.mrb[0].mxu0
        %6123 = vmatprep.mubr.f32.mxu0 0.0
        %6124 = vmatmul.mubr.f32.gmra.mrb[0].mxu0 %v5921
        %v6125 = vpop.f32.mrb[0].mxu0
        %v6126 = vadd.f32 0.0, %v6125
        %v6127 = vpop.f32.mrb[0].mxu0
        %6128 = vmatprep.mubr.f32.mxu0 0.0
        %6129 = vmatmul.mubr.f32.gmra.mrb[0].mxu0 %v5924
        %v6130 = vpop.f32.mrb[0].mxu0
        %v6131 = vadd.f32 0.0, %v6130
        %v6132 = vpop.f32.mrb[0].mxu0
        %6133 = vmatprep.mubr.f32.mxu0 0.0
        %6134 = vmatmul.mubr.f32.gmra.mrb[0].mxu0 %v5927
        %v6135 = vpop.f32.mrb[0].mxu0
        %v6136 = vadd.f32 0.0, %v6135
        %v6137 = vpop.f32.mrb[0].mxu0
        %6138 = vmatprep.mubr.f32.mxu0 0.0
        %6139 = vmatmul.mubr.f32.gmra.mrb[0].mxu0 %v5930
        %v6140 = vpop.f32.mrb[0].mxu0
        %v6141 = vadd.f32 0.0, %v6140
        %v6142 = vpop.f32.mrb[0].mxu0
        %6143 = vmatprep.mubr.f32.mxu0 0.0
        %6144 = vmatmul.mubr.f32.gmra.mrb[0].mxu0 %v5933
        %v6145 = vpop.f32.mrb[0].mxu0
        %v6146 = vadd.f32 0.0, %v6145
        %v6147 = vpop.f32.mrb[0].mxu0
        %6148 = vmatprep.mubr.f32.mxu0 0.0
        %6149 = vmatmul.mubr.f32.gmra.mrb[0].mxu0 %v5936
        %v6150 = vpop.f32.mrb[0].mxu0
        %v6151 = vadd.f32 0.0, %v6150
        %v6152 = vpop.f32.mrb[0].mxu0
        %6153 = vmatprep.mubr.f32.mxu0 0.0
        %6154 = vmatmul.mubr.f32.gmra.mrb[0].mxu0 %v5939
        %v6155 = vpop.f32.mrb[0].mxu0
        %v6156 = vadd.f32 0.0, %v6155
        %v6157 = vpop.f32.mrb[0].mxu0
        %6158 = vdwg.mxu0
        %6159 = vrot.lane.b32.xlu0 %v529, 72
        %v6160 = vpop.permute.xlu0 %6159
        %6161 = vrot.lane.b32.xlu0 %v535, 72
        %v6162 = vpop.permute.xlu0 %6161
        %6163 = vrot.lane.b32.xlu0 %v541, 72
        %v6164 = vpop.permute.xlu0 %6163
        %6165 = vrot.lane.b32.xlu0 %v547, 72
        %v6166 = vpop.permute.xlu0 %6165
        %6167 = vrot.lane.b32.xlu0 %v553, 72
        %v6168 = vpop.permute.xlu0 %6167
        %6169 = vrot.lane.b32.xlu0 %v559, 72
        %v6170 = vpop.permute.xlu0 %6169
        %6171 = vrot.lane.b32.xlu0 %v565, 72
        %v6172 = vpop.permute.xlu0 %6171
        %6173 = vrot.lane.b32.xlu0 %v571, 72
        %v6174 = vpop.permute.xlu0 %6173
        %v6175 = vsel %vm623, %v6160, 0
        %v6177 = vsel %vm623, %v6162, 0
        %v6179 = vsel %vm623, %v6164, 0
        %v6181 = vsel %vm623, %v6166, 0
        %v6183 = vsel %vm623, %v6168, 0
        %v6185 = vsel %vm623, %v6170, 0
        %v6187 = vsel %vm623, %v6172, 0
        %v6189 = vsel %vm623, %v6174, 0
        %6191 = vmatprep.subr.mxu0 0.0
        %6192 = vmatpush1.msra.mxu0 %v581
        %6193 = vmatprep.subr.mxu0 0.0
        %6194 = vmatpush1.msra.mxu0 0.0
        %6195 = vmatprep.subr.mxu0 0.0
        %6196 = vmatpush1.msra.mxu0 0.0
        %6197 = vmatprep.subr.mxu0 0.0
        %6198 = vmatpush1.msra.mxu0 0.0
        %6199 = vmatprep.subr.mxu0 0.0
        %6200 = vmatpush1.msra.mxu0 0.0
        %6201 = vmatprep.subr.mxu0 0.0
        %6202 = vmatpush1.msra.mxu0 0.0
        %6203 = vmatprep.subr.mxu0 0.0
        %6204 = vmatpush1.msra.mxu0 0.0
        %6205 = vmatprep.subr.mxu0 0.0
        %6206 = vmatpush1.msra.mxu0 0.0
        %6207 = vmatprep.subr.mxu0 0.0
        %6208 = vmatpush1.msra.mxu0 0.0
        %6209 = vmatprep.subr.mxu0 0.0
        %6210 = vmatpush1.msra.mxu0 0.0
        %6211 = vmatprep.subr.mxu0 0.0
        %6212 = vmatpush1.msra.mxu0 0.0
        %6213 = vmatprep.subr.mxu0 0.0
        %6214 = vmatpush1.msra.mxu0 0.0
        %6215 = vmatprep.subr.mxu0 0.0
        %6216 = vmatpush1.msra.mxu0 0.0
        %6217 = vmatprep.subr.mxu0 0.0
        %6218 = vmatpush1.msra.mxu0 0.0
        %6219 = vmatprep.subr.mxu0 0.0
        %6220 = vmatpush1.msra.mxu0 0.0
        %6221 = vmatprep.subr.mxu0 0.0
        %6222 = vmatpush1.msra.mxu0 0.0
        %6223 = vmatprep.subr.mxu0 0.0
        %6224 = vmatpush1.msra.mxu0 0.0
        %6225 = vmatprep.subr.mxu0 0.0
        %6226 = vmatpush1.msra.mxu0 0.0
        %6227 = vmatprep.subr.mxu0 0.0
        %6228 = vmatpush1.msra.mxu0 0.0
        %6229 = vmatprep.subr.mxu0 0.0
        %6230 = vmatpush1.msra.mxu0 0.0
        %6231 = vmatprep.subr.mxu0 0.0
        %6232 = vmatpush1.msra.mxu0 0.0
        %6233 = vmatprep.subr.mxu0 0.0
        %6234 = vmatpush1.msra.mxu0 0.0
        %6235 = vmatprep.subr.mxu0 0.0
        %6236 = vmatpush1.msra.mxu0 0.0
        %6237 = vmatprep.subr.mxu0 0.0
        %6238 = vmatpush1.msra.mxu0 0.0
        %6239 = vmatprep.subr.mxu0 0.0
        %6240 = vmatpush1.msra.mxu0 0.0
        %6241 = vmatprep.subr.mxu0 0.0
        %6242 = vmatpush1.msra.mxu0 0.0
        %6243 = vmatprep.subr.mxu0 0.0
        %6244 = vmatpush1.msra.mxu0 0.0
        %6245 = vmatprep.subr.mxu0 0.0
        %6246 = vmatpush1.msra.mxu0 0.0
        %6247 = vmatprep.subr.mxu0 0.0
        %6248 = vmatpush1.msra.mxu0 0.0
        %6249 = vmatprep.subr.mxu0 0.0
        %6250 = vmatpush1.msra.mxu0 0.0
        %6251 = vmatprep.subr.mxu0 0.0
        %6252 = vmatpush1.msra.mxu0 0.0
        %6253 = vmatprep.subr.mxu0 0.0
        %6254 = vmatpush1.msra.mxu0 0.0
        %6255 = vmatprep.mubr.f32.mxu0 0.0
        %6256 = vmatmul.mubr.f32.gmra.mrb[0].mxu0 %v6175
        %v6257 = vpop.f32.mrb[0].mxu0
        %v6258 = vadd.f32 0.0, %v6257
        %v6259 = vpop.f32.mrb[0].mxu0
        %6260 = vmatprep.mubr.f32.mxu0 0.0
        %6261 = vmatmul.mubr.f32.gmra.mrb[0].mxu0 %v6177
        %v6262 = vpop.f32.mrb[0].mxu0
        %v6263 = vadd.f32 0.0, %v6262
        %v6264 = vpop.f32.mrb[0].mxu0
        %6265 = vmatprep.mubr.f32.mxu0 0.0
        %6266 = vmatmul.mubr.f32.gmra.mrb[0].mxu0 %v6179
        %v6267 = vpop.f32.mrb[0].mxu0
        %v6268 = vadd.f32 0.0, %v6267
        %v6269 = vpop.f32.mrb[0].mxu0
        %6270 = vmatprep.mubr.f32.mxu0 0.0
        %6271 = vmatmul.mubr.f32.gmra.mrb[0].mxu0 %v6181
        %v6272 = vpop.f32.mrb[0].mxu0
        %v6273 = vadd.f32 0.0, %v6272
        %v6274 = vpop.f32.mrb[0].mxu0
        %6275 = vmatprep.mubr.f32.mxu0 0.0
        %6276 = vmatmul.mubr.f32.gmra.mrb[0].mxu0 %v6183
        %v6277 = vpop.f32.mrb[0].mxu0
        %v6278 = vadd.f32 0.0, %v6277
        %v6279 = vpop.f32.mrb[0].mxu0
        %6280 = vmatprep.mubr.f32.mxu0 0.0
        %6281 = vmatmul.mubr.f32.gmra.mrb[0].mxu0 %v6185
        %v6282 = vpop.f32.mrb[0].mxu0
        %v6283 = vadd.f32 0.0, %v6282
        %v6284 = vpop.f32.mrb[0].mxu0
        %6285 = vmatprep.mubr.f32.mxu0 0.0
        %6286 = vmatmul.mubr.f32.gmra.mrb[0].mxu0 %v6187
        %v6287 = vpop.f32.mrb[0].mxu0
        %v6288 = vadd.f32 0.0, %v6287
        %v6289 = vpop.f32.mrb[0].mxu0
        %6290 = vmatprep.mubr.f32.mxu0 0.0
        %6291 = vmatmul.mubr.f32.gmra.mrb[0].mxu0 %v6189
        %v6292 = vpop.f32.mrb[0].mxu0
        %v6293 = vadd.f32 0.0, %v6292
        %v6294 = vpop.f32.mrb[0].mxu0
        %6295 = vdwg.mxu0
        %v6296 = vmul.f32 %v6121, %v6258
        %v6297 = vmul.f32 %v6126, %v6263
        %v6298 = vmul.f32 %v6131, %v6268
        %v6299 = vmul.f32 %v6136, %v6273
        %v6300 = vmul.f32 %v6141, %v6278
        %v6301 = vmul.f32 %v6146, %v6283
        %v6302 = vmul.f32 %v6151, %v6288
        %v6303 = vmul.f32 %v6156, %v6293
        %v6304 = vadd.f32 %v5909, %v6296
        %v6305 = vadd.f32 %v5910, %v6297
        %v6306 = vadd.f32 %v5911, %v6298
        %v6307 = vadd.f32 %v5912, %v6299
        %v6308 = vadd.f32 %v5913, %v6300
        %v6309 = vadd.f32 %v5914, %v6301
        %v6310 = vadd.f32 %v5915, %v6302
        %v6311 = vadd.f32 %v5916, %v6303
        %6312 = vst.msk [vmem:[%s409] sm:$0xff] %vm435, %v6046
        %6313 = vst.msk [vmem:[%s409 + $0x8] sm:$0xff] %vm435, %v6047
        %6314 = vst.msk [vmem:[%s409 + $0x10] sm:$0xff] %vm435, %v6048
        %6315 = vst.msk [vmem:[%s409 + $0x18] sm:$0xff] %vm435, %v6049
        %6316 = vst.msk [vmem:[%s409 + $0x20] sm:$0xff] %vm435, %v6050
        %6317 = vst.msk [vmem:[%s409 + $0x28] sm:$0xff] %vm435, %v6051
        %6318 = vst.msk [vmem:[%s409 + $0x30] sm:$0xff] %vm435, %v6052
        %6319 = vst.msk [vmem:[%s409 + $0x38] sm:$0xff] %vm435, %v6053
        %v6320 = vld [vmem:[#allocation7] sm:$0xff]
        %v6321 = vld [vmem:[#allocation7 + $0x8] sm:$0xff]
        %v6322 = vld [vmem:[#allocation7 + $0x10] sm:$0xff]
        %v6323 = vld [vmem:[#allocation7 + $0x18] sm:$0xff]
        %v6324 = vld [vmem:[#allocation7 + $0x20] sm:$0xff]
        %v6325 = vld [vmem:[#allocation7 + $0x28] sm:$0xff]
        %v6326 = vld [vmem:[#allocation7 + $0x30] sm:$0xff]
        %v6327 = vld [vmem:[#allocation7 + $0x38] sm:$0xff]
        %v6329 = vsel %vm435, %v6304, 0
        %v6332 = vsel %vm435, %v6305, 0
        %v6335 = vsel %vm435, %v6306, 0
        %v6338 = vsel %vm435, %v6307, 0
        %v6341 = vsel %vm435, %v6308, 0
        %v6344 = vsel %vm435, %v6309, 0
        %v6347 = vsel %vm435, %v6310, 0
        %v6350 = vsel %vm435, %v6311, 0
        %6352 = vmatprep.subr.mxu0 0.0
        %6353 = vmatpush1.msra.mxu0 %v6320
        %6354 = vmatprep.subr.mxu0 0.0
        %6355 = vmatpush1.msra.mxu0 %v6321
        %6356 = vmatprep.subr.mxu0 0.0
        %6357 = vmatpush1.msra.mxu0 %v6322
        %6358 = vmatprep.subr.mxu0 0.0
        %6359 = vmatpush1.msra.mxu0 %v6323
        %6360 = vmatprep.subr.mxu0 0.0
        %6361 = vmatpush1.msra.mxu0 %v6324
        %6362 = vmatprep.subr.mxu0 0.0
        %6363 = vmatpush1.msra.mxu0 %v6325
        %6364 = vmatprep.subr.mxu0 0.0
        %6365 = vmatpush1.msra.mxu0 %v6326
        %6366 = vmatprep.subr.mxu0 0.0
        %6367 = vmatpush1.msra.mxu0 %v6327
        %6368 = vmatprep.subr.mxu0 0.0
        %6369 = vmatpush1.msra.mxu0 0.0
        %6370 = vmatprep.subr.mxu0 0.0
        %6371 = vmatpush1.msra.mxu0 0.0
        %6372 = vmatprep.subr.mxu0 0.0
        %6373 = vmatpush1.msra.mxu0 0.0
        %6374 = vmatprep.subr.mxu0 0.0
        %6375 = vmatpush1.msra.mxu0 0.0
        %6376 = vmatprep.subr.mxu0 0.0
        %6377 = vmatpush1.msra.mxu0 0.0
        %6378 = vmatprep.subr.mxu0 0.0
        %6379 = vmatpush1.msra.mxu0 0.0
        %6380 = vmatprep.subr.mxu0 0.0
        %6381 = vmatpush1.msra.mxu0 0.0
        %6382 = vmatprep.subr.mxu0 0.0
        %6383 = vmatpush1.msra.mxu0 0.0
        %6384 = vmatprep.subr.mxu0 0.0
        %6385 = vmatpush1.msra.mxu0 0.0
        %6386 = vmatprep.subr.mxu0 0.0
        %6387 = vmatpush1.msra.mxu0 0.0
        %6388 = vmatprep.subr.mxu0 0.0
        %6389 = vmatpush1.msra.mxu0 0.0
        %6390 = vmatprep.subr.mxu0 0.0
        %6391 = vmatpush1.msra.mxu0 0.0
        %6392 = vmatprep.subr.mxu0 0.0
        %6393 = vmatpush1.msra.mxu0 0.0
        %6394 = vmatprep.subr.mxu0 0.0
        %6395 = vmatpush1.msra.mxu0 0.0
        %6396 = vmatprep.subr.mxu0 0.0
        %6397 = vmatpush1.msra.mxu0 0.0
        %6398 = vmatprep.subr.mxu0 0.0
        %6399 = vmatpush1.msra.mxu0 0.0
        %6400 = vmatprep.subr.mxu0 0.0
        %6401 = vmatpush1.msra.mxu0 0.0
        %6402 = vmatprep.subr.mxu0 0.0
        %6403 = vmatpush1.msra.mxu0 0.0
        %6404 = vmatprep.subr.mxu0 0.0
        %6405 = vmatpush1.msra.mxu0 0.0
        %6406 = vmatprep.subr.mxu0 0.0
        %6407 = vmatpush1.msra.mxu0 0.0
        %6408 = vmatprep.subr.mxu0 0.0
        %6409 = vmatpush1.msra.mxu0 0.0
        %6410 = vmatprep.subr.mxu0 0.0
        %6411 = vmatpush1.msra.mxu0 0.0
        %6412 = vmatprep.subr.mxu0 0.0
        %6413 = vmatpush1.msra.mxu0 0.0
        %6414 = vmatprep.subr.mxu0 0.0
        %6415 = vmatpush1.msra.mxu0 0.0
        %6416 = vmatprep.mubr.f32.mxu0 0.0
        %6417 = vmatmul.mubr.f32.gmra.mrb[0].mxu0 %v6329
        %v6418 = vpop.f32.mrb[0].mxu0
        %v6419 = vadd.f32 0.0, %v6418
        %v6420 = vpop.f32.mrb[0].mxu0
        %6421 = vmatprep.mubr.f32.mxu0 0.0
        %6422 = vmatmul.mubr.f32.gmra.mrb[0].mxu0 %v6332
        %v6423 = vpop.f32.mrb[0].mxu0
        %v6424 = vadd.f32 0.0, %v6423
        %v6425 = vpop.f32.mrb[0].mxu0
        %6426 = vmatprep.mubr.f32.mxu0 0.0
        %6427 = vmatmul.mubr.f32.gmra.mrb[0].mxu0 %v6335
        %v6428 = vpop.f32.mrb[0].mxu0
        %v6429 = vadd.f32 0.0, %v6428
        %v6430 = vpop.f32.mrb[0].mxu0
        %6431 = vmatprep.mubr.f32.mxu0 0.0
        %6432 = vmatmul.mubr.f32.gmra.mrb[0].mxu0 %v6338
        %v6433 = vpop.f32.mrb[0].mxu0
        %v6434 = vadd.f32 0.0, %v6433
        %v6435 = vpop.f32.mrb[0].mxu0
        %6436 = vmatprep.mubr.f32.mxu0 0.0
        %6437 = vmatmul.mubr.f32.gmra.mrb[0].mxu0 %v6341
        %v6438 = vpop.f32.mrb[0].mxu0
        %v6439 = vadd.f32 0.0, %v6438
        %v6440 = vpop.f32.mrb[0].mxu0
        %6441 = vmatprep.mubr.f32.mxu0 0.0
        %6442 = vmatmul.mubr.f32.gmra.mrb[0].mxu0 %v6344
        %v6443 = vpop.f32.mrb[0].mxu0
        %v6444 = vadd.f32 0.0, %v6443
        %v6445 = vpop.f32.mrb[0].mxu0
        %6446 = vmatprep.mubr.f32.mxu0 0.0
        %6447 = vmatmul.mubr.f32.gmra.mrb[0].mxu0 %v6347
        %v6448 = vpop.f32.mrb[0].mxu0
        %v6449 = vadd.f32 0.0, %v6448
        %v6450 = vpop.f32.mrb[0].mxu0
        %6451 = vmatprep.mubr.f32.mxu0 0.0
        %6452 = vmatmul.mubr.f32.gmra.mrb[0].mxu0 %v6350
        %v6453 = vpop.f32.mrb[0].mxu0
        %v6454 = vadd.f32 0.0, %v6453
        %v6455 = vpop.f32.mrb[0].mxu0
        %6456 = vdwg.mxu0
        %6457 = vst.msk [vmem:[%s395] sm:$0xff] %vm435, %v6419
        %6458 = vst.msk [vmem:[%s395 + $0x8] sm:$0xff] %vm435, %v6424
        %6459 = vst.msk [vmem:[%s395 + $0x10] sm:$0xff] %vm435, %v6429
        %6460 = vst.msk [vmem:[%s395 + $0x18] sm:$0xff] %vm435, %v6434
        %6461 = vst.msk [vmem:[%s395 + $0x20] sm:$0xff] %vm435, %v6439
        %6462 = vst.msk [vmem:[%s395 + $0x28] sm:$0xff] %vm435, %v6444
        %6463 = vst.msk [vmem:[%s395 + $0x30] sm:$0xff] %vm435, %v6449
        %6464 = vst.msk [vmem:[%s395 + $0x38] sm:$0xff] %vm435, %v6454
        %s6465 = sand.u32 %s189, 1
        %s6466 = scalar_lea.sflag [#allocation4], %s6465
        %s6467 = sand.u32 %s189, 1
        %s6468 = smul.addr %s6467, 64
        %s6469 = scalar_lea.vmem [#allocation13], %s6468
        %s6470 = smul.u32 8, %s29
        %p6471 = scmp.lt.s32.totalorder %s6470, 15
        %s6472 = scalar_select %p6471, %s6470, 15
        %s6473 = smul.addr %s6472, 8
        %s6474 = scalar_lea.vmem %s8, %s6473
        // Predicated region
        $region73: #{standard_attention.1} parent=47 // pred_check
          %p6475 = pneg %p199
        $region74: #{standard_attention.1} parent=47 // pred_check_branch
          %6477 = sbr.rel (%p6475) target = $region76
        $region75: #{standard_attention.1} parent=47 // pred_region
          %s6478 = smul.u32 8, %s29
          %s6480 = ssub.s32 1024, 1024
          %6481 = vsyncadd %s6466, %s6480
          %s6482 = smul.addr %s6478, 128
          %s6483 = scalar_lea.hbm %s7, %s6482
          %s6484 = sshll.u32 %s6469, 4
          %s6485 = int_to_ptr.vmem [resolvable:$true] %s6484
          %6490 = dma.vmem_to_hbm [thread:$0]  %s6485, 1024, %s6483, %s6466, 128, 128, 8
        $region76: #{standard_attention.1} parent=47 // pred_fallthru
          _
        // Predicated region
        $region77: #{standard_attention.1} parent=47 // pred_check
          %p6491 = pneg %p225
        $region78: #{standard_attention.1} parent=47 // pred_check_branch
          %6493 = sbr.rel (%p6491) target = $region80
        $region79: #{standard_attention.1} parent=47 // pred_region
          %s6494 = smul.u32 8, %s29
        $region80: #{standard_attention.1} parent=47 // pred_fallthru
          _
      $region48: #{standard_attention.1} parent=5 // pred_fallthru
        _
      %p6495 = scmp.le.s32.totalorder 2, %s24
      // Predicated region
      $region81: #{standard_attention.1} parent=5 // pred_check
        %p6496 = pneg %p6495
      $region82: #{standard_attention.1} parent=5 // pred_check_branch
        %6498 = sbr.rel (%p6496) target = $region84
      $region83: #{standard_attention.1} parent=5 // pred_region
        %s6499 = ssub.s32 %s24, 2
        // Predicated region
        $region85: #{standard_attention.1} parent=83 // pred_check
          %p6500 = pneg %p205
        $region86: #{standard_attention.1} parent=83 // pred_check_branch
          %6502 = sbr.rel (%p6500) target = $region88
        $region87: #{standard_attention.1} parent=83 // pred_region
          %s6503 = sand.u32 %s190, 1
          %s6504 = scalar_lea.sflag [#allocation4], %s6503
          %s6505 = sand.u32 %s190, 1
          %s6506 = smul.addr %s6505, 64
          %s6507 = scalar_lea.vmem [#allocation13], %s6506
          %6508 = dma.done %s6504, 1024
        $region88: #{standard_attention.1} parent=83 // pred_fallthru
          _
        // Predicated region
        $region89: #{standard_attention.1} parent=83 // pred_check
          %p6509 = pneg %p231
        $region90: #{standard_attention.1} parent=83 // pred_check_branch
          %6511 = sbr.rel (%p6509) target = $region92
        $region91: #{standard_attention.1} parent=83 // pred_region
          %s6512 = smul.u32 8, %s30
          %p6513 = scmp.lt.s32.totalorder %s6512, 15
          %s6514 = scalar_select %p6513, %s6512, 15
          %s6515 = smul.addr %s6514, 8
          %s6516 = scalar_lea.vmem %s8, %s6515
        $region92: #{standard_attention.1} parent=83 // pred_fallthru
          _
      $region84: #{standard_attention.1} parent=5 // pred_fallthru
        _
    $region6: #{standard_attention.1} parent=1 // loop_footer
      %s28 = sadd.s32 1, %s24
    $region7: #{standard_attention.1} parent=1 // loop_footer_branch
      %23 = sbr.rel target = $region3
    $region8: #{standard_attention.1} parent=1 // loop_exit
      _
    %6517 = vsyncpa [#allocation3], 1
    %s6518 = scalar_lea.sflag [#allocation3], 1
    %6519 = vsyncpa %s6518, 1
    %6520 = vsyncpa [#allocation6], 1
    %6521 = vsyncpa [#allocation9], 1
    %6522 = vsyncpa [#allocation12], 1
    %6523 = vsyncpa [#allocation4], 1
    %s6524 = scalar_lea.sflag [#allocation4], 1
    %6525 = vsyncpa %s6524, 1

</llo_original>
